<compile_context>
chip_gen: v7x
topology: tpu7x:2x2x1
jax: 0.10.0
libtpu: 0.0.40
codegen_flags: <defaults>
</compile_context>

<pallas_src>
import functools

import jax
import jax.numpy as jnp
from jax import lax
from jax.experimental import pallas as pl
from jax.experimental.pallas import tpu as pltpu


def _vmem_limit_bytes():
    # v5e/v6e have 128 MiB physical VMEM -> allow up to 96 MiB; v7x has 64 MiB -> cap at 48 MiB.
    try:
        cap = int(pltpu.get_tpu_info().vmem_capacity_bytes)
        return int(min(cap * 3 // 4, 96 * 1024 * 1024))
    except Exception:
        return 48 * 1024 * 1024


# --------------------------------------------------------------------------------------
# Fused kernel: BN1+ReLU -> conv1(3x3, stride) -> BN2+ReLU -> conv2(3x3)
#               + shortcut(1x1 conv + BN) + residual add + SE gate, per batch element.
# --------------------------------------------------------------------------------------
def _resnet_block_kernel(x_ref, rsel_ref, w1_ref, w2_ref, ws_ref,
                         s1_ref, h1_ref, s2_ref, h2_ref, ss_ref, hs_ref,
                         sw1_ref, sw2_ref, o_ref, apad_ref, tpad_ref, *,
                         stride, H, W, C_in, C_out):
    f32 = jnp.float32
    H_out, W_out = H // stride, W // stride
    HW, HWo = H * W, H_out * W_out

    # ---- NCHW-flat -> channel-last inside the kernel (HBM input stays NCHW & lane-dense) ----
    x_cf = x_ref[...].astype(f32)                                  # (C_in, H*W)
    x_cl = x_cf.T                                                  # (H*W, C_in)

    # ---- BN1 + ReLU (f32 element-wise) ----
    a1 = jnp.maximum(x_cl * s1_ref[...] + h1_ref[...], 0.0)       # (H*W, C_in)

    # ---- zero-padded activation slab, bf16, built in VMEM (no HBM padding pass) ----
    apad_ref[...] = jnp.zeros_like(apad_ref)
    apad_ref[1:H + 1, 1:W + 1, :] = a1.reshape(H, W, C_in).astype(apad_ref.dtype)

    # ---- conv1 (3x3): 9 accumulating MXU matmuls, no patch concat.  Evaluated at unit stride
    #      over the full H x W grid; stride-2 subsampling is a dense 0/1 selection matmul. ----
    acc1 = jnp.zeros((HW, C_out), f32)
    for kh in range(3):
        for kw in range(3):
            lhs = apad_ref[kh:kh + H, kw:kw + W, :].reshape(HW, C_in)          # bf16
            acc1 = acc1 + jnp.dot(lhs, w1_ref[kh * 3 + kw],
                                  preferred_element_type=f32)

    if stride == 2:
        rsel = rsel_ref[...]                                       # (HWo, HW) 0/1 selection
        acc1 = jnp.dot(rsel, acc1, preferred_element_type=f32)     # subsample conv1 output
        x_sc = jnp.dot(rsel, x_cl, preferred_element_type=f32)     # subsample shortcut input
    else:
        x_sc = x_cl

    # ---- BN2 + ReLU -> second padded slab (bf16) ----
    t = jnp.maximum(acc1 * s2_ref[...] + h2_ref[...], 0.0)         # (HWo, C_out)
    tpad_ref[...] = jnp.zeros_like(tpad_ref)
    tpad_ref[1:H_out + 1, 1:W_out + 1, :] = (
        t.reshape(H_out, W_out, C_out).astype(tpad_ref.dtype))

    # ---- shortcut (1x1 conv + BN) initialises the accumulator; conv2 accumulates on top ----
    sc = jnp.dot(x_sc.astype(jnp.bfloat16), ws_ref[...], preferred_element_type=f32)
    acc2 = sc * ss_ref[...] + hs_ref[...]                          # (HWo, C_out)
    for kh in range(3):
        for kw in range(3):
            lhs = tpad_ref[kh:kh + H_out, kw:kw + W_out, :].reshape(HWo, C_out)
            acc2 = acc2 + jnp.dot(lhs, w2_ref[kh * 3 + kw],
                                  preferred_element_type=f32)
    u = acc2                                                       # residual sum, f32

    # ---- Squeeze-Excitation: global mean + 2-layer MLP + sigmoid, once per batch element ----
    pooled = jnp.sum(u, axis=0, keepdims=True) * (1.0 / float(HWo))            # (1, C_out)
    z = jnp.maximum(jnp.dot(pooled, sw1_ref[...], preferred_element_type=f32), 0.0)
    gate = jax.nn.sigmoid(jnp.dot(z, sw2_ref[...], preferred_element_type=f32))

    # ---- gate and write the output directly in NCHW layout (lanes = H_out*W_out, dense) ----
    y = u * gate                                                   # (HWo, C_out)
    o_ref[...] = y.T.astype(o_ref.dtype)                           # (C_out, HWo)


# --------------------------------------------------------------------------------------
# parameters & wrapper
# --------------------------------------------------------------------------------------
def bn_scale_shift(p, eps=1e-5):
    scale = p["gamma"] / jnp.sqrt(p["var"] + eps)
    shift = p["beta"] - p["mean"] * scale
    return scale, shift


def _conv3x3_to_kmat(w_oihw):
    # (O, I, 3, 3) -> (9, I, O), with k = kh*3 + kw, matching the in-kernel loop order.
    O, I, KH, KW = w_oihw.shape
    return jnp.transpose(w_oihw, (2, 3, 1, 0)).reshape(KH * KW, I, O).astype(jnp.bfloat16)


def _stride2_selection(H, W, dtype=jnp.float32):
    # (H_out*W_out, H*W) 0/1 matrix selecting spatial positions (2i, 2j) from a row-major H*W grid.
    H_out, W_out = H // 2, W // 2
    m = jnp.arange(H_out * W_out)
    src = (2 * (m // W_out)) * W + 2 * (m % W_out)
    return (src[:, None] == jnp.arange(H * W)[None, :]).astype(dtype)


def resnet_block_forward(x_nchw, params, *, stride=1):
    if stride not in (1, 2):
        raise ValueError("stride must be 1 or 2")
    B, C_in, H, W = x_nchw.shape
    if H % stride or W % stride:
        raise ValueError("H and W must be divisible by stride")
    C_out = params["conv1"].shape[0]
    Cr = params["se_w1"].shape[0]
    H_out, W_out = H // stride, W // stride
    HW, HWo = H * W, H_out * W_out

    s1, h1 = bn_scale_shift(params["bn1"])
    s2, h2 = bn_scale_shift(params["bn2"])
    ss, hs = bn_scale_shift(params["bn_s"])

    w1 = _conv3x3_to_kmat(params["conv1"])                                     # (9, C_in,  C_out)
    w2 = _conv3x3_to_kmat(params["conv2"])                                     # (9, C_out, C_out)
    ws = jnp.transpose(params["conv_s"][:, :, 0, 0], (1, 0)).astype(jnp.bfloat16)  # (C_in, C_out)
    sw1 = params["se_w1"].T.astype(jnp.float32)                                # (C_out, Cr)
    sw2 = params["se_w2"].T.astype(jnp.float32)                                # (Cr, C_out)

    rsel = (_stride2_selection(H, W) if stride == 2
            else jnp.zeros((1, 1), jnp.float32))                               # dummy if stride==1

    # Free reshape: x stays in NCHW layout in HBM, lane dim = H*W (dense).
    x_flat = x_nchw.reshape(B, C_in, HW).astype(jnp.float32)

    kernel = functools.partial(_resnet_block_kernel, stride=stride,
                               H=H, W=W, C_in=C_in, C_out=C_out)

    def _const_spec(shape):
        if len(shape) == 2:
            return pl.BlockSpec(shape, lambda b: (0, 0))
        return pl.BlockSpec(shape, lambda b: (0, 0, 0))

    out_flat = pl.pallas_call(
        kernel,
        out_shape=jax.ShapeDtypeStruct((B, C_out, HWo), jnp.float32),
        grid=(B,),
        in_specs=[
            pl.BlockSpec((None, C_in, HW), lambda b: (b, 0, 0)),   # x, per batch element
            _const_spec(tuple(rsel.shape)),                        # stride-2 selection (or dummy)
            _const_spec((9, C_in, C_out)),                         # conv1 weights
            _const_spec((9, C_out, C_out)),                        # conv2 weights
            _const_spec((C_in, C_out)),                            # shortcut 1x1 weights
            _const_spec((1, C_in)), _const_spec((1, C_in)),        # BN1 scale / shift
            _const_spec((1, C_out)), _const_spec((1, C_out)),      # BN2 scale / shift
            _const_spec((1, C_out)), _const_spec((1, C_out)),      # BN_s scale / shift
            _const_spec((C_out, Cr)), _const_spec((Cr, C_out)),    # SE MLP weights
        ],
        out_specs=pl.BlockSpec((None, C_out, HWo), lambda b: (b, 0, 0)),
        scratch_shapes=[
            pltpu.VMEM((H + 2, W + 2, C_in), jnp.bfloat16),        # padded BN1+ReLU slab
            pltpu.VMEM((H_out + 2, W_out + 2, C_out), jnp.bfloat16),  # padded BN2+ReLU slab
        ],
        compiler_params=pltpu.CompilerParams(
            dimension_semantics=("parallel",),
            vmem_limit_bytes=_vmem_limit_bytes()),
    )(x_flat, rsel, w1, w2, ws,
      s1.reshape(1, C_in), h1.reshape(1, C_in),
      s2.reshape(1, C_out), h2.reshape(1, C_out),
      ss.reshape(1, C_out), hs.reshape(1, C_out),
      sw1, sw2)

    return out_flat.reshape(B, C_out, H_out, W_out)                # free reshape (NCHW)


def init_params(key, in_c, out_c, r=8):
    ks = jax.random.split(key, 8)

    def conv_w(k, o, i, kh, kw):
        return jax.random.normal(k, (o, i, kh, kw), jnp.float32) / jnp.sqrt(i * kh * kw)

    def lin_w(k, o, i):
        return jax.random.normal(k, (o, i), jnp.float32) / jnp.sqrt(i)

    def bn(k, c):
        k1, k2, k3, k4 = jax.random.split(k, 4)
        return dict(
            gamma=1.0 + 0.1 * jax.random.normal(k1, (c,), jnp.float32),
            beta=0.1 * jax.random.normal(k2, (c,), jnp.float32),
            mean=0.1 * jax.random.normal(k3, (c,), jnp.float32),
            var=1.0 + 0.1 * jax.random.uniform(k4, (c,), jnp.float32),
        )

    return dict(
        bn1=bn(ks[0], in_c),
        conv1=conv_w(ks[1], out_c, in_c, 3, 3),
        bn2=bn(ks[2], out_c),
        conv2=conv_w(ks[3], out_c, out_c, 3, 3),
        conv_s=conv_w(ks[4], out_c, in_c, 1, 1),
        bn_s=bn(ks[5], out_c),
        se_w1=lin_w(ks[6], out_c // r, out_c),   # PyTorch Linear: (out_features, in_features)
        se_w2=lin_w(ks[7], out_c, out_c // r),
    )


# --------------------------------------------------------------------------------------
# pure-JAX reference (mirrors the kernel's bf16 matmul / f32 elementwise policy)
# --------------------------------------------------------------------------------------
def reference_forward(x_nchw, params, stride):
    f32, bf16 = jnp.float32, jnp.bfloat16
    x = jnp.transpose(x_nchw, (0, 2, 3, 1)).astype(f32)            # NHWC

    def bn(t, p):
        s, h = bn_scale_shift(p)
        return t * s + h

    def conv(t, w, st, pad):
        wt = jnp.transpose(w, (2, 3, 1, 0)).astype(bf16)
        return lax.conv_general_dilated(
            t.astype(bf16), wt, (st, st), [(pad, pad), (pad, pad)],
            dimension_numbers=("NHWC", "HWIO", "NHWC"),
            preferred_element_type=f32)

    a1 = jnp.maximum(bn(x, params["bn1"]), 0.0)
    t1 = conv(a1, params["conv1"], stride, 1)
    a2 = jnp.maximum(bn(t1, params["bn2"]), 0.0)
    t2 = conv(a2, params["conv2"], 1, 1)
    s = bn(conv(x, params["conv_s"], stride, 0), params["bn_s"])
    u = t2 + s
    pooled = jnp.mean(u, axis=(1, 2))                              # (B, C)
    z = jnp.maximum(pooled @ params["se_w1"].T, 0.0)
    g = jax.nn.sigmoid(z @ params["se_w2"].T)
    y = u * g[:, None, None, :]
    return jnp.transpose(y, (0, 3, 1, 2))


if __name__ == "__main__":
    B, in_c, out_c, H, W = 2, 8, 16, 16, 16
    key = jax.random.PRNGKey(0)
    kx, kp = jax.random.split(key)
    x = jax.random.normal(kx, (B, in_c, H, W), jnp.float32)
    params = init_params(kp, in_c, out_c)

    for stride in (1, 2):
        fwd = jax.jit(functools.partial(resnet_block_forward, stride=stride))
        out = jax.block_until_ready(fwd(x, params))
        assert out.shape == (B, out_c, H // stride, W // stride), out.shape
        ref = reference_forward(x, params, stride)
        max_err = float(jnp.max(jnp.abs(out - ref)))
        if not bool(jnp.allclose(out, ref, atol=2e-2, rtol=2e-2)):
            raise AssertionError(
                f"stride={stride}: Pallas output mismatch vs reference, max abs err = {max_err}")
    print("KERNEL_OK")
</pallas_src>

<mosaic_0001>
module attributes {stable_mosaic.version = 11 : i64} {
  func.func @_resnet_block_kernel(%arg0: i32, %arg1: memref<1x8x256xf32, #tpu.memory_space<vmem>>, %arg2: memref<1x1xf32, #tpu.memory_space<vmem>>, %arg3: memref<9x8x16xbf16, #tpu.memory_space<vmem>>, %arg4: memref<9x16x16xbf16, #tpu.memory_space<vmem>>, %arg5: memref<8x16xbf16, #tpu.memory_space<vmem>>, %arg6: memref<1x8xf32, #tpu.memory_space<vmem>>, %arg7: memref<1x8xf32, #tpu.memory_space<vmem>>, %arg8: memref<1x16xf32, #tpu.memory_space<vmem>>, %arg9: memref<1x16xf32, #tpu.memory_space<vmem>>, %arg10: memref<1x16xf32, #tpu.memory_space<vmem>>, %arg11: memref<1x16xf32, #tpu.memory_space<vmem>>, %arg12: memref<16x2xf32, #tpu.memory_space<vmem>>, %arg13: memref<2x16xf32, #tpu.memory_space<vmem>>, %arg14: memref<1x16x256xf32, #tpu.memory_space<vmem>>, %arg15: memref<18x18x8xbf16, #tpu.memory_space<vmem>>, %arg16: memref<18x18x16xbf16, #tpu.memory_space<vmem>>) attributes {dimension_semantics = [#tpu.dimension_semantics<parallel>], iteration_bounds = array<i64: 2>, scalar_prefetch = 0 : i64, scratch_operands = 2 : i64, tpu.core_type = #tpu.core_type<tc>, window_params = [{transform_indices = @transform_0, window_bounds = array<i64: 1, 8, 256>}, {pipeline_mode = #tpu.pipeline_mode<synchronous>, transform_indices = @transform_1, window_bounds = array<i64: 1, 1>}, {pipeline_mode = #tpu.pipeline_mode<synchronous>, transform_indices = @transform_2, window_bounds = array<i64: 9, 8, 16>}, {pipeline_mode = #tpu.pipeline_mode<synchronous>, transform_indices = @transform_3, window_bounds = array<i64: 9, 16, 16>}, {pipeline_mode = #tpu.pipeline_mode<synchronous>, transform_indices = @transform_4, window_bounds = array<i64: 8, 16>}, {pipeline_mode = #tpu.pipeline_mode<synchronous>, transform_indices = @transform_5, window_bounds = array<i64: 1, 8>}, {pipeline_mode = #tpu.pipeline_mode<synchronous>, transform_indices = @transform_6, window_bounds = array<i64: 1, 8>}, {pipeline_mode = #tpu.pipeline_mode<synchronous>, transform_indices = @transform_7, window_bounds = array<i64: 1, 16>}, {pipeline_mode = #tpu.pipeline_mode<synchronous>, transform_indices = @transform_8, window_bounds = array<i64: 1, 16>}, {pipeline_mode = #tpu.pipeline_mode<synchronous>, transform_indices = @transform_9, window_bounds = array<i64: 1, 16>}, {pipeline_mode = #tpu.pipeline_mode<synchronous>, transform_indices = @transform_10, window_bounds = array<i64: 1, 16>}, {pipeline_mode = #tpu.pipeline_mode<synchronous>, transform_indices = @transform_11, window_bounds = array<i64: 16, 2>}, {pipeline_mode = #tpu.pipeline_mode<synchronous>, transform_indices = @transform_12, window_bounds = array<i64: 2, 16>}, {transform_indices = @transform_13, window_bounds = array<i64: 1, 16, 256>}]} {
    %c0 = arith.constant 0 : index
    %c0_0 = arith.constant 0 : index
    %c0_1 = arith.constant 0 : index
    %0 = vector.load %arg1[%c0, %c0_0, %c0_1] : memref<1x8x256xf32, #tpu.memory_space<vmem>>, vector<1x8x256xf32>
    %1 = vector.shape_cast %0 : vector<1x8x256xf32> to vector<8x256xf32>
    %2 = tpu.transpose %1, [1, 0] : vector<8x256xf32> -> vector<256x8xf32>
    %c0_2 = arith.constant 0 : index
    %c0_3 = arith.constant 0 : index
    %3 = vector.load %arg6[%c0_2, %c0_3] : memref<1x8xf32, #tpu.memory_space<vmem>>, vector<1x8xf32>
    %4 = vector.broadcast %3 : vector<1x8xf32> to vector<256x8xf32>
    %5 = arith.mulf %2, %4 : vector<256x8xf32>
    %c0_4 = arith.constant 0 : index
    %c0_5 = arith.constant 0 : index
    %6 = vector.load %arg7[%c0_4, %c0_5] : memref<1x8xf32, #tpu.memory_space<vmem>>, vector<1x8xf32>
    %7 = vector.broadcast %6 : vector<1x8xf32> to vector<256x8xf32>
    %8 = arith.addf %5, %7 : vector<256x8xf32>
    %cst = arith.constant 0.000000e+00 : f32
    %9 = vector.broadcast %cst : f32 to vector<256x8xf32>
    %10 = arith.maximumf %8, %9 : vector<256x8xf32>
    %cst_6 = arith.constant 0.000000e+00 : bf16
    %11 = vector.broadcast %cst_6 : bf16 to vector<18x18x8xbf16>
    %c0_7 = arith.constant 0 : index
    %c0_8 = arith.constant 0 : index
    %c0_9 = arith.constant 0 : index
    %12 = vector.load %arg15[%c0_7, %c0_8, %c0_9] : memref<18x18x8xbf16, #tpu.memory_space<vmem>>, vector<18x18x8xbf16>
    tpu.vector_store %arg15[%c0_7, %c0_8, %c0_9], %11 {strides = array<i32>} : memref<18x18x8xbf16, #tpu.memory_space<vmem>>, vector<18x18x8xbf16>,
    %13 = vector.shape_cast %10 : vector<256x8xf32> to vector<16x16x8xf32>
    %14 = arith.truncf %13 : vector<16x16x8xf32> to vector<16x16x8xbf16>
    %c1 = arith.constant 1 : index
    %c1_10 = arith.constant 1 : index
    %c0_11 = arith.constant 0 : index
    %15 = vector.load %arg15[%c1, %c1_10, %c0_11] : memref<18x18x8xbf16, #tpu.memory_space<vmem>>, vector<16x16x8xbf16>
    tpu.vector_store %arg15[%c1, %c1_10, %c0_11], %14 {strides = array<i32>} : memref<18x18x8xbf16, #tpu.memory_space<vmem>>, vector<16x16x8xbf16>,
    %cst_12 = arith.constant 0.000000e+00 : f32
    %16 = vector.broadcast %cst_12 : f32 to vector<256x16xf32>
    %c0_13 = arith.constant 0 : index
    %c0_14 = arith.constant 0 : index
    %c0_15 = arith.constant 0 : index
    %17 = vector.load %arg15[%c0_13, %c0_14, %c0_15] : memref<18x18x8xbf16, #tpu.memory_space<vmem>>, vector<16x16x8xbf16>
    %18 = vector.shape_cast %17 : vector<16x16x8xbf16> to vector<256x8xbf16>
    %c0_16 = arith.constant 0 : index
    %c0_17 = arith.constant 0 : index
    %c0_18 = arith.constant 0 : index
    %19 = vector.load %arg3[%c0_16, %c0_17, %c0_18] : memref<9x8x16xbf16, #tpu.memory_space<vmem>>, vector<1x8x16xbf16>
    %20 = vector.shape_cast %19 : vector<1x8x16xbf16> to vector<8x16xbf16>
    %cst_19 = arith.constant dense<0.000000e+00> : vector<256x16xf32>
    %21 = tpu.matmul %18, %20, %cst_19 {dimension_numbers = #tpu.dot_dimension_numbers<[1], [0], [0], [1], [0, 0, 1, 1], [], []>} : vector<256x8xbf16>, vector<8x16xbf16>, vector<256x16xf32> -> vector<256x16xf32>
    %22 = arith.addf %16, %21 : vector<256x16xf32>
    %c0_20 = arith.constant 0 : index
    %c1_21 = arith.constant 1 : index
    %c0_22 = arith.constant 0 : index
    %23 = vector.load %arg15[%c0_20, %c1_21, %c0_22] : memref<18x18x8xbf16, #tpu.memory_space<vmem>>, vector<16x16x8xbf16>
    %24 = vector.shape_cast %23 : vector<16x16x8xbf16> to vector<256x8xbf16>
    %c1_23 = arith.constant 1 : index
    %c0_24 = arith.constant 0 : index
    %c0_25 = arith.constant 0 : index
    %25 = vector.load %arg3[%c1_23, %c0_24, %c0_25] : memref<9x8x16xbf16, #tpu.memory_space<vmem>>, vector<1x8x16xbf16>
    %26 = vector.shape_cast %25 : vector<1x8x16xbf16> to vector<8x16xbf16>
    %cst_26 = arith.constant dense<0.000000e+00> : vector<256x16xf32>
    %27 = tpu.matmul %24, %26, %cst_26 {dimension_numbers = #tpu.dot_dimension_numbers<[1], [0], [0], [1], [0, 0, 1, 1], [], []>} : vector<256x8xbf16>, vector<8x16xbf16>, vector<256x16xf32> -> vector<256x16xf32>
    %28 = arith.addf %22, %27 : vector<256x16xf32>
    %c0_27 = arith.constant 0 : index
    %c2 = arith.constant 2 : index
    %c0_28 = arith.constant 0 : index
    %29 = vector.load %arg15[%c0_27, %c2, %c0_28] : memref<18x18x8xbf16, #tpu.memory_space<vmem>>, vector<16x16x8xbf16>
    %30 = vector.shape_cast %29 : vector<16x16x8xbf16> to vector<256x8xbf16>
    %c2_29 = arith.constant 2 : index
    %c0_30 = arith.constant 0 : index
    %c0_31 = arith.constant 0 : index
    %31 = vector.load %arg3[%c2_29, %c0_30, %c0_31] : memref<9x8x16xbf16, #tpu.memory_space<vmem>>, vector<1x8x16xbf16>
    %32 = vector.shape_cast %31 : vector<1x8x16xbf16> to vector<8x16xbf16>
    %cst_32 = arith.constant dense<0.000000e+00> : vector<256x16xf32>
    %33 = tpu.matmul %30, %32, %cst_32 {dimension_numbers = #tpu.dot_dimension_numbers<[1], [0], [0], [1], [0, 0, 1, 1], [], []>} : vector<256x8xbf16>, vector<8x16xbf16>, vector<256x16xf32> -> vector<256x16xf32>
    %34 = arith.addf %28, %33 : vector<256x16xf32>
    %c1_33 = arith.constant 1 : index
    %c0_34 = arith.constant 0 : index
    %c0_35 = arith.constant 0 : index
    %35 = vector.load %arg15[%c1_33, %c0_34, %c0_35] : memref<18x18x8xbf16, #tpu.memory_space<vmem>>, vector<16x16x8xbf16>
    %36 = vector.shape_cast %35 : vector<16x16x8xbf16> to vector<256x8xbf16>
    %c3 = arith.constant 3 : index
    %c0_36 = arith.constant 0 : index
    %c0_37 = arith.constant 0 : index
    %37 = vector.load %arg3[%c3, %c0_36, %c0_37] : memref<9x8x16xbf16, #tpu.memory_space<vmem>>, vector<1x8x16xbf16>
    %38 = vector.shape_cast %37 : vector<1x8x16xbf16> to vector<8x16xbf16>
    %cst_38 = arith.constant dense<0.000000e+00> : vector<256x16xf32>
    %39 = tpu.matmul %36, %38, %cst_38 {dimension_numbers = #tpu.dot_dimension_numbers<[1], [0], [0], [1], [0, 0, 1, 1], [], []>} : vector<256x8xbf16>, vector<8x16xbf16>, vector<256x16xf32> -> vector<256x16xf32>
    %40 = arith.addf %34, %39 : vector<256x16xf32>
    %c1_39 = arith.constant 1 : index
    %c1_40 = arith.constant 1 : index
    %c0_41 = arith.constant 0 : index
    %41 = vector.load %arg15[%c1_39, %c1_40, %c0_41] : memref<18x18x8xbf16, #tpu.memory_space<vmem>>, vector<16x16x8xbf16>
    %42 = vector.shape_cast %41 : vector<16x16x8xbf16> to vector<256x8xbf16>
    %c4 = arith.constant 4 : index
    %c0_42 = arith.constant 0 : index
    %c0_43 = arith.constant 0 : index
    %43 = vector.load %arg3[%c4, %c0_42, %c0_43] : memref<9x8x16xbf16, #tpu.memory_space<vmem>>, vector<1x8x16xbf16>
    %44 = vector.shape_cast %43 : vector<1x8x16xbf16> to vector<8x16xbf16>
    %cst_44 = arith.constant dense<0.000000e+00> : vector<256x16xf32>
    %45 = tpu.matmul %42, %44, %cst_44 {dimension_numbers = #tpu.dot_dimension_numbers<[1], [0], [0], [1], [0, 0, 1, 1], [], []>} : vector<256x8xbf16>, vector<8x16xbf16>, vector<256x16xf32> -> vector<256x16xf32>
    %46 = arith.addf %40, %45 : vector<256x16xf32>
    %c1_45 = arith.constant 1 : index
    %c2_46 = arith.constant 2 : index
    %c0_47 = arith.constant 0 : index
    %47 = vector.load %arg15[%c1_45, %c2_46, %c0_47] : memref<18x18x8xbf16, #tpu.memory_space<vmem>>, vector<16x16x8xbf16>
    %48 = vector.shape_cast %47 : vector<16x16x8xbf16> to vector<256x8xbf16>
    %c5 = arith.constant 5 : index
    %c0_48 = arith.constant 0 : index
    %c0_49 = arith.constant 0 : index
    %49 = vector.load %arg3[%c5, %c0_48, %c0_49] : memref<9x8x16xbf16, #tpu.memory_space<vmem>>, vector<1x8x16xbf16>
    %50 = vector.shape_cast %49 : vector<1x8x16xbf16> to vector<8x16xbf16>
    %cst_50 = arith.constant dense<0.000000e+00> : vector<256x16xf32>
    %51 = tpu.matmul %48, %50, %cst_50 {dimension_numbers = #tpu.dot_dimension_numbers<[1], [0], [0], [1], [0, 0, 1, 1], [], []>} : vector<256x8xbf16>, vector<8x16xbf16>, vector<256x16xf32> -> vector<256x16xf32>
    %52 = arith.addf %46, %51 : vector<256x16xf32>
    %c2_51 = arith.constant 2 : index
    %c0_52 = arith.constant 0 : index
    %c0_53 = arith.constant 0 : index
    %53 = vector.load %arg15[%c2_51, %c0_52, %c0_53] : memref<18x18x8xbf16, #tpu.memory_space<vmem>>, vector<16x16x8xbf16>
    %54 = vector.shape_cast %53 : vector<16x16x8xbf16> to vector<256x8xbf16>
    %c6 = arith.constant 6 : index
    %c0_54 = arith.constant 0 : index
    %c0_55 = arith.constant 0 : index
    %55 = vector.load %arg3[%c6, %c0_54, %c0_55] : memref<9x8x16xbf16, #tpu.memory_space<vmem>>, vector<1x8x16xbf16>
    %56 = vector.shape_cast %55 : vector<1x8x16xbf16> to vector<8x16xbf16>
    %cst_56 = arith.constant dense<0.000000e+00> : vector<256x16xf32>
    %57 = tpu.matmul %54, %56, %cst_56 {dimension_numbers = #tpu.dot_dimension_numbers<[1], [0], [0], [1], [0, 0, 1, 1], [], []>} : vector<256x8xbf16>, vector<8x16xbf16>, vector<256x16xf32> -> vector<256x16xf32>
    %58 = arith.addf %52, %57 : vector<256x16xf32>
    %c2_57 = arith.constant 2 : index
    %c1_58 = arith.constant 1 : index
    %c0_59 = arith.constant 0 : index
    %59 = vector.load %arg15[%c2_57, %c1_58, %c0_59] : memref<18x18x8xbf16, #tpu.memory_space<vmem>>, vector<16x16x8xbf16>
    %60 = vector.shape_cast %59 : vector<16x16x8xbf16> to vector<256x8xbf16>
    %c7 = arith.constant 7 : index
    %c0_60 = arith.constant 0 : index
    %c0_61 = arith.constant 0 : index
    %61 = vector.load %arg3[%c7, %c0_60, %c0_61] : memref<9x8x16xbf16, #tpu.memory_space<vmem>>, vector<1x8x16xbf16>
    %62 = vector.shape_cast %61 : vector<1x8x16xbf16> to vector<8x16xbf16>
    %cst_62 = arith.constant dense<0.000000e+00> : vector<256x16xf32>
    %63 = tpu.matmul %60, %62, %cst_62 {dimension_numbers = #tpu.dot_dimension_numbers<[1], [0], [0], [1], [0, 0, 1, 1], [], []>} : vector<256x8xbf16>, vector<8x16xbf16>, vector<256x16xf32> -> vector<256x16xf32>
    %64 = arith.addf %58, %63 : vector<256x16xf32>
    %c2_63 = arith.constant 2 : index
    %c2_64 = arith.constant 2 : index
    %c0_65 = arith.constant 0 : index
    %65 = vector.load %arg15[%c2_63, %c2_64, %c0_65] : memref<18x18x8xbf16, #tpu.memory_space<vmem>>, vector<16x16x8xbf16>
    %66 = vector.shape_cast %65 : vector<16x16x8xbf16> to vector<256x8xbf16>
    %c8 = arith.constant 8 : index
    %c0_66 = arith.constant 0 : index
    %c0_67 = arith.constant 0 : index
    %67 = vector.load %arg3[%c8, %c0_66, %c0_67] : memref<9x8x16xbf16, #tpu.memory_space<vmem>>, vector<1x8x16xbf16>
    %68 = vector.shape_cast %67 : vector<1x8x16xbf16> to vector<8x16xbf16>
    %cst_68 = arith.constant dense<0.000000e+00> : vector<256x16xf32>
    %69 = tpu.matmul %66, %68, %cst_68 {dimension_numbers = #tpu.dot_dimension_numbers<[1], [0], [0], [1], [0, 0, 1, 1], [], []>} : vector<256x8xbf16>, vector<8x16xbf16>, vector<256x16xf32> -> vector<256x16xf32>
    %70 = arith.addf %64, %69 : vector<256x16xf32>
    %c0_69 = arith.constant 0 : index
    %c0_70 = arith.constant 0 : index
    %71 = vector.load %arg8[%c0_69, %c0_70] : memref<1x16xf32, #tpu.memory_space<vmem>>, vector<1x16xf32>
    %72 = vector.broadcast %71 : vector<1x16xf32> to vector<256x16xf32>
    %73 = arith.mulf %70, %72 : vector<256x16xf32>
    %c0_71 = arith.constant 0 : index
    %c0_72 = arith.constant 0 : index
    %74 = vector.load %arg9[%c0_71, %c0_72] : memref<1x16xf32, #tpu.memory_space<vmem>>, vector<1x16xf32>
    %75 = vector.broadcast %74 : vector<1x16xf32> to vector<256x16xf32>
    %76 = arith.addf %73, %75 : vector<256x16xf32>
    %cst_73 = arith.constant 0.000000e+00 : f32
    %77 = vector.broadcast %cst_73 : f32 to vector<256x16xf32>
    %78 = arith.maximumf %76, %77 : vector<256x16xf32>
    %cst_74 = arith.constant 0.000000e+00 : bf16
    %79 = vector.broadcast %cst_74 : bf16 to vector<18x18x16xbf16>
    %c0_75 = arith.constant 0 : index
    %c0_76 = arith.constant 0 : index
    %c0_77 = arith.constant 0 : index
    %80 = vector.load %arg16[%c0_75, %c0_76, %c0_77] : memref<18x18x16xbf16, #tpu.memory_space<vmem>>, vector<18x18x16xbf16>
    tpu.vector_store %arg16[%c0_75, %c0_76, %c0_77], %79 {strides = array<i32>} : memref<18x18x16xbf16, #tpu.memory_space<vmem>>, vector<18x18x16xbf16>,
    %81 = vector.shape_cast %78 : vector<256x16xf32> to vector<16x16x16xf32>
    %82 = arith.truncf %81 : vector<16x16x16xf32> to vector<16x16x16xbf16>
    %c1_78 = arith.constant 1 : index
    %c1_79 = arith.constant 1 : index
    %c0_80 = arith.constant 0 : index
    %83 = vector.load %arg16[%c1_78, %c1_79, %c0_80] : memref<18x18x16xbf16, #tpu.memory_space<vmem>>, vector<16x16x16xbf16>
    tpu.vector_store %arg16[%c1_78, %c1_79, %c0_80], %82 {strides = array<i32>} : memref<18x18x16xbf16, #tpu.memory_space<vmem>>, vector<16x16x16xbf16>,
    %84 = arith.truncf %2 : vector<256x8xf32> to vector<256x8xbf16>
    %c0_81 = arith.constant 0 : index
    %c0_82 = arith.constant 0 : index
    %85 = vector.load %arg5[%c0_81, %c0_82] : memref<8x16xbf16, #tpu.memory_space<vmem>>, vector<8x16xbf16>
    %cst_83 = arith.constant dense<0.000000e+00> : vector<256x16xf32>
    %86 = tpu.matmul %84, %85, %cst_83 {dimension_numbers = #tpu.dot_dimension_numbers<[1], [0], [0], [1], [0, 0, 1, 1], [], []>} : vector<256x8xbf16>, vector<8x16xbf16>, vector<256x16xf32> -> vector<256x16xf32>
    %c0_84 = arith.constant 0 : index
    %c0_85 = arith.constant 0 : index
    %87 = vector.load %arg10[%c0_84, %c0_85] : memref<1x16xf32, #tpu.memory_space<vmem>>, vector<1x16xf32>
    %88 = vector.broadcast %87 : vector<1x16xf32> to vector<256x16xf32>
    %89 = arith.mulf %86, %88 : vector<256x16xf32>
    %c0_86 = arith.constant 0 : index
    %c0_87 = arith.constant 0 : index
    %90 = vector.load %arg11[%c0_86, %c0_87] : memref<1x16xf32, #tpu.memory_space<vmem>>, vector<1x16xf32>
    %91 = vector.broadcast %90 : vector<1x16xf32> to vector<256x16xf32>
    %92 = arith.addf %89, %91 : vector<256x16xf32>
    %c0_88 = arith.constant 0 : index
    %c0_89 = arith.constant 0 : index
    %c0_90 = arith.constant 0 : index
    %93 = vector.load %arg16[%c0_88, %c0_89, %c0_90] : memref<18x18x16xbf16, #tpu.memory_space<vmem>>, vector<16x16x16xbf16>
    %94 = vector.shape_cast %93 : vector<16x16x16xbf16> to vector<256x16xbf16>
    %c0_91 = arith.constant 0 : index
    %c0_92 = arith.constant 0 : index
    %c0_93 = arith.constant 0 : index
    %95 = vector.load %arg4[%c0_91, %c0_92, %c0_93] : memref<9x16x16xbf16, #tpu.memory_space<vmem>>, vector<1x16x16xbf16>
    %96 = vector.shape_cast %95 : vector<1x16x16xbf16> to vector<16x16xbf16>
    %cst_94 = arith.constant dense<0.000000e+00> : vector<256x16xf32>
    %97 = tpu.matmul %94, %96, %cst_94 {dimension_numbers = #tpu.dot_dimension_numbers<[1], [0], [0], [1], [0, 0, 1, 1], [], []>} : vector<256x16xbf16>, vector<16x16xbf16>, vector<256x16xf32> -> vector<256x16xf32>
    %98 = arith.addf %92, %97 : vector<256x16xf32>
    %c0_95 = arith.constant 0 : index
    %c1_96 = arith.constant 1 : index
    %c0_97 = arith.constant 0 : index
    %99 = vector.load %arg16[%c0_95, %c1_96, %c0_97] : memref<18x18x16xbf16, #tpu.memory_space<vmem>>, vector<16x16x16xbf16>
    %100 = vector.shape_cast %99 : vector<16x16x16xbf16> to vector<256x16xbf16>
    %c1_98 = arith.constant 1 : index
    %c0_99 = arith.constant 0 : index
    %c0_100 = arith.constant 0 : index
    %101 = vector.load %arg4[%c1_98, %c0_99, %c0_100] : memref<9x16x16xbf16, #tpu.memory_space<vmem>>, vector<1x16x16xbf16>
    %102 = vector.shape_cast %101 : vector<1x16x16xbf16> to vector<16x16xbf16>
    %cst_101 = arith.constant dense<0.000000e+00> : vector<256x16xf32>
    %103 = tpu.matmul %100, %102, %cst_101 {dimension_numbers = #tpu.dot_dimension_numbers<[1], [0], [0], [1], [0, 0, 1, 1], [], []>} : vector<256x16xbf16>, vector<16x16xbf16>, vector<256x16xf32> -> vector<256x16xf32>
    %104 = arith.addf %98, %103 : vector<256x16xf32>
    %c0_102 = arith.constant 0 : index
    %c2_103 = arith.constant 2 : index
    %c0_104 = arith.constant 0 : index
    %105 = vector.load %arg16[%c0_102, %c2_103, %c0_104] : memref<18x18x16xbf16, #tpu.memory_space<vmem>>, vector<16x16x16xbf16>
    %106 = vector.shape_cast %105 : vector<16x16x16xbf16> to vector<256x16xbf16>
    %c2_105 = arith.constant 2 : index
    %c0_106 = arith.constant 0 : index
    %c0_107 = arith.constant 0 : index
    %107 = vector.load %arg4[%c2_105, %c0_106, %c0_107] : memref<9x16x16xbf16, #tpu.memory_space<vmem>>, vector<1x16x16xbf16>
    %108 = vector.shape_cast %107 : vector<1x16x16xbf16> to vector<16x16xbf16>
    %cst_108 = arith.constant dense<0.000000e+00> : vector<256x16xf32>
    %109 = tpu.matmul %106, %108, %cst_108 {dimension_numbers = #tpu.dot_dimension_numbers<[1], [0], [0], [1], [0, 0, 1, 1], [], []>} : vector<256x16xbf16>, vector<16x16xbf16>, vector<256x16xf32> -> vector<256x16xf32>
    %110 = arith.addf %104, %109 : vector<256x16xf32>
    %c1_109 = arith.constant 1 : index
    %c0_110 = arith.constant 0 : index
    %c0_111 = arith.constant 0 : index
    %111 = vector.load %arg16[%c1_109, %c0_110, %c0_111] : memref<18x18x16xbf16, #tpu.memory_space<vmem>>, vector<16x16x16xbf16>
    %112 = vector.shape_cast %111 : vector<16x16x16xbf16> to vector<256x16xbf16>
    %c3_112 = arith.constant 3 : index
    %c0_113 = arith.constant 0 : index
    %c0_114 = arith.constant 0 : index
    %113 = vector.load %arg4[%c3_112, %c0_113, %c0_114] : memref<9x16x16xbf16, #tpu.memory_space<vmem>>, vector<1x16x16xbf16>
    %114 = vector.shape_cast %113 : vector<1x16x16xbf16> to vector<16x16xbf16>
    %cst_115 = arith.constant dense<0.000000e+00> : vector<256x16xf32>
    %115 = tpu.matmul %112, %114, %cst_115 {dimension_numbers = #tpu.dot_dimension_numbers<[1], [0], [0], [1], [0, 0, 1, 1], [], []>} : vector<256x16xbf16>, vector<16x16xbf16>, vector<256x16xf32> -> vector<256x16xf32>
    %116 = arith.addf %110, %115 : vector<256x16xf32>
    %c1_116 = arith.constant 1 : index
    %c1_117 = arith.constant 1 : index
    %c0_118 = arith.constant 0 : index
    %117 = vector.load %arg16[%c1_116, %c1_117, %c0_118] : memref<18x18x16xbf16, #tpu.memory_space<vmem>>, vector<16x16x16xbf16>
    %118 = vector.shape_cast %117 : vector<16x16x16xbf16> to vector<256x16xbf16>
    %c4_119 = arith.constant 4 : index
    %c0_120 = arith.constant 0 : index
    %c0_121 = arith.constant 0 : index
    %119 = vector.load %arg4[%c4_119, %c0_120, %c0_121] : memref<9x16x16xbf16, #tpu.memory_space<vmem>>, vector<1x16x16xbf16>
    %120 = vector.shape_cast %119 : vector<1x16x16xbf16> to vector<16x16xbf16>
    %cst_122 = arith.constant dense<0.000000e+00> : vector<256x16xf32>
    %121 = tpu.matmul %118, %120, %cst_122 {dimension_numbers = #tpu.dot_dimension_numbers<[1], [0], [0], [1], [0, 0, 1, 1], [], []>} : vector<256x16xbf16>, vector<16x16xbf16>, vector<256x16xf32> -> vector<256x16xf32>
    %122 = arith.addf %116, %121 : vector<256x16xf32>
    %c1_123 = arith.constant 1 : index
    %c2_124 = arith.constant 2 : index
    %c0_125 = arith.constant 0 : index
    %123 = vector.load %arg16[%c1_123, %c2_124, %c0_125] : memref<18x18x16xbf16, #tpu.memory_space<vmem>>, vector<16x16x16xbf16>
    %124 = vector.shape_cast %123 : vector<16x16x16xbf16> to vector<256x16xbf16>
    %c5_126 = arith.constant 5 : index
    %c0_127 = arith.constant 0 : index
    %c0_128 = arith.constant 0 : index
    %125 = vector.load %arg4[%c5_126, %c0_127, %c0_128] : memref<9x16x16xbf16, #tpu.memory_space<vmem>>, vector<1x16x16xbf16>
    %126 = vector.shape_cast %125 : vector<1x16x16xbf16> to vector<16x16xbf16>
    %cst_129 = arith.constant dense<0.000000e+00> : vector<256x16xf32>
    %127 = tpu.matmul %124, %126, %cst_129 {dimension_numbers = #tpu.dot_dimension_numbers<[1], [0], [0], [1], [0, 0, 1, 1], [], []>} : vector<256x16xbf16>, vector<16x16xbf16>, vector<256x16xf32> -> vector<256x16xf32>
    %128 = arith.addf %122, %127 : vector<256x16xf32>
    %c2_130 = arith.constant 2 : index
    %c0_131 = arith.constant 0 : index
    %c0_132 = arith.constant 0 : index
    %129 = vector.load %arg16[%c2_130, %c0_131, %c0_132] : memref<18x18x16xbf16, #tpu.memory_space<vmem>>, vector<16x16x16xbf16>
    %130 = vector.shape_cast %129 : vector<16x16x16xbf16> to vector<256x16xbf16>
    %c6_133 = arith.constant 6 : index
    %c0_134 = arith.constant 0 : index
    %c0_135 = arith.constant 0 : index
    %131 = vector.load %arg4[%c6_133, %c0_134, %c0_135] : memref<9x16x16xbf16, #tpu.memory_space<vmem>>, vector<1x16x16xbf16>
    %132 = vector.shape_cast %131 : vector<1x16x16xbf16> to vector<16x16xbf16>
    %cst_136 = arith.constant dense<0.000000e+00> : vector<256x16xf32>
    %133 = tpu.matmul %130, %132, %cst_136 {dimension_numbers = #tpu.dot_dimension_numbers<[1], [0], [0], [1], [0, 0, 1, 1], [], []>} : vector<256x16xbf16>, vector<16x16xbf16>, vector<256x16xf32> -> vector<256x16xf32>
    %134 = arith.addf %128, %133 : vector<256x16xf32>
    %c2_137 = arith.constant 2 : index
    %c1_138 = arith.constant 1 : index
    %c0_139 = arith.constant 0 : index
    %135 = vector.load %arg16[%c2_137, %c1_138, %c0_139] : memref<18x18x16xbf16, #tpu.memory_space<vmem>>, vector<16x16x16xbf16>
    %136 = vector.shape_cast %135 : vector<16x16x16xbf16> to vector<256x16xbf16>
    %c7_140 = arith.constant 7 : index
    %c0_141 = arith.constant 0 : index
    %c0_142 = arith.constant 0 : index
    %137 = vector.load %arg4[%c7_140, %c0_141, %c0_142] : memref<9x16x16xbf16, #tpu.memory_space<vmem>>, vector<1x16x16xbf16>
    %138 = vector.shape_cast %137 : vector<1x16x16xbf16> to vector<16x16xbf16>
    %cst_143 = arith.constant dense<0.000000e+00> : vector<256x16xf32>
    %139 = tpu.matmul %136, %138, %cst_143 {dimension_numbers = #tpu.dot_dimension_numbers<[1], [0], [0], [1], [0, 0, 1, 1], [], []>} : vector<256x16xbf16>, vector<16x16xbf16>, vector<256x16xf32> -> vector<256x16xf32>
    %140 = arith.addf %134, %139 : vector<256x16xf32>
    %c2_144 = arith.constant 2 : index
    %c2_145 = arith.constant 2 : index
    %c0_146 = arith.constant 0 : index
    %141 = vector.load %arg16[%c2_144, %c2_145, %c0_146] : memref<18x18x16xbf16, #tpu.memory_space<vmem>>, vector<16x16x16xbf16>
    %142 = vector.shape_cast %141 : vector<16x16x16xbf16> to vector<256x16xbf16>
    %c8_147 = arith.constant 8 : index
    %c0_148 = arith.constant 0 : index
    %c0_149 = arith.constant 0 : index
    %143 = vector.load %arg4[%c8_147, %c0_148, %c0_149] : memref<9x16x16xbf16, #tpu.memory_space<vmem>>, vector<1x16x16xbf16>
    %144 = vector.shape_cast %143 : vector<1x16x16xbf16> to vector<16x16xbf16>
    %cst_150 = arith.constant dense<0.000000e+00> : vector<256x16xf32>
    %145 = tpu.matmul %142, %144, %cst_150 {dimension_numbers = #tpu.dot_dimension_numbers<[1], [0], [0], [1], [0, 0, 1, 1], [], []>} : vector<256x16xbf16>, vector<16x16xbf16>, vector<256x16xf32> -> vector<256x16xf32>
    %146 = arith.addf %140, %145 : vector<256x16xf32>
    %cst_151 = arith.constant dense<0.000000e+00> : vector<16xf32>
    %147 = vector.multi_reduction <add>, %146, %cst_151 [0] : vector<256x16xf32> to vector<16xf32>
    %148 = vector.shape_cast %147 : vector<16xf32> to vector<1x16xf32>
    %cst_152 = arith.constant 3.906250e-03 : f32
    %149 = vector.broadcast %cst_152 : f32 to vector<1x16xf32>
    %150 = arith.mulf %148, %149 : vector<1x16xf32>
    %c0_153 = arith.constant 0 : index
    %c0_154 = arith.constant 0 : index
    %151 = vector.load %arg12[%c0_153, %c0_154] : memref<16x2xf32, #tpu.memory_space<vmem>>, vector<16x2xf32>
    %cst_155 = arith.constant dense<0.000000e+00> : vector<1x2xf32>
    %152 = tpu.matmul %150, %151, %cst_155 {dimension_numbers = #tpu.dot_dimension_numbers<[1], [0], [0], [1], [0, 0, 1, 1], [], []>} : vector<1x16xf32>, vector<16x2xf32>, vector<1x2xf32> -> vector<1x2xf32>
    %cst_156 = arith.constant 0.000000e+00 : f32
    %153 = vector.broadcast %cst_156 : f32 to vector<1x2xf32>
    %154 = arith.maximumf %152, %153 : vector<1x2xf32>
    %c0_157 = arith.constant 0 : index
    %c0_158 = arith.constant 0 : index
    %155 = vector.load %arg13[%c0_157, %c0_158] : memref<2x16xf32, #tpu.memory_space<vmem>>, vector<2x16xf32>
    %cst_159 = arith.constant dense<0.000000e+00> : vector<1x16xf32>
    %156 = tpu.matmul %154, %155, %cst_159 {dimension_numbers = #tpu.dot_dimension_numbers<[1], [0], [0], [1], [0, 0, 1, 1], [], []>} : vector<1x2xf32>, vector<2x16xf32>, vector<1x16xf32> -> vector<1x16xf32>
    %157 = arith.negf %156 : vector<1x16xf32>
    %158 = math.exp %157 : vector<1x16xf32>
    %cst_160 = arith.constant 1.000000e+00 : f32
    %159 = vector.broadcast %cst_160 : f32 to vector<1x16xf32>
    %160 = arith.addf %159, %158 : vector<1x16xf32>
    %161 = arith.divf %159, %160 : vector<1x16xf32>
    %162 = vector.broadcast %161 : vector<1x16xf32> to vector<256x16xf32>
    %163 = arith.mulf %146, %162 : vector<256x16xf32>
    %164 = tpu.transpose %163, [1, 0] : vector<256x16xf32> -> vector<16x256xf32>
    %c0_161 = arith.constant 0 : index
    %c0_162 = arith.constant 0 : index
    %c0_163 = arith.constant 0 : index
    %165 = vector.load %arg14[%c0_161, %c0_162, %c0_163] : memref<1x16x256xf32, #tpu.memory_space<vmem>>, vector<1x16x256xf32>
    %166 = vector.shape_cast %165 : vector<1x16x256xf32> to vector<16x256xf32>
    %167 = vector.shape_cast %164 : vector<16x256xf32> to vector<1x16x256xf32>
    tpu.vector_store %arg14[%c0_161, %c0_162, %c0_163], %167 {strides = array<i32>} : memref<1x16x256xf32, #tpu.memory_space<vmem>>, vector<1x16x256xf32>,
    return
  }
  func.func @transform_0(%arg0: i32) -> (i32, i32, i32) {
    %c0_i32 = arith.constant 0 : i32
    %c0_i32_0 = arith.constant 0 : i32
    %c0_i32_1 = arith.constant 0 : i32
    return %arg0, %c0_i32, %c0_i32_0 : i32, i32, i32
  }
  func.func @transform_1(%arg0: i32) -> (i32, i32) {
    %c0_i32 = arith.constant 0 : i32
    %c0_i32_0 = arith.constant 0 : i32
    %c0_i32_1 = arith.constant 0 : i32
    return %c0_i32, %c0_i32_0 : i32, i32
  }
  func.func @transform_2(%arg0: i32) -> (i32, i32, i32) {
    %c0_i32 = arith.constant 0 : i32
    %c0_i32_0 = arith.constant 0 : i32
    %c0_i32_1 = arith.constant 0 : i32
    %c0_i32_2 = arith.constant 0 : i32
    return %c0_i32, %c0_i32_0, %c0_i32_1 : i32, i32, i32
  }
  func.func @transform_3(%arg0: i32) -> (i32, i32, i32) {
    %c0_i32 = arith.constant 0 : i32
    %c0_i32_0 = arith.constant 0 : i32
    %c0_i32_1 = arith.constant 0 : i32
    %c0_i32_2 = arith.constant 0 : i32
    return %c0_i32, %c0_i32_0, %c0_i32_1 : i32, i32, i32
  }
  func.func @transform_4(%arg0: i32) -> (i32, i32) {
    %c0_i32 = arith.constant 0 : i32
    %c0_i32_0 = arith.constant 0 : i32
    %c0_i32_1 = arith.constant 0 : i32
    return %c0_i32, %c0_i32_0 : i32, i32
  }
  func.func @transform_5(%arg0: i32) -> (i32, i32) {
    %c0_i32 = arith.constant 0 : i32
    %c0_i32_0 = arith.constant 0 : i32
    %c0_i32_1 = arith.constant 0 : i32
    return %c0_i32, %c0_i32_0 : i32, i32
  }
  func.func @transform_6(%arg0: i32) -> (i32, i32) {
    %c0_i32 = arith.constant 0 : i32
    %c0_i32_0 = arith.constant 0 : i32
    %c0_i32_1 = arith.constant 0 : i32
    return %c0_i32, %c0_i32_0 : i32, i32
  }
  func.func @transform_7(%arg0: i32) -> (i32, i32) {
    %c0_i32 = arith.constant 0 : i32
    %c0_i32_0 = arith.constant 0 : i32
    %c0_i32_1 = arith.constant 0 : i32
    return %c0_i32, %c0_i32_0 : i32, i32
  }
  func.func @transform_8(%arg0: i32) -> (i32, i32) {
    %c0_i32 = arith.constant 0 : i32
    %c0_i32_0 = arith.constant 0 : i32
    %c0_i32_1 = arith.constant 0 : i32
    return %c0_i32, %c0_i32_0 : i32, i32
  }
  func.func @transform_9(%arg0: i32) -> (i32, i32) {
    %c0_i32 = arith.constant 0 : i32
    %c0_i32_0 = arith.constant 0 : i32
    %c0_i32_1 = arith.constant 0 : i32
    return %c0_i32, %c0_i32_0 : i32, i32
  }
  func.func @transform_10(%arg0: i32) -> (i32, i32) {
    %c0_i32 = arith.constant 0 : i32
    %c0_i32_0 = arith.constant 0 : i32
    %c0_i32_1 = arith.constant 0 : i32
    return %c0_i32, %c0_i32_0 : i32, i32
  }
  func.func @transform_11(%arg0: i32) -> (i32, i32) {
    %c0_i32 = arith.constant 0 : i32
    %c0_i32_0 = arith.constant 0 : i32
    %c0_i32_1 = arith.constant 0 : i32
    return %c0_i32, %c0_i32_0 : i32, i32
  }
  func.func @transform_12(%arg0: i32) -> (i32, i32) {
    %c0_i32 = arith.constant 0 : i32
    %c0_i32_0 = arith.constant 0 : i32
    %c0_i32_1 = arith.constant 0 : i32
    return %c0_i32, %c0_i32_0 : i32, i32
  }
  func.func @transform_13(%arg0: i32) -> (i32, i32, i32) {
    %c0_i32 = arith.constant 0 : i32
    %c0_i32_0 = arith.constant 0 : i32
    %c0_i32_1 = arith.constant 0 : i32
    return %arg0, %c0_i32, %c0_i32_0 : i32, i32, i32
  }
}

</mosaic_0001>

<llo_original>
// kernel: resnet_block_forward.1
$region0: #{resnet_block_forward.1}
  #allocation0 [shape = 'u32[]', space=smem, size = 0x4, offset = 0x4, fixed_abs, tag = 'smem constant byte address 0x4 - core index']
  #allocation1 [shape = 'u32[144,128]{1,0:T(1,128)}', space=vmem, size = 0x12000, scoped, tag = 'internal scratch']
  #allocation2 [shape = 'bf16[18,18,8]{2,1,0:T(8,128)(2,1)}', space=vmem, size = 0x1b000, scoped, tag = 'scratch operand']
  #allocation3 [shape = 'bf16[18,18,16]{2,1,0:T(8,128)(2,1)}', space=vmem, size = 0x1b000, scoped, tag = 'scratch operand']
  #allocation4 [shape = 'f32[1,1]{1,0:T(1,128)S(1)}', space=vmem, size = 0x200, scoped, tag = 'scoped memory for resnet_block_forward.1']
  %s0 = inlined_call_operand.vmem [shape: f32[2,8,256], index: 0, kind: input, shape index: {}]
  %s1 = inlined_call_operand.<no memory space> [shape: f32[1,1], index: 1, kind: input, shape index: {}]
  %s2 = inlined_call_operand.vmem [shape: bf16[9,8,16], index: 2, kind: input, shape index: {}]
  %s3 = inlined_call_operand.vmem [shape: bf16[9,16,16], index: 3, kind: input, shape index: {}]
  %s4 = inlined_call_operand.vmem [shape: bf16[8,16], index: 4, kind: input, shape index: {}]
  %s5 = inlined_call_operand.vmem [shape: f32[1,8], index: 5, kind: input, shape index: {}]
  %s6 = inlined_call_operand.vmem [shape: f32[1,8], index: 6, kind: input, shape index: {}]
  %s7 = inlined_call_operand.vmem [shape: f32[1,16], index: 7, kind: input, shape index: {}]
  %s8 = inlined_call_operand.vmem [shape: f32[1,16], index: 8, kind: input, shape index: {}]
  %s9 = inlined_call_operand.vmem [shape: f32[1,16], index: 9, kind: input, shape index: {}]
  %s10 = inlined_call_operand.vmem [shape: f32[1,16], index: 10, kind: input, shape index: {}]
  %s11 = inlined_call_operand.vmem [shape: f32[16,2], index: 11, kind: input, shape index: {}]
  %s12 = inlined_call_operand.vmem [shape: f32[2,16], index: 12, kind: input, shape index: {}]
  %s13 = inlined_call_operand.vmem [shape: f32[2,16,256], index: 13, kind: output, shape index: {}]
  %s14 = sld [smem:[#allocation0]]
  $region85: #{resnet_block_forward.1} parent=0
    _
  %s16 = ssub.s32 1, %s14
  %s17 = scalar_select 0, %s16, %s14
  %v18 = vstv %s1
  %19 = vst [vmem:[#allocation4] sm:$0x1] %v18
  loop: start=0, step=1, limit=4
  $region2: #{resnet_block_forward.1} parent=0 // loop_pre_header
    _
  $region3: #{resnet_block_forward.1} parent=0 // loop_header
    %s21 = sphi 0, %s25
    %p22 = scmp.ge.s32.totalorder %s21, 4
    %s31 = sphi 0, %s33
    %s34 = sphi 0, %s31
    %s35 = sphi 0, %s34
    %s51 = sphi 0, %s35
    %s55 = sphi 0, %s55
    %s57 = sphi 0, %s55
    %s58 = sphi 0, %s57
    %s72 = sphi 0, %s58
    %s76 = sphi 0, %s76
    %s78 = sphi 0, %s76
    %s79 = sphi 0, %s78
    %s93 = sphi 0, %s79
    %s97 = sphi 0, %s97
    %s99 = sphi 0, %s97
    %s100 = sphi 0, %s99
    %s114 = sphi 0, %s100
    %s118 = sphi 0, %s118
    %s120 = sphi 0, %s118
    %s121 = sphi 0, %s120
    %s135 = sphi 0, %s121
    %s139 = sphi 0, %s139
    %s141 = sphi 0, %s139
    %s142 = sphi 0, %s141
    %s156 = sphi 0, %s142
    %s160 = sphi 0, %s160
    %s162 = sphi 0, %s160
    %s163 = sphi 0, %s162
    %s177 = sphi 0, %s163
    %s181 = sphi 0, %s181
    %s183 = sphi 0, %s181
    %s184 = sphi 0, %s183
    %s198 = sphi 0, %s184
    %s202 = sphi 0, %s202
    %s204 = sphi 0, %s202
    %s205 = sphi 0, %s204
    %s219 = sphi 0, %s205
    %s223 = sphi 0, %s223
    %s225 = sphi 0, %s223
    %s226 = sphi 0, %s225
    %s240 = sphi 0, %s226
    %s244 = sphi 0, %s244
    %s246 = sphi 0, %s244
    %s247 = sphi 0, %s246
    %s261 = sphi 0, %s247
    %s265 = sphi 0, %s265
    %s267 = sphi 0, %s265
    %s268 = sphi 0, %s267
    %s282 = sphi 0, %s268
    %s286 = sphi 0, %s286
    %s288 = sphi 0, %s286
    %s289 = sphi 0, %s288
    %s303 = sphi 0, %s289
    %s309 = sphi 0, %s311
    %s312 = sphi 0, %s309
    %s313 = sphi 0, %s312
    %s329 = sphi 0, %s313
  $region4: #{resnet_block_forward.1} parent=0 // loop_header_branch
    %24 = sbr.rel (%p22) target = $region8
  $region5: #{resnet_block_forward.1} parent=0 // loop_body
    %s26 = ssub.s32 %s21, 1
    %s27 = ssub.s32 %s21, 2
    %s28 = sadd.s32 %s21, 1
    %s29 = ssub.s32 %s21, %s28
    %p30 = scmp.eq.s32.totalorder %s29, 0
    %s32 = sadd.s32 %s31, 1
    %s33 = scalar_select %p30, %s31, %s32
    %p36 = pneg %p30
    %p37 = scmp.eq.s32.totalorder %s21, 1
    %p38 = por %p36, %p37
    %p39 = scmp.ne.s32.totalorder %s31, %s34
    %p40 = scmp.eq.s32.totalorder %s21, 0
    %p41 = por %p39, %p40
    %p42 = scmp.ne.s32.totalorder %s31, %s34
    %p43 = scmp.eq.s32.totalorder %s26, 1
    %p44 = por %p42, %p43
    %p45 = scmp.ne.s32.totalorder %s34, %s35
    %p46 = scmp.eq.s32.totalorder %s26, 0
    %p47 = por %p45, %p46
    %p48 = scmp.ne.s32.totalorder %s34, %s35
    %p49 = scmp.eq.s32.totalorder %s27, 1
    %p50 = por %p48, %p49
    %p52 = scmp.ne.s32.totalorder %s35, %s51
    %p53 = scmp.eq.s32.totalorder %s27, 0
    %p54 = por %p52, %p53
    %s56 = sadd.s32 %s55, 1
    %p59 = scmp.eq.s32.totalorder %s21, 1
    %p60 = scmp.ne.s32.totalorder %s55, %s57
    %p61 = scmp.eq.s32.totalorder %s21, 0
    %p62 = por %p60, %p61
    %p63 = scmp.ne.s32.totalorder %s55, %s57
    %p64 = scmp.eq.s32.totalorder %s26, 1
    %p65 = por %p63, %p64
    %p66 = scmp.ne.s32.totalorder %s57, %s58
    %p67 = scmp.eq.s32.totalorder %s26, 0
    %p68 = por %p66, %p67
    %p69 = scmp.ne.s32.totalorder %s57, %s58
    %p70 = scmp.eq.s32.totalorder %s27, 1
    %p71 = por %p69, %p70
    %p73 = scmp.ne.s32.totalorder %s58, %s72
    %p74 = scmp.eq.s32.totalorder %s27, 0
    %p75 = por %p73, %p74
    %s77 = sadd.s32 %s76, 1
    %p80 = scmp.eq.s32.totalorder %s21, 1
    %p81 = scmp.ne.s32.totalorder %s76, %s78
    %p82 = scmp.eq.s32.totalorder %s21, 0
    %p83 = por %p81, %p82
    %p84 = scmp.ne.s32.totalorder %s76, %s78
    %p85 = scmp.eq.s32.totalorder %s26, 1
    %p86 = por %p84, %p85
    %p87 = scmp.ne.s32.totalorder %s78, %s79
    %p88 = scmp.eq.s32.totalorder %s26, 0
    %p89 = por %p87, %p88
    %p90 = scmp.ne.s32.totalorder %s78, %s79
    %p91 = scmp.eq.s32.totalorder %s27, 1
    %p92 = por %p90, %p91
    %p94 = scmp.ne.s32.totalorder %s79, %s93
    %p95 = scmp.eq.s32.totalorder %s27, 0
    %p96 = por %p94, %p95
    %s98 = sadd.s32 %s97, 1
    %p101 = scmp.eq.s32.totalorder %s21, 1
    %p102 = scmp.ne.s32.totalorder %s97, %s99
    %p103 = scmp.eq.s32.totalorder %s21, 0
    %p104 = por %p102, %p103
    %p105 = scmp.ne.s32.totalorder %s97, %s99
    %p106 = scmp.eq.s32.totalorder %s26, 1
    %p107 = por %p105, %p106
    %p108 = scmp.ne.s32.totalorder %s99, %s100
    %p109 = scmp.eq.s32.totalorder %s26, 0
    %p110 = por %p108, %p109
    %p111 = scmp.ne.s32.totalorder %s99, %s100
    %p112 = scmp.eq.s32.totalorder %s27, 1
    %p113 = por %p111, %p112
    %p115 = scmp.ne.s32.totalorder %s100, %s114
    %p116 = scmp.eq.s32.totalorder %s27, 0
    %p117 = por %p115, %p116
    %s119 = sadd.s32 %s118, 1
    %p122 = scmp.eq.s32.totalorder %s21, 1
    %p123 = scmp.ne.s32.totalorder %s118, %s120
    %p124 = scmp.eq.s32.totalorder %s21, 0
    %p125 = por %p123, %p124
    %p126 = scmp.ne.s32.totalorder %s118, %s120
    %p127 = scmp.eq.s32.totalorder %s26, 1
    %p128 = por %p126, %p127
    %p129 = scmp.ne.s32.totalorder %s120, %s121
    %p130 = scmp.eq.s32.totalorder %s26, 0
    %p131 = por %p129, %p130
    %p132 = scmp.ne.s32.totalorder %s120, %s121
    %p133 = scmp.eq.s32.totalorder %s27, 1
    %p134 = por %p132, %p133
    %p136 = scmp.ne.s32.totalorder %s121, %s135
    %p137 = scmp.eq.s32.totalorder %s27, 0
    %p138 = por %p136, %p137
    %s140 = sadd.s32 %s139, 1
    %p143 = scmp.eq.s32.totalorder %s21, 1
    %p144 = scmp.ne.s32.totalorder %s139, %s141
    %p145 = scmp.eq.s32.totalorder %s21, 0
    %p146 = por %p144, %p145
    %p147 = scmp.ne.s32.totalorder %s139, %s141
    %p148 = scmp.eq.s32.totalorder %s26, 1
    %p149 = por %p147, %p148
    %p150 = scmp.ne.s32.totalorder %s141, %s142
    %p151 = scmp.eq.s32.totalorder %s26, 0
    %p152 = por %p150, %p151
    %p153 = scmp.ne.s32.totalorder %s141, %s142
    %p154 = scmp.eq.s32.totalorder %s27, 1
    %p155 = por %p153, %p154
    %p157 = scmp.ne.s32.totalorder %s142, %s156
    %p158 = scmp.eq.s32.totalorder %s27, 0
    %p159 = por %p157, %p158
    %s161 = sadd.s32 %s160, 1
    %p164 = scmp.eq.s32.totalorder %s21, 1
    %p165 = scmp.ne.s32.totalorder %s160, %s162
    %p166 = scmp.eq.s32.totalorder %s21, 0
    %p167 = por %p165, %p166
    %p168 = scmp.ne.s32.totalorder %s160, %s162
    %p169 = scmp.eq.s32.totalorder %s26, 1
    %p170 = por %p168, %p169
    %p171 = scmp.ne.s32.totalorder %s162, %s163
    %p172 = scmp.eq.s32.totalorder %s26, 0
    %p173 = por %p171, %p172
    %p174 = scmp.ne.s32.totalorder %s162, %s163
    %p175 = scmp.eq.s32.totalorder %s27, 1
    %p176 = por %p174, %p175
    %p178 = scmp.ne.s32.totalorder %s163, %s177
    %p179 = scmp.eq.s32.totalorder %s27, 0
    %p180 = por %p178, %p179
    %s182 = sadd.s32 %s181, 1
    %p185 = scmp.eq.s32.totalorder %s21, 1
    %p186 = scmp.ne.s32.totalorder %s181, %s183
    %p187 = scmp.eq.s32.totalorder %s21, 0
    %p188 = por %p186, %p187
    %p189 = scmp.ne.s32.totalorder %s181, %s183
    %p190 = scmp.eq.s32.totalorder %s26, 1
    %p191 = por %p189, %p190
    %p192 = scmp.ne.s32.totalorder %s183, %s184
    %p193 = scmp.eq.s32.totalorder %s26, 0
    %p194 = por %p192, %p193
    %p195 = scmp.ne.s32.totalorder %s183, %s184
    %p196 = scmp.eq.s32.totalorder %s27, 1
    %p197 = por %p195, %p196
    %p199 = scmp.ne.s32.totalorder %s184, %s198
    %p200 = scmp.eq.s32.totalorder %s27, 0
    %p201 = por %p199, %p200
    %s203 = sadd.s32 %s202, 1
    %p206 = scmp.eq.s32.totalorder %s21, 1
    %p207 = scmp.ne.s32.totalorder %s202, %s204
    %p208 = scmp.eq.s32.totalorder %s21, 0
    %p209 = por %p207, %p208
    %p210 = scmp.ne.s32.totalorder %s202, %s204
    %p211 = scmp.eq.s32.totalorder %s26, 1
    %p212 = por %p210, %p211
    %p213 = scmp.ne.s32.totalorder %s204, %s205
    %p214 = scmp.eq.s32.totalorder %s26, 0
    %p215 = por %p213, %p214
    %p216 = scmp.ne.s32.totalorder %s204, %s205
    %p217 = scmp.eq.s32.totalorder %s27, 1
    %p218 = por %p216, %p217
    %p220 = scmp.ne.s32.totalorder %s205, %s219
    %p221 = scmp.eq.s32.totalorder %s27, 0
    %p222 = por %p220, %p221
    %s224 = sadd.s32 %s223, 1
    %p227 = scmp.eq.s32.totalorder %s21, 1
    %p228 = scmp.ne.s32.totalorder %s223, %s225
    %p229 = scmp.eq.s32.totalorder %s21, 0
    %p230 = por %p228, %p229
    %p231 = scmp.ne.s32.totalorder %s223, %s225
    %p232 = scmp.eq.s32.totalorder %s26, 1
    %p233 = por %p231, %p232
    %p234 = scmp.ne.s32.totalorder %s225, %s226
    %p235 = scmp.eq.s32.totalorder %s26, 0
    %p236 = por %p234, %p235
    %p237 = scmp.ne.s32.totalorder %s225, %s226
    %p238 = scmp.eq.s32.totalorder %s27, 1
    %p239 = por %p237, %p238
    %p241 = scmp.ne.s32.totalorder %s226, %s240
    %p242 = scmp.eq.s32.totalorder %s27, 0
    %p243 = por %p241, %p242
    %s245 = sadd.s32 %s244, 1
    %p248 = scmp.eq.s32.totalorder %s21, 1
    %p249 = scmp.ne.s32.totalorder %s244, %s246
    %p250 = scmp.eq.s32.totalorder %s21, 0
    %p251 = por %p249, %p250
    %p252 = scmp.ne.s32.totalorder %s244, %s246
    %p253 = scmp.eq.s32.totalorder %s26, 1
    %p254 = por %p252, %p253
    %p255 = scmp.ne.s32.totalorder %s246, %s247
    %p256 = scmp.eq.s32.totalorder %s26, 0
    %p257 = por %p255, %p256
    %p258 = scmp.ne.s32.totalorder %s246, %s247
    %p259 = scmp.eq.s32.totalorder %s27, 1
    %p260 = por %p258, %p259
    %p262 = scmp.ne.s32.totalorder %s247, %s261
    %p263 = scmp.eq.s32.totalorder %s27, 0
    %p264 = por %p262, %p263
    %s266 = sadd.s32 %s265, 1
    %p269 = scmp.eq.s32.totalorder %s21, 1
    %p270 = scmp.ne.s32.totalorder %s265, %s267
    %p271 = scmp.eq.s32.totalorder %s21, 0
    %p272 = por %p270, %p271
    %p273 = scmp.ne.s32.totalorder %s265, %s267
    %p274 = scmp.eq.s32.totalorder %s26, 1
    %p275 = por %p273, %p274
    %p276 = scmp.ne.s32.totalorder %s267, %s268
    %p277 = scmp.eq.s32.totalorder %s26, 0
    %p278 = por %p276, %p277
    %p279 = scmp.ne.s32.totalorder %s267, %s268
    %p280 = scmp.eq.s32.totalorder %s27, 1
    %p281 = por %p279, %p280
    %p283 = scmp.ne.s32.totalorder %s268, %s282
    %p284 = scmp.eq.s32.totalorder %s27, 0
    %p285 = por %p283, %p284
    %s287 = sadd.s32 %s286, 1
    %p290 = scmp.eq.s32.totalorder %s21, 1
    %p291 = scmp.ne.s32.totalorder %s286, %s288
    %p292 = scmp.eq.s32.totalorder %s21, 0
    %p293 = por %p291, %p292
    %p294 = scmp.ne.s32.totalorder %s286, %s288
    %p295 = scmp.eq.s32.totalorder %s26, 1
    %p296 = por %p294, %p295
    %p297 = scmp.ne.s32.totalorder %s288, %s289
    %p298 = scmp.eq.s32.totalorder %s26, 0
    %p299 = por %p297, %p298
    %p300 = scmp.ne.s32.totalorder %s288, %s289
    %p301 = scmp.eq.s32.totalorder %s27, 1
    %p302 = por %p300, %p301
    %p304 = scmp.ne.s32.totalorder %s289, %s303
    %p305 = scmp.eq.s32.totalorder %s27, 0
    %p306 = por %p304, %p305
    %s307 = ssub.s32 %s21, %s28
    %p308 = scmp.eq.s32.totalorder %s307, 0
    %s310 = sadd.s32 %s309, 1
    %s311 = scalar_select %p308, %s309, %s310
    %p314 = pneg %p308
    %p315 = scmp.eq.s32.totalorder %s21, 1
    %p316 = por %p314, %p315
    %p317 = scmp.ne.s32.totalorder %s309, %s312
    %p318 = scmp.eq.s32.totalorder %s21, 0
    %p319 = por %p317, %p318
    %p320 = scmp.ne.s32.totalorder %s309, %s312
    %p321 = scmp.eq.s32.totalorder %s26, 1
    %p322 = por %p320, %p321
    %p323 = scmp.ne.s32.totalorder %s312, %s313
    %p324 = scmp.eq.s32.totalorder %s26, 0
    %p325 = por %p323, %p324
    %p326 = scmp.ne.s32.totalorder %s312, %s313
    %p327 = scmp.eq.s32.totalorder %s27, 1
    %p328 = por %p326, %p327
    %p330 = scmp.ne.s32.totalorder %s313, %s329
    %p331 = scmp.eq.s32.totalorder %s27, 0
    %p332 = por %p330, %p331
    %p333 = scmp.le.s32.totalorder 1, %s21
    %p334 = scmp.lt.s32.totalorder %s21, 3
    %p335 = pnand %p333, %p334
    %p336 = pneg %p335
    // Predicated region
    $region9: #{resnet_block_forward.1} parent=5 // pred_check
      _
    $region10: #{resnet_block_forward.1} parent=5 // pred_check_branch
      %338 = sbr.rel (%p335) target = $region12
    $region11: #{resnet_block_forward.1} parent=5 // pred_region
      %s339 = ssub.s32 %s21, 1
      // Predicated region
      $region13: #{resnet_block_forward.1} parent=11 // pred_check
        %p340 = pneg %p68
      $region14: #{resnet_block_forward.1} parent=11 // pred_check_branch
        %342 = sbr.rel (%p340) target = $region16
      $region15: #{resnet_block_forward.1} parent=11 // pred_region
        _
      $region16: #{resnet_block_forward.1} parent=11 // pred_fallthru
        _
      // Predicated region
      $region17: #{resnet_block_forward.1} parent=11 // pred_check
        %p343 = pneg %p89
      $region18: #{resnet_block_forward.1} parent=11 // pred_check_branch
        %345 = sbr.rel (%p343) target = $region20
      $region19: #{resnet_block_forward.1} parent=11 // pred_region
        _
      $region20: #{resnet_block_forward.1} parent=11 // pred_fallthru
        _
      // Predicated region
      $region21: #{resnet_block_forward.1} parent=11 // pred_check
        %p346 = pneg %p110
      $region22: #{resnet_block_forward.1} parent=11 // pred_check_branch
        %348 = sbr.rel (%p346) target = $region24
      $region23: #{resnet_block_forward.1} parent=11 // pred_region
        _
      $region24: #{resnet_block_forward.1} parent=11 // pred_fallthru
        _
      // Predicated region
      $region25: #{resnet_block_forward.1} parent=11 // pred_check
        %p349 = pneg %p131
      $region26: #{resnet_block_forward.1} parent=11 // pred_check_branch
        %351 = sbr.rel (%p349) target = $region28
      $region27: #{resnet_block_forward.1} parent=11 // pred_region
        _
      $region28: #{resnet_block_forward.1} parent=11 // pred_fallthru
        _
      // Predicated region
      $region29: #{resnet_block_forward.1} parent=11 // pred_check
        %p352 = pneg %p152
      $region30: #{resnet_block_forward.1} parent=11 // pred_check_branch
        %354 = sbr.rel (%p352) target = $region32
      $region31: #{resnet_block_forward.1} parent=11 // pred_region
        _
      $region32: #{resnet_block_forward.1} parent=11 // pred_fallthru
        _
      // Predicated region
      $region33: #{resnet_block_forward.1} parent=11 // pred_check
        %p355 = pneg %p173
      $region34: #{resnet_block_forward.1} parent=11 // pred_check_branch
        %357 = sbr.rel (%p355) target = $region36
      $region35: #{resnet_block_forward.1} parent=11 // pred_region
        _
      $region36: #{resnet_block_forward.1} parent=11 // pred_fallthru
        _
      // Predicated region
      $region37: #{resnet_block_forward.1} parent=11 // pred_check
        %p358 = pneg %p194
      $region38: #{resnet_block_forward.1} parent=11 // pred_check_branch
        %360 = sbr.rel (%p358) target = $region40
      $region39: #{resnet_block_forward.1} parent=11 // pred_region
        _
      $region40: #{resnet_block_forward.1} parent=11 // pred_fallthru
        _
      // Predicated region
      $region41: #{resnet_block_forward.1} parent=11 // pred_check
        %p361 = pneg %p215
      $region42: #{resnet_block_forward.1} parent=11 // pred_check_branch
        %363 = sbr.rel (%p361) target = $region44
      $region43: #{resnet_block_forward.1} parent=11 // pred_region
        _
      $region44: #{resnet_block_forward.1} parent=11 // pred_fallthru
        _
      // Predicated region
      $region45: #{resnet_block_forward.1} parent=11 // pred_check
        %p364 = pneg %p236
      $region46: #{resnet_block_forward.1} parent=11 // pred_check_branch
        %366 = sbr.rel (%p364) target = $region48
      $region47: #{resnet_block_forward.1} parent=11 // pred_region
        _
      $region48: #{resnet_block_forward.1} parent=11 // pred_fallthru
        _
      // Predicated region
      $region49: #{resnet_block_forward.1} parent=11 // pred_check
        %p367 = pneg %p257
      $region50: #{resnet_block_forward.1} parent=11 // pred_check_branch
        %369 = sbr.rel (%p367) target = $region52
      $region51: #{resnet_block_forward.1} parent=11 // pred_region
        _
      $region52: #{resnet_block_forward.1} parent=11 // pred_fallthru
        _
      // Predicated region
      $region53: #{resnet_block_forward.1} parent=11 // pred_check
        %p370 = pneg %p278
      $region54: #{resnet_block_forward.1} parent=11 // pred_check_branch
        %372 = sbr.rel (%p370) target = $region56
      $region55: #{resnet_block_forward.1} parent=11 // pred_region
        _
      $region56: #{resnet_block_forward.1} parent=11 // pred_fallthru
        _
      // Predicated region
      $region57: #{resnet_block_forward.1} parent=11 // pred_check
        %p373 = pneg %p299
      $region58: #{resnet_block_forward.1} parent=11 // pred_check_branch
        %375 = sbr.rel (%p373) target = $region60
      $region59: #{resnet_block_forward.1} parent=11 // pred_region
        _
      $region60: #{resnet_block_forward.1} parent=11 // pred_fallthru
        _
    $region12: #{resnet_block_forward.1} parent=5 // pred_fallthru
      _
    %p376 = scmp.lt.s32.totalorder %s21, 2
    // Predicated region
    $region61: #{resnet_block_forward.1} parent=5 // pred_check
      %p377 = pneg %p376
    $region62: #{resnet_block_forward.1} parent=5 // pred_check_branch
      %379 = sbr.rel (%p377) target = $region64
    $region63: #{resnet_block_forward.1} parent=5 // pred_region
      // Predicated region
      $region65: #{resnet_block_forward.1} parent=63 // pred_check
        %p380 = pneg %p41
      $region66: #{resnet_block_forward.1} parent=63 // pred_check_branch
        %382 = sbr.rel (%p380) target = $region68
      $region67: #{resnet_block_forward.1} parent=63 // pred_region
        %p383 = scmp.lt.s32.totalorder %s21, 1
        %s384 = scalar_select %p383, %s21, 1
        %s385 = smul.addr %s384, 2
        %s386 = smul.addr %s385, 8
        %s387 = scalar_lea.vmem %s0, %s386
      $region68: #{resnet_block_forward.1} parent=63 // pred_fallthru
        _
    $region64: #{resnet_block_forward.1} parent=5 // pred_fallthru
      _
    %p388 = scmp.le.s32.totalorder 1, %s21
    %p389 = scmp.lt.s32.totalorder %s21, 3
    %p390 = pnand %p388, %p389
    %p391 = pneg %p390
    // Predicated region
    $region69: #{resnet_block_forward.1} parent=5 // pred_check
      _
    $region70: #{resnet_block_forward.1} parent=5 // pred_check_branch
      %393 = sbr.rel (%p390) target = $region72
    $region71: #{resnet_block_forward.1} parent=5 // pred_region
      %s394 = ssub.s32 %s21, 1
      %p395 = scmp.lt.s32.totalorder %s26, 1
      %s396 = scalar_select %p395, %s26, 1
      %s397 = smul.addr %s396, 2
      %s398 = smul.addr %s397, 8
      %s399 = scalar_lea.vmem %s0, %s398
      %p400 = pneg %p47
      %p401 = pneg %p44
      %p402 = pneg %p68
      %p403 = pneg %p65
      %p404 = pneg %p89
      %p405 = pneg %p86
      %p406 = pneg %p110
      %p407 = pneg %p107
      %p408 = pneg %p131
      %p409 = pneg %p128
      %p410 = pneg %p152
      %p411 = pneg %p149
      %p412 = pneg %p173
      %p413 = pneg %p170
      %p414 = pneg %p194
      %p415 = pneg %p191
      %p416 = pneg %p215
      %p417 = pneg %p212
      %p418 = pneg %p236
      %p419 = pneg %p233
      %p420 = pneg %p257
      %p421 = pneg %p254
      %p422 = pneg %p278
      %p423 = pneg %p275
      %p424 = pneg %p299
      %p425 = pneg %p296
      %p426 = pneg %p325
      %p427 = pneg %p322
      %p428 = scmp.lt.s32.totalorder %s26, 1
      %s429 = scalar_select %p428, %s26, 1
      %s430 = smul.addr %s429, 4
      %s431 = smul.addr %s430, 8
      %s432 = scalar_lea.vmem %s13, %s431
      %p433 = scmp.lt.s32.totalorder %s26, 1
      %s434 = scalar_select %p433, %s26, 1
      %s435 = smul.addr %s434, 2
      %s436 = smul.addr %s435, 8
      %s437 = scalar_lea.vmem %s0, %s436
      %p438 = scmp.lt.s32.totalorder %s26, 1
      %s439 = scalar_select %p438, %s26, 1
      %s440 = smul.addr %s439, 4
      %s441 = smul.addr %s440, 8
      %s442 = scalar_lea.vmem %s13, %s441
      %v444 = vld [vmem:[%s437] sm:$0xff]
      %v445 = vld [vmem:[%s437 + $0x8] sm:$0xff]
      %446 = vxpose.xlu0.b32.start [1/16] %v444, 128
      %447 = vxpose.xlu0.b32.cont [2/16] 0.0, 128
      %448 = vxpose.xlu0.b32.cont [3/16] 0.0, 128
      %449 = vxpose.xlu0.b32.cont [4/16] 0.0, 128
      %450 = vxpose.xlu0.b32.cont [5/16] 0.0, 128
      %451 = vxpose.xlu0.b32.cont [6/16] 0.0, 128
      %452 = vxpose.xlu0.b32.cont [7/16] 0.0, 128
      %453 = vxpose.xlu0.b32.cont [8/16] 0.0, 128
      %454 = vxpose.xlu0.b32.cont [9/16] 0.0, 128
      %455 = vxpose.xlu0.b32.cont [10/16] 0.0, 128
      %456 = vxpose.xlu0.b32.cont [11/16] 0.0, 128
      %457 = vxpose.xlu0.b32.cont [12/16] 0.0, 128
      %458 = vxpose.xlu0.b32.cont [13/16] 0.0, 128
      %459 = vxpose.xlu0.b32.cont [14/16] 0.0, 128
      %460 = vxpose.xlu0.b32.cont [15/16] 0.0, 128
      %461 = vxpose.xlu0.b32.end [16/16] 0.0, 128
      %v462 = vpop.trf.xlu0
      %v463 = vpop.trf.xlu0
      %v464 = vpop.trf.xlu0
      %v465 = vpop.trf.xlu0
      %v466 = vpop.trf.xlu0
      %v467 = vpop.trf.xlu0
      %v468 = vpop.trf.xlu0
      %v469 = vpop.trf.xlu0
      %v470 = vpop.trf.xlu0
      %v471 = vpop.trf.xlu0
      %v472 = vpop.trf.xlu0
      %v473 = vpop.trf.xlu0
      %v474 = vpop.trf.xlu0
      %v475 = vpop.trf.xlu0
      %v476 = vpop.trf.xlu0
      %v477 = vpop.trf.xlu0
      %478 = vxpose.xlu0.b32.start [1/16] %v445, 128
      %479 = vxpose.xlu0.b32.cont [2/16] 0.0, 128
      %480 = vxpose.xlu0.b32.cont [3/16] 0.0, 128
      %481 = vxpose.xlu0.b32.cont [4/16] 0.0, 128
      %482 = vxpose.xlu0.b32.cont [5/16] 0.0, 128
      %483 = vxpose.xlu0.b32.cont [6/16] 0.0, 128
      %484 = vxpose.xlu0.b32.cont [7/16] 0.0, 128
      %485 = vxpose.xlu0.b32.cont [8/16] 0.0, 128
      %486 = vxpose.xlu0.b32.cont [9/16] 0.0, 128
      %487 = vxpose.xlu0.b32.cont [10/16] 0.0, 128
      %488 = vxpose.xlu0.b32.cont [11/16] 0.0, 128
      %489 = vxpose.xlu0.b32.cont [12/16] 0.0, 128
      %490 = vxpose.xlu0.b32.cont [13/16] 0.0, 128
      %491 = vxpose.xlu0.b32.cont [14/16] 0.0, 128
      %492 = vxpose.xlu0.b32.cont [15/16] 0.0, 128
      %493 = vxpose.xlu0.b32.end [16/16] 0.0, 128
      %v494 = vpop.trf.xlu0
      %v495 = vpop.trf.xlu0
      %v496 = vpop.trf.xlu0
      %v497 = vpop.trf.xlu0
      %v498 = vpop.trf.xlu0
      %v499 = vpop.trf.xlu0
      %v500 = vpop.trf.xlu0
      %v501 = vpop.trf.xlu0
      %v502 = vpop.trf.xlu0
      %v503 = vpop.trf.xlu0
      %v504 = vpop.trf.xlu0
      %v505 = vpop.trf.xlu0
      %v506 = vpop.trf.xlu0
      %v507 = vpop.trf.xlu0
      %v508 = vpop.trf.xlu0
      %v509 = vpop.trf.xlu0
      %v510 = vld [vmem:[%s5] sm:$0x1]
      %v512 = vlaneseq
      %v513 = vshrl.u32 %v512, 7
      %v514 = vsub.s32 0, %v513
      %v515 = vrot.slane %v510, %v514
      %v517 = vmul.f32 %v462, %v515
      %v518 = vmul.f32 %v463, %v515
      %v519 = vmul.f32 %v464, %v515
      %v520 = vmul.f32 %v465, %v515
      %v521 = vmul.f32 %v466, %v515
      %v522 = vmul.f32 %v467, %v515
      %v523 = vmul.f32 %v468, %v515
      %v524 = vmul.f32 %v469, %v515
      %v525 = vmul.f32 %v470, %v515
      %v526 = vmul.f32 %v471, %v515
      %v527 = vmul.f32 %v472, %v515
      %v528 = vmul.f32 %v473, %v515
      %v529 = vmul.f32 %v474, %v515
      %v530 = vmul.f32 %v475, %v515
      %v531 = vmul.f32 %v476, %v515
      %v532 = vmul.f32 %v477, %v515
      %v533 = vmul.f32 %v494, %v515
      %v534 = vmul.f32 %v495, %v515
      %v535 = vmul.f32 %v496, %v515
      %v536 = vmul.f32 %v497, %v515
      %v537 = vmul.f32 %v498, %v515
      %v538 = vmul.f32 %v499, %v515
      %v539 = vmul.f32 %v500, %v515
      %v540 = vmul.f32 %v501, %v515
      %v541 = vmul.f32 %v502, %v515
      %v542 = vmul.f32 %v503, %v515
      %v543 = vmul.f32 %v504, %v515
      %v544 = vmul.f32 %v505, %v515
      %v545 = vmul.f32 %v506, %v515
      %v546 = vmul.f32 %v507, %v515
      %v547 = vmul.f32 %v508, %v515
      %v548 = vmul.f32 %v509, %v515
      %v549 = vld [vmem:[%s6] sm:$0x1]
      %v551 = vlaneseq
      %v552 = vshrl.u32 %v551, 7
      %v553 = vsub.s32 0, %v552
      %v554 = vrot.slane %v549, %v553
      %v556 = vadd.f32 %v517, %v554
      %v557 = vadd.f32 %v518, %v554
      %v558 = vadd.f32 %v519, %v554
      %v559 = vadd.f32 %v520, %v554
      %v560 = vadd.f32 %v521, %v554
      %v561 = vadd.f32 %v522, %v554
      %v562 = vadd.f32 %v523, %v554
      %v563 = vadd.f32 %v524, %v554
      %v564 = vadd.f32 %v525, %v554
      %v565 = vadd.f32 %v526, %v554
      %v566 = vadd.f32 %v527, %v554
      %v567 = vadd.f32 %v528, %v554
      %v568 = vadd.f32 %v529, %v554
      %v569 = vadd.f32 %v530, %v554
      %v570 = vadd.f32 %v531, %v554
      %v571 = vadd.f32 %v532, %v554
      %v572 = vadd.f32 %v533, %v554
      %v573 = vadd.f32 %v534, %v554
      %v574 = vadd.f32 %v535, %v554
      %v575 = vadd.f32 %v536, %v554
      %v576 = vadd.f32 %v537, %v554
      %v577 = vadd.f32 %v538, %v554
      %v578 = vadd.f32 %v539, %v554
      %v579 = vadd.f32 %v540, %v554
      %v580 = vadd.f32 %v541, %v554
      %v581 = vadd.f32 %v542, %v554
      %v582 = vadd.f32 %v543, %v554
      %v583 = vadd.f32 %v544, %v554
      %v584 = vadd.f32 %v545, %v554
      %v585 = vadd.f32 %v546, %v554
      %v586 = vadd.f32 %v547, %v554
      %v587 = vadd.f32 %v548, %v554
      %v588 = vmax.f32 %v556, 0.0
      %v589 = vmax.f32 %v557, 0.0
      %v590 = vmax.f32 %v558, 0.0
      %v591 = vmax.f32 %v559, 0.0
      %v592 = vmax.f32 %v560, 0.0
      %v593 = vmax.f32 %v561, 0.0
      %v594 = vmax.f32 %v562, 0.0
      %v595 = vmax.f32 %v563, 0.0
      %v596 = vmax.f32 %v564, 0.0
      %v597 = vmax.f32 %v565, 0.0
      %v598 = vmax.f32 %v566, 0.0
      %v599 = vmax.f32 %v567, 0.0
      %v600 = vmax.f32 %v568, 0.0
      %v601 = vmax.f32 %v569, 0.0
      %v602 = vmax.f32 %v570, 0.0
      %v603 = vmax.f32 %v571, 0.0
      %v604 = vmax.f32 %v572, 0.0
      %v605 = vmax.f32 %v573, 0.0
      %v606 = vmax.f32 %v574, 0.0
      %v607 = vmax.f32 %v575, 0.0
      %v608 = vmax.f32 %v576, 0.0
      %v609 = vmax.f32 %v577, 0.0
      %v610 = vmax.f32 %v578, 0.0
      %v611 = vmax.f32 %v579, 0.0
      %v612 = vmax.f32 %v580, 0.0
      %v613 = vmax.f32 %v581, 0.0
      %v614 = vmax.f32 %v582, 0.0
      %v615 = vmax.f32 %v583, 0.0
      %v616 = vmax.f32 %v584, 0.0
      %v617 = vmax.f32 %v585, 0.0
      %v618 = vmax.f32 %v586, 0.0
      %v619 = vmax.f32 %v587, 0.0
      %vm620 = vcmask 60416
      %621 = vst.msk [vmem:[#allocation2] sm:$0xf] %vm620, 0
      %622 = vst.msk [vmem:[#allocation2 + $0x4] sm:$0xf] %vm620, 0
      %vm623 = vcmask 57344
      %624 = vst.msk [vmem:[#allocation2 + $0x8] sm:$0x1] %vm623, 0
      %625 = vst.msk [vmem:[#allocation2 + $0xc] sm:$0xf] %vm620, 0
      %626 = vst.msk [vmem:[#allocation2 + $0x10] sm:$0xf] %vm620, 0
      %627 = vst.msk [vmem:[#allocation2 + $0x14] sm:$0x1] %vm623, 0
      %628 = vst.msk [vmem:[#allocation2 + $0x18] sm:$0xf] %vm620, 0
      %629 = vst.msk [vmem:[#allocation2 + $0x1c] sm:$0xf] %vm620, 0
      %630 = vst.msk [vmem:[#allocation2 + $0x20] sm:$0x1] %vm623, 0
      %631 = vst.msk [vmem:[#allocation2 + $0x24] sm:$0xf] %vm620, 0
      %632 = vst.msk [vmem:[#allocation2 + $0x28] sm:$0xf] %vm620, 0
      %633 = vst.msk [vmem:[#allocation2 + $0x2c] sm:$0x1] %vm623, 0
      %634 = vst.msk [vmem:[#allocation2 + $0x30] sm:$0xf] %vm620, 0
      %635 = vst.msk [vmem:[#allocation2 + $0x34] sm:$0xf] %vm620, 0
      %636 = vst.msk [vmem:[#allocation2 + $0x38] sm:$0x1] %vm623, 0
      %637 = vst.msk [vmem:[#allocation2 + $0x3c] sm:$0xf] %vm620, 0
      %638 = vst.msk [vmem:[#allocation2 + $0x40] sm:$0xf] %vm620, 0
      %639 = vst.msk [vmem:[#allocation2 + $0x44] sm:$0x1] %vm623, 0
      %640 = vst.msk [vmem:[#allocation2 + $0x48] sm:$0xf] %vm620, 0
      %641 = vst.msk [vmem:[#allocation2 + $0x4c] sm:$0xf] %vm620, 0
      %642 = vst.msk [vmem:[#allocation2 + $0x50] sm:$0x1] %vm623, 0
      %643 = vst.msk [vmem:[#allocation2 + $0x54] sm:$0xf] %vm620, 0
      %644 = vst.msk [vmem:[#allocation2 + $0x58] sm:$0xf] %vm620, 0
      %645 = vst.msk [vmem:[#allocation2 + $0x5c] sm:$0x1] %vm623, 0
      %646 = vst.msk [vmem:[#allocation2 + $0x60] sm:$0xf] %vm620, 0
      %647 = vst.msk [vmem:[#allocation2 + $0x64] sm:$0xf] %vm620, 0
      %648 = vst.msk [vmem:[#allocation2 + $0x68] sm:$0x1] %vm623, 0
      %649 = vst.msk [vmem:[#allocation2 + $0x6c] sm:$0xf] %vm620, 0
      %650 = vst.msk [vmem:[#allocation2 + $0x70] sm:$0xf] %vm620, 0
      %651 = vst.msk [vmem:[#allocation2 + $0x74] sm:$0x1] %vm623, 0
      %652 = vst.msk [vmem:[#allocation2 + $0x78] sm:$0xf] %vm620, 0
      %653 = vst.msk [vmem:[#allocation2 + $0x7c] sm:$0xf] %vm620, 0
      %654 = vst.msk [vmem:[#allocation2 + $0x80] sm:$0x1] %vm623, 0
      %655 = vst.msk [vmem:[#allocation2 + $0x84] sm:$0xf] %vm620, 0
      %656 = vst.msk [vmem:[#allocation2 + $0x88] sm:$0xf] %vm620, 0
      %657 = vst.msk [vmem:[#allocation2 + $0x8c] sm:$0x1] %vm623, 0
      %658 = vst.msk [vmem:[#allocation2 + $0x90] sm:$0xf] %vm620, 0
      %659 = vst.msk [vmem:[#allocation2 + $0x94] sm:$0xf] %vm620, 0
      %660 = vst.msk [vmem:[#allocation2 + $0x98] sm:$0x1] %vm623, 0
      %661 = vst.msk [vmem:[#allocation2 + $0x9c] sm:$0xf] %vm620, 0
      %662 = vst.msk [vmem:[#allocation2 + $0xa0] sm:$0xf] %vm620, 0
      %663 = vst.msk [vmem:[#allocation2 + $0xa4] sm:$0x1] %vm623, 0
      %664 = vst.msk [vmem:[#allocation2 + $0xa8] sm:$0xf] %vm620, 0
      %665 = vst.msk [vmem:[#allocation2 + $0xac] sm:$0xf] %vm620, 0
      %666 = vst.msk [vmem:[#allocation2 + $0xb0] sm:$0x1] %vm623, 0
      %667 = vst.msk [vmem:[#allocation2 + $0xb4] sm:$0xf] %vm620, 0
      %668 = vst.msk [vmem:[#allocation2 + $0xb8] sm:$0xf] %vm620, 0
      %669 = vst.msk [vmem:[#allocation2 + $0xbc] sm:$0x1] %vm623, 0
      %670 = vst.msk [vmem:[#allocation2 + $0xc0] sm:$0xf] %vm620, 0
      %671 = vst.msk [vmem:[#allocation2 + $0xc4] sm:$0xf] %vm620, 0
      %672 = vst.msk [vmem:[#allocation2 + $0xc8] sm:$0x1] %vm623, 0
      %673 = vst.msk [vmem:[#allocation2 + $0xcc] sm:$0xf] %vm620, 0
      %674 = vst.msk [vmem:[#allocation2 + $0xd0] sm:$0xf] %vm620, 0
      %675 = vst.msk [vmem:[#allocation2 + $0xd4] sm:$0x1] %vm623, 0
      %v676 = vpack.c.bf16 %v589, %v588
      %v677 = vpack.c.bf16 %v591, %v590
      %v678 = vpack.c.bf16 %v593, %v592
      %v679 = vpack.c.bf16 %v595, %v594
      %v680 = vpack.c.bf16 %v597, %v596
      %v681 = vpack.c.bf16 %v599, %v598
      %v682 = vpack.c.bf16 %v601, %v600
      %v683 = vpack.c.bf16 %v603, %v602
      %v684 = vpack.c.bf16 %v605, %v604
      %v685 = vpack.c.bf16 %v607, %v606
      %v686 = vpack.c.bf16 %v609, %v608
      %v687 = vpack.c.bf16 %v611, %v610
      %v688 = vpack.c.bf16 %v613, %v612
      %v689 = vpack.c.bf16 %v615, %v614
      %v690 = vpack.c.bf16 %v617, %v616
      %v691 = vpack.c.bf16 %v619, %v618
      %v708 = vunpack.c.l.b16 %v676
      %v709 = vunpack.c.h.b16 %v676
      %v710 = vunpack.c.l.b16 %v677
      %v711 = vunpack.c.h.b16 %v677
      %v712 = vunpack.c.l.b16 %v678
      %v713 = vunpack.c.h.b16 %v678
      %v714 = vunpack.c.l.b16 %v679
      %v715 = vunpack.c.h.b16 %v679
      %v716 = vunpack.c.l.b16 %v680
      %v717 = vunpack.c.h.b16 %v680
      %v718 = vunpack.c.l.b16 %v681
      %v719 = vunpack.c.h.b16 %v681
      %v720 = vunpack.c.l.b16 %v682
      %v721 = vunpack.c.h.b16 %v682
      %v722 = vunpack.c.l.b16 %v683
      %v723 = vunpack.c.h.b16 %v683
      %v724 = vunpack.c.l.b16 %v684
      %v725 = vunpack.c.h.b16 %v684
      %v726 = vunpack.c.l.b16 %v685
      %v727 = vunpack.c.h.b16 %v685
      %v728 = vunpack.c.l.b16 %v686
      %v729 = vunpack.c.h.b16 %v686
      %v730 = vunpack.c.l.b16 %v687
      %v731 = vunpack.c.h.b16 %v687
      %v732 = vunpack.c.l.b16 %v688
      %v733 = vunpack.c.h.b16 %v688
      %v734 = vunpack.c.l.b16 %v689
      %v735 = vunpack.c.h.b16 %v689
      %v736 = vunpack.c.l.b16 %v690
      %v737 = vunpack.c.h.b16 %v690
      %v738 = vunpack.c.l.b16 %v691
      %v739 = vunpack.c.h.b16 %v691
      %v740 = vpack.c.b16 %v708, %v708
      %v741 = vpack.c.b16 %v709, %v709
      %v742 = vpack.c.b16 %v710, %v710
      %v743 = vpack.c.b16 %v711, %v711
      %v744 = vpack.c.b16 %v712, %v712
      %v745 = vpack.c.b16 %v713, %v713
      %v746 = vpack.c.b16 %v714, %v714
      %v747 = vpack.c.b16 %v715, %v715
      %v748 = vpack.c.b16 %v716, %v716
      %v749 = vpack.c.b16 %v717, %v717
      %v750 = vpack.c.b16 %v718, %v718
      %v751 = vpack.c.b16 %v719, %v719
      %v752 = vpack.c.b16 %v720, %v720
      %v753 = vpack.c.b16 %v721, %v721
      %v754 = vpack.c.b16 %v722, %v722
      %v755 = vpack.c.b16 %v723, %v723
      %v756 = vpack.c.b16 %v724, %v724
      %v757 = vpack.c.b16 %v725, %v725
      %v758 = vpack.c.b16 %v726, %v726
      %v759 = vpack.c.b16 %v727, %v727
      %v760 = vpack.c.b16 %v728, %v728
      %v761 = vpack.c.b16 %v729, %v729
      %v762 = vpack.c.b16 %v730, %v730
      %v763 = vpack.c.b16 %v731, %v731
      %v764 = vpack.c.b16 %v732, %v732
      %v765 = vpack.c.b16 %v733, %v733
      %v766 = vpack.c.b16 %v734, %v734
      %v767 = vpack.c.b16 %v735, %v735
      %v768 = vpack.c.b16 %v736, %v736
      %v769 = vpack.c.b16 %v737, %v737
      %v770 = vpack.c.b16 %v738, %v738
      %v771 = vpack.c.b16 %v739, %v739
      %vm772 = vsmask.f32 256
      %vm773 = vsmask.f32 4368
      %vm774 = vmor %vm772, %vm773
      %v776 = vshrl.u32 %v740, 16
      %v778 = vrot.slane %v776, 7
      %v779 = vshll.u32 %v740, 16
      %v781 = vor.u32 %v778, %v779
      %v782 = vrot.slane %v778, 4
      %v784 = vshrl.u32 %v741, 16
      %v786 = vrot.slane %v784, 7
      %v787 = vshll.u32 %v741, 16
      %v789 = vor.u32 %v786, %v787
      %v790 = vsel %vm774, %v782, %v789
      %v791 = vrot.slane %v786, 4
      %v793 = vshrl.u32 %v742, 16
      %v795 = vrot.slane %v793, 7
      %v796 = vshll.u32 %v742, 16
      %v798 = vor.u32 %v795, %v796
      %v799 = vrot.slane %v795, 4
      %v801 = vshrl.u32 %v743, 16
      %v803 = vrot.slane %v801, 7
      %v804 = vshll.u32 %v743, 16
      %v806 = vor.u32 %v803, %v804
      %v807 = vsel %vm774, %v799, %v806
      %v808 = vrot.slane %v803, 4
      %v810 = vshrl.u32 %v744, 16
      %v812 = vrot.slane %v810, 7
      %v813 = vshll.u32 %v744, 16
      %v815 = vor.u32 %v812, %v813
      %v816 = vrot.slane %v812, 4
      %v818 = vshrl.u32 %v745, 16
      %v820 = vrot.slane %v818, 7
      %v821 = vshll.u32 %v745, 16
      %v823 = vor.u32 %v820, %v821
      %v824 = vsel %vm774, %v816, %v823
      %v825 = vrot.slane %v820, 4
      %v827 = vshrl.u32 %v746, 16
      %v829 = vrot.slane %v827, 7
      %v830 = vshll.u32 %v746, 16
      %v832 = vor.u32 %v829, %v830
      %v833 = vrot.slane %v829, 4
      %v835 = vshrl.u32 %v747, 16
      %v837 = vrot.slane %v835, 7
      %v838 = vshll.u32 %v747, 16
      %v840 = vor.u32 %v837, %v838
      %v841 = vsel %vm774, %v833, %v840
      %v842 = vrot.slane %v837, 4
      %v844 = vshrl.u32 %v748, 16
      %v846 = vrot.slane %v844, 7
      %v847 = vshll.u32 %v748, 16
      %v849 = vor.u32 %v846, %v847
      %v850 = vrot.slane %v846, 4
      %v852 = vshrl.u32 %v749, 16
      %v854 = vrot.slane %v852, 7
      %v855 = vshll.u32 %v749, 16
      %v857 = vor.u32 %v854, %v855
      %v858 = vsel %vm774, %v850, %v857
      %v859 = vrot.slane %v854, 4
      %v861 = vshrl.u32 %v750, 16
      %v863 = vrot.slane %v861, 7
      %v864 = vshll.u32 %v750, 16
      %v866 = vor.u32 %v863, %v864
      %v867 = vrot.slane %v863, 4
      %v869 = vshrl.u32 %v751, 16
      %v871 = vrot.slane %v869, 7
      %v872 = vshll.u32 %v751, 16
      %v874 = vor.u32 %v871, %v872
      %v875 = vsel %vm774, %v867, %v874
      %v876 = vrot.slane %v871, 4
      %v878 = vshrl.u32 %v752, 16
      %v880 = vrot.slane %v878, 7
      %v881 = vshll.u32 %v752, 16
      %v883 = vor.u32 %v880, %v881
      %v884 = vrot.slane %v880, 4
      %v886 = vshrl.u32 %v753, 16
      %v888 = vrot.slane %v886, 7
      %v889 = vshll.u32 %v753, 16
      %v891 = vor.u32 %v888, %v889
      %v892 = vsel %vm774, %v884, %v891
      %v893 = vrot.slane %v888, 4
      %v895 = vshrl.u32 %v754, 16
      %v897 = vrot.slane %v895, 7
      %v898 = vshll.u32 %v754, 16
      %v900 = vor.u32 %v897, %v898
      %v901 = vrot.slane %v897, 4
      %v903 = vshrl.u32 %v755, 16
      %v905 = vrot.slane %v903, 7
      %v906 = vshll.u32 %v755, 16
      %v908 = vor.u32 %v905, %v906
      %v909 = vsel %vm774, %v901, %v908
      %v910 = vrot.slane %v905, 4
      %v912 = vshrl.u32 %v756, 16
      %v914 = vrot.slane %v912, 7
      %v915 = vshll.u32 %v756, 16
      %v917 = vor.u32 %v914, %v915
      %v918 = vrot.slane %v914, 4
      %v920 = vshrl.u32 %v757, 16
      %v922 = vrot.slane %v920, 7
      %v923 = vshll.u32 %v757, 16
      %v925 = vor.u32 %v922, %v923
      %v926 = vsel %vm774, %v918, %v925
      %v927 = vrot.slane %v922, 4
      %v929 = vshrl.u32 %v758, 16
      %v931 = vrot.slane %v929, 7
      %v932 = vshll.u32 %v758, 16
      %v934 = vor.u32 %v931, %v932
      %v935 = vrot.slane %v931, 4
      %v937 = vshrl.u32 %v759, 16
      %v939 = vrot.slane %v937, 7
      %v940 = vshll.u32 %v759, 16
      %v942 = vor.u32 %v939, %v940
      %v943 = vsel %vm774, %v935, %v942
      %v944 = vrot.slane %v939, 4
      %v946 = vshrl.u32 %v760, 16
      %v948 = vrot.slane %v946, 7
      %v949 = vshll.u32 %v760, 16
      %v951 = vor.u32 %v948, %v949
      %v952 = vrot.slane %v948, 4
      %v954 = vshrl.u32 %v761, 16
      %v956 = vrot.slane %v954, 7
      %v957 = vshll.u32 %v761, 16
      %v959 = vor.u32 %v956, %v957
      %v960 = vsel %vm774, %v952, %v959
      %v961 = vrot.slane %v956, 4
      %v963 = vshrl.u32 %v762, 16
      %v965 = vrot.slane %v963, 7
      %v966 = vshll.u32 %v762, 16
      %v968 = vor.u32 %v965, %v966
      %v969 = vrot.slane %v965, 4
      %v971 = vshrl.u32 %v763, 16
      %v973 = vrot.slane %v971, 7
      %v974 = vshll.u32 %v763, 16
      %v976 = vor.u32 %v973, %v974
      %v977 = vsel %vm774, %v969, %v976
      %v978 = vrot.slane %v973, 4
      %v980 = vshrl.u32 %v764, 16
      %v982 = vrot.slane %v980, 7
      %v983 = vshll.u32 %v764, 16
      %v985 = vor.u32 %v982, %v983
      %v986 = vrot.slane %v982, 4
      %v988 = vshrl.u32 %v765, 16
      %v990 = vrot.slane %v988, 7
      %v991 = vshll.u32 %v765, 16
      %v993 = vor.u32 %v990, %v991
      %v994 = vsel %vm774, %v986, %v993
      %v995 = vrot.slane %v990, 4
      %v997 = vshrl.u32 %v766, 16
      %v999 = vrot.slane %v997, 7
      %v1000 = vshll.u32 %v766, 16
      %v1002 = vor.u32 %v999, %v1000
      %v1003 = vrot.slane %v999, 4
      %v1005 = vshrl.u32 %v767, 16
      %v1007 = vrot.slane %v1005, 7
      %v1008 = vshll.u32 %v767, 16
      %v1010 = vor.u32 %v1007, %v1008
      %v1011 = vsel %vm774, %v1003, %v1010
      %v1012 = vrot.slane %v1007, 4
      %v1014 = vshrl.u32 %v768, 16
      %v1016 = vrot.slane %v1014, 7
      %v1017 = vshll.u32 %v768, 16
      %v1019 = vor.u32 %v1016, %v1017
      %v1020 = vrot.slane %v1016, 4
      %v1022 = vshrl.u32 %v769, 16
      %v1024 = vrot.slane %v1022, 7
      %v1025 = vshll.u32 %v769, 16
      %v1027 = vor.u32 %v1024, %v1025
      %v1028 = vsel %vm774, %v1020, %v1027
      %v1029 = vrot.slane %v1024, 4
      %v1031 = vshrl.u32 %v770, 16
      %v1033 = vrot.slane %v1031, 7
      %v1034 = vshll.u32 %v770, 16
      %v1036 = vor.u32 %v1033, %v1034
      %v1037 = vrot.slane %v1033, 4
      %v1039 = vshrl.u32 %v771, 16
      %v1041 = vrot.slane %v1039, 7
      %v1042 = vshll.u32 %v771, 16
      %v1044 = vor.u32 %v1041, %v1042
      %v1045 = vsel %vm774, %v1037, %v1044
      %v1046 = vrot.slane %v1041, 4
      %s1095 = scalar_lea.vmem [#allocation2], 12
      %vm1096 = vcmask 60416
      %vm1097 = vsmask.f32 7938
      %vm1098 = vmand %vm1096, %vm1097
      %v1099 = vld [vmem:[%s1095] sm:$0xf]
      %v1100 = vsel %vm1098, %v781, %v1099
      %1101 = vst [vmem:[%s1095] sm:$0xf] %v1100
      %1102 = vst.msk [vmem:[%s1095 + $0x4] sm:$0xf] %vm620, %v790
      %vm1103 = vcmask 57344
      %vm1104 = vmand %vm1103, %vm772
      %v1105 = vld [vmem:[%s1095 + $0x8] sm:$0x1]
      %v1106 = vsel %vm1104, %v791, %v1105
      %1107 = vst [vmem:[%s1095 + $0x8] sm:$0x1] %v1106
      %v1108 = vld [vmem:[%s1095 + $0xc] sm:$0xf]
      %v1109 = vsel %vm1098, %v798, %v1108
      %1110 = vst [vmem:[%s1095 + $0xc] sm:$0xf] %v1109
      %1111 = vst.msk [vmem:[%s1095 + $0x10] sm:$0xf] %vm620, %v807
      %v1112 = vld [vmem:[%s1095 + $0x14] sm:$0x1]
      %v1113 = vsel %vm1104, %v808, %v1112
      %1114 = vst [vmem:[%s1095 + $0x14] sm:$0x1] %v1113
      %v1115 = vld [vmem:[%s1095 + $0x18] sm:$0xf]
      %v1116 = vsel %vm1098, %v815, %v1115
      %1117 = vst [vmem:[%s1095 + $0x18] sm:$0xf] %v1116
      %1118 = vst.msk [vmem:[%s1095 + $0x1c] sm:$0xf] %vm620, %v824
      %v1119 = vld [vmem:[%s1095 + $0x20] sm:$0x1]
      %v1120 = vsel %vm1104, %v825, %v1119
      %1121 = vst [vmem:[%s1095 + $0x20] sm:$0x1] %v1120
      %v1122 = vld [vmem:[%s1095 + $0x24] sm:$0xf]
      %v1123 = vsel %vm1098, %v832, %v1122
      %1124 = vst [vmem:[%s1095 + $0x24] sm:$0xf] %v1123
      %1125 = vst.msk [vmem:[%s1095 + $0x28] sm:$0xf] %vm620, %v841
      %v1126 = vld [vmem:[%s1095 + $0x2c] sm:$0x1]
      %v1127 = vsel %vm1104, %v842, %v1126
      %1128 = vst [vmem:[%s1095 + $0x2c] sm:$0x1] %v1127
      %v1129 = vld [vmem:[%s1095 + $0x30] sm:$0xf]
      %v1130 = vsel %vm1098, %v849, %v1129
      %1131 = vst [vmem:[%s1095 + $0x30] sm:$0xf] %v1130
      %1132 = vst.msk [vmem:[%s1095 + $0x34] sm:$0xf] %vm620, %v858
      %v1133 = vld [vmem:[%s1095 + $0x38] sm:$0x1]
      %v1134 = vsel %vm1104, %v859, %v1133
      %1135 = vst [vmem:[%s1095 + $0x38] sm:$0x1] %v1134
      %v1136 = vld [vmem:[%s1095 + $0x3c] sm:$0xf]
      %v1137 = vsel %vm1098, %v866, %v1136
      %1138 = vst [vmem:[%s1095 + $0x3c] sm:$0xf] %v1137
      %1139 = vst.msk [vmem:[%s1095 + $0x40] sm:$0xf] %vm620, %v875
      %v1140 = vld [vmem:[%s1095 + $0x44] sm:$0x1]
      %v1141 = vsel %vm1104, %v876, %v1140
      %1142 = vst [vmem:[%s1095 + $0x44] sm:$0x1] %v1141
      %v1143 = vld [vmem:[%s1095 + $0x48] sm:$0xf]
      %v1144 = vsel %vm1098, %v883, %v1143
      %1145 = vst [vmem:[%s1095 + $0x48] sm:$0xf] %v1144
      %1146 = vst.msk [vmem:[%s1095 + $0x4c] sm:$0xf] %vm620, %v892
      %v1147 = vld [vmem:[%s1095 + $0x50] sm:$0x1]
      %v1148 = vsel %vm1104, %v893, %v1147
      %1149 = vst [vmem:[%s1095 + $0x50] sm:$0x1] %v1148
      %v1150 = vld [vmem:[%s1095 + $0x54] sm:$0xf]
      %v1151 = vsel %vm1098, %v900, %v1150
      %1152 = vst [vmem:[%s1095 + $0x54] sm:$0xf] %v1151
      %1153 = vst.msk [vmem:[%s1095 + $0x58] sm:$0xf] %vm620, %v909
      %v1154 = vld [vmem:[%s1095 + $0x5c] sm:$0x1]
      %v1155 = vsel %vm1104, %v910, %v1154
      %1156 = vst [vmem:[%s1095 + $0x5c] sm:$0x1] %v1155
      %v1157 = vld [vmem:[%s1095 + $0x60] sm:$0xf]
      %v1158 = vsel %vm1098, %v917, %v1157
      %1159 = vst [vmem:[%s1095 + $0x60] sm:$0xf] %v1158
      %1160 = vst.msk [vmem:[%s1095 + $0x64] sm:$0xf] %vm620, %v926
      %v1161 = vld [vmem:[%s1095 + $0x68] sm:$0x1]
      %v1162 = vsel %vm1104, %v927, %v1161
      %1163 = vst [vmem:[%s1095 + $0x68] sm:$0x1] %v1162
      %v1164 = vld [vmem:[%s1095 + $0x6c] sm:$0xf]
      %v1165 = vsel %vm1098, %v934, %v1164
      %1166 = vst [vmem:[%s1095 + $0x6c] sm:$0xf] %v1165
      %1167 = vst.msk [vmem:[%s1095 + $0x70] sm:$0xf] %vm620, %v943
      %v1168 = vld [vmem:[%s1095 + $0x74] sm:$0x1]
      %v1169 = vsel %vm1104, %v944, %v1168
      %1170 = vst [vmem:[%s1095 + $0x74] sm:$0x1] %v1169
      %v1171 = vld [vmem:[%s1095 + $0x78] sm:$0xf]
      %v1172 = vsel %vm1098, %v951, %v1171
      %1173 = vst [vmem:[%s1095 + $0x78] sm:$0xf] %v1172
      %1174 = vst.msk [vmem:[%s1095 + $0x7c] sm:$0xf] %vm620, %v960
      %v1175 = vld [vmem:[%s1095 + $0x80] sm:$0x1]
      %v1176 = vsel %vm1104, %v961, %v1175
      %1177 = vst [vmem:[%s1095 + $0x80] sm:$0x1] %v1176
      %v1178 = vld [vmem:[%s1095 + $0x84] sm:$0xf]
      %v1179 = vsel %vm1098, %v968, %v1178
      %1180 = vst [vmem:[%s1095 + $0x84] sm:$0xf] %v1179
      %1181 = vst.msk [vmem:[%s1095 + $0x88] sm:$0xf] %vm620, %v977
      %v1182 = vld [vmem:[%s1095 + $0x8c] sm:$0x1]
      %v1183 = vsel %vm1104, %v978, %v1182
      %1184 = vst [vmem:[%s1095 + $0x8c] sm:$0x1] %v1183
      %v1185 = vld [vmem:[%s1095 + $0x90] sm:$0xf]
      %v1186 = vsel %vm1098, %v985, %v1185
      %1187 = vst [vmem:[%s1095 + $0x90] sm:$0xf] %v1186
      %1188 = vst.msk [vmem:[%s1095 + $0x94] sm:$0xf] %vm620, %v994
      %v1189 = vld [vmem:[%s1095 + $0x98] sm:$0x1]
      %v1190 = vsel %vm1104, %v995, %v1189
      %1191 = vst [vmem:[%s1095 + $0x98] sm:$0x1] %v1190
      %v1192 = vld [vmem:[%s1095 + $0x9c] sm:$0xf]
      %v1193 = vsel %vm1098, %v1002, %v1192
      %1194 = vst [vmem:[%s1095 + $0x9c] sm:$0xf] %v1193
      %1195 = vst.msk [vmem:[%s1095 + $0xa0] sm:$0xf] %vm620, %v1011
      %v1196 = vld [vmem:[%s1095 + $0xa4] sm:$0x1]
      %v1197 = vsel %vm1104, %v1012, %v1196
      %1198 = vst [vmem:[%s1095 + $0xa4] sm:$0x1] %v1197
      %v1199 = vld [vmem:[%s1095 + $0xa8] sm:$0xf]
      %v1200 = vsel %vm1098, %v1019, %v1199
      %1201 = vst [vmem:[%s1095 + $0xa8] sm:$0xf] %v1200
      %1202 = vst.msk [vmem:[%s1095 + $0xac] sm:$0xf] %vm620, %v1028
      %v1203 = vld [vmem:[%s1095 + $0xb0] sm:$0x1]
      %v1204 = vsel %vm1104, %v1029, %v1203
      %1205 = vst [vmem:[%s1095 + $0xb0] sm:$0x1] %v1204
      %v1206 = vld [vmem:[%s1095 + $0xb4] sm:$0xf]
      %v1207 = vsel %vm1098, %v1036, %v1206
      %1208 = vst [vmem:[%s1095 + $0xb4] sm:$0xf] %v1207
      %1209 = vst.msk [vmem:[%s1095 + $0xb8] sm:$0xf] %vm620, %v1045
      %v1210 = vld [vmem:[%s1095 + $0xbc] sm:$0x1]
      %v1211 = vsel %vm1104, %v1046, %v1210
      %1212 = vst [vmem:[%s1095 + $0xbc] sm:$0x1] %v1211
      %v1213 = vld [vmem:[#allocation2] sm:$0xf]
      %v1214 = vld [vmem:[#allocation2 + $0x4] sm:$0xf]
      %v1215 = vld [vmem:[#allocation2 + $0xc] sm:$0xf]
      %v1216 = vld [vmem:[#allocation2 + $0x10] sm:$0xf]
      %v1217 = vld [vmem:[#allocation2 + $0x18] sm:$0xf]
      %v1218 = vld [vmem:[#allocation2 + $0x1c] sm:$0xf]
      %v1219 = vld [vmem:[#allocation2 + $0x24] sm:$0xf]
      %v1220 = vld [vmem:[#allocation2 + $0x28] sm:$0xf]
      %v1221 = vld [vmem:[#allocation2 + $0x30] sm:$0xf]
      %v1222 = vld [vmem:[#allocation2 + $0x34] sm:$0xf]
      %v1223 = vld [vmem:[#allocation2 + $0x3c] sm:$0xf]
      %v1224 = vld [vmem:[#allocation2 + $0x40] sm:$0xf]
      %v1225 = vld [vmem:[#allocation2 + $0x48] sm:$0xf]
      %v1226 = vld [vmem:[#allocation2 + $0x4c] sm:$0xf]
      %v1227 = vld [vmem:[#allocation2 + $0x54] sm:$0xf]
      %v1228 = vld [vmem:[#allocation2 + $0x58] sm:$0xf]
      %v1229 = vld [vmem:[#allocation2 + $0x60] sm:$0xf]
      %v1230 = vld [vmem:[#allocation2 + $0x64] sm:$0xf]
      %v1231 = vld [vmem:[#allocation2 + $0x6c] sm:$0xf]
      %v1232 = vld [vmem:[#allocation2 + $0x70] sm:$0xf]
      %v1233 = vld [vmem:[#allocation2 + $0x78] sm:$0xf]
      %v1234 = vld [vmem:[#allocation2 + $0x7c] sm:$0xf]
      %v1235 = vld [vmem:[#allocation2 + $0x84] sm:$0xf]
      %v1236 = vld [vmem:[#allocation2 + $0x88] sm:$0xf]
      %v1237 = vld [vmem:[#allocation2 + $0x90] sm:$0xf]
      %v1238 = vld [vmem:[#allocation2 + $0x94] sm:$0xf]
      %v1239 = vld [vmem:[#allocation2 + $0x9c] sm:$0xf]
      %v1240 = vld [vmem:[#allocation2 + $0xa0] sm:$0xf]
      %v1241 = vld [vmem:[#allocation2 + $0xa8] sm:$0xf]
      %v1242 = vld [vmem:[#allocation2 + $0xac] sm:$0xf]
      %v1243 = vld [vmem:[#allocation2 + $0xb4] sm:$0xf]
      %v1244 = vld [vmem:[#allocation2 + $0xb8] sm:$0xf]
      %v1245 = vld [vmem:[%s2] sm:$0xf]
      %v1246 = vld [vmem:[#allocation2 + $0x8] sm:$0x1]
      %v1247 = vld [vmem:[#allocation2 + $0x14] sm:$0x1]
      %v1248 = vld [vmem:[#allocation2 + $0x20] sm:$0x1]
      %v1249 = vld [vmem:[#allocation2 + $0x2c] sm:$0x1]
      %v1250 = vld [vmem:[#allocation2 + $0x38] sm:$0x1]
      %v1251 = vld [vmem:[#allocation2 + $0x44] sm:$0x1]
      %v1252 = vld [vmem:[#allocation2 + $0x50] sm:$0x1]
      %v1253 = vld [vmem:[#allocation2 + $0x5c] sm:$0x1]
      %v1254 = vld [vmem:[#allocation2 + $0x68] sm:$0x1]
      %v1255 = vld [vmem:[#allocation2 + $0x74] sm:$0x1]
      %v1256 = vld [vmem:[#allocation2 + $0x80] sm:$0x1]
      %v1257 = vld [vmem:[#allocation2 + $0x8c] sm:$0x1]
      %v1258 = vld [vmem:[#allocation2 + $0x98] sm:$0x1]
      %v1259 = vld [vmem:[#allocation2 + $0xa4] sm:$0x1]
      %v1260 = vld [vmem:[#allocation2 + $0xb0] sm:$0x1]
      %v1261 = vld [vmem:[#allocation2 + $0xbc] sm:$0x1]
      %vm1262 = vsmask.f32 3328
      %vm1263 = vsmask.f32 7440
      %vm1264 = vmor %vm1262, %vm1263
      %v1266 = vshrl.u32 %v1213, 16
      %v1268 = vrot.slane %v1266, 4
      %v1269 = vshll.u32 %v1213, 16
      %v1271 = vrot.slane %v1269, 5
      %v1272 = vor.u32 %v1268, %v1271
      %v1273 = vrot.slane %v1272, 4
      %v1275 = vshll.u32 %v1214, 16
      %v1277 = vrot.slane %v1275, 5
      %v1278 = vsel %vm1264, %v1273, %v1277
      %v1279 = vshrl.u32 %v1214, 16
      %v1281 = vrot.slane %v1279, 4
      %v1282 = vor.u32 %v1281, %v1277
      %v1283 = vrot.slane %v1282, 4
      %v1285 = vshll.u32 %v1246, 16
      %v1287 = vrot.slane %v1285, 5
      %v1288 = vsel %vm1264, %v1283, %v1287
      %v1290 = vshrl.u32 %v1215, 16
      %v1292 = vrot.slane %v1290, 4
      %v1293 = vshll.u32 %v1215, 16
      %v1295 = vrot.slane %v1293, 5
      %v1296 = vor.u32 %v1292, %v1295
      %v1297 = vrot.slane %v1296, 4
      %v1299 = vshll.u32 %v1216, 16
      %v1301 = vrot.slane %v1299, 5
      %v1302 = vsel %vm1264, %v1297, %v1301
      %v1303 = vshrl.u32 %v1216, 16
      %v1305 = vrot.slane %v1303, 4
      %v1306 = vor.u32 %v1305, %v1301
      %v1307 = vrot.slane %v1306, 4
      %v1309 = vshll.u32 %v1247, 16
      %v1311 = vrot.slane %v1309, 5
      %v1312 = vsel %vm1264, %v1307, %v1311
      %v1314 = vshrl.u32 %v1217, 16
      %v1316 = vrot.slane %v1314, 4
      %v1317 = vshll.u32 %v1217, 16
      %v1319 = vrot.slane %v1317, 5
      %v1320 = vor.u32 %v1316, %v1319
      %v1321 = vrot.slane %v1320, 4
      %v1323 = vshll.u32 %v1218, 16
      %v1325 = vrot.slane %v1323, 5
      %v1326 = vsel %vm1264, %v1321, %v1325
      %v1327 = vshrl.u32 %v1218, 16
      %v1329 = vrot.slane %v1327, 4
      %v1330 = vor.u32 %v1329, %v1325
      %v1331 = vrot.slane %v1330, 4
      %v1333 = vshll.u32 %v1248, 16
      %v1335 = vrot.slane %v1333, 5
      %v1336 = vsel %vm1264, %v1331, %v1335
      %v1338 = vshrl.u32 %v1219, 16
      %v1340 = vrot.slane %v1338, 4
      %v1341 = vshll.u32 %v1219, 16
      %v1343 = vrot.slane %v1341, 5
      %v1344 = vor.u32 %v1340, %v1343
      %v1345 = vrot.slane %v1344, 4
      %v1347 = vshll.u32 %v1220, 16
      %v1349 = vrot.slane %v1347, 5
      %v1350 = vsel %vm1264, %v1345, %v1349
      %v1351 = vshrl.u32 %v1220, 16
      %v1353 = vrot.slane %v1351, 4
      %v1354 = vor.u32 %v1353, %v1349
      %v1355 = vrot.slane %v1354, 4
      %v1357 = vshll.u32 %v1249, 16
      %v1359 = vrot.slane %v1357, 5
      %v1360 = vsel %vm1264, %v1355, %v1359
      %v1362 = vshrl.u32 %v1221, 16
      %v1364 = vrot.slane %v1362, 4
      %v1365 = vshll.u32 %v1221, 16
      %v1367 = vrot.slane %v1365, 5
      %v1368 = vor.u32 %v1364, %v1367
      %v1369 = vrot.slane %v1368, 4
      %v1371 = vshll.u32 %v1222, 16
      %v1373 = vrot.slane %v1371, 5
      %v1374 = vsel %vm1264, %v1369, %v1373
      %v1375 = vshrl.u32 %v1222, 16
      %v1377 = vrot.slane %v1375, 4
      %v1378 = vor.u32 %v1377, %v1373
      %v1379 = vrot.slane %v1378, 4
      %v1381 = vshll.u32 %v1250, 16
      %v1383 = vrot.slane %v1381, 5
      %v1384 = vsel %vm1264, %v1379, %v1383
      %v1386 = vshrl.u32 %v1223, 16
      %v1388 = vrot.slane %v1386, 4
      %v1389 = vshll.u32 %v1223, 16
      %v1391 = vrot.slane %v1389, 5
      %v1392 = vor.u32 %v1388, %v1391
      %v1393 = vrot.slane %v1392, 4
      %v1395 = vshll.u32 %v1224, 16
      %v1397 = vrot.slane %v1395, 5
      %v1398 = vsel %vm1264, %v1393, %v1397
      %v1399 = vshrl.u32 %v1224, 16
      %v1401 = vrot.slane %v1399, 4
      %v1402 = vor.u32 %v1401, %v1397
      %v1403 = vrot.slane %v1402, 4
      %v1405 = vshll.u32 %v1251, 16
      %v1407 = vrot.slane %v1405, 5
      %v1408 = vsel %vm1264, %v1403, %v1407
      %v1410 = vshrl.u32 %v1225, 16
      %v1412 = vrot.slane %v1410, 4
      %v1413 = vshll.u32 %v1225, 16
      %v1415 = vrot.slane %v1413, 5
      %v1416 = vor.u32 %v1412, %v1415
      %v1417 = vrot.slane %v1416, 4
      %v1419 = vshll.u32 %v1226, 16
      %v1421 = vrot.slane %v1419, 5
      %v1422 = vsel %vm1264, %v1417, %v1421
      %v1423 = vshrl.u32 %v1226, 16
      %v1425 = vrot.slane %v1423, 4
      %v1426 = vor.u32 %v1425, %v1421
      %v1427 = vrot.slane %v1426, 4
      %v1429 = vshll.u32 %v1252, 16
      %v1431 = vrot.slane %v1429, 5
      %v1432 = vsel %vm1264, %v1427, %v1431
      %v1434 = vshrl.u32 %v1227, 16
      %v1436 = vrot.slane %v1434, 4
      %v1437 = vshll.u32 %v1227, 16
      %v1439 = vrot.slane %v1437, 5
      %v1440 = vor.u32 %v1436, %v1439
      %v1441 = vrot.slane %v1440, 4
      %v1443 = vshll.u32 %v1228, 16
      %v1445 = vrot.slane %v1443, 5
      %v1446 = vsel %vm1264, %v1441, %v1445
      %v1447 = vshrl.u32 %v1228, 16
      %v1449 = vrot.slane %v1447, 4
      %v1450 = vor.u32 %v1449, %v1445
      %v1451 = vrot.slane %v1450, 4
      %v1453 = vshll.u32 %v1253, 16
      %v1455 = vrot.slane %v1453, 5
      %v1456 = vsel %vm1264, %v1451, %v1455
      %v1458 = vshrl.u32 %v1229, 16
      %v1460 = vrot.slane %v1458, 4
      %v1461 = vshll.u32 %v1229, 16
      %v1463 = vrot.slane %v1461, 5
      %v1464 = vor.u32 %v1460, %v1463
      %v1465 = vrot.slane %v1464, 4
      %v1467 = vshll.u32 %v1230, 16
      %v1469 = vrot.slane %v1467, 5
      %v1470 = vsel %vm1264, %v1465, %v1469
      %v1471 = vshrl.u32 %v1230, 16
      %v1473 = vrot.slane %v1471, 4
      %v1474 = vor.u32 %v1473, %v1469
      %v1475 = vrot.slane %v1474, 4
      %v1477 = vshll.u32 %v1254, 16
      %v1479 = vrot.slane %v1477, 5
      %v1480 = vsel %vm1264, %v1475, %v1479
      %v1482 = vshrl.u32 %v1231, 16
      %v1484 = vrot.slane %v1482, 4
      %v1485 = vshll.u32 %v1231, 16
      %v1487 = vrot.slane %v1485, 5
      %v1488 = vor.u32 %v1484, %v1487
      %v1489 = vrot.slane %v1488, 4
      %v1491 = vshll.u32 %v1232, 16
      %v1493 = vrot.slane %v1491, 5
      %v1494 = vsel %vm1264, %v1489, %v1493
      %v1495 = vshrl.u32 %v1232, 16
      %v1497 = vrot.slane %v1495, 4
      %v1498 = vor.u32 %v1497, %v1493
      %v1499 = vrot.slane %v1498, 4
      %v1501 = vshll.u32 %v1255, 16
      %v1503 = vrot.slane %v1501, 5
      %v1504 = vsel %vm1264, %v1499, %v1503
      %v1506 = vshrl.u32 %v1233, 16
      %v1508 = vrot.slane %v1506, 4
      %v1509 = vshll.u32 %v1233, 16
      %v1511 = vrot.slane %v1509, 5
      %v1512 = vor.u32 %v1508, %v1511
      %v1513 = vrot.slane %v1512, 4
      %v1515 = vshll.u32 %v1234, 16
      %v1517 = vrot.slane %v1515, 5
      %v1518 = vsel %vm1264, %v1513, %v1517
      %v1519 = vshrl.u32 %v1234, 16
      %v1521 = vrot.slane %v1519, 4
      %v1522 = vor.u32 %v1521, %v1517
      %v1523 = vrot.slane %v1522, 4
      %v1525 = vshll.u32 %v1256, 16
      %v1527 = vrot.slane %v1525, 5
      %v1528 = vsel %vm1264, %v1523, %v1527
      %v1530 = vshrl.u32 %v1235, 16
      %v1532 = vrot.slane %v1530, 4
      %v1533 = vshll.u32 %v1235, 16
      %v1535 = vrot.slane %v1533, 5
      %v1536 = vor.u32 %v1532, %v1535
      %v1537 = vrot.slane %v1536, 4
      %v1539 = vshll.u32 %v1236, 16
      %v1541 = vrot.slane %v1539, 5
      %v1542 = vsel %vm1264, %v1537, %v1541
      %v1543 = vshrl.u32 %v1236, 16
      %v1545 = vrot.slane %v1543, 4
      %v1546 = vor.u32 %v1545, %v1541
      %v1547 = vrot.slane %v1546, 4
      %v1549 = vshll.u32 %v1257, 16
      %v1551 = vrot.slane %v1549, 5
      %v1552 = vsel %vm1264, %v1547, %v1551
      %v1554 = vshrl.u32 %v1237, 16
      %v1556 = vrot.slane %v1554, 4
      %v1557 = vshll.u32 %v1237, 16
      %v1559 = vrot.slane %v1557, 5
      %v1560 = vor.u32 %v1556, %v1559
      %v1561 = vrot.slane %v1560, 4
      %v1563 = vshll.u32 %v1238, 16
      %v1565 = vrot.slane %v1563, 5
      %v1566 = vsel %vm1264, %v1561, %v1565
      %v1567 = vshrl.u32 %v1238, 16
      %v1569 = vrot.slane %v1567, 4
      %v1570 = vor.u32 %v1569, %v1565
      %v1571 = vrot.slane %v1570, 4
      %v1573 = vshll.u32 %v1258, 16
      %v1575 = vrot.slane %v1573, 5
      %v1576 = vsel %vm1264, %v1571, %v1575
      %v1578 = vshrl.u32 %v1239, 16
      %v1580 = vrot.slane %v1578, 4
      %v1581 = vshll.u32 %v1239, 16
      %v1583 = vrot.slane %v1581, 5
      %v1584 = vor.u32 %v1580, %v1583
      %v1585 = vrot.slane %v1584, 4
      %v1587 = vshll.u32 %v1240, 16
      %v1589 = vrot.slane %v1587, 5
      %v1590 = vsel %vm1264, %v1585, %v1589
      %v1591 = vshrl.u32 %v1240, 16
      %v1593 = vrot.slane %v1591, 4
      %v1594 = vor.u32 %v1593, %v1589
      %v1595 = vrot.slane %v1594, 4
      %v1597 = vshll.u32 %v1259, 16
      %v1599 = vrot.slane %v1597, 5
      %v1600 = vsel %vm1264, %v1595, %v1599
      %v1602 = vshrl.u32 %v1241, 16
      %v1604 = vrot.slane %v1602, 4
      %v1605 = vshll.u32 %v1241, 16
      %v1607 = vrot.slane %v1605, 5
      %v1608 = vor.u32 %v1604, %v1607
      %v1609 = vrot.slane %v1608, 4
      %v1611 = vshll.u32 %v1242, 16
      %v1613 = vrot.slane %v1611, 5
      %v1614 = vsel %vm1264, %v1609, %v1613
      %v1615 = vshrl.u32 %v1242, 16
      %v1617 = vrot.slane %v1615, 4
      %v1618 = vor.u32 %v1617, %v1613
      %v1619 = vrot.slane %v1618, 4
      %v1621 = vshll.u32 %v1260, 16
      %v1623 = vrot.slane %v1621, 5
      %v1624 = vsel %vm1264, %v1619, %v1623
      %v1626 = vshrl.u32 %v1243, 16
      %v1628 = vrot.slane %v1626, 4
      %v1629 = vshll.u32 %v1243, 16
      %v1631 = vrot.slane %v1629, 5
      %v1632 = vor.u32 %v1628, %v1631
      %v1633 = vrot.slane %v1632, 4
      %v1635 = vshll.u32 %v1244, 16
      %v1637 = vrot.slane %v1635, 5
      %v1638 = vsel %vm1264, %v1633, %v1637
      %v1639 = vshrl.u32 %v1244, 16
      %v1641 = vrot.slane %v1639, 4
      %v1642 = vor.u32 %v1641, %v1637
      %v1643 = vrot.slane %v1642, 4
      %v1645 = vshll.u32 %v1261, 16
      %v1647 = vrot.slane %v1645, 5
      %v1648 = vsel %vm1264, %v1643, %v1647
      %s1649 = scalar_lea.vmem %s2, 4
      %v1650 = vld [vmem:[%s1649] sm:$0xf]
      %v1651 = vunpack.c.l.b16 %v1278
      %v1652 = vunpack.c.l.b16 %v1288
      %v1653 = vunpack.c.l.b16 %v1302
      %v1654 = vunpack.c.l.b16 %v1312
      %v1655 = vunpack.c.l.b16 %v1326
      %v1656 = vunpack.c.l.b16 %v1336
      %v1657 = vunpack.c.l.b16 %v1350
      %v1658 = vunpack.c.l.b16 %v1360
      %v1659 = vunpack.c.l.b16 %v1374
      %v1660 = vunpack.c.l.b16 %v1384
      %v1661 = vunpack.c.l.b16 %v1398
      %v1662 = vunpack.c.l.b16 %v1408
      %v1663 = vunpack.c.l.b16 %v1422
      %v1664 = vunpack.c.l.b16 %v1432
      %v1665 = vunpack.c.l.b16 %v1446
      %v1666 = vunpack.c.l.b16 %v1456
      %v1667 = vunpack.c.l.b16 %v1470
      %v1668 = vunpack.c.l.b16 %v1480
      %v1669 = vunpack.c.l.b16 %v1494
      %v1670 = vunpack.c.l.b16 %v1504
      %v1671 = vunpack.c.l.b16 %v1518
      %v1672 = vunpack.c.l.b16 %v1528
      %v1673 = vunpack.c.l.b16 %v1542
      %v1674 = vunpack.c.l.b16 %v1552
      %v1675 = vunpack.c.l.b16 %v1566
      %v1676 = vunpack.c.l.b16 %v1576
      %v1677 = vunpack.c.l.b16 %v1590
      %v1678 = vunpack.c.l.b16 %v1600
      %v1679 = vunpack.c.l.b16 %v1614
      %v1680 = vunpack.c.l.b16 %v1624
      %v1681 = vunpack.c.l.b16 %v1638
      %v1682 = vunpack.c.l.b16 %v1648
      %v1683 = vpack.c.b16 %v1652, %v1651
      %v1684 = vpack.c.b16 %v1654, %v1653
      %v1685 = vpack.c.b16 %v1656, %v1655
      %v1686 = vpack.c.b16 %v1658, %v1657
      %v1687 = vpack.c.b16 %v1660, %v1659
      %v1688 = vpack.c.b16 %v1662, %v1661
      %v1689 = vpack.c.b16 %v1664, %v1663
      %v1690 = vpack.c.b16 %v1666, %v1665
      %v1691 = vpack.c.b16 %v1668, %v1667
      %v1692 = vpack.c.b16 %v1670, %v1669
      %v1693 = vpack.c.b16 %v1672, %v1671
      %v1694 = vpack.c.b16 %v1674, %v1673
      %v1695 = vpack.c.b16 %v1676, %v1675
      %v1696 = vpack.c.b16 %v1678, %v1677
      %v1697 = vpack.c.b16 %v1680, %v1679
      %v1698 = vpack.c.b16 %v1682, %v1681
      %vm1699 = vcmask 64512
      %v1701 = vsel %vm1699, %v1683, 0
      %v1704 = vsel %vm1699, %v1684, 0
      %v1707 = vsel %vm1699, %v1685, 0
      %v1710 = vsel %vm1699, %v1686, 0
      %v1713 = vsel %vm1699, %v1687, 0
      %v1716 = vsel %vm1699, %v1688, 0
      %v1719 = vsel %vm1699, %v1689, 0
      %v1722 = vsel %vm1699, %v1690, 0
      %v1725 = vsel %vm1699, %v1691, 0
      %v1728 = vsel %vm1699, %v1692, 0
      %v1731 = vsel %vm1699, %v1693, 0
      %v1734 = vsel %vm1699, %v1694, 0
      %v1737 = vsel %vm1699, %v1695, 0
      %v1740 = vsel %vm1699, %v1696, 0
      %v1743 = vsel %vm1699, %v1697, 0
      %v1746 = vsel %vm1699, %v1698, 0
      %vm1748 = vcmask 1043456
      %v1750 = vsel %vm1748, %v1650, 0
      %1752 = vmatprep.subr.bf16.mxu0 0
      %1753 = vmatpush1.bf16.msra.mxu0 %v1750
      %1754 = vmatprep.subr.bf16.mxu0 0
      %1755 = vmatpush1.bf16.msra.mxu0 0
      %1756 = vmatprep.subr.bf16.mxu0 0
      %1757 = vmatpush1.bf16.msra.mxu0 0
      %1758 = vmatprep.subr.bf16.mxu0 0
      %1759 = vmatpush1.bf16.msra.mxu0 0
      %1760 = vmatprep.subr.bf16.mxu0 0
      %1761 = vmatpush1.bf16.msra.mxu0 0
      %1762 = vmatprep.subr.bf16.mxu0 0
      %1763 = vmatpush1.bf16.msra.mxu0 0
      %1764 = vmatprep.subr.bf16.mxu0 0
      %1765 = vmatpush1.bf16.msra.mxu0 0
      %1766 = vmatprep.subr.bf16.mxu0 0
      %1767 = vmatpush1.bf16.msra.mxu0 0
      %1768 = vmatprep.subr.bf16.mxu0 0
      %1769 = vmatpush1.bf16.msra.mxu0 0
      %1770 = vmatprep.subr.bf16.mxu0 0
      %1771 = vmatpush1.bf16.msra.mxu0 0
      %1772 = vmatprep.subr.bf16.mxu0 0
      %1773 = vmatpush1.bf16.msra.mxu0 0
      %1774 = vmatprep.subr.bf16.mxu0 0
      %1775 = vmatpush1.bf16.msra.mxu0 0
      %1776 = vmatprep.subr.bf16.mxu0 0
      %1777 = vmatpush1.bf16.msra.mxu0 0
      %1778 = vmatprep.subr.bf16.mxu0 0
      %1779 = vmatpush1.bf16.msra.mxu0 0
      %1780 = vmatprep.subr.bf16.mxu0 0
      %1781 = vmatpush1.bf16.msra.mxu0 0
      %1782 = vmatprep.subr.bf16.mxu0 0
      %1783 = vmatpush1.bf16.msra.mxu0 0
      %1784 = vmatprep.mubr.bf16.mxu0 0
      %1785 = vmatmul.mubr.bf16.gmra.mrb[0].mxu0 %v1701
      %v1786 = vpop.f32.mrb[0].mxu0
      %v1787 = vadd.f32 0.0, %v1786
      %v1788 = vpop.f32.mrb[0].mxu0
      %v1789 = vpop.f32.mrb[0].mxu0
      %v1790 = vadd.f32 0.0, %v1789
      %v1791 = vpop.f32.mrb[0].mxu0
      %1792 = vmatprep.mubr.bf16.mxu0 0
      %1793 = vmatmul.mubr.bf16.gmra.mrb[0].mxu0 %v1704
      %v1794 = vpop.f32.mrb[0].mxu0
      %v1795 = vadd.f32 0.0, %v1794
      %v1796 = vpop.f32.mrb[0].mxu0
      %v1797 = vpop.f32.mrb[0].mxu0
      %v1798 = vadd.f32 0.0, %v1797
      %v1799 = vpop.f32.mrb[0].mxu0
      %1800 = vmatprep.mubr.bf16.mxu0 0
      %1801 = vmatmul.mubr.bf16.gmra.mrb[0].mxu0 %v1707
      %v1802 = vpop.f32.mrb[0].mxu0
      %v1803 = vadd.f32 0.0, %v1802
      %v1804 = vpop.f32.mrb[0].mxu0
      %v1805 = vpop.f32.mrb[0].mxu0
      %v1806 = vadd.f32 0.0, %v1805
      %v1807 = vpop.f32.mrb[0].mxu0
      %1808 = vmatprep.mubr.bf16.mxu0 0
      %1809 = vmatmul.mubr.bf16.gmra.mrb[0].mxu0 %v1710
      %v1810 = vpop.f32.mrb[0].mxu0
      %v1811 = vadd.f32 0.0, %v1810
      %v1812 = vpop.f32.mrb[0].mxu0
      %v1813 = vpop.f32.mrb[0].mxu0
      %v1814 = vadd.f32 0.0, %v1813
      %v1815 = vpop.f32.mrb[0].mxu0
      %1816 = vmatprep.mubr.bf16.mxu0 0
      %1817 = vmatmul.mubr.bf16.gmra.mrb[0].mxu0 %v1713
      %v1818 = vpop.f32.mrb[0].mxu0
      %v1819 = vadd.f32 0.0, %v1818
      %v1820 = vpop.f32.mrb[0].mxu0
      %v1821 = vpop.f32.mrb[0].mxu0
      %v1822 = vadd.f32 0.0, %v1821
      %v1823 = vpop.f32.mrb[0].mxu0
      %1824 = vmatprep.mubr.bf16.mxu0 0
      %1825 = vmatmul.mubr.bf16.gmra.mrb[0].mxu0 %v1716
      %v1826 = vpop.f32.mrb[0].mxu0
      %v1827 = vadd.f32 0.0, %v1826
      %v1828 = vpop.f32.mrb[0].mxu0
      %v1829 = vpop.f32.mrb[0].mxu0
      %v1830 = vadd.f32 0.0, %v1829
      %v1831 = vpop.f32.mrb[0].mxu0
      %1832 = vmatprep.mubr.bf16.mxu0 0
      %1833 = vmatmul.mubr.bf16.gmra.mrb[0].mxu0 %v1719
      %v1834 = vpop.f32.mrb[0].mxu0
      %v1835 = vadd.f32 0.0, %v1834
      %v1836 = vpop.f32.mrb[0].mxu0
      %v1837 = vpop.f32.mrb[0].mxu0
      %v1838 = vadd.f32 0.0, %v1837
      %v1839 = vpop.f32.mrb[0].mxu0
      %1840 = vmatprep.mubr.bf16.mxu0 0
      %1841 = vmatmul.mubr.bf16.gmra.mrb[0].mxu0 %v1722
      %v1842 = vpop.f32.mrb[0].mxu0
      %v1843 = vadd.f32 0.0, %v1842
      %v1844 = vpop.f32.mrb[0].mxu0
      %v1845 = vpop.f32.mrb[0].mxu0
      %v1846 = vadd.f32 0.0, %v1845
      %v1847 = vpop.f32.mrb[0].mxu0
      %1848 = vmatprep.mubr.bf16.mxu0 0
      %1849 = vmatmul.mubr.bf16.gmra.mrb[0].mxu0 %v1725
      %v1850 = vpop.f32.mrb[0].mxu0
      %v1851 = vadd.f32 0.0, %v1850
      %v1852 = vpop.f32.mrb[0].mxu0
      %v1853 = vpop.f32.mrb[0].mxu0
      %v1854 = vadd.f32 0.0, %v1853
      %v1855 = vpop.f32.mrb[0].mxu0
      %1856 = vmatprep.mubr.bf16.mxu0 0
      %1857 = vmatmul.mubr.bf16.gmra.mrb[0].mxu0 %v1728
      %v1858 = vpop.f32.mrb[0].mxu0
      %v1859 = vadd.f32 0.0, %v1858
      %v1860 = vpop.f32.mrb[0].mxu0
      %v1861 = vpop.f32.mrb[0].mxu0
      %v1862 = vadd.f32 0.0, %v1861
      %v1863 = vpop.f32.mrb[0].mxu0
      %1864 = vmatprep.mubr.bf16.mxu0 0
      %1865 = vmatmul.mubr.bf16.gmra.mrb[0].mxu0 %v1731
      %v1866 = vpop.f32.mrb[0].mxu0
      %v1867 = vadd.f32 0.0, %v1866
      %v1868 = vpop.f32.mrb[0].mxu0
      %v1869 = vpop.f32.mrb[0].mxu0
      %v1870 = vadd.f32 0.0, %v1869
      %v1871 = vpop.f32.mrb[0].mxu0
      %1872 = vmatprep.mubr.bf16.mxu0 0
      %1873 = vmatmul.mubr.bf16.gmra.mrb[0].mxu0 %v1734
      %v1874 = vpop.f32.mrb[0].mxu0
      %v1875 = vadd.f32 0.0, %v1874
      %v1876 = vpop.f32.mrb[0].mxu0
      %v1877 = vpop.f32.mrb[0].mxu0
      %v1878 = vadd.f32 0.0, %v1877
      %v1879 = vpop.f32.mrb[0].mxu0
      %1880 = vmatprep.mubr.bf16.mxu0 0
      %1881 = vmatmul.mubr.bf16.gmra.mrb[0].mxu0 %v1737
      %v1882 = vpop.f32.mrb[0].mxu0
      %v1883 = vadd.f32 0.0, %v1882
      %v1884 = vpop.f32.mrb[0].mxu0
      %v1885 = vpop.f32.mrb[0].mxu0
      %v1886 = vadd.f32 0.0, %v1885
      %v1887 = vpop.f32.mrb[0].mxu0
      %1888 = vmatprep.mubr.bf16.mxu0 0
      %1889 = vmatmul.mubr.bf16.gmra.mrb[0].mxu0 %v1740
      %v1890 = vpop.f32.mrb[0].mxu0
      %v1891 = vadd.f32 0.0, %v1890
      %v1892 = vpop.f32.mrb[0].mxu0
      %v1893 = vpop.f32.mrb[0].mxu0
      %v1894 = vadd.f32 0.0, %v1893
      %v1895 = vpop.f32.mrb[0].mxu0
      %1896 = vmatprep.mubr.bf16.mxu0 0
      %1897 = vmatmul.mubr.bf16.gmra.mrb[0].mxu0 %v1743
      %v1898 = vpop.f32.mrb[0].mxu0
      %v1899 = vadd.f32 0.0, %v1898
      %v1900 = vpop.f32.mrb[0].mxu0
      %v1901 = vpop.f32.mrb[0].mxu0
      %v1902 = vadd.f32 0.0, %v1901
      %v1903 = vpop.f32.mrb[0].mxu0
      %1904 = vmatprep.mubr.bf16.mxu0 0
      %1905 = vmatmul.mubr.bf16.gmra.mrb[0].mxu0 %v1746
      %v1906 = vpop.f32.mrb[0].mxu0
      %v1907 = vadd.f32 0.0, %v1906
      %v1908 = vpop.f32.mrb[0].mxu0
      %v1909 = vpop.f32.mrb[0].mxu0
      %v1910 = vadd.f32 0.0, %v1909
      %v1911 = vpop.f32.mrb[0].mxu0
      %1912 = vdwg.mxu0
      %v1945 = vunpack.c.l.b16 %v1213
      %v1946 = vunpack.c.l.b16 %v1214
      %v1947 = vunpack.c.l.b16 %v1215
      %v1948 = vunpack.c.l.b16 %v1216
      %v1949 = vunpack.c.l.b16 %v1217
      %v1950 = vunpack.c.l.b16 %v1218
      %v1951 = vunpack.c.l.b16 %v1219
      %v1952 = vunpack.c.l.b16 %v1220
      %v1953 = vunpack.c.l.b16 %v1221
      %v1954 = vunpack.c.l.b16 %v1222
      %v1955 = vunpack.c.l.b16 %v1223
      %v1956 = vunpack.c.l.b16 %v1224
      %v1957 = vunpack.c.l.b16 %v1225
      %v1958 = vunpack.c.l.b16 %v1226
      %v1959 = vunpack.c.l.b16 %v1227
      %v1960 = vunpack.c.l.b16 %v1228
      %v1961 = vunpack.c.l.b16 %v1229
      %v1962 = vunpack.c.l.b16 %v1230
      %v1963 = vunpack.c.l.b16 %v1231
      %v1964 = vunpack.c.l.b16 %v1232
      %v1965 = vunpack.c.l.b16 %v1233
      %v1966 = vunpack.c.l.b16 %v1234
      %v1967 = vunpack.c.l.b16 %v1235
      %v1968 = vunpack.c.l.b16 %v1236
      %v1969 = vunpack.c.l.b16 %v1237
      %v1970 = vunpack.c.l.b16 %v1238
      %v1971 = vunpack.c.l.b16 %v1239
      %v1972 = vunpack.c.l.b16 %v1240
      %v1973 = vunpack.c.l.b16 %v1241
      %v1974 = vunpack.c.l.b16 %v1242
      %v1975 = vunpack.c.l.b16 %v1243
      %v1976 = vunpack.c.l.b16 %v1244
      %v1977 = vpack.c.b16 %v1946, %v1945
      %v1978 = vpack.c.b16 %v1948, %v1947
      %v1979 = vpack.c.b16 %v1950, %v1949
      %v1980 = vpack.c.b16 %v1952, %v1951
      %v1981 = vpack.c.b16 %v1954, %v1953
      %v1982 = vpack.c.b16 %v1956, %v1955
      %v1983 = vpack.c.b16 %v1958, %v1957
      %v1984 = vpack.c.b16 %v1960, %v1959
      %v1985 = vpack.c.b16 %v1962, %v1961
      %v1986 = vpack.c.b16 %v1964, %v1963
      %v1987 = vpack.c.b16 %v1966, %v1965
      %v1988 = vpack.c.b16 %v1968, %v1967
      %v1989 = vpack.c.b16 %v1970, %v1969
      %v1990 = vpack.c.b16 %v1972, %v1971
      %v1991 = vpack.c.b16 %v1974, %v1973
      %v1992 = vpack.c.b16 %v1976, %v1975
      %v1994 = vsel %vm1699, %v1977, 0
      %v1997 = vsel %vm1699, %v1978, 0
      %v2000 = vsel %vm1699, %v1979, 0
      %v2003 = vsel %vm1699, %v1980, 0
      %v2006 = vsel %vm1699, %v1981, 0
      %v2009 = vsel %vm1699, %v1982, 0
      %v2012 = vsel %vm1699, %v1983, 0
      %v2015 = vsel %vm1699, %v1984, 0
      %v2018 = vsel %vm1699, %v1985, 0
      %v2021 = vsel %vm1699, %v1986, 0
      %v2024 = vsel %vm1699, %v1987, 0
      %v2027 = vsel %vm1699, %v1988, 0
      %v2030 = vsel %vm1699, %v1989, 0
      %v2033 = vsel %vm1699, %v1990, 0
      %v2036 = vsel %vm1699, %v1991, 0
      %v2039 = vsel %vm1699, %v1992, 0
      %v2042 = vsel %vm1748, %v1245, 0
      %2044 = vmatprep.subr.bf16.mxu0 0
      %2045 = vmatpush1.bf16.msra.mxu0 %v2042
      %2046 = vmatprep.subr.bf16.mxu0 0
      %2047 = vmatpush1.bf16.msra.mxu0 0
      %2048 = vmatprep.subr.bf16.mxu0 0
      %2049 = vmatpush1.bf16.msra.mxu0 0
      %2050 = vmatprep.subr.bf16.mxu0 0
      %2051 = vmatpush1.bf16.msra.mxu0 0
      %2052 = vmatprep.subr.bf16.mxu0 0
      %2053 = vmatpush1.bf16.msra.mxu0 0
      %2054 = vmatprep.subr.bf16.mxu0 0
      %2055 = vmatpush1.bf16.msra.mxu0 0
      %2056 = vmatprep.subr.bf16.mxu0 0
      %2057 = vmatpush1.bf16.msra.mxu0 0
      %2058 = vmatprep.subr.bf16.mxu0 0
      %2059 = vmatpush1.bf16.msra.mxu0 0
      %2060 = vmatprep.subr.bf16.mxu0 0
      %2061 = vmatpush1.bf16.msra.mxu0 0
      %2062 = vmatprep.subr.bf16.mxu0 0
      %2063 = vmatpush1.bf16.msra.mxu0 0
      %2064 = vmatprep.subr.bf16.mxu0 0
      %2065 = vmatpush1.bf16.msra.mxu0 0
      %2066 = vmatprep.subr.bf16.mxu0 0
      %2067 = vmatpush1.bf16.msra.mxu0 0
      %2068 = vmatprep.subr.bf16.mxu0 0
      %2069 = vmatpush1.bf16.msra.mxu0 0
      %2070 = vmatprep.subr.bf16.mxu0 0
      %2071 = vmatpush1.bf16.msra.mxu0 0
      %2072 = vmatprep.subr.bf16.mxu0 0
      %2073 = vmatpush1.bf16.msra.mxu0 0
      %2074 = vmatprep.subr.bf16.mxu0 0
      %2075 = vmatpush1.bf16.msra.mxu0 0
      %2076 = vmatprep.mubr.bf16.mxu0 0
      %2077 = vmatmul.mubr.bf16.gmra.mrb[0].mxu0 %v1994
      %v2078 = vpop.f32.mrb[0].mxu0
      %v2079 = vadd.f32 %v1787, %v2078
      %v2080 = vpop.f32.mrb[0].mxu0
      %v2081 = vpop.f32.mrb[0].mxu0
      %v2082 = vadd.f32 %v1790, %v2081
      %v2083 = vpop.f32.mrb[0].mxu0
      %2084 = vmatprep.mubr.bf16.mxu0 0
      %2085 = vmatmul.mubr.bf16.gmra.mrb[0].mxu0 %v1997
      %v2086 = vpop.f32.mrb[0].mxu0
      %v2087 = vadd.f32 %v1795, %v2086
      %v2088 = vpop.f32.mrb[0].mxu0
      %v2089 = vpop.f32.mrb[0].mxu0
      %v2090 = vadd.f32 %v1798, %v2089
      %v2091 = vpop.f32.mrb[0].mxu0
      %2092 = vmatprep.mubr.bf16.mxu0 0
      %2093 = vmatmul.mubr.bf16.gmra.mrb[0].mxu0 %v2000
      %v2094 = vpop.f32.mrb[0].mxu0
      %v2095 = vadd.f32 %v1803, %v2094
      %v2096 = vpop.f32.mrb[0].mxu0
      %v2097 = vpop.f32.mrb[0].mxu0
      %v2098 = vadd.f32 %v1806, %v2097
      %v2099 = vpop.f32.mrb[0].mxu0
      %2100 = vmatprep.mubr.bf16.mxu0 0
      %2101 = vmatmul.mubr.bf16.gmra.mrb[0].mxu0 %v2003
      %v2102 = vpop.f32.mrb[0].mxu0
      %v2103 = vadd.f32 %v1811, %v2102
      %v2104 = vpop.f32.mrb[0].mxu0
      %v2105 = vpop.f32.mrb[0].mxu0
      %v2106 = vadd.f32 %v1814, %v2105
      %v2107 = vpop.f32.mrb[0].mxu0
      %2108 = vmatprep.mubr.bf16.mxu0 0
      %2109 = vmatmul.mubr.bf16.gmra.mrb[0].mxu0 %v2006
      %v2110 = vpop.f32.mrb[0].mxu0
      %v2111 = vadd.f32 %v1819, %v2110
      %v2112 = vpop.f32.mrb[0].mxu0
      %v2113 = vpop.f32.mrb[0].mxu0
      %v2114 = vadd.f32 %v1822, %v2113
      %v2115 = vpop.f32.mrb[0].mxu0
      %2116 = vmatprep.mubr.bf16.mxu0 0
      %2117 = vmatmul.mubr.bf16.gmra.mrb[0].mxu0 %v2009
      %v2118 = vpop.f32.mrb[0].mxu0
      %v2119 = vadd.f32 %v1827, %v2118
      %v2120 = vpop.f32.mrb[0].mxu0
      %v2121 = vpop.f32.mrb[0].mxu0
      %v2122 = vadd.f32 %v1830, %v2121
      %v2123 = vpop.f32.mrb[0].mxu0
      %2124 = vmatprep.mubr.bf16.mxu0 0
      %2125 = vmatmul.mubr.bf16.gmra.mrb[0].mxu0 %v2012
      %v2126 = vpop.f32.mrb[0].mxu0
      %v2127 = vadd.f32 %v1835, %v2126
      %v2128 = vpop.f32.mrb[0].mxu0
      %v2129 = vpop.f32.mrb[0].mxu0
      %v2130 = vadd.f32 %v1838, %v2129
      %v2131 = vpop.f32.mrb[0].mxu0
      %2132 = vmatprep.mubr.bf16.mxu0 0
      %2133 = vmatmul.mubr.bf16.gmra.mrb[0].mxu0 %v2015
      %v2134 = vpop.f32.mrb[0].mxu0
      %v2135 = vadd.f32 %v1843, %v2134
      %v2136 = vpop.f32.mrb[0].mxu0
      %v2137 = vpop.f32.mrb[0].mxu0
      %v2138 = vadd.f32 %v1846, %v2137
      %v2139 = vpop.f32.mrb[0].mxu0
      %2140 = vmatprep.mubr.bf16.mxu0 0
      %2141 = vmatmul.mubr.bf16.gmra.mrb[0].mxu0 %v2018
      %v2142 = vpop.f32.mrb[0].mxu0
      %v2143 = vadd.f32 %v1851, %v2142
      %v2144 = vpop.f32.mrb[0].mxu0
      %v2145 = vpop.f32.mrb[0].mxu0
      %v2146 = vadd.f32 %v1854, %v2145
      %v2147 = vpop.f32.mrb[0].mxu0
      %2148 = vmatprep.mubr.bf16.mxu0 0
      %2149 = vmatmul.mubr.bf16.gmra.mrb[0].mxu0 %v2021
      %v2150 = vpop.f32.mrb[0].mxu0
      %v2151 = vadd.f32 %v1859, %v2150
      %v2152 = vpop.f32.mrb[0].mxu0
      %v2153 = vpop.f32.mrb[0].mxu0
      %v2154 = vadd.f32 %v1862, %v2153
      %v2155 = vpop.f32.mrb[0].mxu0
      %2156 = vmatprep.mubr.bf16.mxu0 0
      %2157 = vmatmul.mubr.bf16.gmra.mrb[0].mxu0 %v2024
      %v2158 = vpop.f32.mrb[0].mxu0
      %v2159 = vadd.f32 %v1867, %v2158
      %v2160 = vpop.f32.mrb[0].mxu0
      %v2161 = vpop.f32.mrb[0].mxu0
      %v2162 = vadd.f32 %v1870, %v2161
      %v2163 = vpop.f32.mrb[0].mxu0
      %2164 = vmatprep.mubr.bf16.mxu0 0
      %2165 = vmatmul.mubr.bf16.gmra.mrb[0].mxu0 %v2027
      %v2166 = vpop.f32.mrb[0].mxu0
      %v2167 = vadd.f32 %v1875, %v2166
      %v2168 = vpop.f32.mrb[0].mxu0
      %v2169 = vpop.f32.mrb[0].mxu0
      %v2170 = vadd.f32 %v1878, %v2169
      %v2171 = vpop.f32.mrb[0].mxu0
      %2172 = vmatprep.mubr.bf16.mxu0 0
      %2173 = vmatmul.mubr.bf16.gmra.mrb[0].mxu0 %v2030
      %v2174 = vpop.f32.mrb[0].mxu0
      %v2175 = vadd.f32 %v1883, %v2174
      %v2176 = vpop.f32.mrb[0].mxu0
      %v2177 = vpop.f32.mrb[0].mxu0
      %v2178 = vadd.f32 %v1886, %v2177
      %v2179 = vpop.f32.mrb[0].mxu0
      %2180 = vmatprep.mubr.bf16.mxu0 0
      %2181 = vmatmul.mubr.bf16.gmra.mrb[0].mxu0 %v2033
      %v2182 = vpop.f32.mrb[0].mxu0
      %v2183 = vadd.f32 %v1891, %v2182
      %v2184 = vpop.f32.mrb[0].mxu0
      %v2185 = vpop.f32.mrb[0].mxu0
      %v2186 = vadd.f32 %v1894, %v2185
      %v2187 = vpop.f32.mrb[0].mxu0
      %2188 = vmatprep.mubr.bf16.mxu0 0
      %2189 = vmatmul.mubr.bf16.gmra.mrb[0].mxu0 %v2036
      %v2190 = vpop.f32.mrb[0].mxu0
      %v2191 = vadd.f32 %v1899, %v2190
      %v2192 = vpop.f32.mrb[0].mxu0
      %v2193 = vpop.f32.mrb[0].mxu0
      %v2194 = vadd.f32 %v1902, %v2193
      %v2195 = vpop.f32.mrb[0].mxu0
      %2196 = vmatprep.mubr.bf16.mxu0 0
      %2197 = vmatmul.mubr.bf16.gmra.mrb[0].mxu0 %v2039
      %v2198 = vpop.f32.mrb[0].mxu0
      %v2199 = vadd.f32 %v1907, %v2198
      %v2200 = vpop.f32.mrb[0].mxu0
      %v2201 = vpop.f32.mrb[0].mxu0
      %v2202 = vadd.f32 %v1910, %v2201
      %v2203 = vpop.f32.mrb[0].mxu0
      %2204 = vdwg.mxu0
      %v2205 = vld [vmem:[#allocation2] sm:$0xe]
      %v2206 = vld [vmem:[#allocation2 + $0xc] sm:$0xe]
      %v2207 = vld [vmem:[#allocation2 + $0x18] sm:$0xe]
      %v2208 = vld [vmem:[#allocation2 + $0x24] sm:$0xe]
      %v2209 = vld [vmem:[#allocation2 + $0x30] sm:$0xe]
      %v2210 = vld [vmem:[#allocation2 + $0x3c] sm:$0xe]
      %v2211 = vld [vmem:[#allocation2 + $0x48] sm:$0xe]
      %v2212 = vld [vmem:[#allocation2 + $0x54] sm:$0xe]
      %v2213 = vld [vmem:[#allocation2 + $0x60] sm:$0xe]
      %v2214 = vld [vmem:[#allocation2 + $0x6c] sm:$0xe]
      %v2215 = vld [vmem:[#allocation2 + $0x78] sm:$0xe]
      %v2216 = vld [vmem:[#allocation2 + $0x84] sm:$0xe]
      %v2217 = vld [vmem:[#allocation2 + $0x90] sm:$0xe]
      %v2218 = vld [vmem:[#allocation2 + $0x9c] sm:$0xe]
      %v2219 = vld [vmem:[#allocation2 + $0xa8] sm:$0xe]
      %v2220 = vld [vmem:[#allocation2 + $0xb4] sm:$0xe]
      %vm2253 = vcmask 1042432
      %vm2254 = vcmask 1046532
      %vm2255 = vmor %vm2253, %vm2254
      %v2256 = vrot.slane %v2205, 5
      %v2257 = vrot.slane %v2256, 4
      %v2258 = vrot.slane %v1214, 5
      %v2259 = vsel %vm2255, %v2257, %v2258
      %v2260 = vrot.slane %v2258, 4
      %v2261 = vrot.slane %v1246, 5
      %v2262 = vsel %vm2255, %v2260, %v2261
      %v2263 = vrot.slane %v2206, 5
      %v2264 = vrot.slane %v2263, 4
      %v2265 = vrot.slane %v1216, 5
      %v2266 = vsel %vm2255, %v2264, %v2265
      %v2267 = vrot.slane %v2265, 4
      %v2268 = vrot.slane %v1247, 5
      %v2269 = vsel %vm2255, %v2267, %v2268
      %v2270 = vrot.slane %v2207, 5
      %v2271 = vrot.slane %v2270, 4
      %v2272 = vrot.slane %v1218, 5
      %v2273 = vsel %vm2255, %v2271, %v2272
      %v2274 = vrot.slane %v2272, 4
      %v2275 = vrot.slane %v1248, 5
      %v2276 = vsel %vm2255, %v2274, %v2275
      %v2277 = vrot.slane %v2208, 5
      %v2278 = vrot.slane %v2277, 4
      %v2279 = vrot.slane %v1220, 5
      %v2280 = vsel %vm2255, %v2278, %v2279
      %v2281 = vrot.slane %v2279, 4
      %v2282 = vrot.slane %v1249, 5
      %v2283 = vsel %vm2255, %v2281, %v2282
      %v2284 = vrot.slane %v2209, 5
      %v2285 = vrot.slane %v2284, 4
      %v2286 = vrot.slane %v1222, 5
      %v2287 = vsel %vm2255, %v2285, %v2286
      %v2288 = vrot.slane %v2286, 4
      %v2289 = vrot.slane %v1250, 5
      %v2290 = vsel %vm2255, %v2288, %v2289
      %v2291 = vrot.slane %v2210, 5
      %v2292 = vrot.slane %v2291, 4
      %v2293 = vrot.slane %v1224, 5
      %v2294 = vsel %vm2255, %v2292, %v2293
      %v2295 = vrot.slane %v2293, 4
      %v2296 = vrot.slane %v1251, 5
      %v2297 = vsel %vm2255, %v2295, %v2296
      %v2298 = vrot.slane %v2211, 5
      %v2299 = vrot.slane %v2298, 4
      %v2300 = vrot.slane %v1226, 5
      %v2301 = vsel %vm2255, %v2299, %v2300
      %v2302 = vrot.slane %v2300, 4
      %v2303 = vrot.slane %v1252, 5
      %v2304 = vsel %vm2255, %v2302, %v2303
      %v2305 = vrot.slane %v2212, 5
      %v2306 = vrot.slane %v2305, 4
      %v2307 = vrot.slane %v1228, 5
      %v2308 = vsel %vm2255, %v2306, %v2307
      %v2309 = vrot.slane %v2307, 4
      %v2310 = vrot.slane %v1253, 5
      %v2311 = vsel %vm2255, %v2309, %v2310
      %v2312 = vrot.slane %v2213, 5
      %v2313 = vrot.slane %v2312, 4
      %v2314 = vrot.slane %v1230, 5
      %v2315 = vsel %vm2255, %v2313, %v2314
      %v2316 = vrot.slane %v2314, 4
      %v2317 = vrot.slane %v1254, 5
      %v2318 = vsel %vm2255, %v2316, %v2317
      %v2319 = vrot.slane %v2214, 5
      %v2320 = vrot.slane %v2319, 4
      %v2321 = vrot.slane %v1232, 5
      %v2322 = vsel %vm2255, %v2320, %v2321
      %v2323 = vrot.slane %v2321, 4
      %v2324 = vrot.slane %v1255, 5
      %v2325 = vsel %vm2255, %v2323, %v2324
      %v2326 = vrot.slane %v2215, 5
      %v2327 = vrot.slane %v2326, 4
      %v2328 = vrot.slane %v1234, 5
      %v2329 = vsel %vm2255, %v2327, %v2328
      %v2330 = vrot.slane %v2328, 4
      %v2331 = vrot.slane %v1256, 5
      %v2332 = vsel %vm2255, %v2330, %v2331
      %v2333 = vrot.slane %v2216, 5
      %v2334 = vrot.slane %v2333, 4
      %v2335 = vrot.slane %v1236, 5
      %v2336 = vsel %vm2255, %v2334, %v2335
      %v2337 = vrot.slane %v2335, 4
      %v2338 = vrot.slane %v1257, 5
      %v2339 = vsel %vm2255, %v2337, %v2338
      %v2340 = vrot.slane %v2217, 5
      %v2341 = vrot.slane %v2340, 4
      %v2342 = vrot.slane %v1238, 5
      %v2343 = vsel %vm2255, %v2341, %v2342
      %v2344 = vrot.slane %v2342, 4
      %v2345 = vrot.slane %v1258, 5
      %v2346 = vsel %vm2255, %v2344, %v2345
      %v2347 = vrot.slane %v2218, 5
      %v2348 = vrot.slane %v2347, 4
      %v2349 = vrot.slane %v1240, 5
      %v2350 = vsel %vm2255, %v2348, %v2349
      %v2351 = vrot.slane %v2349, 4
      %v2352 = vrot.slane %v1259, 5
      %v2353 = vsel %vm2255, %v2351, %v2352
      %v2354 = vrot.slane %v2219, 5
      %v2355 = vrot.slane %v2354, 4
      %v2356 = vrot.slane %v1242, 5
      %v2357 = vsel %vm2255, %v2355, %v2356
      %v2358 = vrot.slane %v2356, 4
      %v2359 = vrot.slane %v1260, 5
      %v2360 = vsel %vm2255, %v2358, %v2359
      %v2361 = vrot.slane %v2220, 5
      %v2362 = vrot.slane %v2361, 4
      %v2363 = vrot.slane %v1244, 5
      %v2364 = vsel %vm2255, %v2362, %v2363
      %v2365 = vrot.slane %v2363, 4
      %v2366 = vrot.slane %v1261, 5
      %v2367 = vsel %vm2255, %v2365, %v2366
      %s2368 = scalar_lea.vmem %s2, 8
      %v2369 = vld [vmem:[%s2368] sm:$0xf]
      %v2370 = vunpack.c.l.b16 %v2259
      %v2371 = vunpack.c.l.b16 %v2262
      %v2372 = vunpack.c.l.b16 %v2266
      %v2373 = vunpack.c.l.b16 %v2269
      %v2374 = vunpack.c.l.b16 %v2273
      %v2375 = vunpack.c.l.b16 %v2276
      %v2376 = vunpack.c.l.b16 %v2280
      %v2377 = vunpack.c.l.b16 %v2283
      %v2378 = vunpack.c.l.b16 %v2287
      %v2379 = vunpack.c.l.b16 %v2290
      %v2380 = vunpack.c.l.b16 %v2294
      %v2381 = vunpack.c.l.b16 %v2297
      %v2382 = vunpack.c.l.b16 %v2301
      %v2383 = vunpack.c.l.b16 %v2304
      %v2384 = vunpack.c.l.b16 %v2308
      %v2385 = vunpack.c.l.b16 %v2311
      %v2386 = vunpack.c.l.b16 %v2315
      %v2387 = vunpack.c.l.b16 %v2318
      %v2388 = vunpack.c.l.b16 %v2322
      %v2389 = vunpack.c.l.b16 %v2325
      %v2390 = vunpack.c.l.b16 %v2329
      %v2391 = vunpack.c.l.b16 %v2332
      %v2392 = vunpack.c.l.b16 %v2336
      %v2393 = vunpack.c.l.b16 %v2339
      %v2394 = vunpack.c.l.b16 %v2343
      %v2395 = vunpack.c.l.b16 %v2346
      %v2396 = vunpack.c.l.b16 %v2350
      %v2397 = vunpack.c.l.b16 %v2353
      %v2398 = vunpack.c.l.b16 %v2357
      %v2399 = vunpack.c.l.b16 %v2360
      %v2400 = vunpack.c.l.b16 %v2364
      %v2401 = vunpack.c.l.b16 %v2367
      %v2402 = vpack.c.b16 %v2371, %v2370
      %v2403 = vpack.c.b16 %v2373, %v2372
      %v2404 = vpack.c.b16 %v2375, %v2374
      %v2405 = vpack.c.b16 %v2377, %v2376
      %v2406 = vpack.c.b16 %v2379, %v2378
      %v2407 = vpack.c.b16 %v2381, %v2380
      %v2408 = vpack.c.b16 %v2383, %v2382
      %v2409 = vpack.c.b16 %v2385, %v2384
      %v2410 = vpack.c.b16 %v2387, %v2386
      %v2411 = vpack.c.b16 %v2389, %v2388
      %v2412 = vpack.c.b16 %v2391, %v2390
      %v2413 = vpack.c.b16 %v2393, %v2392
      %v2414 = vpack.c.b16 %v2395, %v2394
      %v2415 = vpack.c.b16 %v2397, %v2396
      %v2416 = vpack.c.b16 %v2399, %v2398
      %v2417 = vpack.c.b16 %v2401, %v2400
      %v2419 = vsel %vm1699, %v2402, 0
      %v2422 = vsel %vm1699, %v2403, 0
      %v2425 = vsel %vm1699, %v2404, 0
      %v2428 = vsel %vm1699, %v2405, 0
      %v2431 = vsel %vm1699, %v2406, 0
      %v2434 = vsel %vm1699, %v2407, 0
      %v2437 = vsel %vm1699, %v2408, 0
      %v2440 = vsel %vm1699, %v2409, 0
      %v2443 = vsel %vm1699, %v2410, 0
      %v2446 = vsel %vm1699, %v2411, 0
      %v2449 = vsel %vm1699, %v2412, 0
      %v2452 = vsel %vm1699, %v2413, 0
      %v2455 = vsel %vm1699, %v2414, 0
      %v2458 = vsel %vm1699, %v2415, 0
      %v2461 = vsel %vm1699, %v2416, 0
      %v2464 = vsel %vm1699, %v2417, 0
      %v2467 = vsel %vm1748, %v2369, 0
      %2469 = vmatprep.subr.bf16.mxu0 0
      %2470 = vmatpush1.bf16.msra.mxu0 %v2467
      %2471 = vmatprep.subr.bf16.mxu0 0
      %2472 = vmatpush1.bf16.msra.mxu0 0
      %2473 = vmatprep.subr.bf16.mxu0 0
      %2474 = vmatpush1.bf16.msra.mxu0 0
      %2475 = vmatprep.subr.bf16.mxu0 0
      %2476 = vmatpush1.bf16.msra.mxu0 0
      %2477 = vmatprep.subr.bf16.mxu0 0
      %2478 = vmatpush1.bf16.msra.mxu0 0
      %2479 = vmatprep.subr.bf16.mxu0 0
      %2480 = vmatpush1.bf16.msra.mxu0 0
      %2481 = vmatprep.subr.bf16.mxu0 0
      %2482 = vmatpush1.bf16.msra.mxu0 0
      %2483 = vmatprep.subr.bf16.mxu0 0
      %2484 = vmatpush1.bf16.msra.mxu0 0
      %2485 = vmatprep.subr.bf16.mxu0 0
      %2486 = vmatpush1.bf16.msra.mxu0 0
      %2487 = vmatprep.subr.bf16.mxu0 0
      %2488 = vmatpush1.bf16.msra.mxu0 0
      %2489 = vmatprep.subr.bf16.mxu0 0
      %2490 = vmatpush1.bf16.msra.mxu0 0
      %2491 = vmatprep.subr.bf16.mxu0 0
      %2492 = vmatpush1.bf16.msra.mxu0 0
      %2493 = vmatprep.subr.bf16.mxu0 0
      %2494 = vmatpush1.bf16.msra.mxu0 0
      %2495 = vmatprep.subr.bf16.mxu0 0
      %2496 = vmatpush1.bf16.msra.mxu0 0
      %2497 = vmatprep.subr.bf16.mxu0 0
      %2498 = vmatpush1.bf16.msra.mxu0 0
      %2499 = vmatprep.subr.bf16.mxu0 0
      %2500 = vmatpush1.bf16.msra.mxu0 0
      %2501 = vmatprep.mubr.bf16.mxu0 0
      %2502 = vmatmul.mubr.bf16.gmra.mrb[0].mxu0 %v2419
      %v2503 = vpop.f32.mrb[0].mxu0
      %v2504 = vadd.f32 0.0, %v2503
      %v2505 = vpop.f32.mrb[0].mxu0
      %v2506 = vpop.f32.mrb[0].mxu0
      %v2507 = vadd.f32 0.0, %v2506
      %v2508 = vpop.f32.mrb[0].mxu0
      %2509 = vmatprep.mubr.bf16.mxu0 0
      %2510 = vmatmul.mubr.bf16.gmra.mrb[0].mxu0 %v2422
      %v2511 = vpop.f32.mrb[0].mxu0
      %v2512 = vadd.f32 0.0, %v2511
      %v2513 = vpop.f32.mrb[0].mxu0
      %v2514 = vpop.f32.mrb[0].mxu0
      %v2515 = vadd.f32 0.0, %v2514
      %v2516 = vpop.f32.mrb[0].mxu0
      %2517 = vmatprep.mubr.bf16.mxu0 0
      %2518 = vmatmul.mubr.bf16.gmra.mrb[0].mxu0 %v2425
      %v2519 = vpop.f32.mrb[0].mxu0
      %v2520 = vadd.f32 0.0, %v2519
      %v2521 = vpop.f32.mrb[0].mxu0
      %v2522 = vpop.f32.mrb[0].mxu0
      %v2523 = vadd.f32 0.0, %v2522
      %v2524 = vpop.f32.mrb[0].mxu0
      %2525 = vmatprep.mubr.bf16.mxu0 0
      %2526 = vmatmul.mubr.bf16.gmra.mrb[0].mxu0 %v2428
      %v2527 = vpop.f32.mrb[0].mxu0
      %v2528 = vadd.f32 0.0, %v2527
      %v2529 = vpop.f32.mrb[0].mxu0
      %v2530 = vpop.f32.mrb[0].mxu0
      %v2531 = vadd.f32 0.0, %v2530
      %v2532 = vpop.f32.mrb[0].mxu0
      %2533 = vmatprep.mubr.bf16.mxu0 0
      %2534 = vmatmul.mubr.bf16.gmra.mrb[0].mxu0 %v2431
      %v2535 = vpop.f32.mrb[0].mxu0
      %v2536 = vadd.f32 0.0, %v2535
      %v2537 = vpop.f32.mrb[0].mxu0
      %v2538 = vpop.f32.mrb[0].mxu0
      %v2539 = vadd.f32 0.0, %v2538
      %v2540 = vpop.f32.mrb[0].mxu0
      %2541 = vmatprep.mubr.bf16.mxu0 0
      %2542 = vmatmul.mubr.bf16.gmra.mrb[0].mxu0 %v2434
      %v2543 = vpop.f32.mrb[0].mxu0
      %v2544 = vadd.f32 0.0, %v2543
      %v2545 = vpop.f32.mrb[0].mxu0
      %v2546 = vpop.f32.mrb[0].mxu0
      %v2547 = vadd.f32 0.0, %v2546
      %v2548 = vpop.f32.mrb[0].mxu0
      %2549 = vmatprep.mubr.bf16.mxu0 0
      %2550 = vmatmul.mubr.bf16.gmra.mrb[0].mxu0 %v2437
      %v2551 = vpop.f32.mrb[0].mxu0
      %v2552 = vadd.f32 0.0, %v2551
      %v2553 = vpop.f32.mrb[0].mxu0
      %v2554 = vpop.f32.mrb[0].mxu0
      %v2555 = vadd.f32 0.0, %v2554
      %v2556 = vpop.f32.mrb[0].mxu0
      %2557 = vmatprep.mubr.bf16.mxu0 0
      %2558 = vmatmul.mubr.bf16.gmra.mrb[0].mxu0 %v2440
      %v2559 = vpop.f32.mrb[0].mxu0
      %v2560 = vadd.f32 0.0, %v2559
      %v2561 = vpop.f32.mrb[0].mxu0
      %v2562 = vpop.f32.mrb[0].mxu0
      %v2563 = vadd.f32 0.0, %v2562
      %v2564 = vpop.f32.mrb[0].mxu0
      %2565 = vmatprep.mubr.bf16.mxu0 0
      %2566 = vmatmul.mubr.bf16.gmra.mrb[0].mxu0 %v2443
      %v2567 = vpop.f32.mrb[0].mxu0
      %v2568 = vadd.f32 0.0, %v2567
      %v2569 = vpop.f32.mrb[0].mxu0
      %v2570 = vpop.f32.mrb[0].mxu0
      %v2571 = vadd.f32 0.0, %v2570
      %v2572 = vpop.f32.mrb[0].mxu0
      %2573 = vmatprep.mubr.bf16.mxu0 0
      %2574 = vmatmul.mubr.bf16.gmra.mrb[0].mxu0 %v2446
      %v2575 = vpop.f32.mrb[0].mxu0
      %v2576 = vadd.f32 0.0, %v2575
      %v2577 = vpop.f32.mrb[0].mxu0
      %v2578 = vpop.f32.mrb[0].mxu0
      %v2579 = vadd.f32 0.0, %v2578
      %v2580 = vpop.f32.mrb[0].mxu0
      %2581 = vmatprep.mubr.bf16.mxu0 0
      %2582 = vmatmul.mubr.bf16.gmra.mrb[0].mxu0 %v2449
      %v2583 = vpop.f32.mrb[0].mxu0
      %v2584 = vadd.f32 0.0, %v2583
      %v2585 = vpop.f32.mrb[0].mxu0
      %v2586 = vpop.f32.mrb[0].mxu0
      %v2587 = vadd.f32 0.0, %v2586
      %v2588 = vpop.f32.mrb[0].mxu0
      %2589 = vmatprep.mubr.bf16.mxu0 0
      %2590 = vmatmul.mubr.bf16.gmra.mrb[0].mxu0 %v2452
      %v2591 = vpop.f32.mrb[0].mxu0
      %v2592 = vadd.f32 0.0, %v2591
      %v2593 = vpop.f32.mrb[0].mxu0
      %v2594 = vpop.f32.mrb[0].mxu0
      %v2595 = vadd.f32 0.0, %v2594
      %v2596 = vpop.f32.mrb[0].mxu0
      %2597 = vmatprep.mubr.bf16.mxu0 0
      %2598 = vmatmul.mubr.bf16.gmra.mrb[0].mxu0 %v2455
      %v2599 = vpop.f32.mrb[0].mxu0
      %v2600 = vadd.f32 0.0, %v2599
      %v2601 = vpop.f32.mrb[0].mxu0
      %v2602 = vpop.f32.mrb[0].mxu0
      %v2603 = vadd.f32 0.0, %v2602
      %v2604 = vpop.f32.mrb[0].mxu0
      %2605 = vmatprep.mubr.bf16.mxu0 0
      %2606 = vmatmul.mubr.bf16.gmra.mrb[0].mxu0 %v2458
      %v2607 = vpop.f32.mrb[0].mxu0
      %v2608 = vadd.f32 0.0, %v2607
      %v2609 = vpop.f32.mrb[0].mxu0
      %v2610 = vpop.f32.mrb[0].mxu0
      %v2611 = vadd.f32 0.0, %v2610
      %v2612 = vpop.f32.mrb[0].mxu0
      %2613 = vmatprep.mubr.bf16.mxu0 0
      %2614 = vmatmul.mubr.bf16.gmra.mrb[0].mxu0 %v2461
      %v2615 = vpop.f32.mrb[0].mxu0
      %v2616 = vadd.f32 0.0, %v2615
      %v2617 = vpop.f32.mrb[0].mxu0
      %v2618 = vpop.f32.mrb[0].mxu0
      %v2619 = vadd.f32 0.0, %v2618
      %v2620 = vpop.f32.mrb[0].mxu0
      %2621 = vmatprep.mubr.bf16.mxu0 0
      %2622 = vmatmul.mubr.bf16.gmra.mrb[0].mxu0 %v2464
      %v2623 = vpop.f32.mrb[0].mxu0
      %v2624 = vadd.f32 0.0, %v2623
      %v2625 = vpop.f32.mrb[0].mxu0
      %v2626 = vpop.f32.mrb[0].mxu0
      %v2627 = vadd.f32 0.0, %v2626
      %v2628 = vpop.f32.mrb[0].mxu0
      %2629 = vdwg.mxu0
      %v2630 = vadd.f32 %v2079, %v2504
      %v2631 = vadd.f32 %v2082, %v2507
      %v2632 = vadd.f32 %v2087, %v2512
      %v2633 = vadd.f32 %v2090, %v2515
      %v2634 = vadd.f32 %v2095, %v2520
      %v2635 = vadd.f32 %v2098, %v2523
      %v2636 = vadd.f32 %v2103, %v2528
      %v2637 = vadd.f32 %v2106, %v2531
      %v2638 = vadd.f32 %v2111, %v2536
      %v2639 = vadd.f32 %v2114, %v2539
      %v2640 = vadd.f32 %v2119, %v2544
      %v2641 = vadd.f32 %v2122, %v2547
      %v2642 = vadd.f32 %v2127, %v2552
      %v2643 = vadd.f32 %v2130, %v2555
      %v2644 = vadd.f32 %v2135, %v2560
      %v2645 = vadd.f32 %v2138, %v2563
      %v2646 = vadd.f32 %v2143, %v2568
      %v2647 = vadd.f32 %v2146, %v2571
      %v2648 = vadd.f32 %v2151, %v2576
      %v2649 = vadd.f32 %v2154, %v2579
      %v2650 = vadd.f32 %v2159, %v2584
      %v2651 = vadd.f32 %v2162, %v2587
      %v2652 = vadd.f32 %v2167, %v2592
      %v2653 = vadd.f32 %v2170, %v2595
      %v2654 = vadd.f32 %v2175, %v2600
      %v2655 = vadd.f32 %v2178, %v2603
      %v2656 = vadd.f32 %v2183, %v2608
      %v2657 = vadd.f32 %v2186, %v2611
      %v2658 = vadd.f32 %v2191, %v2616
      %v2659 = vadd.f32 %v2194, %v2619
      %v2660 = vadd.f32 %v2199, %v2624
      %v2661 = vadd.f32 %v2202, %v2627
      %v2662 = vld [vmem:[%s1095] sm:$0xf]
      %v2663 = vld [vmem:[%s1095 + $0x4] sm:$0xf]
      %v2664 = vld [vmem:[%s1095 + $0xc] sm:$0xf]
      %v2665 = vld [vmem:[%s1095 + $0x10] sm:$0xf]
      %v2666 = vld [vmem:[%s1095 + $0x18] sm:$0xf]
      %v2667 = vld [vmem:[%s1095 + $0x1c] sm:$0xf]
      %v2668 = vld [vmem:[%s1095 + $0x24] sm:$0xf]
      %v2669 = vld [vmem:[%s1095 + $0x28] sm:$0xf]
      %v2670 = vld [vmem:[%s1095 + $0x30] sm:$0xf]
      %v2671 = vld [vmem:[%s1095 + $0x34] sm:$0xf]
      %v2672 = vld [vmem:[%s1095 + $0x3c] sm:$0xf]
      %v2673 = vld [vmem:[%s1095 + $0x40] sm:$0xf]
      %v2674 = vld [vmem:[%s1095 + $0x48] sm:$0xf]
      %v2675 = vld [vmem:[%s1095 + $0x4c] sm:$0xf]
      %v2676 = vld [vmem:[%s1095 + $0x54] sm:$0xf]
      %v2677 = vld [vmem:[%s1095 + $0x58] sm:$0xf]
      %v2678 = vld [vmem:[%s1095 + $0x60] sm:$0xf]
      %v2679 = vld [vmem:[%s1095 + $0x64] sm:$0xf]
      %v2680 = vld [vmem:[%s1095 + $0x6c] sm:$0xf]
      %v2681 = vld [vmem:[%s1095 + $0x70] sm:$0xf]
      %v2682 = vld [vmem:[%s1095 + $0x78] sm:$0xf]
      %v2683 = vld [vmem:[%s1095 + $0x7c] sm:$0xf]
      %v2684 = vld [vmem:[%s1095 + $0x84] sm:$0xf]
      %v2685 = vld [vmem:[%s1095 + $0x88] sm:$0xf]
      %v2686 = vld [vmem:[%s1095 + $0x90] sm:$0xf]
      %v2687 = vld [vmem:[%s1095 + $0x94] sm:$0xf]
      %v2688 = vld [vmem:[%s1095 + $0x9c] sm:$0xf]
      %v2689 = vld [vmem:[%s1095 + $0xa0] sm:$0xf]
      %v2690 = vld [vmem:[%s1095 + $0xa8] sm:$0xf]
      %v2691 = vld [vmem:[%s1095 + $0xac] sm:$0xf]
      %v2692 = vld [vmem:[%s1095 + $0xb4] sm:$0xf]
      %v2693 = vld [vmem:[%s1095 + $0xb8] sm:$0xf]
      %s2694 = scalar_lea.vmem %s2, 12
      %v2695 = vld [vmem:[%s2694] sm:$0xf]
      %v2728 = vunpack.c.l.b16 %v2662
      %v2729 = vunpack.c.l.b16 %v2663
      %v2730 = vunpack.c.l.b16 %v2664
      %v2731 = vunpack.c.l.b16 %v2665
      %v2732 = vunpack.c.l.b16 %v2666
      %v2733 = vunpack.c.l.b16 %v2667
      %v2734 = vunpack.c.l.b16 %v2668
      %v2735 = vunpack.c.l.b16 %v2669
      %v2736 = vunpack.c.l.b16 %v2670
      %v2737 = vunpack.c.l.b16 %v2671
      %v2738 = vunpack.c.l.b16 %v2672
      %v2739 = vunpack.c.l.b16 %v2673
      %v2740 = vunpack.c.l.b16 %v2674
      %v2741 = vunpack.c.l.b16 %v2675
      %v2742 = vunpack.c.l.b16 %v2676
      %v2743 = vunpack.c.l.b16 %v2677
      %v2744 = vunpack.c.l.b16 %v2678
      %v2745 = vunpack.c.l.b16 %v2679
      %v2746 = vunpack.c.l.b16 %v2680
      %v2747 = vunpack.c.l.b16 %v2681
      %v2748 = vunpack.c.l.b16 %v2682
      %v2749 = vunpack.c.l.b16 %v2683
      %v2750 = vunpack.c.l.b16 %v2684
      %v2751 = vunpack.c.l.b16 %v2685
      %v2752 = vunpack.c.l.b16 %v2686
      %v2753 = vunpack.c.l.b16 %v2687
      %v2754 = vunpack.c.l.b16 %v2688
      %v2755 = vunpack.c.l.b16 %v2689
      %v2756 = vunpack.c.l.b16 %v2690
      %v2757 = vunpack.c.l.b16 %v2691
      %v2758 = vunpack.c.l.b16 %v2692
      %v2759 = vunpack.c.l.b16 %v2693
      %v2760 = vpack.c.b16 %v2729, %v2728
      %v2761 = vpack.c.b16 %v2731, %v2730
      %v2762 = vpack.c.b16 %v2733, %v2732
      %v2763 = vpack.c.b16 %v2735, %v2734
      %v2764 = vpack.c.b16 %v2737, %v2736
      %v2765 = vpack.c.b16 %v2739, %v2738
      %v2766 = vpack.c.b16 %v2741, %v2740
      %v2767 = vpack.c.b16 %v2743, %v2742
      %v2768 = vpack.c.b16 %v2745, %v2744
      %v2769 = vpack.c.b16 %v2747, %v2746
      %v2770 = vpack.c.b16 %v2749, %v2748
      %v2771 = vpack.c.b16 %v2751, %v2750
      %v2772 = vpack.c.b16 %v2753, %v2752
      %v2773 = vpack.c.b16 %v2755, %v2754
      %v2774 = vpack.c.b16 %v2757, %v2756
      %v2775 = vpack.c.b16 %v2759, %v2758
      %v2777 = vsel %vm1699, %v2760, 0
      %v2780 = vsel %vm1699, %v2761, 0
      %v2783 = vsel %vm1699, %v2762, 0
      %v2786 = vsel %vm1699, %v2763, 0
      %v2789 = vsel %vm1699, %v2764, 0
      %v2792 = vsel %vm1699, %v2765, 0
      %v2795 = vsel %vm1699, %v2766, 0
      %v2798 = vsel %vm1699, %v2767, 0
      %v2801 = vsel %vm1699, %v2768, 0
      %v2804 = vsel %vm1699, %v2769, 0
      %v2807 = vsel %vm1699, %v2770, 0
      %v2810 = vsel %vm1699, %v2771, 0
      %v2813 = vsel %vm1699, %v2772, 0
      %v2816 = vsel %vm1699, %v2773, 0
      %v2819 = vsel %vm1699, %v2774, 0
      %v2822 = vsel %vm1699, %v2775, 0
      %v2825 = vsel %vm1748, %v2695, 0
      %2827 = vmatprep.subr.bf16.mxu0 0
      %2828 = vmatpush1.bf16.msra.mxu0 %v2825
      %2829 = vmatprep.subr.bf16.mxu0 0
      %2830 = vmatpush1.bf16.msra.mxu0 0
      %2831 = vmatprep.subr.bf16.mxu0 0
      %2832 = vmatpush1.bf16.msra.mxu0 0
      %2833 = vmatprep.subr.bf16.mxu0 0
      %2834 = vmatpush1.bf16.msra.mxu0 0
      %2835 = vmatprep.subr.bf16.mxu0 0
      %2836 = vmatpush1.bf16.msra.mxu0 0
      %2837 = vmatprep.subr.bf16.mxu0 0
      %2838 = vmatpush1.bf16.msra.mxu0 0
      %2839 = vmatprep.subr.bf16.mxu0 0
      %2840 = vmatpush1.bf16.msra.mxu0 0
      %2841 = vmatprep.subr.bf16.mxu0 0
      %2842 = vmatpush1.bf16.msra.mxu0 0
      %2843 = vmatprep.subr.bf16.mxu0 0
      %2844 = vmatpush1.bf16.msra.mxu0 0
      %2845 = vmatprep.subr.bf16.mxu0 0
      %2846 = vmatpush1.bf16.msra.mxu0 0
      %2847 = vmatprep.subr.bf16.mxu0 0
      %2848 = vmatpush1.bf16.msra.mxu0 0
      %2849 = vmatprep.subr.bf16.mxu0 0
      %2850 = vmatpush1.bf16.msra.mxu0 0
      %2851 = vmatprep.subr.bf16.mxu0 0
      %2852 = vmatpush1.bf16.msra.mxu0 0
      %2853 = vmatprep.subr.bf16.mxu0 0
      %2854 = vmatpush1.bf16.msra.mxu0 0
      %2855 = vmatprep.subr.bf16.mxu0 0
      %2856 = vmatpush1.bf16.msra.mxu0 0
      %2857 = vmatprep.subr.bf16.mxu0 0
      %2858 = vmatpush1.bf16.msra.mxu0 0
      %2859 = vmatprep.mubr.bf16.mxu0 0
      %2860 = vmatmul.mubr.bf16.gmra.mrb[0].mxu0 %v2777
      %v2861 = vpop.f32.mrb[0].mxu0
      %v2862 = vadd.f32 0.0, %v2861
      %v2863 = vpop.f32.mrb[0].mxu0
      %v2864 = vpop.f32.mrb[0].mxu0
      %v2865 = vadd.f32 0.0, %v2864
      %v2866 = vpop.f32.mrb[0].mxu0
      %2867 = vmatprep.mubr.bf16.mxu0 0
      %2868 = vmatmul.mubr.bf16.gmra.mrb[0].mxu0 %v2780
      %v2869 = vpop.f32.mrb[0].mxu0
      %v2870 = vadd.f32 0.0, %v2869
      %v2871 = vpop.f32.mrb[0].mxu0
      %v2872 = vpop.f32.mrb[0].mxu0
      %v2873 = vadd.f32 0.0, %v2872
      %v2874 = vpop.f32.mrb[0].mxu0
      %2875 = vmatprep.mubr.bf16.mxu0 0
      %2876 = vmatmul.mubr.bf16.gmra.mrb[0].mxu0 %v2783
      %v2877 = vpop.f32.mrb[0].mxu0
      %v2878 = vadd.f32 0.0, %v2877
      %v2879 = vpop.f32.mrb[0].mxu0
      %v2880 = vpop.f32.mrb[0].mxu0
      %v2881 = vadd.f32 0.0, %v2880
      %v2882 = vpop.f32.mrb[0].mxu0
      %2883 = vmatprep.mubr.bf16.mxu0 0
      %2884 = vmatmul.mubr.bf16.gmra.mrb[0].mxu0 %v2786
      %v2885 = vpop.f32.mrb[0].mxu0
      %v2886 = vadd.f32 0.0, %v2885
      %v2887 = vpop.f32.mrb[0].mxu0
      %v2888 = vpop.f32.mrb[0].mxu0
      %v2889 = vadd.f32 0.0, %v2888
      %v2890 = vpop.f32.mrb[0].mxu0
      %2891 = vmatprep.mubr.bf16.mxu0 0
      %2892 = vmatmul.mubr.bf16.gmra.mrb[0].mxu0 %v2789
      %v2893 = vpop.f32.mrb[0].mxu0
      %v2894 = vadd.f32 0.0, %v2893
      %v2895 = vpop.f32.mrb[0].mxu0
      %v2896 = vpop.f32.mrb[0].mxu0
      %v2897 = vadd.f32 0.0, %v2896
      %v2898 = vpop.f32.mrb[0].mxu0
      %2899 = vmatprep.mubr.bf16.mxu0 0
      %2900 = vmatmul.mubr.bf16.gmra.mrb[0].mxu0 %v2792
      %v2901 = vpop.f32.mrb[0].mxu0
      %v2902 = vadd.f32 0.0, %v2901
      %v2903 = vpop.f32.mrb[0].mxu0
      %v2904 = vpop.f32.mrb[0].mxu0
      %v2905 = vadd.f32 0.0, %v2904
      %v2906 = vpop.f32.mrb[0].mxu0
      %2907 = vmatprep.mubr.bf16.mxu0 0
      %2908 = vmatmul.mubr.bf16.gmra.mrb[0].mxu0 %v2795
      %v2909 = vpop.f32.mrb[0].mxu0
      %v2910 = vadd.f32 0.0, %v2909
      %v2911 = vpop.f32.mrb[0].mxu0
      %v2912 = vpop.f32.mrb[0].mxu0
      %v2913 = vadd.f32 0.0, %v2912
      %v2914 = vpop.f32.mrb[0].mxu0
      %2915 = vmatprep.mubr.bf16.mxu0 0
      %2916 = vmatmul.mubr.bf16.gmra.mrb[0].mxu0 %v2798
      %v2917 = vpop.f32.mrb[0].mxu0
      %v2918 = vadd.f32 0.0, %v2917
      %v2919 = vpop.f32.mrb[0].mxu0
      %v2920 = vpop.f32.mrb[0].mxu0
      %v2921 = vadd.f32 0.0, %v2920
      %v2922 = vpop.f32.mrb[0].mxu0
      %2923 = vmatprep.mubr.bf16.mxu0 0
      %2924 = vmatmul.mubr.bf16.gmra.mrb[0].mxu0 %v2801
      %v2925 = vpop.f32.mrb[0].mxu0
      %v2926 = vadd.f32 0.0, %v2925
      %v2927 = vpop.f32.mrb[0].mxu0
      %v2928 = vpop.f32.mrb[0].mxu0
      %v2929 = vadd.f32 0.0, %v2928
      %v2930 = vpop.f32.mrb[0].mxu0
      %2931 = vmatprep.mubr.bf16.mxu0 0
      %2932 = vmatmul.mubr.bf16.gmra.mrb[0].mxu0 %v2804
      %v2933 = vpop.f32.mrb[0].mxu0
      %v2934 = vadd.f32 0.0, %v2933
      %v2935 = vpop.f32.mrb[0].mxu0
      %v2936 = vpop.f32.mrb[0].mxu0
      %v2937 = vadd.f32 0.0, %v2936
      %v2938 = vpop.f32.mrb[0].mxu0
      %2939 = vmatprep.mubr.bf16.mxu0 0
      %2940 = vmatmul.mubr.bf16.gmra.mrb[0].mxu0 %v2807
      %v2941 = vpop.f32.mrb[0].mxu0
      %v2942 = vadd.f32 0.0, %v2941
      %v2943 = vpop.f32.mrb[0].mxu0
      %v2944 = vpop.f32.mrb[0].mxu0
      %v2945 = vadd.f32 0.0, %v2944
      %v2946 = vpop.f32.mrb[0].mxu0
      %2947 = vmatprep.mubr.bf16.mxu0 0
      %2948 = vmatmul.mubr.bf16.gmra.mrb[0].mxu0 %v2810
      %v2949 = vpop.f32.mrb[0].mxu0
      %v2950 = vadd.f32 0.0, %v2949
      %v2951 = vpop.f32.mrb[0].mxu0
      %v2952 = vpop.f32.mrb[0].mxu0
      %v2953 = vadd.f32 0.0, %v2952
      %v2954 = vpop.f32.mrb[0].mxu0
      %2955 = vmatprep.mubr.bf16.mxu0 0
      %2956 = vmatmul.mubr.bf16.gmra.mrb[0].mxu0 %v2813
      %v2957 = vpop.f32.mrb[0].mxu0
      %v2958 = vadd.f32 0.0, %v2957
      %v2959 = vpop.f32.mrb[0].mxu0
      %v2960 = vpop.f32.mrb[0].mxu0
      %v2961 = vadd.f32 0.0, %v2960
      %v2962 = vpop.f32.mrb[0].mxu0
      %2963 = vmatprep.mubr.bf16.mxu0 0
      %2964 = vmatmul.mubr.bf16.gmra.mrb[0].mxu0 %v2816
      %v2965 = vpop.f32.mrb[0].mxu0
      %v2966 = vadd.f32 0.0, %v2965
      %v2967 = vpop.f32.mrb[0].mxu0
      %v2968 = vpop.f32.mrb[0].mxu0
      %v2969 = vadd.f32 0.0, %v2968
      %v2970 = vpop.f32.mrb[0].mxu0
      %2971 = vmatprep.mubr.bf16.mxu0 0
      %2972 = vmatmul.mubr.bf16.gmra.mrb[0].mxu0 %v2819
      %v2973 = vpop.f32.mrb[0].mxu0
      %v2974 = vadd.f32 0.0, %v2973
      %v2975 = vpop.f32.mrb[0].mxu0
      %v2976 = vpop.f32.mrb[0].mxu0
      %v2977 = vadd.f32 0.0, %v2976
      %v2978 = vpop.f32.mrb[0].mxu0
      %2979 = vmatprep.mubr.bf16.mxu0 0
      %2980 = vmatmul.mubr.bf16.gmra.mrb[0].mxu0 %v2822
      %v2981 = vpop.f32.mrb[0].mxu0
      %v2982 = vadd.f32 0.0, %v2981
      %v2983 = vpop.f32.mrb[0].mxu0
      %v2984 = vpop.f32.mrb[0].mxu0
      %v2985 = vadd.f32 0.0, %v2984
      %v2986 = vpop.f32.mrb[0].mxu0
      %2987 = vdwg.mxu0
      %v2988 = vadd.f32 %v2630, %v2862
      %v2989 = vadd.f32 %v2631, %v2865
      %v2990 = vadd.f32 %v2632, %v2870
      %v2991 = vadd.f32 %v2633, %v2873
      %v2992 = vadd.f32 %v2634, %v2878
      %v2993 = vadd.f32 %v2635, %v2881
      %v2994 = vadd.f32 %v2636, %v2886
      %v2995 = vadd.f32 %v2637, %v2889
      %v2996 = vadd.f32 %v2638, %v2894
      %v2997 = vadd.f32 %v2639, %v2897
      %v2998 = vadd.f32 %v2640, %v2902
      %v2999 = vadd.f32 %v2641, %v2905
      %v3000 = vadd.f32 %v2642, %v2910
      %v3001 = vadd.f32 %v2643, %v2913
      %v3002 = vadd.f32 %v2644, %v2918
      %v3003 = vadd.f32 %v2645, %v2921
      %v3004 = vadd.f32 %v2646, %v2926
      %v3005 = vadd.f32 %v2647, %v2929
      %v3006 = vadd.f32 %v2648, %v2934
      %v3007 = vadd.f32 %v2649, %v2937
      %v3008 = vadd.f32 %v2650, %v2942
      %v3009 = vadd.f32 %v2651, %v2945
      %v3010 = vadd.f32 %v2652, %v2950
      %v3011 = vadd.f32 %v2653, %v2953
      %v3012 = vadd.f32 %v2654, %v2958
      %v3013 = vadd.f32 %v2655, %v2961
      %v3014 = vadd.f32 %v2656, %v2966
      %v3015 = vadd.f32 %v2657, %v2969
      %v3016 = vadd.f32 %v2658, %v2974
      %v3017 = vadd.f32 %v2659, %v2977
      %v3018 = vadd.f32 %v2660, %v2982
      %v3019 = vadd.f32 %v2661, %v2985
      %v3020 = vld [vmem:[%s1095] sm:$0xf]
      %v3021 = vld [vmem:[%s1095 + $0x4] sm:$0xf]
      %v3022 = vld [vmem:[%s1095 + $0x8] sm:$0x1]
      %v3023 = vld [vmem:[%s1095 + $0xc] sm:$0xf]
      %v3024 = vld [vmem:[%s1095 + $0x10] sm:$0xf]
      %v3025 = vld [vmem:[%s1095 + $0x14] sm:$0x1]
      %v3026 = vld [vmem:[%s1095 + $0x18] sm:$0xf]
      %v3027 = vld [vmem:[%s1095 + $0x1c] sm:$0xf]
      %v3028 = vld [vmem:[%s1095 + $0x20] sm:$0x1]
      %v3029 = vld [vmem:[%s1095 + $0x24] sm:$0xf]
      %v3030 = vld [vmem:[%s1095 + $0x28] sm:$0xf]
      %v3031 = vld [vmem:[%s1095 + $0x2c] sm:$0x1]
      %v3032 = vld [vmem:[%s1095 + $0x30] sm:$0xf]
      %v3033 = vld [vmem:[%s1095 + $0x34] sm:$0xf]
      %v3034 = vld [vmem:[%s1095 + $0x38] sm:$0x1]
      %v3035 = vld [vmem:[%s1095 + $0x3c] sm:$0xf]
      %v3036 = vld [vmem:[%s1095 + $0x40] sm:$0xf]
      %v3037 = vld [vmem:[%s1095 + $0x44] sm:$0x1]
      %v3038 = vld [vmem:[%s1095 + $0x48] sm:$0xf]
      %v3039 = vld [vmem:[%s1095 + $0x4c] sm:$0xf]
      %v3040 = vld [vmem:[%s1095 + $0x50] sm:$0x1]
      %v3041 = vld [vmem:[%s1095 + $0x54] sm:$0xf]
      %v3042 = vld [vmem:[%s1095 + $0x58] sm:$0xf]
      %v3043 = vld [vmem:[%s1095 + $0x5c] sm:$0x1]
      %v3044 = vld [vmem:[%s1095 + $0x60] sm:$0xf]
      %v3045 = vld [vmem:[%s1095 + $0x64] sm:$0xf]
      %v3046 = vld [vmem:[%s1095 + $0x68] sm:$0x1]
      %v3047 = vld [vmem:[%s1095 + $0x6c] sm:$0xf]
      %v3048 = vld [vmem:[%s1095 + $0x70] sm:$0xf]
      %v3049 = vld [vmem:[%s1095 + $0x74] sm:$0x1]
      %v3050 = vld [vmem:[%s1095 + $0x78] sm:$0xf]
      %v3051 = vld [vmem:[%s1095 + $0x7c] sm:$0xf]
      %v3052 = vld [vmem:[%s1095 + $0x80] sm:$0x1]
      %v3053 = vld [vmem:[%s1095 + $0x84] sm:$0xf]
      %v3054 = vld [vmem:[%s1095 + $0x88] sm:$0xf]
      %v3055 = vld [vmem:[%s1095 + $0x8c] sm:$0x1]
      %v3056 = vld [vmem:[%s1095 + $0x90] sm:$0xf]
      %v3057 = vld [vmem:[%s1095 + $0x94] sm:$0xf]
      %v3058 = vld [vmem:[%s1095 + $0x98] sm:$0x1]
      %v3059 = vld [vmem:[%s1095 + $0x9c] sm:$0xf]
      %v3060 = vld [vmem:[%s1095 + $0xa0] sm:$0xf]
      %v3061 = vld [vmem:[%s1095 + $0xa4] sm:$0x1]
      %v3062 = vld [vmem:[%s1095 + $0xa8] sm:$0xf]
      %v3063 = vld [vmem:[%s1095 + $0xac] sm:$0xf]
      %v3064 = vld [vmem:[%s1095 + $0xb0] sm:$0x1]
      %v3065 = vld [vmem:[%s1095 + $0xb4] sm:$0xf]
      %v3066 = vld [vmem:[%s1095 + $0xb8] sm:$0xf]
      %v3067 = vld [vmem:[%s1095 + $0xbc] sm:$0x1]
      %v3069 = vshrl.u32 %v3020, 16
      %v3071 = vrot.slane %v3069, 4
      %v3072 = vshll.u32 %v3020, 16
      %v3074 = vrot.slane %v3072, 5
      %v3075 = vor.u32 %v3071, %v3074
      %v3076 = vrot.slane %v3075, 4
      %v3078 = vshll.u32 %v3021, 16
      %v3080 = vrot.slane %v3078, 5
      %v3081 = vsel %vm1264, %v3076, %v3080
      %v3082 = vshrl.u32 %v3021, 16
      %v3084 = vrot.slane %v3082, 4
      %v3085 = vor.u32 %v3084, %v3080
      %v3086 = vrot.slane %v3085, 4
      %v3088 = vshll.u32 %v3022, 16
      %v3090 = vrot.slane %v3088, 5
      %v3091 = vsel %vm1264, %v3086, %v3090
      %v3093 = vshrl.u32 %v3023, 16
      %v3095 = vrot.slane %v3093, 4
      %v3096 = vshll.u32 %v3023, 16
      %v3098 = vrot.slane %v3096, 5
      %v3099 = vor.u32 %v3095, %v3098
      %v3100 = vrot.slane %v3099, 4
      %v3102 = vshll.u32 %v3024, 16
      %v3104 = vrot.slane %v3102, 5
      %v3105 = vsel %vm1264, %v3100, %v3104
      %v3106 = vshrl.u32 %v3024, 16
      %v3108 = vrot.slane %v3106, 4
      %v3109 = vor.u32 %v3108, %v3104
      %v3110 = vrot.slane %v3109, 4
      %v3112 = vshll.u32 %v3025, 16
      %v3114 = vrot.slane %v3112, 5
      %v3115 = vsel %vm1264, %v3110, %v3114
      %v3117 = vshrl.u32 %v3026, 16
      %v3119 = vrot.slane %v3117, 4
      %v3120 = vshll.u32 %v3026, 16
      %v3122 = vrot.slane %v3120, 5
      %v3123 = vor.u32 %v3119, %v3122
      %v3124 = vrot.slane %v3123, 4
      %v3126 = vshll.u32 %v3027, 16
      %v3128 = vrot.slane %v3126, 5
      %v3129 = vsel %vm1264, %v3124, %v3128
      %v3130 = vshrl.u32 %v3027, 16
      %v3132 = vrot.slane %v3130, 4
      %v3133 = vor.u32 %v3132, %v3128
      %v3134 = vrot.slane %v3133, 4
      %v3136 = vshll.u32 %v3028, 16
      %v3138 = vrot.slane %v3136, 5
      %v3139 = vsel %vm1264, %v3134, %v3138
      %v3141 = vshrl.u32 %v3029, 16
      %v3143 = vrot.slane %v3141, 4
      %v3144 = vshll.u32 %v3029, 16
      %v3146 = vrot.slane %v3144, 5
      %v3147 = vor.u32 %v3143, %v3146
      %v3148 = vrot.slane %v3147, 4
      %v3150 = vshll.u32 %v3030, 16
      %v3152 = vrot.slane %v3150, 5
      %v3153 = vsel %vm1264, %v3148, %v3152
      %v3154 = vshrl.u32 %v3030, 16
      %v3156 = vrot.slane %v3154, 4
      %v3157 = vor.u32 %v3156, %v3152
      %v3158 = vrot.slane %v3157, 4
      %v3160 = vshll.u32 %v3031, 16
      %v3162 = vrot.slane %v3160, 5
      %v3163 = vsel %vm1264, %v3158, %v3162
      %v3165 = vshrl.u32 %v3032, 16
      %v3167 = vrot.slane %v3165, 4
      %v3168 = vshll.u32 %v3032, 16
      %v3170 = vrot.slane %v3168, 5
      %v3171 = vor.u32 %v3167, %v3170
      %v3172 = vrot.slane %v3171, 4
      %v3174 = vshll.u32 %v3033, 16
      %v3176 = vrot.slane %v3174, 5
      %v3177 = vsel %vm1264, %v3172, %v3176
      %v3178 = vshrl.u32 %v3033, 16
      %v3180 = vrot.slane %v3178, 4
      %v3181 = vor.u32 %v3180, %v3176
      %v3182 = vrot.slane %v3181, 4
      %v3184 = vshll.u32 %v3034, 16
      %v3186 = vrot.slane %v3184, 5
      %v3187 = vsel %vm1264, %v3182, %v3186
      %v3189 = vshrl.u32 %v3035, 16
      %v3191 = vrot.slane %v3189, 4
      %v3192 = vshll.u32 %v3035, 16
      %v3194 = vrot.slane %v3192, 5
      %v3195 = vor.u32 %v3191, %v3194
      %v3196 = vrot.slane %v3195, 4
      %v3198 = vshll.u32 %v3036, 16
      %v3200 = vrot.slane %v3198, 5
      %v3201 = vsel %vm1264, %v3196, %v3200
      %v3202 = vshrl.u32 %v3036, 16
      %v3204 = vrot.slane %v3202, 4
      %v3205 = vor.u32 %v3204, %v3200
      %v3206 = vrot.slane %v3205, 4
      %v3208 = vshll.u32 %v3037, 16
      %v3210 = vrot.slane %v3208, 5
      %v3211 = vsel %vm1264, %v3206, %v3210
      %v3213 = vshrl.u32 %v3038, 16
      %v3215 = vrot.slane %v3213, 4
      %v3216 = vshll.u32 %v3038, 16
      %v3218 = vrot.slane %v3216, 5
      %v3219 = vor.u32 %v3215, %v3218
      %v3220 = vrot.slane %v3219, 4
      %v3222 = vshll.u32 %v3039, 16
      %v3224 = vrot.slane %v3222, 5
      %v3225 = vsel %vm1264, %v3220, %v3224
      %v3226 = vshrl.u32 %v3039, 16
      %v3228 = vrot.slane %v3226, 4
      %v3229 = vor.u32 %v3228, %v3224
      %v3230 = vrot.slane %v3229, 4
      %v3232 = vshll.u32 %v3040, 16
      %v3234 = vrot.slane %v3232, 5
      %v3235 = vsel %vm1264, %v3230, %v3234
      %v3237 = vshrl.u32 %v3041, 16
      %v3239 = vrot.slane %v3237, 4
      %v3240 = vshll.u32 %v3041, 16
      %v3242 = vrot.slane %v3240, 5
      %v3243 = vor.u32 %v3239, %v3242
      %v3244 = vrot.slane %v3243, 4
      %v3246 = vshll.u32 %v3042, 16
      %v3248 = vrot.slane %v3246, 5
      %v3249 = vsel %vm1264, %v3244, %v3248
      %v3250 = vshrl.u32 %v3042, 16
      %v3252 = vrot.slane %v3250, 4
      %v3253 = vor.u32 %v3252, %v3248
      %v3254 = vrot.slane %v3253, 4
      %v3256 = vshll.u32 %v3043, 16
      %v3258 = vrot.slane %v3256, 5
      %v3259 = vsel %vm1264, %v3254, %v3258
      %v3261 = vshrl.u32 %v3044, 16
      %v3263 = vrot.slane %v3261, 4
      %v3264 = vshll.u32 %v3044, 16
      %v3266 = vrot.slane %v3264, 5
      %v3267 = vor.u32 %v3263, %v3266
      %v3268 = vrot.slane %v3267, 4
      %v3270 = vshll.u32 %v3045, 16
      %v3272 = vrot.slane %v3270, 5
      %v3273 = vsel %vm1264, %v3268, %v3272
      %v3274 = vshrl.u32 %v3045, 16
      %v3276 = vrot.slane %v3274, 4
      %v3277 = vor.u32 %v3276, %v3272
      %v3278 = vrot.slane %v3277, 4
      %v3280 = vshll.u32 %v3046, 16
      %v3282 = vrot.slane %v3280, 5
      %v3283 = vsel %vm1264, %v3278, %v3282
      %v3285 = vshrl.u32 %v3047, 16
      %v3287 = vrot.slane %v3285, 4
      %v3288 = vshll.u32 %v3047, 16
      %v3290 = vrot.slane %v3288, 5
      %v3291 = vor.u32 %v3287, %v3290
      %v3292 = vrot.slane %v3291, 4
      %v3294 = vshll.u32 %v3048, 16
      %v3296 = vrot.slane %v3294, 5
      %v3297 = vsel %vm1264, %v3292, %v3296
      %v3298 = vshrl.u32 %v3048, 16
      %v3300 = vrot.slane %v3298, 4
      %v3301 = vor.u32 %v3300, %v3296
      %v3302 = vrot.slane %v3301, 4
      %v3304 = vshll.u32 %v3049, 16
      %v3306 = vrot.slane %v3304, 5
      %v3307 = vsel %vm1264, %v3302, %v3306
      %v3309 = vshrl.u32 %v3050, 16
      %v3311 = vrot.slane %v3309, 4
      %v3312 = vshll.u32 %v3050, 16
      %v3314 = vrot.slane %v3312, 5
      %v3315 = vor.u32 %v3311, %v3314
      %v3316 = vrot.slane %v3315, 4
      %v3318 = vshll.u32 %v3051, 16
      %v3320 = vrot.slane %v3318, 5
      %v3321 = vsel %vm1264, %v3316, %v3320
      %v3322 = vshrl.u32 %v3051, 16
      %v3324 = vrot.slane %v3322, 4
      %v3325 = vor.u32 %v3324, %v3320
      %v3326 = vrot.slane %v3325, 4
      %v3328 = vshll.u32 %v3052, 16
      %v3330 = vrot.slane %v3328, 5
      %v3331 = vsel %vm1264, %v3326, %v3330
      %v3333 = vshrl.u32 %v3053, 16
      %v3335 = vrot.slane %v3333, 4
      %v3336 = vshll.u32 %v3053, 16
      %v3338 = vrot.slane %v3336, 5
      %v3339 = vor.u32 %v3335, %v3338
      %v3340 = vrot.slane %v3339, 4
      %v3342 = vshll.u32 %v3054, 16
      %v3344 = vrot.slane %v3342, 5
      %v3345 = vsel %vm1264, %v3340, %v3344
      %v3346 = vshrl.u32 %v3054, 16
      %v3348 = vrot.slane %v3346, 4
      %v3349 = vor.u32 %v3348, %v3344
      %v3350 = vrot.slane %v3349, 4
      %v3352 = vshll.u32 %v3055, 16
      %v3354 = vrot.slane %v3352, 5
      %v3355 = vsel %vm1264, %v3350, %v3354
      %v3357 = vshrl.u32 %v3056, 16
      %v3359 = vrot.slane %v3357, 4
      %v3360 = vshll.u32 %v3056, 16
      %v3362 = vrot.slane %v3360, 5
      %v3363 = vor.u32 %v3359, %v3362
      %v3364 = vrot.slane %v3363, 4
      %v3366 = vshll.u32 %v3057, 16
      %v3368 = vrot.slane %v3366, 5
      %v3369 = vsel %vm1264, %v3364, %v3368
      %v3370 = vshrl.u32 %v3057, 16
      %v3372 = vrot.slane %v3370, 4
      %v3373 = vor.u32 %v3372, %v3368
      %v3374 = vrot.slane %v3373, 4
      %v3376 = vshll.u32 %v3058, 16
      %v3378 = vrot.slane %v3376, 5
      %v3379 = vsel %vm1264, %v3374, %v3378
      %v3381 = vshrl.u32 %v3059, 16
      %v3383 = vrot.slane %v3381, 4
      %v3384 = vshll.u32 %v3059, 16
      %v3386 = vrot.slane %v3384, 5
      %v3387 = vor.u32 %v3383, %v3386
      %v3388 = vrot.slane %v3387, 4
      %v3390 = vshll.u32 %v3060, 16
      %v3392 = vrot.slane %v3390, 5
      %v3393 = vsel %vm1264, %v3388, %v3392
      %v3394 = vshrl.u32 %v3060, 16
      %v3396 = vrot.slane %v3394, 4
      %v3397 = vor.u32 %v3396, %v3392
      %v3398 = vrot.slane %v3397, 4
      %v3400 = vshll.u32 %v3061, 16
      %v3402 = vrot.slane %v3400, 5
      %v3403 = vsel %vm1264, %v3398, %v3402
      %v3405 = vshrl.u32 %v3062, 16
      %v3407 = vrot.slane %v3405, 4
      %v3408 = vshll.u32 %v3062, 16
      %v3410 = vrot.slane %v3408, 5
      %v3411 = vor.u32 %v3407, %v3410
      %v3412 = vrot.slane %v3411, 4
      %v3414 = vshll.u32 %v3063, 16
      %v3416 = vrot.slane %v3414, 5
      %v3417 = vsel %vm1264, %v3412, %v3416
      %v3418 = vshrl.u32 %v3063, 16
      %v3420 = vrot.slane %v3418, 4
      %v3421 = vor.u32 %v3420, %v3416
      %v3422 = vrot.slane %v3421, 4
      %v3424 = vshll.u32 %v3064, 16
      %v3426 = vrot.slane %v3424, 5
      %v3427 = vsel %vm1264, %v3422, %v3426
      %v3429 = vshrl.u32 %v3065, 16
      %v3431 = vrot.slane %v3429, 4
      %v3432 = vshll.u32 %v3065, 16
      %v3434 = vrot.slane %v3432, 5
      %v3435 = vor.u32 %v3431, %v3434
      %v3436 = vrot.slane %v3435, 4
      %v3438 = vshll.u32 %v3066, 16
      %v3440 = vrot.slane %v3438, 5
      %v3441 = vsel %vm1264, %v3436, %v3440
      %v3442 = vshrl.u32 %v3066, 16
      %v3444 = vrot.slane %v3442, 4
      %v3445 = vor.u32 %v3444, %v3440
      %v3446 = vrot.slane %v3445, 4
      %v3448 = vshll.u32 %v3067, 16
      %v3450 = vrot.slane %v3448, 5
      %v3451 = vsel %vm1264, %v3446, %v3450
      %s3452 = scalar_lea.vmem %s2, 16
      %v3453 = vld [vmem:[%s3452] sm:$0xf]
      %v3454 = vunpack.c.l.b16 %v3081
      %v3455 = vunpack.c.l.b16 %v3091
      %v3456 = vunpack.c.l.b16 %v3105
      %v3457 = vunpack.c.l.b16 %v3115
      %v3458 = vunpack.c.l.b16 %v3129
      %v3459 = vunpack.c.l.b16 %v3139
      %v3460 = vunpack.c.l.b16 %v3153
      %v3461 = vunpack.c.l.b16 %v3163
      %v3462 = vunpack.c.l.b16 %v3177
      %v3463 = vunpack.c.l.b16 %v3187
      %v3464 = vunpack.c.l.b16 %v3201
      %v3465 = vunpack.c.l.b16 %v3211
      %v3466 = vunpack.c.l.b16 %v3225
      %v3467 = vunpack.c.l.b16 %v3235
      %v3468 = vunpack.c.l.b16 %v3249
      %v3469 = vunpack.c.l.b16 %v3259
      %v3470 = vunpack.c.l.b16 %v3273
      %v3471 = vunpack.c.l.b16 %v3283
      %v3472 = vunpack.c.l.b16 %v3297
      %v3473 = vunpack.c.l.b16 %v3307
      %v3474 = vunpack.c.l.b16 %v3321
      %v3475 = vunpack.c.l.b16 %v3331
      %v3476 = vunpack.c.l.b16 %v3345
      %v3477 = vunpack.c.l.b16 %v3355
      %v3478 = vunpack.c.l.b16 %v3369
      %v3479 = vunpack.c.l.b16 %v3379
      %v3480 = vunpack.c.l.b16 %v3393
      %v3481 = vunpack.c.l.b16 %v3403
      %v3482 = vunpack.c.l.b16 %v3417
      %v3483 = vunpack.c.l.b16 %v3427
      %v3484 = vunpack.c.l.b16 %v3441
      %v3485 = vunpack.c.l.b16 %v3451
      %v3486 = vpack.c.b16 %v3455, %v3454
      %v3487 = vpack.c.b16 %v3457, %v3456
      %v3488 = vpack.c.b16 %v3459, %v3458
      %v3489 = vpack.c.b16 %v3461, %v3460
      %v3490 = vpack.c.b16 %v3463, %v3462
      %v3491 = vpack.c.b16 %v3465, %v3464
      %v3492 = vpack.c.b16 %v3467, %v3466
      %v3493 = vpack.c.b16 %v3469, %v3468
      %v3494 = vpack.c.b16 %v3471, %v3470
      %v3495 = vpack.c.b16 %v3473, %v3472
      %v3496 = vpack.c.b16 %v3475, %v3474
      %v3497 = vpack.c.b16 %v3477, %v3476
      %v3498 = vpack.c.b16 %v3479, %v3478
      %v3499 = vpack.c.b16 %v3481, %v3480
      %v3500 = vpack.c.b16 %v3483, %v3482
      %v3501 = vpack.c.b16 %v3485, %v3484
      %v3503 = vsel %vm1699, %v3486, 0
      %v3506 = vsel %vm1699, %v3487, 0
      %v3509 = vsel %vm1699, %v3488, 0
      %v3512 = vsel %vm1699, %v3489, 0
      %v3515 = vsel %vm1699, %v3490, 0
      %v3518 = vsel %vm1699, %v3491, 0
      %v3521 = vsel %vm1699, %v3492, 0
      %v3524 = vsel %vm1699, %v3493, 0
      %v3527 = vsel %vm1699, %v3494, 0
      %v3530 = vsel %vm1699, %v3495, 0
      %v3533 = vsel %vm1699, %v3496, 0
      %v3536 = vsel %vm1699, %v3497, 0
      %v3539 = vsel %vm1699, %v3498, 0
      %v3542 = vsel %vm1699, %v3499, 0
      %v3545 = vsel %vm1699, %v3500, 0
      %v3548 = vsel %vm1699, %v3501, 0
      %v3551 = vsel %vm1748, %v3453, 0
      %3553 = vmatprep.subr.bf16.mxu0 0
      %3554 = vmatpush1.bf16.msra.mxu0 %v3551
      %3555 = vmatprep.subr.bf16.mxu0 0
      %3556 = vmatpush1.bf16.msra.mxu0 0
      %3557 = vmatprep.subr.bf16.mxu0 0
      %3558 = vmatpush1.bf16.msra.mxu0 0
      %3559 = vmatprep.subr.bf16.mxu0 0
      %3560 = vmatpush1.bf16.msra.mxu0 0
      %3561 = vmatprep.subr.bf16.mxu0 0
      %3562 = vmatpush1.bf16.msra.mxu0 0
      %3563 = vmatprep.subr.bf16.mxu0 0
      %3564 = vmatpush1.bf16.msra.mxu0 0
      %3565 = vmatprep.subr.bf16.mxu0 0
      %3566 = vmatpush1.bf16.msra.mxu0 0
      %3567 = vmatprep.subr.bf16.mxu0 0
      %3568 = vmatpush1.bf16.msra.mxu0 0
      %3569 = vmatprep.subr.bf16.mxu0 0
      %3570 = vmatpush1.bf16.msra.mxu0 0
      %3571 = vmatprep.subr.bf16.mxu0 0
      %3572 = vmatpush1.bf16.msra.mxu0 0
      %3573 = vmatprep.subr.bf16.mxu0 0
      %3574 = vmatpush1.bf16.msra.mxu0 0
      %3575 = vmatprep.subr.bf16.mxu0 0
      %3576 = vmatpush1.bf16.msra.mxu0 0
      %3577 = vmatprep.subr.bf16.mxu0 0
      %3578 = vmatpush1.bf16.msra.mxu0 0
      %3579 = vmatprep.subr.bf16.mxu0 0
      %3580 = vmatpush1.bf16.msra.mxu0 0
      %3581 = vmatprep.subr.bf16.mxu0 0
      %3582 = vmatpush1.bf16.msra.mxu0 0
      %3583 = vmatprep.subr.bf16.mxu0 0
      %3584 = vmatpush1.bf16.msra.mxu0 0
      %3585 = vmatprep.mubr.bf16.mxu0 0
      %3586 = vmatmul.mubr.bf16.gmra.mrb[0].mxu0 %v3503
      %v3587 = vpop.f32.mrb[0].mxu0
      %v3588 = vadd.f32 0.0, %v3587
      %v3589 = vpop.f32.mrb[0].mxu0
      %v3590 = vpop.f32.mrb[0].mxu0
      %v3591 = vadd.f32 0.0, %v3590
      %v3592 = vpop.f32.mrb[0].mxu0
      %3593 = vmatprep.mubr.bf16.mxu0 0
      %3594 = vmatmul.mubr.bf16.gmra.mrb[0].mxu0 %v3506
      %v3595 = vpop.f32.mrb[0].mxu0
      %v3596 = vadd.f32 0.0, %v3595
      %v3597 = vpop.f32.mrb[0].mxu0
      %v3598 = vpop.f32.mrb[0].mxu0
      %v3599 = vadd.f32 0.0, %v3598
      %v3600 = vpop.f32.mrb[0].mxu0
      %3601 = vmatprep.mubr.bf16.mxu0 0
      %3602 = vmatmul.mubr.bf16.gmra.mrb[0].mxu0 %v3509
      %v3603 = vpop.f32.mrb[0].mxu0
      %v3604 = vadd.f32 0.0, %v3603
      %v3605 = vpop.f32.mrb[0].mxu0
      %v3606 = vpop.f32.mrb[0].mxu0
      %v3607 = vadd.f32 0.0, %v3606
      %v3608 = vpop.f32.mrb[0].mxu0
      %3609 = vmatprep.mubr.bf16.mxu0 0
      %3610 = vmatmul.mubr.bf16.gmra.mrb[0].mxu0 %v3512
      %v3611 = vpop.f32.mrb[0].mxu0
      %v3612 = vadd.f32 0.0, %v3611
      %v3613 = vpop.f32.mrb[0].mxu0
      %v3614 = vpop.f32.mrb[0].mxu0
      %v3615 = vadd.f32 0.0, %v3614
      %v3616 = vpop.f32.mrb[0].mxu0
      %3617 = vmatprep.mubr.bf16.mxu0 0
      %3618 = vmatmul.mubr.bf16.gmra.mrb[0].mxu0 %v3515
      %v3619 = vpop.f32.mrb[0].mxu0
      %v3620 = vadd.f32 0.0, %v3619
      %v3621 = vpop.f32.mrb[0].mxu0
      %v3622 = vpop.f32.mrb[0].mxu0
      %v3623 = vadd.f32 0.0, %v3622
      %v3624 = vpop.f32.mrb[0].mxu0
      %3625 = vmatprep.mubr.bf16.mxu0 0
      %3626 = vmatmul.mubr.bf16.gmra.mrb[0].mxu0 %v3518
      %v3627 = vpop.f32.mrb[0].mxu0
      %v3628 = vadd.f32 0.0, %v3627
      %v3629 = vpop.f32.mrb[0].mxu0
      %v3630 = vpop.f32.mrb[0].mxu0
      %v3631 = vadd.f32 0.0, %v3630
      %v3632 = vpop.f32.mrb[0].mxu0
      %3633 = vmatprep.mubr.bf16.mxu0 0
      %3634 = vmatmul.mubr.bf16.gmra.mrb[0].mxu0 %v3521
      %v3635 = vpop.f32.mrb[0].mxu0
      %v3636 = vadd.f32 0.0, %v3635
      %v3637 = vpop.f32.mrb[0].mxu0
      %v3638 = vpop.f32.mrb[0].mxu0
      %v3639 = vadd.f32 0.0, %v3638
      %v3640 = vpop.f32.mrb[0].mxu0
      %3641 = vmatprep.mubr.bf16.mxu0 0
      %3642 = vmatmul.mubr.bf16.gmra.mrb[0].mxu0 %v3524
      %v3643 = vpop.f32.mrb[0].mxu0
      %v3644 = vadd.f32 0.0, %v3643
      %v3645 = vpop.f32.mrb[0].mxu0
      %v3646 = vpop.f32.mrb[0].mxu0
      %v3647 = vadd.f32 0.0, %v3646
      %v3648 = vpop.f32.mrb[0].mxu0
      %3649 = vmatprep.mubr.bf16.mxu0 0
      %3650 = vmatmul.mubr.bf16.gmra.mrb[0].mxu0 %v3527
      %v3651 = vpop.f32.mrb[0].mxu0
      %v3652 = vadd.f32 0.0, %v3651
      %v3653 = vpop.f32.mrb[0].mxu0
      %v3654 = vpop.f32.mrb[0].mxu0
      %v3655 = vadd.f32 0.0, %v3654
      %v3656 = vpop.f32.mrb[0].mxu0
      %3657 = vmatprep.mubr.bf16.mxu0 0
      %3658 = vmatmul.mubr.bf16.gmra.mrb[0].mxu0 %v3530
      %v3659 = vpop.f32.mrb[0].mxu0
      %v3660 = vadd.f32 0.0, %v3659
      %v3661 = vpop.f32.mrb[0].mxu0
      %v3662 = vpop.f32.mrb[0].mxu0
      %v3663 = vadd.f32 0.0, %v3662
      %v3664 = vpop.f32.mrb[0].mxu0
      %3665 = vmatprep.mubr.bf16.mxu0 0
      %3666 = vmatmul.mubr.bf16.gmra.mrb[0].mxu0 %v3533
      %v3667 = vpop.f32.mrb[0].mxu0
      %v3668 = vadd.f32 0.0, %v3667
      %v3669 = vpop.f32.mrb[0].mxu0
      %v3670 = vpop.f32.mrb[0].mxu0
      %v3671 = vadd.f32 0.0, %v3670
      %v3672 = vpop.f32.mrb[0].mxu0
      %3673 = vmatprep.mubr.bf16.mxu0 0
      %3674 = vmatmul.mubr.bf16.gmra.mrb[0].mxu0 %v3536
      %v3675 = vpop.f32.mrb[0].mxu0
      %v3676 = vadd.f32 0.0, %v3675
      %v3677 = vpop.f32.mrb[0].mxu0
      %v3678 = vpop.f32.mrb[0].mxu0
      %v3679 = vadd.f32 0.0, %v3678
      %v3680 = vpop.f32.mrb[0].mxu0
      %3681 = vmatprep.mubr.bf16.mxu0 0
      %3682 = vmatmul.mubr.bf16.gmra.mrb[0].mxu0 %v3539
      %v3683 = vpop.f32.mrb[0].mxu0
      %v3684 = vadd.f32 0.0, %v3683
      %v3685 = vpop.f32.mrb[0].mxu0
      %v3686 = vpop.f32.mrb[0].mxu0
      %v3687 = vadd.f32 0.0, %v3686
      %v3688 = vpop.f32.mrb[0].mxu0
      %3689 = vmatprep.mubr.bf16.mxu0 0
      %3690 = vmatmul.mubr.bf16.gmra.mrb[0].mxu0 %v3542
      %v3691 = vpop.f32.mrb[0].mxu0
      %v3692 = vadd.f32 0.0, %v3691
      %v3693 = vpop.f32.mrb[0].mxu0
      %v3694 = vpop.f32.mrb[0].mxu0
      %v3695 = vadd.f32 0.0, %v3694
      %v3696 = vpop.f32.mrb[0].mxu0
      %3697 = vmatprep.mubr.bf16.mxu0 0
      %3698 = vmatmul.mubr.bf16.gmra.mrb[0].mxu0 %v3545
      %v3699 = vpop.f32.mrb[0].mxu0
      %v3700 = vadd.f32 0.0, %v3699
      %v3701 = vpop.f32.mrb[0].mxu0
      %v3702 = vpop.f32.mrb[0].mxu0
      %v3703 = vadd.f32 0.0, %v3702
      %v3704 = vpop.f32.mrb[0].mxu0
      %3705 = vmatprep.mubr.bf16.mxu0 0
      %3706 = vmatmul.mubr.bf16.gmra.mrb[0].mxu0 %v3548
      %v3707 = vpop.f32.mrb[0].mxu0
      %v3708 = vadd.f32 0.0, %v3707
      %v3709 = vpop.f32.mrb[0].mxu0
      %v3710 = vpop.f32.mrb[0].mxu0
      %v3711 = vadd.f32 0.0, %v3710
      %v3712 = vpop.f32.mrb[0].mxu0
      %3713 = vdwg.mxu0
      %v3714 = vadd.f32 %v2988, %v3588
      %v3715 = vadd.f32 %v2989, %v3591
      %v3716 = vadd.f32 %v2990, %v3596
      %v3717 = vadd.f32 %v2991, %v3599
      %v3718 = vadd.f32 %v2992, %v3604
      %v3719 = vadd.f32 %v2993, %v3607
      %v3720 = vadd.f32 %v2994, %v3612
      %v3721 = vadd.f32 %v2995, %v3615
      %v3722 = vadd.f32 %v2996, %v3620
      %v3723 = vadd.f32 %v2997, %v3623
      %v3724 = vadd.f32 %v2998, %v3628
      %v3725 = vadd.f32 %v2999, %v3631
      %v3726 = vadd.f32 %v3000, %v3636
      %v3727 = vadd.f32 %v3001, %v3639
      %v3728 = vadd.f32 %v3002, %v3644
      %v3729 = vadd.f32 %v3003, %v3647
      %v3730 = vadd.f32 %v3004, %v3652
      %v3731 = vadd.f32 %v3005, %v3655
      %v3732 = vadd.f32 %v3006, %v3660
      %v3733 = vadd.f32 %v3007, %v3663
      %v3734 = vadd.f32 %v3008, %v3668
      %v3735 = vadd.f32 %v3009, %v3671
      %v3736 = vadd.f32 %v3010, %v3676
      %v3737 = vadd.f32 %v3011, %v3679
      %v3738 = vadd.f32 %v3012, %v3684
      %v3739 = vadd.f32 %v3013, %v3687
      %v3740 = vadd.f32 %v3014, %v3692
      %v3741 = vadd.f32 %v3015, %v3695
      %v3742 = vadd.f32 %v3016, %v3700
      %v3743 = vadd.f32 %v3017, %v3703
      %v3744 = vadd.f32 %v3018, %v3708
      %v3745 = vadd.f32 %v3019, %v3711
      %v3746 = vld [vmem:[%s1095] sm:$0xe]
      %v3747 = vld [vmem:[%s1095 + $0xc] sm:$0xe]
      %v3748 = vld [vmem:[%s1095 + $0x18] sm:$0xe]
      %v3749 = vld [vmem:[%s1095 + $0x24] sm:$0xe]
      %v3750 = vld [vmem:[%s1095 + $0x30] sm:$0xe]
      %v3751 = vld [vmem:[%s1095 + $0x3c] sm:$0xe]
      %v3752 = vld [vmem:[%s1095 + $0x48] sm:$0xe]
      %v3753 = vld [vmem:[%s1095 + $0x54] sm:$0xe]
      %v3754 = vld [vmem:[%s1095 + $0x60] sm:$0xe]
      %v3755 = vld [vmem:[%s1095 + $0x6c] sm:$0xe]
      %v3756 = vld [vmem:[%s1095 + $0x78] sm:$0xe]
      %v3757 = vld [vmem:[%s1095 + $0x84] sm:$0xe]
      %v3758 = vld [vmem:[%s1095 + $0x90] sm:$0xe]
      %v3759 = vld [vmem:[%s1095 + $0x9c] sm:$0xe]
      %v3760 = vld [vmem:[%s1095 + $0xa8] sm:$0xe]
      %v3761 = vld [vmem:[%s1095 + $0xb4] sm:$0xe]
      %v3810 = vrot.slane %v3746, 5
      %v3811 = vrot.slane %v3810, 4
      %v3812 = vrot.slane %v3021, 5
      %v3813 = vsel %vm2255, %v3811, %v3812
      %v3814 = vrot.slane %v3812, 4
      %v3815 = vrot.slane %v3022, 5
      %v3816 = vsel %vm2255, %v3814, %v3815
      %v3817 = vrot.slane %v3747, 5
      %v3818 = vrot.slane %v3817, 4
      %v3819 = vrot.slane %v3024, 5
      %v3820 = vsel %vm2255, %v3818, %v3819
      %v3821 = vrot.slane %v3819, 4
      %v3822 = vrot.slane %v3025, 5
      %v3823 = vsel %vm2255, %v3821, %v3822
      %v3824 = vrot.slane %v3748, 5
      %v3825 = vrot.slane %v3824, 4
      %v3826 = vrot.slane %v3027, 5
      %v3827 = vsel %vm2255, %v3825, %v3826
      %v3828 = vrot.slane %v3826, 4
      %v3829 = vrot.slane %v3028, 5
      %v3830 = vsel %vm2255, %v3828, %v3829
      %v3831 = vrot.slane %v3749, 5
      %v3832 = vrot.slane %v3831, 4
      %v3833 = vrot.slane %v3030, 5
      %v3834 = vsel %vm2255, %v3832, %v3833
      %v3835 = vrot.slane %v3833, 4
      %v3836 = vrot.slane %v3031, 5
      %v3837 = vsel %vm2255, %v3835, %v3836
      %v3838 = vrot.slane %v3750, 5
      %v3839 = vrot.slane %v3838, 4
      %v3840 = vrot.slane %v3033, 5
      %v3841 = vsel %vm2255, %v3839, %v3840
      %v3842 = vrot.slane %v3840, 4
      %v3843 = vrot.slane %v3034, 5
      %v3844 = vsel %vm2255, %v3842, %v3843
      %v3845 = vrot.slane %v3751, 5
      %v3846 = vrot.slane %v3845, 4
      %v3847 = vrot.slane %v3036, 5
      %v3848 = vsel %vm2255, %v3846, %v3847
      %v3849 = vrot.slane %v3847, 4
      %v3850 = vrot.slane %v3037, 5
      %v3851 = vsel %vm2255, %v3849, %v3850
      %v3852 = vrot.slane %v3752, 5
      %v3853 = vrot.slane %v3852, 4
      %v3854 = vrot.slane %v3039, 5
      %v3855 = vsel %vm2255, %v3853, %v3854
      %v3856 = vrot.slane %v3854, 4
      %v3857 = vrot.slane %v3040, 5
      %v3858 = vsel %vm2255, %v3856, %v3857
      %v3859 = vrot.slane %v3753, 5
      %v3860 = vrot.slane %v3859, 4
      %v3861 = vrot.slane %v3042, 5
      %v3862 = vsel %vm2255, %v3860, %v3861
      %v3863 = vrot.slane %v3861, 4
      %v3864 = vrot.slane %v3043, 5
      %v3865 = vsel %vm2255, %v3863, %v3864
      %v3866 = vrot.slane %v3754, 5
      %v3867 = vrot.slane %v3866, 4
      %v3868 = vrot.slane %v3045, 5
      %v3869 = vsel %vm2255, %v3867, %v3868
      %v3870 = vrot.slane %v3868, 4
      %v3871 = vrot.slane %v3046, 5
      %v3872 = vsel %vm2255, %v3870, %v3871
      %v3873 = vrot.slane %v3755, 5
      %v3874 = vrot.slane %v3873, 4
      %v3875 = vrot.slane %v3048, 5
      %v3876 = vsel %vm2255, %v3874, %v3875
      %v3877 = vrot.slane %v3875, 4
      %v3878 = vrot.slane %v3049, 5
      %v3879 = vsel %vm2255, %v3877, %v3878
      %v3880 = vrot.slane %v3756, 5
      %v3881 = vrot.slane %v3880, 4
      %v3882 = vrot.slane %v3051, 5
      %v3883 = vsel %vm2255, %v3881, %v3882
      %v3884 = vrot.slane %v3882, 4
      %v3885 = vrot.slane %v3052, 5
      %v3886 = vsel %vm2255, %v3884, %v3885
      %v3887 = vrot.slane %v3757, 5
      %v3888 = vrot.slane %v3887, 4
      %v3889 = vrot.slane %v3054, 5
      %v3890 = vsel %vm2255, %v3888, %v3889
      %v3891 = vrot.slane %v3889, 4
      %v3892 = vrot.slane %v3055, 5
      %v3893 = vsel %vm2255, %v3891, %v3892
      %v3894 = vrot.slane %v3758, 5
      %v3895 = vrot.slane %v3894, 4
      %v3896 = vrot.slane %v3057, 5
      %v3897 = vsel %vm2255, %v3895, %v3896
      %v3898 = vrot.slane %v3896, 4
      %v3899 = vrot.slane %v3058, 5
      %v3900 = vsel %vm2255, %v3898, %v3899
      %v3901 = vrot.slane %v3759, 5
      %v3902 = vrot.slane %v3901, 4
      %v3903 = vrot.slane %v3060, 5
      %v3904 = vsel %vm2255, %v3902, %v3903
      %v3905 = vrot.slane %v3903, 4
      %v3906 = vrot.slane %v3061, 5
      %v3907 = vsel %vm2255, %v3905, %v3906
      %v3908 = vrot.slane %v3760, 5
      %v3909 = vrot.slane %v3908, 4
      %v3910 = vrot.slane %v3063, 5
      %v3911 = vsel %vm2255, %v3909, %v3910
      %v3912 = vrot.slane %v3910, 4
      %v3913 = vrot.slane %v3064, 5
      %v3914 = vsel %vm2255, %v3912, %v3913
      %v3915 = vrot.slane %v3761, 5
      %v3916 = vrot.slane %v3915, 4
      %v3917 = vrot.slane %v3066, 5
      %v3918 = vsel %vm2255, %v3916, %v3917
      %v3919 = vrot.slane %v3917, 4
      %v3920 = vrot.slane %v3067, 5
      %v3921 = vsel %vm2255, %v3919, %v3920
      %s3922 = scalar_lea.vmem %s2, 20
      %v3923 = vld [vmem:[%s3922] sm:$0xf]
      %v3924 = vunpack.c.l.b16 %v3813
      %v3925 = vunpack.c.l.b16 %v3816
      %v3926 = vunpack.c.l.b16 %v3820
      %v3927 = vunpack.c.l.b16 %v3823
      %v3928 = vunpack.c.l.b16 %v3827
      %v3929 = vunpack.c.l.b16 %v3830
      %v3930 = vunpack.c.l.b16 %v3834
      %v3931 = vunpack.c.l.b16 %v3837
      %v3932 = vunpack.c.l.b16 %v3841
      %v3933 = vunpack.c.l.b16 %v3844
      %v3934 = vunpack.c.l.b16 %v3848
      %v3935 = vunpack.c.l.b16 %v3851
      %v3936 = vunpack.c.l.b16 %v3855
      %v3937 = vunpack.c.l.b16 %v3858
      %v3938 = vunpack.c.l.b16 %v3862
      %v3939 = vunpack.c.l.b16 %v3865
      %v3940 = vunpack.c.l.b16 %v3869
      %v3941 = vunpack.c.l.b16 %v3872
      %v3942 = vunpack.c.l.b16 %v3876
      %v3943 = vunpack.c.l.b16 %v3879
      %v3944 = vunpack.c.l.b16 %v3883
      %v3945 = vunpack.c.l.b16 %v3886
      %v3946 = vunpack.c.l.b16 %v3890
      %v3947 = vunpack.c.l.b16 %v3893
      %v3948 = vunpack.c.l.b16 %v3897
      %v3949 = vunpack.c.l.b16 %v3900
      %v3950 = vunpack.c.l.b16 %v3904
      %v3951 = vunpack.c.l.b16 %v3907
      %v3952 = vunpack.c.l.b16 %v3911
      %v3953 = vunpack.c.l.b16 %v3914
      %v3954 = vunpack.c.l.b16 %v3918
      %v3955 = vunpack.c.l.b16 %v3921
      %v3956 = vpack.c.b16 %v3925, %v3924
      %v3957 = vpack.c.b16 %v3927, %v3926
      %v3958 = vpack.c.b16 %v3929, %v3928
      %v3959 = vpack.c.b16 %v3931, %v3930
      %v3960 = vpack.c.b16 %v3933, %v3932
      %v3961 = vpack.c.b16 %v3935, %v3934
      %v3962 = vpack.c.b16 %v3937, %v3936
      %v3963 = vpack.c.b16 %v3939, %v3938
      %v3964 = vpack.c.b16 %v3941, %v3940
      %v3965 = vpack.c.b16 %v3943, %v3942
      %v3966 = vpack.c.b16 %v3945, %v3944
      %v3967 = vpack.c.b16 %v3947, %v3946
      %v3968 = vpack.c.b16 %v3949, %v3948
      %v3969 = vpack.c.b16 %v3951, %v3950
      %v3970 = vpack.c.b16 %v3953, %v3952
      %v3971 = vpack.c.b16 %v3955, %v3954
      %v3973 = vsel %vm1699, %v3956, 0
      %v3976 = vsel %vm1699, %v3957, 0
      %v3979 = vsel %vm1699, %v3958, 0
      %v3982 = vsel %vm1699, %v3959, 0
      %v3985 = vsel %vm1699, %v3960, 0
      %v3988 = vsel %vm1699, %v3961, 0
      %v3991 = vsel %vm1699, %v3962, 0
      %v3994 = vsel %vm1699, %v3963, 0
      %v3997 = vsel %vm1699, %v3964, 0
      %v4000 = vsel %vm1699, %v3965, 0
      %v4003 = vsel %vm1699, %v3966, 0
      %v4006 = vsel %vm1699, %v3967, 0
      %v4009 = vsel %vm1699, %v3968, 0
      %v4012 = vsel %vm1699, %v3969, 0
      %v4015 = vsel %vm1699, %v3970, 0
      %v4018 = vsel %vm1699, %v3971, 0
      %v4021 = vsel %vm1748, %v3923, 0
      %4023 = vmatprep.subr.bf16.mxu0 0
      %4024 = vmatpush1.bf16.msra.mxu0 %v4021
      %4025 = vmatprep.subr.bf16.mxu0 0
      %4026 = vmatpush1.bf16.msra.mxu0 0
      %4027 = vmatprep.subr.bf16.mxu0 0
      %4028 = vmatpush1.bf16.msra.mxu0 0
      %4029 = vmatprep.subr.bf16.mxu0 0
      %4030 = vmatpush1.bf16.msra.mxu0 0
      %4031 = vmatprep.subr.bf16.mxu0 0
      %4032 = vmatpush1.bf16.msra.mxu0 0
      %4033 = vmatprep.subr.bf16.mxu0 0
      %4034 = vmatpush1.bf16.msra.mxu0 0
      %4035 = vmatprep.subr.bf16.mxu0 0
      %4036 = vmatpush1.bf16.msra.mxu0 0
      %4037 = vmatprep.subr.bf16.mxu0 0
      %4038 = vmatpush1.bf16.msra.mxu0 0
      %4039 = vmatprep.subr.bf16.mxu0 0
      %4040 = vmatpush1.bf16.msra.mxu0 0
      %4041 = vmatprep.subr.bf16.mxu0 0
      %4042 = vmatpush1.bf16.msra.mxu0 0
      %4043 = vmatprep.subr.bf16.mxu0 0
      %4044 = vmatpush1.bf16.msra.mxu0 0
      %4045 = vmatprep.subr.bf16.mxu0 0
      %4046 = vmatpush1.bf16.msra.mxu0 0
      %4047 = vmatprep.subr.bf16.mxu0 0
      %4048 = vmatpush1.bf16.msra.mxu0 0
      %4049 = vmatprep.subr.bf16.mxu0 0
      %4050 = vmatpush1.bf16.msra.mxu0 0
      %4051 = vmatprep.subr.bf16.mxu0 0
      %4052 = vmatpush1.bf16.msra.mxu0 0
      %4053 = vmatprep.subr.bf16.mxu0 0
      %4054 = vmatpush1.bf16.msra.mxu0 0
      %4055 = vmatprep.mubr.bf16.mxu0 0
      %4056 = vmatmul.mubr.bf16.gmra.mrb[0].mxu0 %v3973
      %v4057 = vpop.f32.mrb[0].mxu0
      %v4058 = vadd.f32 0.0, %v4057
      %v4059 = vpop.f32.mrb[0].mxu0
      %v4060 = vpop.f32.mrb[0].mxu0
      %v4061 = vadd.f32 0.0, %v4060
      %v4062 = vpop.f32.mrb[0].mxu0
      %4063 = vmatprep.mubr.bf16.mxu0 0
      %4064 = vmatmul.mubr.bf16.gmra.mrb[0].mxu0 %v3976
      %v4065 = vpop.f32.mrb[0].mxu0
      %v4066 = vadd.f32 0.0, %v4065
      %v4067 = vpop.f32.mrb[0].mxu0
      %v4068 = vpop.f32.mrb[0].mxu0
      %v4069 = vadd.f32 0.0, %v4068
      %v4070 = vpop.f32.mrb[0].mxu0
      %4071 = vmatprep.mubr.bf16.mxu0 0
      %4072 = vmatmul.mubr.bf16.gmra.mrb[0].mxu0 %v3979
      %v4073 = vpop.f32.mrb[0].mxu0
      %v4074 = vadd.f32 0.0, %v4073
      %v4075 = vpop.f32.mrb[0].mxu0
      %v4076 = vpop.f32.mrb[0].mxu0
      %v4077 = vadd.f32 0.0, %v4076
      %v4078 = vpop.f32.mrb[0].mxu0
      %4079 = vmatprep.mubr.bf16.mxu0 0
      %4080 = vmatmul.mubr.bf16.gmra.mrb[0].mxu0 %v3982
      %v4081 = vpop.f32.mrb[0].mxu0
      %v4082 = vadd.f32 0.0, %v4081
      %v4083 = vpop.f32.mrb[0].mxu0
      %v4084 = vpop.f32.mrb[0].mxu0
      %v4085 = vadd.f32 0.0, %v4084
      %v4086 = vpop.f32.mrb[0].mxu0
      %4087 = vmatprep.mubr.bf16.mxu0 0
      %4088 = vmatmul.mubr.bf16.gmra.mrb[0].mxu0 %v3985
      %v4089 = vpop.f32.mrb[0].mxu0
      %v4090 = vadd.f32 0.0, %v4089
      %v4091 = vpop.f32.mrb[0].mxu0
      %v4092 = vpop.f32.mrb[0].mxu0
      %v4093 = vadd.f32 0.0, %v4092
      %v4094 = vpop.f32.mrb[0].mxu0
      %4095 = vmatprep.mubr.bf16.mxu0 0
      %4096 = vmatmul.mubr.bf16.gmra.mrb[0].mxu0 %v3988
      %v4097 = vpop.f32.mrb[0].mxu0
      %v4098 = vadd.f32 0.0, %v4097
      %v4099 = vpop.f32.mrb[0].mxu0
      %v4100 = vpop.f32.mrb[0].mxu0
      %v4101 = vadd.f32 0.0, %v4100
      %v4102 = vpop.f32.mrb[0].mxu0
      %4103 = vmatprep.mubr.bf16.mxu0 0
      %4104 = vmatmul.mubr.bf16.gmra.mrb[0].mxu0 %v3991
      %v4105 = vpop.f32.mrb[0].mxu0
      %v4106 = vadd.f32 0.0, %v4105
      %v4107 = vpop.f32.mrb[0].mxu0
      %v4108 = vpop.f32.mrb[0].mxu0
      %v4109 = vadd.f32 0.0, %v4108
      %v4110 = vpop.f32.mrb[0].mxu0
      %4111 = vmatprep.mubr.bf16.mxu0 0
      %4112 = vmatmul.mubr.bf16.gmra.mrb[0].mxu0 %v3994
      %v4113 = vpop.f32.mrb[0].mxu0
      %v4114 = vadd.f32 0.0, %v4113
      %v4115 = vpop.f32.mrb[0].mxu0
      %v4116 = vpop.f32.mrb[0].mxu0
      %v4117 = vadd.f32 0.0, %v4116
      %v4118 = vpop.f32.mrb[0].mxu0
      %4119 = vmatprep.mubr.bf16.mxu0 0
      %4120 = vmatmul.mubr.bf16.gmra.mrb[0].mxu0 %v3997
      %v4121 = vpop.f32.mrb[0].mxu0
      %v4122 = vadd.f32 0.0, %v4121
      %v4123 = vpop.f32.mrb[0].mxu0
      %v4124 = vpop.f32.mrb[0].mxu0
      %v4125 = vadd.f32 0.0, %v4124
      %v4126 = vpop.f32.mrb[0].mxu0
      %4127 = vmatprep.mubr.bf16.mxu0 0
      %4128 = vmatmul.mubr.bf16.gmra.mrb[0].mxu0 %v4000
      %v4129 = vpop.f32.mrb[0].mxu0
      %v4130 = vadd.f32 0.0, %v4129
      %v4131 = vpop.f32.mrb[0].mxu0
      %v4132 = vpop.f32.mrb[0].mxu0
      %v4133 = vadd.f32 0.0, %v4132
      %v4134 = vpop.f32.mrb[0].mxu0
      %4135 = vmatprep.mubr.bf16.mxu0 0
      %4136 = vmatmul.mubr.bf16.gmra.mrb[0].mxu0 %v4003
      %v4137 = vpop.f32.mrb[0].mxu0
      %v4138 = vadd.f32 0.0, %v4137
      %v4139 = vpop.f32.mrb[0].mxu0
      %v4140 = vpop.f32.mrb[0].mxu0
      %v4141 = vadd.f32 0.0, %v4140
      %v4142 = vpop.f32.mrb[0].mxu0
      %4143 = vmatprep.mubr.bf16.mxu0 0
      %4144 = vmatmul.mubr.bf16.gmra.mrb[0].mxu0 %v4006
      %v4145 = vpop.f32.mrb[0].mxu0
      %v4146 = vadd.f32 0.0, %v4145
      %v4147 = vpop.f32.mrb[0].mxu0
      %v4148 = vpop.f32.mrb[0].mxu0
      %v4149 = vadd.f32 0.0, %v4148
      %v4150 = vpop.f32.mrb[0].mxu0
      %4151 = vmatprep.mubr.bf16.mxu0 0
      %4152 = vmatmul.mubr.bf16.gmra.mrb[0].mxu0 %v4009
      %v4153 = vpop.f32.mrb[0].mxu0
      %v4154 = vadd.f32 0.0, %v4153
      %v4155 = vpop.f32.mrb[0].mxu0
      %v4156 = vpop.f32.mrb[0].mxu0
      %v4157 = vadd.f32 0.0, %v4156
      %v4158 = vpop.f32.mrb[0].mxu0
      %4159 = vmatprep.mubr.bf16.mxu0 0
      %4160 = vmatmul.mubr.bf16.gmra.mrb[0].mxu0 %v4012
      %v4161 = vpop.f32.mrb[0].mxu0
      %v4162 = vadd.f32 0.0, %v4161
      %v4163 = vpop.f32.mrb[0].mxu0
      %v4164 = vpop.f32.mrb[0].mxu0
      %v4165 = vadd.f32 0.0, %v4164
      %v4166 = vpop.f32.mrb[0].mxu0
      %4167 = vmatprep.mubr.bf16.mxu0 0
      %4168 = vmatmul.mubr.bf16.gmra.mrb[0].mxu0 %v4015
      %v4169 = vpop.f32.mrb[0].mxu0
      %v4170 = vadd.f32 0.0, %v4169
      %v4171 = vpop.f32.mrb[0].mxu0
      %v4172 = vpop.f32.mrb[0].mxu0
      %v4173 = vadd.f32 0.0, %v4172
      %v4174 = vpop.f32.mrb[0].mxu0
      %4175 = vmatprep.mubr.bf16.mxu0 0
      %4176 = vmatmul.mubr.bf16.gmra.mrb[0].mxu0 %v4018
      %v4177 = vpop.f32.mrb[0].mxu0
      %v4178 = vadd.f32 0.0, %v4177
      %v4179 = vpop.f32.mrb[0].mxu0
      %v4180 = vpop.f32.mrb[0].mxu0
      %v4181 = vadd.f32 0.0, %v4180
      %v4182 = vpop.f32.mrb[0].mxu0
      %4183 = vdwg.mxu0
      %v4184 = vadd.f32 %v3714, %v4058
      %v4185 = vadd.f32 %v3715, %v4061
      %v4186 = vadd.f32 %v3716, %v4066
      %v4187 = vadd.f32 %v3717, %v4069
      %v4188 = vadd.f32 %v3718, %v4074
      %v4189 = vadd.f32 %v3719, %v4077
      %v4190 = vadd.f32 %v3720, %v4082
      %v4191 = vadd.f32 %v3721, %v4085
      %v4192 = vadd.f32 %v3722, %v4090
      %v4193 = vadd.f32 %v3723, %v4093
      %v4194 = vadd.f32 %v3724, %v4098
      %v4195 = vadd.f32 %v3725, %v4101
      %v4196 = vadd.f32 %v3726, %v4106
      %v4197 = vadd.f32 %v3727, %v4109
      %v4198 = vadd.f32 %v3728, %v4114
      %v4199 = vadd.f32 %v3729, %v4117
      %v4200 = vadd.f32 %v3730, %v4122
      %v4201 = vadd.f32 %v3731, %v4125
      %v4202 = vadd.f32 %v3732, %v4130
      %v4203 = vadd.f32 %v3733, %v4133
      %v4204 = vadd.f32 %v3734, %v4138
      %v4205 = vadd.f32 %v3735, %v4141
      %v4206 = vadd.f32 %v3736, %v4146
      %v4207 = vadd.f32 %v3737, %v4149
      %v4208 = vadd.f32 %v3738, %v4154
      %v4209 = vadd.f32 %v3739, %v4157
      %v4210 = vadd.f32 %v3740, %v4162
      %v4211 = vadd.f32 %v3741, %v4165
      %v4212 = vadd.f32 %v3742, %v4170
      %v4213 = vadd.f32 %v3743, %v4173
      %v4214 = vadd.f32 %v3744, %v4178
      %v4215 = vadd.f32 %v3745, %v4181
      %s4216 = scalar_lea.vmem [#allocation2], 24
      %v4217 = vld [vmem:[%s4216] sm:$0xf]
      %v4218 = vld [vmem:[%s4216 + $0x4] sm:$0xf]
      %v4219 = vld [vmem:[%s4216 + $0xc] sm:$0xf]
      %v4220 = vld [vmem:[%s4216 + $0x10] sm:$0xf]
      %v4221 = vld [vmem:[%s4216 + $0x18] sm:$0xf]
      %v4222 = vld [vmem:[%s4216 + $0x1c] sm:$0xf]
      %v4223 = vld [vmem:[%s4216 + $0x24] sm:$0xf]
      %v4224 = vld [vmem:[%s4216 + $0x28] sm:$0xf]
      %v4225 = vld [vmem:[%s4216 + $0x30] sm:$0xf]
      %v4226 = vld [vmem:[%s4216 + $0x34] sm:$0xf]
      %v4227 = vld [vmem:[%s4216 + $0x3c] sm:$0xf]
      %v4228 = vld [vmem:[%s4216 + $0x40] sm:$0xf]
      %v4229 = vld [vmem:[%s4216 + $0x48] sm:$0xf]
      %v4230 = vld [vmem:[%s4216 + $0x4c] sm:$0xf]
      %v4231 = vld [vmem:[%s4216 + $0x54] sm:$0xf]
      %v4232 = vld [vmem:[%s4216 + $0x58] sm:$0xf]
      %v4233 = vld [vmem:[%s4216 + $0x60] sm:$0xf]
      %v4234 = vld [vmem:[%s4216 + $0x64] sm:$0xf]
      %v4235 = vld [vmem:[%s4216 + $0x6c] sm:$0xf]
      %v4236 = vld [vmem:[%s4216 + $0x70] sm:$0xf]
      %v4237 = vld [vmem:[%s4216 + $0x78] sm:$0xf]
      %v4238 = vld [vmem:[%s4216 + $0x7c] sm:$0xf]
      %v4239 = vld [vmem:[%s4216 + $0x84] sm:$0xf]
      %v4240 = vld [vmem:[%s4216 + $0x88] sm:$0xf]
      %v4241 = vld [vmem:[%s4216 + $0x90] sm:$0xf]
      %v4242 = vld [vmem:[%s4216 + $0x94] sm:$0xf]
      %v4243 = vld [vmem:[%s4216 + $0x9c] sm:$0xf]
      %v4244 = vld [vmem:[%s4216 + $0xa0] sm:$0xf]
      %v4245 = vld [vmem:[%s4216 + $0xa8] sm:$0xf]
      %v4246 = vld [vmem:[%s4216 + $0xac] sm:$0xf]
      %v4247 = vld [vmem:[%s4216 + $0xb4] sm:$0xf]
      %v4248 = vld [vmem:[%s4216 + $0xb8] sm:$0xf]
      %s4249 = scalar_lea.vmem %s2, 24
      %v4250 = vld [vmem:[%s4249] sm:$0xf]
      %v4283 = vunpack.c.l.b16 %v4217
      %v4284 = vunpack.c.l.b16 %v4218
      %v4285 = vunpack.c.l.b16 %v4219
      %v4286 = vunpack.c.l.b16 %v4220
      %v4287 = vunpack.c.l.b16 %v4221
      %v4288 = vunpack.c.l.b16 %v4222
      %v4289 = vunpack.c.l.b16 %v4223
      %v4290 = vunpack.c.l.b16 %v4224
      %v4291 = vunpack.c.l.b16 %v4225
      %v4292 = vunpack.c.l.b16 %v4226
      %v4293 = vunpack.c.l.b16 %v4227
      %v4294 = vunpack.c.l.b16 %v4228
      %v4295 = vunpack.c.l.b16 %v4229
      %v4296 = vunpack.c.l.b16 %v4230
      %v4297 = vunpack.c.l.b16 %v4231
      %v4298 = vunpack.c.l.b16 %v4232
      %v4299 = vunpack.c.l.b16 %v4233
      %v4300 = vunpack.c.l.b16 %v4234
      %v4301 = vunpack.c.l.b16 %v4235
      %v4302 = vunpack.c.l.b16 %v4236
      %v4303 = vunpack.c.l.b16 %v4237
      %v4304 = vunpack.c.l.b16 %v4238
      %v4305 = vunpack.c.l.b16 %v4239
      %v4306 = vunpack.c.l.b16 %v4240
      %v4307 = vunpack.c.l.b16 %v4241
      %v4308 = vunpack.c.l.b16 %v4242
      %v4309 = vunpack.c.l.b16 %v4243
      %v4310 = vunpack.c.l.b16 %v4244
      %v4311 = vunpack.c.l.b16 %v4245
      %v4312 = vunpack.c.l.b16 %v4246
      %v4313 = vunpack.c.l.b16 %v4247
      %v4314 = vunpack.c.l.b16 %v4248
      %v4315 = vpack.c.b16 %v4284, %v4283
      %v4316 = vpack.c.b16 %v4286, %v4285
      %v4317 = vpack.c.b16 %v4288, %v4287
      %v4318 = vpack.c.b16 %v4290, %v4289
      %v4319 = vpack.c.b16 %v4292, %v4291
      %v4320 = vpack.c.b16 %v4294, %v4293
      %v4321 = vpack.c.b16 %v4296, %v4295
      %v4322 = vpack.c.b16 %v4298, %v4297
      %v4323 = vpack.c.b16 %v4300, %v4299
      %v4324 = vpack.c.b16 %v4302, %v4301
      %v4325 = vpack.c.b16 %v4304, %v4303
      %v4326 = vpack.c.b16 %v4306, %v4305
      %v4327 = vpack.c.b16 %v4308, %v4307
      %v4328 = vpack.c.b16 %v4310, %v4309
      %v4329 = vpack.c.b16 %v4312, %v4311
      %v4330 = vpack.c.b16 %v4314, %v4313
      %v4332 = vsel %vm1699, %v4315, 0
      %v4335 = vsel %vm1699, %v4316, 0
      %v4338 = vsel %vm1699, %v4317, 0
      %v4341 = vsel %vm1699, %v4318, 0
      %v4344 = vsel %vm1699, %v4319, 0
      %v4347 = vsel %vm1699, %v4320, 0
      %v4350 = vsel %vm1699, %v4321, 0
      %v4353 = vsel %vm1699, %v4322, 0
      %v4356 = vsel %vm1699, %v4323, 0
      %v4359 = vsel %vm1699, %v4324, 0
      %v4362 = vsel %vm1699, %v4325, 0
      %v4365 = vsel %vm1699, %v4326, 0
      %v4368 = vsel %vm1699, %v4327, 0
      %v4371 = vsel %vm1699, %v4328, 0
      %v4374 = vsel %vm1699, %v4329, 0
      %v4377 = vsel %vm1699, %v4330, 0
      %v4380 = vsel %vm1748, %v4250, 0
      %4382 = vmatprep.subr.bf16.mxu0 0
      %4383 = vmatpush1.bf16.msra.mxu0 %v4380
      %4384 = vmatprep.subr.bf16.mxu0 0
      %4385 = vmatpush1.bf16.msra.mxu0 0
      %4386 = vmatprep.subr.bf16.mxu0 0
      %4387 = vmatpush1.bf16.msra.mxu0 0
      %4388 = vmatprep.subr.bf16.mxu0 0
      %4389 = vmatpush1.bf16.msra.mxu0 0
      %4390 = vmatprep.subr.bf16.mxu0 0
      %4391 = vmatpush1.bf16.msra.mxu0 0
      %4392 = vmatprep.subr.bf16.mxu0 0
      %4393 = vmatpush1.bf16.msra.mxu0 0
      %4394 = vmatprep.subr.bf16.mxu0 0
      %4395 = vmatpush1.bf16.msra.mxu0 0
      %4396 = vmatprep.subr.bf16.mxu0 0
      %4397 = vmatpush1.bf16.msra.mxu0 0
      %4398 = vmatprep.subr.bf16.mxu0 0
      %4399 = vmatpush1.bf16.msra.mxu0 0
      %4400 = vmatprep.subr.bf16.mxu0 0
      %4401 = vmatpush1.bf16.msra.mxu0 0
      %4402 = vmatprep.subr.bf16.mxu0 0
      %4403 = vmatpush1.bf16.msra.mxu0 0
      %4404 = vmatprep.subr.bf16.mxu0 0
      %4405 = vmatpush1.bf16.msra.mxu0 0
      %4406 = vmatprep.subr.bf16.mxu0 0
      %4407 = vmatpush1.bf16.msra.mxu0 0
      %4408 = vmatprep.subr.bf16.mxu0 0
      %4409 = vmatpush1.bf16.msra.mxu0 0
      %4410 = vmatprep.subr.bf16.mxu0 0
      %4411 = vmatpush1.bf16.msra.mxu0 0
      %4412 = vmatprep.subr.bf16.mxu0 0
      %4413 = vmatpush1.bf16.msra.mxu0 0
      %4414 = vmatprep.mubr.bf16.mxu0 0
      %4415 = vmatmul.mubr.bf16.gmra.mrb[0].mxu0 %v4332
      %v4416 = vpop.f32.mrb[0].mxu0
      %v4417 = vadd.f32 0.0, %v4416
      %v4418 = vpop.f32.mrb[0].mxu0
      %v4419 = vpop.f32.mrb[0].mxu0
      %v4420 = vadd.f32 0.0, %v4419
      %v4421 = vpop.f32.mrb[0].mxu0
      %4422 = vmatprep.mubr.bf16.mxu0 0
      %4423 = vmatmul.mubr.bf16.gmra.mrb[0].mxu0 %v4335
      %v4424 = vpop.f32.mrb[0].mxu0
      %v4425 = vadd.f32 0.0, %v4424
      %v4426 = vpop.f32.mrb[0].mxu0
      %v4427 = vpop.f32.mrb[0].mxu0
      %v4428 = vadd.f32 0.0, %v4427
      %v4429 = vpop.f32.mrb[0].mxu0
      %4430 = vmatprep.mubr.bf16.mxu0 0
      %4431 = vmatmul.mubr.bf16.gmra.mrb[0].mxu0 %v4338
      %v4432 = vpop.f32.mrb[0].mxu0
      %v4433 = vadd.f32 0.0, %v4432
      %v4434 = vpop.f32.mrb[0].mxu0
      %v4435 = vpop.f32.mrb[0].mxu0
      %v4436 = vadd.f32 0.0, %v4435
      %v4437 = vpop.f32.mrb[0].mxu0
      %4438 = vmatprep.mubr.bf16.mxu0 0
      %4439 = vmatmul.mubr.bf16.gmra.mrb[0].mxu0 %v4341
      %v4440 = vpop.f32.mrb[0].mxu0
      %v4441 = vadd.f32 0.0, %v4440
      %v4442 = vpop.f32.mrb[0].mxu0
      %v4443 = vpop.f32.mrb[0].mxu0
      %v4444 = vadd.f32 0.0, %v4443
      %v4445 = vpop.f32.mrb[0].mxu0
      %4446 = vmatprep.mubr.bf16.mxu0 0
      %4447 = vmatmul.mubr.bf16.gmra.mrb[0].mxu0 %v4344
      %v4448 = vpop.f32.mrb[0].mxu0
      %v4449 = vadd.f32 0.0, %v4448
      %v4450 = vpop.f32.mrb[0].mxu0
      %v4451 = vpop.f32.mrb[0].mxu0
      %v4452 = vadd.f32 0.0, %v4451
      %v4453 = vpop.f32.mrb[0].mxu0
      %4454 = vmatprep.mubr.bf16.mxu0 0
      %4455 = vmatmul.mubr.bf16.gmra.mrb[0].mxu0 %v4347
      %v4456 = vpop.f32.mrb[0].mxu0
      %v4457 = vadd.f32 0.0, %v4456
      %v4458 = vpop.f32.mrb[0].mxu0
      %v4459 = vpop.f32.mrb[0].mxu0
      %v4460 = vadd.f32 0.0, %v4459
      %v4461 = vpop.f32.mrb[0].mxu0
      %4462 = vmatprep.mubr.bf16.mxu0 0
      %4463 = vmatmul.mubr.bf16.gmra.mrb[0].mxu0 %v4350
      %v4464 = vpop.f32.mrb[0].mxu0
      %v4465 = vadd.f32 0.0, %v4464
      %v4466 = vpop.f32.mrb[0].mxu0
      %v4467 = vpop.f32.mrb[0].mxu0
      %v4468 = vadd.f32 0.0, %v4467
      %v4469 = vpop.f32.mrb[0].mxu0
      %4470 = vmatprep.mubr.bf16.mxu0 0
      %4471 = vmatmul.mubr.bf16.gmra.mrb[0].mxu0 %v4353
      %v4472 = vpop.f32.mrb[0].mxu0
      %v4473 = vadd.f32 0.0, %v4472
      %v4474 = vpop.f32.mrb[0].mxu0
      %v4475 = vpop.f32.mrb[0].mxu0
      %v4476 = vadd.f32 0.0, %v4475
      %v4477 = vpop.f32.mrb[0].mxu0
      %4478 = vmatprep.mubr.bf16.mxu0 0
      %4479 = vmatmul.mubr.bf16.gmra.mrb[0].mxu0 %v4356
      %v4480 = vpop.f32.mrb[0].mxu0
      %v4481 = vadd.f32 0.0, %v4480
      %v4482 = vpop.f32.mrb[0].mxu0
      %v4483 = vpop.f32.mrb[0].mxu0
      %v4484 = vadd.f32 0.0, %v4483
      %v4485 = vpop.f32.mrb[0].mxu0
      %4486 = vmatprep.mubr.bf16.mxu0 0
      %4487 = vmatmul.mubr.bf16.gmra.mrb[0].mxu0 %v4359
      %v4488 = vpop.f32.mrb[0].mxu0
      %v4489 = vadd.f32 0.0, %v4488
      %v4490 = vpop.f32.mrb[0].mxu0
      %v4491 = vpop.f32.mrb[0].mxu0
      %v4492 = vadd.f32 0.0, %v4491
      %v4493 = vpop.f32.mrb[0].mxu0
      %4494 = vmatprep.mubr.bf16.mxu0 0
      %4495 = vmatmul.mubr.bf16.gmra.mrb[0].mxu0 %v4362
      %v4496 = vpop.f32.mrb[0].mxu0
      %v4497 = vadd.f32 0.0, %v4496
      %v4498 = vpop.f32.mrb[0].mxu0
      %v4499 = vpop.f32.mrb[0].mxu0
      %v4500 = vadd.f32 0.0, %v4499
      %v4501 = vpop.f32.mrb[0].mxu0
      %4502 = vmatprep.mubr.bf16.mxu0 0
      %4503 = vmatmul.mubr.bf16.gmra.mrb[0].mxu0 %v4365
      %v4504 = vpop.f32.mrb[0].mxu0
      %v4505 = vadd.f32 0.0, %v4504
      %v4506 = vpop.f32.mrb[0].mxu0
      %v4507 = vpop.f32.mrb[0].mxu0
      %v4508 = vadd.f32 0.0, %v4507
      %v4509 = vpop.f32.mrb[0].mxu0
      %4510 = vmatprep.mubr.bf16.mxu0 0
      %4511 = vmatmul.mubr.bf16.gmra.mrb[0].mxu0 %v4368
      %v4512 = vpop.f32.mrb[0].mxu0
      %v4513 = vadd.f32 0.0, %v4512
      %v4514 = vpop.f32.mrb[0].mxu0
      %v4515 = vpop.f32.mrb[0].mxu0
      %v4516 = vadd.f32 0.0, %v4515
      %v4517 = vpop.f32.mrb[0].mxu0
      %4518 = vmatprep.mubr.bf16.mxu0 0
      %4519 = vmatmul.mubr.bf16.gmra.mrb[0].mxu0 %v4371
      %v4520 = vpop.f32.mrb[0].mxu0
      %v4521 = vadd.f32 0.0, %v4520
      %v4522 = vpop.f32.mrb[0].mxu0
      %v4523 = vpop.f32.mrb[0].mxu0
      %v4524 = vadd.f32 0.0, %v4523
      %v4525 = vpop.f32.mrb[0].mxu0
      %4526 = vmatprep.mubr.bf16.mxu0 0
      %4527 = vmatmul.mubr.bf16.gmra.mrb[0].mxu0 %v4374
      %v4528 = vpop.f32.mrb[0].mxu0
      %v4529 = vadd.f32 0.0, %v4528
      %v4530 = vpop.f32.mrb[0].mxu0
      %v4531 = vpop.f32.mrb[0].mxu0
      %v4532 = vadd.f32 0.0, %v4531
      %v4533 = vpop.f32.mrb[0].mxu0
      %4534 = vmatprep.mubr.bf16.mxu0 0
      %4535 = vmatmul.mubr.bf16.gmra.mrb[0].mxu0 %v4377
      %v4536 = vpop.f32.mrb[0].mxu0
      %v4537 = vadd.f32 0.0, %v4536
      %v4538 = vpop.f32.mrb[0].mxu0
      %v4539 = vpop.f32.mrb[0].mxu0
      %v4540 = vadd.f32 0.0, %v4539
      %v4541 = vpop.f32.mrb[0].mxu0
      %4542 = vdwg.mxu0
      %v4543 = vadd.f32 %v4184, %v4417
      %v4544 = vadd.f32 %v4185, %v4420
      %v4545 = vadd.f32 %v4186, %v4425
      %v4546 = vadd.f32 %v4187, %v4428
      %v4547 = vadd.f32 %v4188, %v4433
      %v4548 = vadd.f32 %v4189, %v4436
      %v4549 = vadd.f32 %v4190, %v4441
      %v4550 = vadd.f32 %v4191, %v4444
      %v4551 = vadd.f32 %v4192, %v4449
      %v4552 = vadd.f32 %v4193, %v4452
      %v4553 = vadd.f32 %v4194, %v4457
      %v4554 = vadd.f32 %v4195, %v4460
      %v4555 = vadd.f32 %v4196, %v4465
      %v4556 = vadd.f32 %v4197, %v4468
      %v4557 = vadd.f32 %v4198, %v4473
      %v4558 = vadd.f32 %v4199, %v4476
      %v4559 = vadd.f32 %v4200, %v4481
      %v4560 = vadd.f32 %v4201, %v4484
      %v4561 = vadd.f32 %v4202, %v4489
      %v4562 = vadd.f32 %v4203, %v4492
      %v4563 = vadd.f32 %v4204, %v4497
      %v4564 = vadd.f32 %v4205, %v4500
      %v4565 = vadd.f32 %v4206, %v4505
      %v4566 = vadd.f32 %v4207, %v4508
      %v4567 = vadd.f32 %v4208, %v4513
      %v4568 = vadd.f32 %v4209, %v4516
      %v4569 = vadd.f32 %v4210, %v4521
      %v4570 = vadd.f32 %v4211, %v4524
      %v4571 = vadd.f32 %v4212, %v4529
      %v4572 = vadd.f32 %v4213, %v4532
      %v4573 = vadd.f32 %v4214, %v4537
      %v4574 = vadd.f32 %v4215, %v4540
      %v4575 = vld [vmem:[%s4216] sm:$0xf]
      %v4576 = vld [vmem:[%s4216 + $0x4] sm:$0xf]
      %v4577 = vld [vmem:[%s4216 + $0x8] sm:$0x1]
      %v4578 = vld [vmem:[%s4216 + $0xc] sm:$0xf]
      %v4579 = vld [vmem:[%s4216 + $0x10] sm:$0xf]
      %v4580 = vld [vmem:[%s4216 + $0x14] sm:$0x1]
      %v4581 = vld [vmem:[%s4216 + $0x18] sm:$0xf]
      %v4582 = vld [vmem:[%s4216 + $0x1c] sm:$0xf]
      %v4583 = vld [vmem:[%s4216 + $0x20] sm:$0x1]
      %v4584 = vld [vmem:[%s4216 + $0x24] sm:$0xf]
      %v4585 = vld [vmem:[%s4216 + $0x28] sm:$0xf]
      %v4586 = vld [vmem:[%s4216 + $0x2c] sm:$0x1]
      %v4587 = vld [vmem:[%s4216 + $0x30] sm:$0xf]
      %v4588 = vld [vmem:[%s4216 + $0x34] sm:$0xf]
      %v4589 = vld [vmem:[%s4216 + $0x38] sm:$0x1]
      %v4590 = vld [vmem:[%s4216 + $0x3c] sm:$0xf]
      %v4591 = vld [vmem:[%s4216 + $0x40] sm:$0xf]
      %v4592 = vld [vmem:[%s4216 + $0x44] sm:$0x1]
      %v4593 = vld [vmem:[%s4216 + $0x48] sm:$0xf]
      %v4594 = vld [vmem:[%s4216 + $0x4c] sm:$0xf]
      %v4595 = vld [vmem:[%s4216 + $0x50] sm:$0x1]
      %v4596 = vld [vmem:[%s4216 + $0x54] sm:$0xf]
      %v4597 = vld [vmem:[%s4216 + $0x58] sm:$0xf]
      %v4598 = vld [vmem:[%s4216 + $0x5c] sm:$0x1]
      %v4599 = vld [vmem:[%s4216 + $0x60] sm:$0xf]
      %v4600 = vld [vmem:[%s4216 + $0x64] sm:$0xf]
      %v4601 = vld [vmem:[%s4216 + $0x68] sm:$0x1]
      %v4602 = vld [vmem:[%s4216 + $0x6c] sm:$0xf]
      %v4603 = vld [vmem:[%s4216 + $0x70] sm:$0xf]
      %v4604 = vld [vmem:[%s4216 + $0x74] sm:$0x1]
      %v4605 = vld [vmem:[%s4216 + $0x78] sm:$0xf]
      %v4606 = vld [vmem:[%s4216 + $0x7c] sm:$0xf]
      %v4607 = vld [vmem:[%s4216 + $0x80] sm:$0x1]
      %v4608 = vld [vmem:[%s4216 + $0x84] sm:$0xf]
      %v4609 = vld [vmem:[%s4216 + $0x88] sm:$0xf]
      %v4610 = vld [vmem:[%s4216 + $0x8c] sm:$0x1]
      %v4611 = vld [vmem:[%s4216 + $0x90] sm:$0xf]
      %v4612 = vld [vmem:[%s4216 + $0x94] sm:$0xf]
      %v4613 = vld [vmem:[%s4216 + $0x98] sm:$0x1]
      %v4614 = vld [vmem:[%s4216 + $0x9c] sm:$0xf]
      %v4615 = vld [vmem:[%s4216 + $0xa0] sm:$0xf]
      %v4616 = vld [vmem:[%s4216 + $0xa4] sm:$0x1]
      %v4617 = vld [vmem:[%s4216 + $0xa8] sm:$0xf]
      %v4618 = vld [vmem:[%s4216 + $0xac] sm:$0xf]
      %v4619 = vld [vmem:[%s4216 + $0xb0] sm:$0x1]
      %v4620 = vld [vmem:[%s4216 + $0xb4] sm:$0xf]
      %v4621 = vld [vmem:[%s4216 + $0xb8] sm:$0xf]
      %v4622 = vld [vmem:[%s4216 + $0xbc] sm:$0x1]
      %v4624 = vshrl.u32 %v4575, 16
      %v4626 = vrot.slane %v4624, 4
      %v4627 = vshll.u32 %v4575, 16
      %v4629 = vrot.slane %v4627, 5
      %v4630 = vor.u32 %v4626, %v4629
      %v4631 = vrot.slane %v4630, 4
      %v4633 = vshll.u32 %v4576, 16
      %v4635 = vrot.slane %v4633, 5
      %v4636 = vsel %vm1264, %v4631, %v4635
      %v4637 = vshrl.u32 %v4576, 16
      %v4639 = vrot.slane %v4637, 4
      %v4640 = vor.u32 %v4639, %v4635
      %v4641 = vrot.slane %v4640, 4
      %v4643 = vshll.u32 %v4577, 16
      %v4645 = vrot.slane %v4643, 5
      %v4646 = vsel %vm1264, %v4641, %v4645
      %v4648 = vshrl.u32 %v4578, 16
      %v4650 = vrot.slane %v4648, 4
      %v4651 = vshll.u32 %v4578, 16
      %v4653 = vrot.slane %v4651, 5
      %v4654 = vor.u32 %v4650, %v4653
      %v4655 = vrot.slane %v4654, 4
      %v4657 = vshll.u32 %v4579, 16
      %v4659 = vrot.slane %v4657, 5
      %v4660 = vsel %vm1264, %v4655, %v4659
      %v4661 = vshrl.u32 %v4579, 16
      %v4663 = vrot.slane %v4661, 4
      %v4664 = vor.u32 %v4663, %v4659
      %v4665 = vrot.slane %v4664, 4
      %v4667 = vshll.u32 %v4580, 16
      %v4669 = vrot.slane %v4667, 5
      %v4670 = vsel %vm1264, %v4665, %v4669
      %v4672 = vshrl.u32 %v4581, 16
      %v4674 = vrot.slane %v4672, 4
      %v4675 = vshll.u32 %v4581, 16
      %v4677 = vrot.slane %v4675, 5
      %v4678 = vor.u32 %v4674, %v4677
      %v4679 = vrot.slane %v4678, 4
      %v4681 = vshll.u32 %v4582, 16
      %v4683 = vrot.slane %v4681, 5
      %v4684 = vsel %vm1264, %v4679, %v4683
      %v4685 = vshrl.u32 %v4582, 16
      %v4687 = vrot.slane %v4685, 4
      %v4688 = vor.u32 %v4687, %v4683
      %v4689 = vrot.slane %v4688, 4
      %v4691 = vshll.u32 %v4583, 16
      %v4693 = vrot.slane %v4691, 5
      %v4694 = vsel %vm1264, %v4689, %v4693
      %v4696 = vshrl.u32 %v4584, 16
      %v4698 = vrot.slane %v4696, 4
      %v4699 = vshll.u32 %v4584, 16
      %v4701 = vrot.slane %v4699, 5
      %v4702 = vor.u32 %v4698, %v4701
      %v4703 = vrot.slane %v4702, 4
      %v4705 = vshll.u32 %v4585, 16
      %v4707 = vrot.slane %v4705, 5
      %v4708 = vsel %vm1264, %v4703, %v4707
      %v4709 = vshrl.u32 %v4585, 16
      %v4711 = vrot.slane %v4709, 4
      %v4712 = vor.u32 %v4711, %v4707
      %v4713 = vrot.slane %v4712, 4
      %v4715 = vshll.u32 %v4586, 16
      %v4717 = vrot.slane %v4715, 5
      %v4718 = vsel %vm1264, %v4713, %v4717
      %v4720 = vshrl.u32 %v4587, 16
      %v4722 = vrot.slane %v4720, 4
      %v4723 = vshll.u32 %v4587, 16
      %v4725 = vrot.slane %v4723, 5
      %v4726 = vor.u32 %v4722, %v4725
      %v4727 = vrot.slane %v4726, 4
      %v4729 = vshll.u32 %v4588, 16
      %v4731 = vrot.slane %v4729, 5
      %v4732 = vsel %vm1264, %v4727, %v4731
      %v4733 = vshrl.u32 %v4588, 16
      %v4735 = vrot.slane %v4733, 4
      %v4736 = vor.u32 %v4735, %v4731
      %v4737 = vrot.slane %v4736, 4
      %v4739 = vshll.u32 %v4589, 16
      %v4741 = vrot.slane %v4739, 5
      %v4742 = vsel %vm1264, %v4737, %v4741
      %v4744 = vshrl.u32 %v4590, 16
      %v4746 = vrot.slane %v4744, 4
      %v4747 = vshll.u32 %v4590, 16
      %v4749 = vrot.slane %v4747, 5
      %v4750 = vor.u32 %v4746, %v4749
      %v4751 = vrot.slane %v4750, 4
      %v4753 = vshll.u32 %v4591, 16
      %v4755 = vrot.slane %v4753, 5
      %v4756 = vsel %vm1264, %v4751, %v4755
      %v4757 = vshrl.u32 %v4591, 16
      %v4759 = vrot.slane %v4757, 4
      %v4760 = vor.u32 %v4759, %v4755
      %v4761 = vrot.slane %v4760, 4
      %v4763 = vshll.u32 %v4592, 16
      %v4765 = vrot.slane %v4763, 5
      %v4766 = vsel %vm1264, %v4761, %v4765
      %v4768 = vshrl.u32 %v4593, 16
      %v4770 = vrot.slane %v4768, 4
      %v4771 = vshll.u32 %v4593, 16
      %v4773 = vrot.slane %v4771, 5
      %v4774 = vor.u32 %v4770, %v4773
      %v4775 = vrot.slane %v4774, 4
      %v4777 = vshll.u32 %v4594, 16
      %v4779 = vrot.slane %v4777, 5
      %v4780 = vsel %vm1264, %v4775, %v4779
      %v4781 = vshrl.u32 %v4594, 16
      %v4783 = vrot.slane %v4781, 4
      %v4784 = vor.u32 %v4783, %v4779
      %v4785 = vrot.slane %v4784, 4
      %v4787 = vshll.u32 %v4595, 16
      %v4789 = vrot.slane %v4787, 5
      %v4790 = vsel %vm1264, %v4785, %v4789
      %v4792 = vshrl.u32 %v4596, 16
      %v4794 = vrot.slane %v4792, 4
      %v4795 = vshll.u32 %v4596, 16
      %v4797 = vrot.slane %v4795, 5
      %v4798 = vor.u32 %v4794, %v4797
      %v4799 = vrot.slane %v4798, 4
      %v4801 = vshll.u32 %v4597, 16
      %v4803 = vrot.slane %v4801, 5
      %v4804 = vsel %vm1264, %v4799, %v4803
      %v4805 = vshrl.u32 %v4597, 16
      %v4807 = vrot.slane %v4805, 4
      %v4808 = vor.u32 %v4807, %v4803
      %v4809 = vrot.slane %v4808, 4
      %v4811 = vshll.u32 %v4598, 16
      %v4813 = vrot.slane %v4811, 5
      %v4814 = vsel %vm1264, %v4809, %v4813
      %v4816 = vshrl.u32 %v4599, 16
      %v4818 = vrot.slane %v4816, 4
      %v4819 = vshll.u32 %v4599, 16
      %v4821 = vrot.slane %v4819, 5
      %v4822 = vor.u32 %v4818, %v4821
      %v4823 = vrot.slane %v4822, 4
      %v4825 = vshll.u32 %v4600, 16
      %v4827 = vrot.slane %v4825, 5
      %v4828 = vsel %vm1264, %v4823, %v4827
      %v4829 = vshrl.u32 %v4600, 16
      %v4831 = vrot.slane %v4829, 4
      %v4832 = vor.u32 %v4831, %v4827
      %v4833 = vrot.slane %v4832, 4
      %v4835 = vshll.u32 %v4601, 16
      %v4837 = vrot.slane %v4835, 5
      %v4838 = vsel %vm1264, %v4833, %v4837
      %v4840 = vshrl.u32 %v4602, 16
      %v4842 = vrot.slane %v4840, 4
      %v4843 = vshll.u32 %v4602, 16
      %v4845 = vrot.slane %v4843, 5
      %v4846 = vor.u32 %v4842, %v4845
      %v4847 = vrot.slane %v4846, 4
      %v4849 = vshll.u32 %v4603, 16
      %v4851 = vrot.slane %v4849, 5
      %v4852 = vsel %vm1264, %v4847, %v4851
      %v4853 = vshrl.u32 %v4603, 16
      %v4855 = vrot.slane %v4853, 4
      %v4856 = vor.u32 %v4855, %v4851
      %v4857 = vrot.slane %v4856, 4
      %v4859 = vshll.u32 %v4604, 16
      %v4861 = vrot.slane %v4859, 5
      %v4862 = vsel %vm1264, %v4857, %v4861
      %v4864 = vshrl.u32 %v4605, 16
      %v4866 = vrot.slane %v4864, 4
      %v4867 = vshll.u32 %v4605, 16
      %v4869 = vrot.slane %v4867, 5
      %v4870 = vor.u32 %v4866, %v4869
      %v4871 = vrot.slane %v4870, 4
      %v4873 = vshll.u32 %v4606, 16
      %v4875 = vrot.slane %v4873, 5
      %v4876 = vsel %vm1264, %v4871, %v4875
      %v4877 = vshrl.u32 %v4606, 16
      %v4879 = vrot.slane %v4877, 4
      %v4880 = vor.u32 %v4879, %v4875
      %v4881 = vrot.slane %v4880, 4
      %v4883 = vshll.u32 %v4607, 16
      %v4885 = vrot.slane %v4883, 5
      %v4886 = vsel %vm1264, %v4881, %v4885
      %v4888 = vshrl.u32 %v4608, 16
      %v4890 = vrot.slane %v4888, 4
      %v4891 = vshll.u32 %v4608, 16
      %v4893 = vrot.slane %v4891, 5
      %v4894 = vor.u32 %v4890, %v4893
      %v4895 = vrot.slane %v4894, 4
      %v4897 = vshll.u32 %v4609, 16
      %v4899 = vrot.slane %v4897, 5
      %v4900 = vsel %vm1264, %v4895, %v4899
      %v4901 = vshrl.u32 %v4609, 16
      %v4903 = vrot.slane %v4901, 4
      %v4904 = vor.u32 %v4903, %v4899
      %v4905 = vrot.slane %v4904, 4
      %v4907 = vshll.u32 %v4610, 16
      %v4909 = vrot.slane %v4907, 5
      %v4910 = vsel %vm1264, %v4905, %v4909
      %v4912 = vshrl.u32 %v4611, 16
      %v4914 = vrot.slane %v4912, 4
      %v4915 = vshll.u32 %v4611, 16
      %v4917 = vrot.slane %v4915, 5
      %v4918 = vor.u32 %v4914, %v4917
      %v4919 = vrot.slane %v4918, 4
      %v4921 = vshll.u32 %v4612, 16
      %v4923 = vrot.slane %v4921, 5
      %v4924 = vsel %vm1264, %v4919, %v4923
      %v4925 = vshrl.u32 %v4612, 16
      %v4927 = vrot.slane %v4925, 4
      %v4928 = vor.u32 %v4927, %v4923
      %v4929 = vrot.slane %v4928, 4
      %v4931 = vshll.u32 %v4613, 16
      %v4933 = vrot.slane %v4931, 5
      %v4934 = vsel %vm1264, %v4929, %v4933
      %v4936 = vshrl.u32 %v4614, 16
      %v4938 = vrot.slane %v4936, 4
      %v4939 = vshll.u32 %v4614, 16
      %v4941 = vrot.slane %v4939, 5
      %v4942 = vor.u32 %v4938, %v4941
      %v4943 = vrot.slane %v4942, 4
      %v4945 = vshll.u32 %v4615, 16
      %v4947 = vrot.slane %v4945, 5
      %v4948 = vsel %vm1264, %v4943, %v4947
      %v4949 = vshrl.u32 %v4615, 16
      %v4951 = vrot.slane %v4949, 4
      %v4952 = vor.u32 %v4951, %v4947
      %v4953 = vrot.slane %v4952, 4
      %v4955 = vshll.u32 %v4616, 16
      %v4957 = vrot.slane %v4955, 5
      %v4958 = vsel %vm1264, %v4953, %v4957
      %v4960 = vshrl.u32 %v4617, 16
      %v4962 = vrot.slane %v4960, 4
      %v4963 = vshll.u32 %v4617, 16
      %v4965 = vrot.slane %v4963, 5
      %v4966 = vor.u32 %v4962, %v4965
      %v4967 = vrot.slane %v4966, 4
      %v4969 = vshll.u32 %v4618, 16
      %v4971 = vrot.slane %v4969, 5
      %v4972 = vsel %vm1264, %v4967, %v4971
      %v4973 = vshrl.u32 %v4618, 16
      %v4975 = vrot.slane %v4973, 4
      %v4976 = vor.u32 %v4975, %v4971
      %v4977 = vrot.slane %v4976, 4
      %v4979 = vshll.u32 %v4619, 16
      %v4981 = vrot.slane %v4979, 5
      %v4982 = vsel %vm1264, %v4977, %v4981
      %v4984 = vshrl.u32 %v4620, 16
      %v4986 = vrot.slane %v4984, 4
      %v4987 = vshll.u32 %v4620, 16
      %v4989 = vrot.slane %v4987, 5
      %v4990 = vor.u32 %v4986, %v4989
      %v4991 = vrot.slane %v4990, 4
      %v4993 = vshll.u32 %v4621, 16
      %v4995 = vrot.slane %v4993, 5
      %v4996 = vsel %vm1264, %v4991, %v4995
      %v4997 = vshrl.u32 %v4621, 16
      %v4999 = vrot.slane %v4997, 4
      %v5000 = vor.u32 %v4999, %v4995
      %v5001 = vrot.slane %v5000, 4
      %v5003 = vshll.u32 %v4622, 16
      %v5005 = vrot.slane %v5003, 5
      %v5006 = vsel %vm1264, %v5001, %v5005
      %s5007 = scalar_lea.vmem %s2, 28
      %v5008 = vld [vmem:[%s5007] sm:$0xf]
      %v5009 = vunpack.c.l.b16 %v4636
      %v5010 = vunpack.c.l.b16 %v4646
      %v5011 = vunpack.c.l.b16 %v4660
      %v5012 = vunpack.c.l.b16 %v4670
      %v5013 = vunpack.c.l.b16 %v4684
      %v5014 = vunpack.c.l.b16 %v4694
      %v5015 = vunpack.c.l.b16 %v4708
      %v5016 = vunpack.c.l.b16 %v4718
      %v5017 = vunpack.c.l.b16 %v4732
      %v5018 = vunpack.c.l.b16 %v4742
      %v5019 = vunpack.c.l.b16 %v4756
      %v5020 = vunpack.c.l.b16 %v4766
      %v5021 = vunpack.c.l.b16 %v4780
      %v5022 = vunpack.c.l.b16 %v4790
      %v5023 = vunpack.c.l.b16 %v4804
      %v5024 = vunpack.c.l.b16 %v4814
      %v5025 = vunpack.c.l.b16 %v4828
      %v5026 = vunpack.c.l.b16 %v4838
      %v5027 = vunpack.c.l.b16 %v4852
      %v5028 = vunpack.c.l.b16 %v4862
      %v5029 = vunpack.c.l.b16 %v4876
      %v5030 = vunpack.c.l.b16 %v4886
      %v5031 = vunpack.c.l.b16 %v4900
      %v5032 = vunpack.c.l.b16 %v4910
      %v5033 = vunpack.c.l.b16 %v4924
      %v5034 = vunpack.c.l.b16 %v4934
      %v5035 = vunpack.c.l.b16 %v4948
      %v5036 = vunpack.c.l.b16 %v4958
      %v5037 = vunpack.c.l.b16 %v4972
      %v5038 = vunpack.c.l.b16 %v4982
      %v5039 = vunpack.c.l.b16 %v4996
      %v5040 = vunpack.c.l.b16 %v5006
      %v5041 = vpack.c.b16 %v5010, %v5009
      %v5042 = vpack.c.b16 %v5012, %v5011
      %v5043 = vpack.c.b16 %v5014, %v5013
      %v5044 = vpack.c.b16 %v5016, %v5015
      %v5045 = vpack.c.b16 %v5018, %v5017
      %v5046 = vpack.c.b16 %v5020, %v5019
      %v5047 = vpack.c.b16 %v5022, %v5021
      %v5048 = vpack.c.b16 %v5024, %v5023
      %v5049 = vpack.c.b16 %v5026, %v5025
      %v5050 = vpack.c.b16 %v5028, %v5027
      %v5051 = vpack.c.b16 %v5030, %v5029
      %v5052 = vpack.c.b16 %v5032, %v5031
      %v5053 = vpack.c.b16 %v5034, %v5033
      %v5054 = vpack.c.b16 %v5036, %v5035
      %v5055 = vpack.c.b16 %v5038, %v5037
      %v5056 = vpack.c.b16 %v5040, %v5039
      %v5058 = vsel %vm1699, %v5041, 0
      %v5061 = vsel %vm1699, %v5042, 0
      %v5064 = vsel %vm1699, %v5043, 0
      %v5067 = vsel %vm1699, %v5044, 0
      %v5070 = vsel %vm1699, %v5045, 0
      %v5073 = vsel %vm1699, %v5046, 0
      %v5076 = vsel %vm1699, %v5047, 0
      %v5079 = vsel %vm1699, %v5048, 0
      %v5082 = vsel %vm1699, %v5049, 0
      %v5085 = vsel %vm1699, %v5050, 0
      %v5088 = vsel %vm1699, %v5051, 0
      %v5091 = vsel %vm1699, %v5052, 0
      %v5094 = vsel %vm1699, %v5053, 0
      %v5097 = vsel %vm1699, %v5054, 0
      %v5100 = vsel %vm1699, %v5055, 0
      %v5103 = vsel %vm1699, %v5056, 0
      %v5106 = vsel %vm1748, %v5008, 0
      %5108 = vmatprep.subr.bf16.mxu0 0
      %5109 = vmatpush1.bf16.msra.mxu0 %v5106
      %5110 = vmatprep.subr.bf16.mxu0 0
      %5111 = vmatpush1.bf16.msra.mxu0 0
      %5112 = vmatprep.subr.bf16.mxu0 0
      %5113 = vmatpush1.bf16.msra.mxu0 0
      %5114 = vmatprep.subr.bf16.mxu0 0
      %5115 = vmatpush1.bf16.msra.mxu0 0
      %5116 = vmatprep.subr.bf16.mxu0 0
      %5117 = vmatpush1.bf16.msra.mxu0 0
      %5118 = vmatprep.subr.bf16.mxu0 0
      %5119 = vmatpush1.bf16.msra.mxu0 0
      %5120 = vmatprep.subr.bf16.mxu0 0
      %5121 = vmatpush1.bf16.msra.mxu0 0
      %5122 = vmatprep.subr.bf16.mxu0 0
      %5123 = vmatpush1.bf16.msra.mxu0 0
      %5124 = vmatprep.subr.bf16.mxu0 0
      %5125 = vmatpush1.bf16.msra.mxu0 0
      %5126 = vmatprep.subr.bf16.mxu0 0
      %5127 = vmatpush1.bf16.msra.mxu0 0
      %5128 = vmatprep.subr.bf16.mxu0 0
      %5129 = vmatpush1.bf16.msra.mxu0 0
      %5130 = vmatprep.subr.bf16.mxu0 0
      %5131 = vmatpush1.bf16.msra.mxu0 0
      %5132 = vmatprep.subr.bf16.mxu0 0
      %5133 = vmatpush1.bf16.msra.mxu0 0
      %5134 = vmatprep.subr.bf16.mxu0 0
      %5135 = vmatpush1.bf16.msra.mxu0 0
      %5136 = vmatprep.subr.bf16.mxu0 0
      %5137 = vmatpush1.bf16.msra.mxu0 0
      %5138 = vmatprep.subr.bf16.mxu0 0
      %5139 = vmatpush1.bf16.msra.mxu0 0
      %5140 = vmatprep.mubr.bf16.mxu0 0
      %5141 = vmatmul.mubr.bf16.gmra.mrb[0].mxu0 %v5058
      %v5142 = vpop.f32.mrb[0].mxu0
      %v5143 = vadd.f32 0.0, %v5142
      %v5144 = vpop.f32.mrb[0].mxu0
      %v5145 = vpop.f32.mrb[0].mxu0
      %v5146 = vadd.f32 0.0, %v5145
      %v5147 = vpop.f32.mrb[0].mxu0
      %5148 = vmatprep.mubr.bf16.mxu0 0
      %5149 = vmatmul.mubr.bf16.gmra.mrb[0].mxu0 %v5061
      %v5150 = vpop.f32.mrb[0].mxu0
      %v5151 = vadd.f32 0.0, %v5150
      %v5152 = vpop.f32.mrb[0].mxu0
      %v5153 = vpop.f32.mrb[0].mxu0
      %v5154 = vadd.f32 0.0, %v5153
      %v5155 = vpop.f32.mrb[0].mxu0
      %5156 = vmatprep.mubr.bf16.mxu0 0
      %5157 = vmatmul.mubr.bf16.gmra.mrb[0].mxu0 %v5064
      %v5158 = vpop.f32.mrb[0].mxu0
      %v5159 = vadd.f32 0.0, %v5158
      %v5160 = vpop.f32.mrb[0].mxu0
      %v5161 = vpop.f32.mrb[0].mxu0
      %v5162 = vadd.f32 0.0, %v5161
      %v5163 = vpop.f32.mrb[0].mxu0
      %5164 = vmatprep.mubr.bf16.mxu0 0
      %5165 = vmatmul.mubr.bf16.gmra.mrb[0].mxu0 %v5067
      %v5166 = vpop.f32.mrb[0].mxu0
      %v5167 = vadd.f32 0.0, %v5166
      %v5168 = vpop.f32.mrb[0].mxu0
      %v5169 = vpop.f32.mrb[0].mxu0
      %v5170 = vadd.f32 0.0, %v5169
      %v5171 = vpop.f32.mrb[0].mxu0
      %5172 = vmatprep.mubr.bf16.mxu0 0
      %5173 = vmatmul.mubr.bf16.gmra.mrb[0].mxu0 %v5070
      %v5174 = vpop.f32.mrb[0].mxu0
      %v5175 = vadd.f32 0.0, %v5174
      %v5176 = vpop.f32.mrb[0].mxu0
      %v5177 = vpop.f32.mrb[0].mxu0
      %v5178 = vadd.f32 0.0, %v5177
      %v5179 = vpop.f32.mrb[0].mxu0
      %5180 = vmatprep.mubr.bf16.mxu0 0
      %5181 = vmatmul.mubr.bf16.gmra.mrb[0].mxu0 %v5073
      %v5182 = vpop.f32.mrb[0].mxu0
      %v5183 = vadd.f32 0.0, %v5182
      %v5184 = vpop.f32.mrb[0].mxu0
      %v5185 = vpop.f32.mrb[0].mxu0
      %v5186 = vadd.f32 0.0, %v5185
      %v5187 = vpop.f32.mrb[0].mxu0
      %5188 = vmatprep.mubr.bf16.mxu0 0
      %5189 = vmatmul.mubr.bf16.gmra.mrb[0].mxu0 %v5076
      %v5190 = vpop.f32.mrb[0].mxu0
      %v5191 = vadd.f32 0.0, %v5190
      %v5192 = vpop.f32.mrb[0].mxu0
      %v5193 = vpop.f32.mrb[0].mxu0
      %v5194 = vadd.f32 0.0, %v5193
      %v5195 = vpop.f32.mrb[0].mxu0
      %5196 = vmatprep.mubr.bf16.mxu0 0
      %5197 = vmatmul.mubr.bf16.gmra.mrb[0].mxu0 %v5079
      %v5198 = vpop.f32.mrb[0].mxu0
      %v5199 = vadd.f32 0.0, %v5198
      %v5200 = vpop.f32.mrb[0].mxu0
      %v5201 = vpop.f32.mrb[0].mxu0
      %v5202 = vadd.f32 0.0, %v5201
      %v5203 = vpop.f32.mrb[0].mxu0
      %5204 = vmatprep.mubr.bf16.mxu0 0
      %5205 = vmatmul.mubr.bf16.gmra.mrb[0].mxu0 %v5082
      %v5206 = vpop.f32.mrb[0].mxu0
      %v5207 = vadd.f32 0.0, %v5206
      %v5208 = vpop.f32.mrb[0].mxu0
      %v5209 = vpop.f32.mrb[0].mxu0
      %v5210 = vadd.f32 0.0, %v5209
      %v5211 = vpop.f32.mrb[0].mxu0
      %5212 = vmatprep.mubr.bf16.mxu0 0
      %5213 = vmatmul.mubr.bf16.gmra.mrb[0].mxu0 %v5085
      %v5214 = vpop.f32.mrb[0].mxu0
      %v5215 = vadd.f32 0.0, %v5214
      %v5216 = vpop.f32.mrb[0].mxu0
      %v5217 = vpop.f32.mrb[0].mxu0
      %v5218 = vadd.f32 0.0, %v5217
      %v5219 = vpop.f32.mrb[0].mxu0
      %5220 = vmatprep.mubr.bf16.mxu0 0
      %5221 = vmatmul.mubr.bf16.gmra.mrb[0].mxu0 %v5088
      %v5222 = vpop.f32.mrb[0].mxu0
      %v5223 = vadd.f32 0.0, %v5222
      %v5224 = vpop.f32.mrb[0].mxu0
      %v5225 = vpop.f32.mrb[0].mxu0
      %v5226 = vadd.f32 0.0, %v5225
      %v5227 = vpop.f32.mrb[0].mxu0
      %5228 = vmatprep.mubr.bf16.mxu0 0
      %5229 = vmatmul.mubr.bf16.gmra.mrb[0].mxu0 %v5091
      %v5230 = vpop.f32.mrb[0].mxu0
      %v5231 = vadd.f32 0.0, %v5230
      %v5232 = vpop.f32.mrb[0].mxu0
      %v5233 = vpop.f32.mrb[0].mxu0
      %v5234 = vadd.f32 0.0, %v5233
      %v5235 = vpop.f32.mrb[0].mxu0
      %5236 = vmatprep.mubr.bf16.mxu0 0
      %5237 = vmatmul.mubr.bf16.gmra.mrb[0].mxu0 %v5094
      %v5238 = vpop.f32.mrb[0].mxu0
      %v5239 = vadd.f32 0.0, %v5238
      %v5240 = vpop.f32.mrb[0].mxu0
      %v5241 = vpop.f32.mrb[0].mxu0
      %v5242 = vadd.f32 0.0, %v5241
      %v5243 = vpop.f32.mrb[0].mxu0
      %5244 = vmatprep.mubr.bf16.mxu0 0
      %5245 = vmatmul.mubr.bf16.gmra.mrb[0].mxu0 %v5097
      %v5246 = vpop.f32.mrb[0].mxu0
      %v5247 = vadd.f32 0.0, %v5246
      %v5248 = vpop.f32.mrb[0].mxu0
      %v5249 = vpop.f32.mrb[0].mxu0
      %v5250 = vadd.f32 0.0, %v5249
      %v5251 = vpop.f32.mrb[0].mxu0
      %5252 = vmatprep.mubr.bf16.mxu0 0
      %5253 = vmatmul.mubr.bf16.gmra.mrb[0].mxu0 %v5100
      %v5254 = vpop.f32.mrb[0].mxu0
      %v5255 = vadd.f32 0.0, %v5254
      %v5256 = vpop.f32.mrb[0].mxu0
      %v5257 = vpop.f32.mrb[0].mxu0
      %v5258 = vadd.f32 0.0, %v5257
      %v5259 = vpop.f32.mrb[0].mxu0
      %5260 = vmatprep.mubr.bf16.mxu0 0
      %5261 = vmatmul.mubr.bf16.gmra.mrb[0].mxu0 %v5103
      %v5262 = vpop.f32.mrb[0].mxu0
      %v5263 = vadd.f32 0.0, %v5262
      %v5264 = vpop.f32.mrb[0].mxu0
      %v5265 = vpop.f32.mrb[0].mxu0
      %v5266 = vadd.f32 0.0, %v5265
      %v5267 = vpop.f32.mrb[0].mxu0
      %5268 = vdwg.mxu0
      %v5269 = vadd.f32 %v4543, %v5143
      %v5270 = vadd.f32 %v4544, %v5146
      %v5271 = vadd.f32 %v4545, %v5151
      %v5272 = vadd.f32 %v4546, %v5154
      %v5273 = vadd.f32 %v4547, %v5159
      %v5274 = vadd.f32 %v4548, %v5162
      %v5275 = vadd.f32 %v4549, %v5167
      %v5276 = vadd.f32 %v4550, %v5170
      %v5277 = vadd.f32 %v4551, %v5175
      %v5278 = vadd.f32 %v4552, %v5178
      %v5279 = vadd.f32 %v4553, %v5183
      %v5280 = vadd.f32 %v4554, %v5186
      %v5281 = vadd.f32 %v4555, %v5191
      %v5282 = vadd.f32 %v4556, %v5194
      %v5283 = vadd.f32 %v4557, %v5199
      %v5284 = vadd.f32 %v4558, %v5202
      %v5285 = vadd.f32 %v4559, %v5207
      %v5286 = vadd.f32 %v4560, %v5210
      %v5287 = vadd.f32 %v4561, %v5215
      %v5288 = vadd.f32 %v4562, %v5218
      %v5289 = vadd.f32 %v4563, %v5223
      %v5290 = vadd.f32 %v4564, %v5226
      %v5291 = vadd.f32 %v4565, %v5231
      %v5292 = vadd.f32 %v4566, %v5234
      %v5293 = vadd.f32 %v4567, %v5239
      %v5294 = vadd.f32 %v4568, %v5242
      %v5295 = vadd.f32 %v4569, %v5247
      %v5296 = vadd.f32 %v4570, %v5250
      %v5297 = vadd.f32 %v4571, %v5255
      %v5298 = vadd.f32 %v4572, %v5258
      %v5299 = vadd.f32 %v4573, %v5263
      %v5300 = vadd.f32 %v4574, %v5266
      %v5301 = vld [vmem:[%s4216] sm:$0xe]
      %v5302 = vld [vmem:[%s4216 + $0xc] sm:$0xe]
      %v5303 = vld [vmem:[%s4216 + $0x18] sm:$0xe]
      %v5304 = vld [vmem:[%s4216 + $0x24] sm:$0xe]
      %v5305 = vld [vmem:[%s4216 + $0x30] sm:$0xe]
      %v5306 = vld [vmem:[%s4216 + $0x3c] sm:$0xe]
      %v5307 = vld [vmem:[%s4216 + $0x48] sm:$0xe]
      %v5308 = vld [vmem:[%s4216 + $0x54] sm:$0xe]
      %v5309 = vld [vmem:[%s4216 + $0x60] sm:$0xe]
      %v5310 = vld [vmem:[%s4216 + $0x6c] sm:$0xe]
      %v5311 = vld [vmem:[%s4216 + $0x78] sm:$0xe]
      %v5312 = vld [vmem:[%s4216 + $0x84] sm:$0xe]
      %v5313 = vld [vmem:[%s4216 + $0x90] sm:$0xe]
      %v5314 = vld [vmem:[%s4216 + $0x9c] sm:$0xe]
      %v5315 = vld [vmem:[%s4216 + $0xa8] sm:$0xe]
      %v5316 = vld [vmem:[%s4216 + $0xb4] sm:$0xe]
      %v5365 = vrot.slane %v5301, 5
      %v5366 = vrot.slane %v5365, 4
      %v5367 = vrot.slane %v4576, 5
      %v5368 = vsel %vm2255, %v5366, %v5367
      %v5369 = vrot.slane %v5367, 4
      %v5370 = vrot.slane %v4577, 5
      %v5371 = vsel %vm2255, %v5369, %v5370
      %v5372 = vrot.slane %v5302, 5
      %v5373 = vrot.slane %v5372, 4
      %v5374 = vrot.slane %v4579, 5
      %v5375 = vsel %vm2255, %v5373, %v5374
      %v5376 = vrot.slane %v5374, 4
      %v5377 = vrot.slane %v4580, 5
      %v5378 = vsel %vm2255, %v5376, %v5377
      %v5379 = vrot.slane %v5303, 5
      %v5380 = vrot.slane %v5379, 4
      %v5381 = vrot.slane %v4582, 5
      %v5382 = vsel %vm2255, %v5380, %v5381
      %v5383 = vrot.slane %v5381, 4
      %v5384 = vrot.slane %v4583, 5
      %v5385 = vsel %vm2255, %v5383, %v5384
      %v5386 = vrot.slane %v5304, 5
      %v5387 = vrot.slane %v5386, 4
      %v5388 = vrot.slane %v4585, 5
      %v5389 = vsel %vm2255, %v5387, %v5388
      %v5390 = vrot.slane %v5388, 4
      %v5391 = vrot.slane %v4586, 5
      %v5392 = vsel %vm2255, %v5390, %v5391
      %v5393 = vrot.slane %v5305, 5
      %v5394 = vrot.slane %v5393, 4
      %v5395 = vrot.slane %v4588, 5
      %v5396 = vsel %vm2255, %v5394, %v5395
      %v5397 = vrot.slane %v5395, 4
      %v5398 = vrot.slane %v4589, 5
      %v5399 = vsel %vm2255, %v5397, %v5398
      %v5400 = vrot.slane %v5306, 5
      %v5401 = vrot.slane %v5400, 4
      %v5402 = vrot.slane %v4591, 5
      %v5403 = vsel %vm2255, %v5401, %v5402
      %v5404 = vrot.slane %v5402, 4
      %v5405 = vrot.slane %v4592, 5
      %v5406 = vsel %vm2255, %v5404, %v5405
      %v5407 = vrot.slane %v5307, 5
      %v5408 = vrot.slane %v5407, 4
      %v5409 = vrot.slane %v4594, 5
      %v5410 = vsel %vm2255, %v5408, %v5409
      %v5411 = vrot.slane %v5409, 4
      %v5412 = vrot.slane %v4595, 5
      %v5413 = vsel %vm2255, %v5411, %v5412
      %v5414 = vrot.slane %v5308, 5
      %v5415 = vrot.slane %v5414, 4
      %v5416 = vrot.slane %v4597, 5
      %v5417 = vsel %vm2255, %v5415, %v5416
      %v5418 = vrot.slane %v5416, 4
      %v5419 = vrot.slane %v4598, 5
      %v5420 = vsel %vm2255, %v5418, %v5419
      %v5421 = vrot.slane %v5309, 5
      %v5422 = vrot.slane %v5421, 4
      %v5423 = vrot.slane %v4600, 5
      %v5424 = vsel %vm2255, %v5422, %v5423
      %v5425 = vrot.slane %v5423, 4
      %v5426 = vrot.slane %v4601, 5
      %v5427 = vsel %vm2255, %v5425, %v5426
      %v5428 = vrot.slane %v5310, 5
      %v5429 = vrot.slane %v5428, 4
      %v5430 = vrot.slane %v4603, 5
      %v5431 = vsel %vm2255, %v5429, %v5430
      %v5432 = vrot.slane %v5430, 4
      %v5433 = vrot.slane %v4604, 5
      %v5434 = vsel %vm2255, %v5432, %v5433
      %v5435 = vrot.slane %v5311, 5
      %v5436 = vrot.slane %v5435, 4
      %v5437 = vrot.slane %v4606, 5
      %v5438 = vsel %vm2255, %v5436, %v5437
      %v5439 = vrot.slane %v5437, 4
      %v5440 = vrot.slane %v4607, 5
      %v5441 = vsel %vm2255, %v5439, %v5440
      %v5442 = vrot.slane %v5312, 5
      %v5443 = vrot.slane %v5442, 4
      %v5444 = vrot.slane %v4609, 5
      %v5445 = vsel %vm2255, %v5443, %v5444
      %v5446 = vrot.slane %v5444, 4
      %v5447 = vrot.slane %v4610, 5
      %v5448 = vsel %vm2255, %v5446, %v5447
      %v5449 = vrot.slane %v5313, 5
      %v5450 = vrot.slane %v5449, 4
      %v5451 = vrot.slane %v4612, 5
      %v5452 = vsel %vm2255, %v5450, %v5451
      %v5453 = vrot.slane %v5451, 4
      %v5454 = vrot.slane %v4613, 5
      %v5455 = vsel %vm2255, %v5453, %v5454
      %v5456 = vrot.slane %v5314, 5
      %v5457 = vrot.slane %v5456, 4
      %v5458 = vrot.slane %v4615, 5
      %v5459 = vsel %vm2255, %v5457, %v5458
      %v5460 = vrot.slane %v5458, 4
      %v5461 = vrot.slane %v4616, 5
      %v5462 = vsel %vm2255, %v5460, %v5461
      %v5463 = vrot.slane %v5315, 5
      %v5464 = vrot.slane %v5463, 4
      %v5465 = vrot.slane %v4618, 5
      %v5466 = vsel %vm2255, %v5464, %v5465
      %v5467 = vrot.slane %v5465, 4
      %v5468 = vrot.slane %v4619, 5
      %v5469 = vsel %vm2255, %v5467, %v5468
      %v5470 = vrot.slane %v5316, 5
      %v5471 = vrot.slane %v5470, 4
      %v5472 = vrot.slane %v4621, 5
      %v5473 = vsel %vm2255, %v5471, %v5472
      %v5474 = vrot.slane %v5472, 4
      %v5475 = vrot.slane %v4622, 5
      %v5476 = vsel %vm2255, %v5474, %v5475
      %s5477 = scalar_lea.vmem %s2, 32
      %v5478 = vld [vmem:[%s5477] sm:$0xf]
      %v5479 = vunpack.c.l.b16 %v5368
      %v5480 = vunpack.c.l.b16 %v5371
      %v5481 = vunpack.c.l.b16 %v5375
      %v5482 = vunpack.c.l.b16 %v5378
      %v5483 = vunpack.c.l.b16 %v5382
      %v5484 = vunpack.c.l.b16 %v5385
      %v5485 = vunpack.c.l.b16 %v5389
      %v5486 = vunpack.c.l.b16 %v5392
      %v5487 = vunpack.c.l.b16 %v5396
      %v5488 = vunpack.c.l.b16 %v5399
      %v5489 = vunpack.c.l.b16 %v5403
      %v5490 = vunpack.c.l.b16 %v5406
      %v5491 = vunpack.c.l.b16 %v5410
      %v5492 = vunpack.c.l.b16 %v5413
      %v5493 = vunpack.c.l.b16 %v5417
      %v5494 = vunpack.c.l.b16 %v5420
      %v5495 = vunpack.c.l.b16 %v5424
      %v5496 = vunpack.c.l.b16 %v5427
      %v5497 = vunpack.c.l.b16 %v5431
      %v5498 = vunpack.c.l.b16 %v5434
      %v5499 = vunpack.c.l.b16 %v5438
      %v5500 = vunpack.c.l.b16 %v5441
      %v5501 = vunpack.c.l.b16 %v5445
      %v5502 = vunpack.c.l.b16 %v5448
      %v5503 = vunpack.c.l.b16 %v5452
      %v5504 = vunpack.c.l.b16 %v5455
      %v5505 = vunpack.c.l.b16 %v5459
      %v5506 = vunpack.c.l.b16 %v5462
      %v5507 = vunpack.c.l.b16 %v5466
      %v5508 = vunpack.c.l.b16 %v5469
      %v5509 = vunpack.c.l.b16 %v5473
      %v5510 = vunpack.c.l.b16 %v5476
      %v5511 = vpack.c.b16 %v5480, %v5479
      %v5512 = vpack.c.b16 %v5482, %v5481
      %v5513 = vpack.c.b16 %v5484, %v5483
      %v5514 = vpack.c.b16 %v5486, %v5485
      %v5515 = vpack.c.b16 %v5488, %v5487
      %v5516 = vpack.c.b16 %v5490, %v5489
      %v5517 = vpack.c.b16 %v5492, %v5491
      %v5518 = vpack.c.b16 %v5494, %v5493
      %v5519 = vpack.c.b16 %v5496, %v5495
      %v5520 = vpack.c.b16 %v5498, %v5497
      %v5521 = vpack.c.b16 %v5500, %v5499
      %v5522 = vpack.c.b16 %v5502, %v5501
      %v5523 = vpack.c.b16 %v5504, %v5503
      %v5524 = vpack.c.b16 %v5506, %v5505
      %v5525 = vpack.c.b16 %v5508, %v5507
      %v5526 = vpack.c.b16 %v5510, %v5509
      %v5528 = vsel %vm1699, %v5511, 0
      %v5531 = vsel %vm1699, %v5512, 0
      %v5534 = vsel %vm1699, %v5513, 0
      %v5537 = vsel %vm1699, %v5514, 0
      %v5540 = vsel %vm1699, %v5515, 0
      %v5543 = vsel %vm1699, %v5516, 0
      %v5546 = vsel %vm1699, %v5517, 0
      %v5549 = vsel %vm1699, %v5518, 0
      %v5552 = vsel %vm1699, %v5519, 0
      %v5555 = vsel %vm1699, %v5520, 0
      %v5558 = vsel %vm1699, %v5521, 0
      %v5561 = vsel %vm1699, %v5522, 0
      %v5564 = vsel %vm1699, %v5523, 0
      %v5567 = vsel %vm1699, %v5524, 0
      %v5570 = vsel %vm1699, %v5525, 0
      %v5573 = vsel %vm1699, %v5526, 0
      %v5576 = vsel %vm1748, %v5478, 0
      %5578 = vmatprep.subr.bf16.mxu0 0
      %5579 = vmatpush1.bf16.msra.mxu0 %v5576
      %5580 = vmatprep.subr.bf16.mxu0 0
      %5581 = vmatpush1.bf16.msra.mxu0 0
      %5582 = vmatprep.subr.bf16.mxu0 0
      %5583 = vmatpush1.bf16.msra.mxu0 0
      %5584 = vmatprep.subr.bf16.mxu0 0
      %5585 = vmatpush1.bf16.msra.mxu0 0
      %5586 = vmatprep.subr.bf16.mxu0 0
      %5587 = vmatpush1.bf16.msra.mxu0 0
      %5588 = vmatprep.subr.bf16.mxu0 0
      %5589 = vmatpush1.bf16.msra.mxu0 0
      %5590 = vmatprep.subr.bf16.mxu0 0
      %5591 = vmatpush1.bf16.msra.mxu0 0
      %5592 = vmatprep.subr.bf16.mxu0 0
      %5593 = vmatpush1.bf16.msra.mxu0 0
      %5594 = vmatprep.subr.bf16.mxu0 0
      %5595 = vmatpush1.bf16.msra.mxu0 0
      %5596 = vmatprep.subr.bf16.mxu0 0
      %5597 = vmatpush1.bf16.msra.mxu0 0
      %5598 = vmatprep.subr.bf16.mxu0 0
      %5599 = vmatpush1.bf16.msra.mxu0 0
      %5600 = vmatprep.subr.bf16.mxu0 0
      %5601 = vmatpush1.bf16.msra.mxu0 0
      %5602 = vmatprep.subr.bf16.mxu0 0
      %5603 = vmatpush1.bf16.msra.mxu0 0
      %5604 = vmatprep.subr.bf16.mxu0 0
      %5605 = vmatpush1.bf16.msra.mxu0 0
      %5606 = vmatprep.subr.bf16.mxu0 0
      %5607 = vmatpush1.bf16.msra.mxu0 0
      %5608 = vmatprep.subr.bf16.mxu0 0
      %5609 = vmatpush1.bf16.msra.mxu0 0
      %5610 = vmatprep.mubr.bf16.mxu0 0
      %5611 = vmatmul.mubr.bf16.gmra.mrb[0].mxu0 %v5528
      %v5612 = vpop.f32.mrb[0].mxu0
      %v5613 = vadd.f32 0.0, %v5612
      %v5614 = vpop.f32.mrb[0].mxu0
      %v5615 = vpop.f32.mrb[0].mxu0
      %v5616 = vadd.f32 0.0, %v5615
      %v5617 = vpop.f32.mrb[0].mxu0
      %5618 = vmatprep.mubr.bf16.mxu0 0
      %5619 = vmatmul.mubr.bf16.gmra.mrb[0].mxu0 %v5531
      %v5620 = vpop.f32.mrb[0].mxu0
      %v5621 = vadd.f32 0.0, %v5620
      %v5622 = vpop.f32.mrb[0].mxu0
      %v5623 = vpop.f32.mrb[0].mxu0
      %v5624 = vadd.f32 0.0, %v5623
      %v5625 = vpop.f32.mrb[0].mxu0
      %5626 = vmatprep.mubr.bf16.mxu0 0
      %5627 = vmatmul.mubr.bf16.gmra.mrb[0].mxu0 %v5534
      %v5628 = vpop.f32.mrb[0].mxu0
      %v5629 = vadd.f32 0.0, %v5628
      %v5630 = vpop.f32.mrb[0].mxu0
      %v5631 = vpop.f32.mrb[0].mxu0
      %v5632 = vadd.f32 0.0, %v5631
      %v5633 = vpop.f32.mrb[0].mxu0
      %5634 = vmatprep.mubr.bf16.mxu0 0
      %5635 = vmatmul.mubr.bf16.gmra.mrb[0].mxu0 %v5537
      %v5636 = vpop.f32.mrb[0].mxu0
      %v5637 = vadd.f32 0.0, %v5636
      %v5638 = vpop.f32.mrb[0].mxu0
      %v5639 = vpop.f32.mrb[0].mxu0
      %v5640 = vadd.f32 0.0, %v5639
      %v5641 = vpop.f32.mrb[0].mxu0
      %5642 = vmatprep.mubr.bf16.mxu0 0
      %5643 = vmatmul.mubr.bf16.gmra.mrb[0].mxu0 %v5540
      %v5644 = vpop.f32.mrb[0].mxu0
      %v5645 = vadd.f32 0.0, %v5644
      %v5646 = vpop.f32.mrb[0].mxu0
      %v5647 = vpop.f32.mrb[0].mxu0
      %v5648 = vadd.f32 0.0, %v5647
      %v5649 = vpop.f32.mrb[0].mxu0
      %5650 = vmatprep.mubr.bf16.mxu0 0
      %5651 = vmatmul.mubr.bf16.gmra.mrb[0].mxu0 %v5543
      %v5652 = vpop.f32.mrb[0].mxu0
      %v5653 = vadd.f32 0.0, %v5652
      %v5654 = vpop.f32.mrb[0].mxu0
      %v5655 = vpop.f32.mrb[0].mxu0
      %v5656 = vadd.f32 0.0, %v5655
      %v5657 = vpop.f32.mrb[0].mxu0
      %5658 = vmatprep.mubr.bf16.mxu0 0
      %5659 = vmatmul.mubr.bf16.gmra.mrb[0].mxu0 %v5546
      %v5660 = vpop.f32.mrb[0].mxu0
      %v5661 = vadd.f32 0.0, %v5660
      %v5662 = vpop.f32.mrb[0].mxu0
      %v5663 = vpop.f32.mrb[0].mxu0
      %v5664 = vadd.f32 0.0, %v5663
      %v5665 = vpop.f32.mrb[0].mxu0
      %5666 = vmatprep.mubr.bf16.mxu0 0
      %5667 = vmatmul.mubr.bf16.gmra.mrb[0].mxu0 %v5549
      %v5668 = vpop.f32.mrb[0].mxu0
      %v5669 = vadd.f32 0.0, %v5668
      %v5670 = vpop.f32.mrb[0].mxu0
      %v5671 = vpop.f32.mrb[0].mxu0
      %v5672 = vadd.f32 0.0, %v5671
      %v5673 = vpop.f32.mrb[0].mxu0
      %5674 = vmatprep.mubr.bf16.mxu0 0
      %5675 = vmatmul.mubr.bf16.gmra.mrb[0].mxu0 %v5552
      %v5676 = vpop.f32.mrb[0].mxu0
      %v5677 = vadd.f32 0.0, %v5676
      %v5678 = vpop.f32.mrb[0].mxu0
      %v5679 = vpop.f32.mrb[0].mxu0
      %v5680 = vadd.f32 0.0, %v5679
      %v5681 = vpop.f32.mrb[0].mxu0
      %5682 = vmatprep.mubr.bf16.mxu0 0
      %5683 = vmatmul.mubr.bf16.gmra.mrb[0].mxu0 %v5555
      %v5684 = vpop.f32.mrb[0].mxu0
      %v5685 = vadd.f32 0.0, %v5684
      %v5686 = vpop.f32.mrb[0].mxu0
      %v5687 = vpop.f32.mrb[0].mxu0
      %v5688 = vadd.f32 0.0, %v5687
      %v5689 = vpop.f32.mrb[0].mxu0
      %5690 = vmatprep.mubr.bf16.mxu0 0
      %5691 = vmatmul.mubr.bf16.gmra.mrb[0].mxu0 %v5558
      %v5692 = vpop.f32.mrb[0].mxu0
      %v5693 = vadd.f32 0.0, %v5692
      %v5694 = vpop.f32.mrb[0].mxu0
      %v5695 = vpop.f32.mrb[0].mxu0
      %v5696 = vadd.f32 0.0, %v5695
      %v5697 = vpop.f32.mrb[0].mxu0
      %5698 = vmatprep.mubr.bf16.mxu0 0
      %5699 = vmatmul.mubr.bf16.gmra.mrb[0].mxu0 %v5561
      %v5700 = vpop.f32.mrb[0].mxu0
      %v5701 = vadd.f32 0.0, %v5700
      %v5702 = vpop.f32.mrb[0].mxu0
      %v5703 = vpop.f32.mrb[0].mxu0
      %v5704 = vadd.f32 0.0, %v5703
      %v5705 = vpop.f32.mrb[0].mxu0
      %5706 = vmatprep.mubr.bf16.mxu0 0
      %5707 = vmatmul.mubr.bf16.gmra.mrb[0].mxu0 %v5564
      %v5708 = vpop.f32.mrb[0].mxu0
      %v5709 = vadd.f32 0.0, %v5708
      %v5710 = vpop.f32.mrb[0].mxu0
      %v5711 = vpop.f32.mrb[0].mxu0
      %v5712 = vadd.f32 0.0, %v5711
      %v5713 = vpop.f32.mrb[0].mxu0
      %5714 = vmatprep.mubr.bf16.mxu0 0
      %5715 = vmatmul.mubr.bf16.gmra.mrb[0].mxu0 %v5567
      %v5716 = vpop.f32.mrb[0].mxu0
      %v5717 = vadd.f32 0.0, %v5716
      %v5718 = vpop.f32.mrb[0].mxu0
      %v5719 = vpop.f32.mrb[0].mxu0
      %v5720 = vadd.f32 0.0, %v5719
      %v5721 = vpop.f32.mrb[0].mxu0
      %5722 = vmatprep.mubr.bf16.mxu0 0
      %5723 = vmatmul.mubr.bf16.gmra.mrb[0].mxu0 %v5570
      %v5724 = vpop.f32.mrb[0].mxu0
      %v5725 = vadd.f32 0.0, %v5724
      %v5726 = vpop.f32.mrb[0].mxu0
      %v5727 = vpop.f32.mrb[0].mxu0
      %v5728 = vadd.f32 0.0, %v5727
      %v5729 = vpop.f32.mrb[0].mxu0
      %5730 = vmatprep.mubr.bf16.mxu0 0
      %5731 = vmatmul.mubr.bf16.gmra.mrb[0].mxu0 %v5573
      %v5732 = vpop.f32.mrb[0].mxu0
      %v5733 = vadd.f32 0.0, %v5732
      %v5734 = vpop.f32.mrb[0].mxu0
      %v5735 = vpop.f32.mrb[0].mxu0
      %v5736 = vadd.f32 0.0, %v5735
      %v5737 = vpop.f32.mrb[0].mxu0
      %5738 = vdwg.mxu0
      %v5739 = vadd.f32 %v5269, %v5613
      %v5740 = vadd.f32 %v5270, %v5616
      %v5741 = vadd.f32 %v5271, %v5621
      %v5742 = vadd.f32 %v5272, %v5624
      %v5743 = vadd.f32 %v5273, %v5629
      %v5744 = vadd.f32 %v5274, %v5632
      %v5745 = vadd.f32 %v5275, %v5637
      %v5746 = vadd.f32 %v5276, %v5640
      %v5747 = vadd.f32 %v5277, %v5645
      %v5748 = vadd.f32 %v5278, %v5648
      %v5749 = vadd.f32 %v5279, %v5653
      %v5750 = vadd.f32 %v5280, %v5656
      %v5751 = vadd.f32 %v5281, %v5661
      %v5752 = vadd.f32 %v5282, %v5664
      %v5753 = vadd.f32 %v5283, %v5669
      %v5754 = vadd.f32 %v5284, %v5672
      %v5755 = vadd.f32 %v5285, %v5677
      %v5756 = vadd.f32 %v5286, %v5680
      %v5757 = vadd.f32 %v5287, %v5685
      %v5758 = vadd.f32 %v5288, %v5688
      %v5759 = vadd.f32 %v5289, %v5693
      %v5760 = vadd.f32 %v5290, %v5696
      %v5761 = vadd.f32 %v5291, %v5701
      %v5762 = vadd.f32 %v5292, %v5704
      %v5763 = vadd.f32 %v5293, %v5709
      %v5764 = vadd.f32 %v5294, %v5712
      %v5765 = vadd.f32 %v5295, %v5717
      %v5766 = vadd.f32 %v5296, %v5720
      %v5767 = vadd.f32 %v5297, %v5725
      %v5768 = vadd.f32 %v5298, %v5728
      %v5769 = vadd.f32 %v5299, %v5733
      %v5770 = vadd.f32 %v5300, %v5736
      %v5771 = vld [vmem:[%s7] sm:$0x1]
      %v5773 = vlaneseq
      %v5774 = vshrl.u32 %v5773, 7
      %v5775 = vsub.s32 0, %v5774
      %v5776 = vrot.slane %v5771, %v5775
      %v5778 = vmul.f32 %v5739, %v5776
      %v5779 = vmul.f32 %v5740, %v5776
      %v5780 = vmul.f32 %v5741, %v5776
      %v5781 = vmul.f32 %v5742, %v5776
      %v5782 = vmul.f32 %v5743, %v5776
      %v5783 = vmul.f32 %v5744, %v5776
      %v5784 = vmul.f32 %v5745, %v5776
      %v5785 = vmul.f32 %v5746, %v5776
      %v5786 = vmul.f32 %v5747, %v5776
      %v5787 = vmul.f32 %v5748, %v5776
      %v5788 = vmul.f32 %v5749, %v5776
      %v5789 = vmul.f32 %v5750, %v5776
      %v5790 = vmul.f32 %v5751, %v5776
      %v5791 = vmul.f32 %v5752, %v5776
      %v5792 = vmul.f32 %v5753, %v5776
      %v5793 = vmul.f32 %v5754, %v5776
      %v5794 = vmul.f32 %v5755, %v5776
      %v5795 = vmul.f32 %v5756, %v5776
      %v5796 = vmul.f32 %v5757, %v5776
      %v5797 = vmul.f32 %v5758, %v5776
      %v5798 = vmul.f32 %v5759, %v5776
      %v5799 = vmul.f32 %v5760, %v5776
      %v5800 = vmul.f32 %v5761, %v5776
      %v5801 = vmul.f32 %v5762, %v5776
      %v5802 = vmul.f32 %v5763, %v5776
      %v5803 = vmul.f32 %v5764, %v5776
      %v5804 = vmul.f32 %v5765, %v5776
      %v5805 = vmul.f32 %v5766, %v5776
      %v5806 = vmul.f32 %v5767, %v5776
      %v5807 = vmul.f32 %v5768, %v5776
      %v5808 = vmul.f32 %v5769, %v5776
      %v5809 = vmul.f32 %v5770, %v5776
      %v5810 = vld [vmem:[%s8] sm:$0x1]
      %v5812 = vlaneseq
      %v5813 = vshrl.u32 %v5812, 7
      %v5814 = vsub.s32 0, %v5813
      %v5815 = vrot.slane %v5810, %v5814
      %v5817 = vadd.f32 %v5778, %v5815
      %v5818 = vadd.f32 %v5779, %v5815
      %v5819 = vadd.f32 %v5780, %v5815
      %v5820 = vadd.f32 %v5781, %v5815
      %v5821 = vadd.f32 %v5782, %v5815
      %v5822 = vadd.f32 %v5783, %v5815
      %v5823 = vadd.f32 %v5784, %v5815
      %v5824 = vadd.f32 %v5785, %v5815
      %v5825 = vadd.f32 %v5786, %v5815
      %v5826 = vadd.f32 %v5787, %v5815
      %v5827 = vadd.f32 %v5788, %v5815
      %v5828 = vadd.f32 %v5789, %v5815
      %v5829 = vadd.f32 %v5790, %v5815
      %v5830 = vadd.f32 %v5791, %v5815
      %v5831 = vadd.f32 %v5792, %v5815
      %v5832 = vadd.f32 %v5793, %v5815
      %v5833 = vadd.f32 %v5794, %v5815
      %v5834 = vadd.f32 %v5795, %v5815
      %v5835 = vadd.f32 %v5796, %v5815
      %v5836 = vadd.f32 %v5797, %v5815
      %v5837 = vadd.f32 %v5798, %v5815
      %v5838 = vadd.f32 %v5799, %v5815
      %v5839 = vadd.f32 %v5800, %v5815
      %v5840 = vadd.f32 %v5801, %v5815
      %v5841 = vadd.f32 %v5802, %v5815
      %v5842 = vadd.f32 %v5803, %v5815
      %v5843 = vadd.f32 %v5804, %v5815
      %v5844 = vadd.f32 %v5805, %v5815
      %v5845 = vadd.f32 %v5806, %v5815
      %v5846 = vadd.f32 %v5807, %v5815
      %v5847 = vadd.f32 %v5808, %v5815
      %v5848 = vadd.f32 %v5809, %v5815
      %v5849 = vmax.f32 %v5817, 0.0
      %v5850 = vmax.f32 %v5818, 0.0
      %v5851 = vmax.f32 %v5819, 0.0
      %v5852 = vmax.f32 %v5820, 0.0
      %v5853 = vmax.f32 %v5821, 0.0
      %v5854 = vmax.f32 %v5822, 0.0
      %v5855 = vmax.f32 %v5823, 0.0
      %v5856 = vmax.f32 %v5824, 0.0
      %v5857 = vmax.f32 %v5825, 0.0
      %v5858 = vmax.f32 %v5826, 0.0
      %v5859 = vmax.f32 %v5827, 0.0
      %v5860 = vmax.f32 %v5828, 0.0
      %v5861 = vmax.f32 %v5829, 0.0
      %v5862 = vmax.f32 %v5830, 0.0
      %v5863 = vmax.f32 %v5831, 0.0
      %v5864 = vmax.f32 %v5832, 0.0
      %v5865 = vmax.f32 %v5833, 0.0
      %v5866 = vmax.f32 %v5834, 0.0
      %v5867 = vmax.f32 %v5835, 0.0
      %v5868 = vmax.f32 %v5836, 0.0
      %v5869 = vmax.f32 %v5837, 0.0
      %v5870 = vmax.f32 %v5838, 0.0
      %v5871 = vmax.f32 %v5839, 0.0
      %v5872 = vmax.f32 %v5840, 0.0
      %v5873 = vmax.f32 %v5841, 0.0
      %v5874 = vmax.f32 %v5842, 0.0
      %v5875 = vmax.f32 %v5843, 0.0
      %v5876 = vmax.f32 %v5844, 0.0
      %v5877 = vmax.f32 %v5845, 0.0
      %v5878 = vmax.f32 %v5846, 0.0
      %v5879 = vmax.f32 %v5847, 0.0
      %v5880 = vmax.f32 %v5848, 0.0
      %vm5881 = vcmask 125952
      %5882 = vst.msk [vmem:[#allocation3] sm:$0xf] %vm5881, 0
      %5883 = vst.msk [vmem:[#allocation3 + $0x4] sm:$0xf] %vm5881, 0
      %vm5884 = vcmask 122880
      %5885 = vst.msk [vmem:[#allocation3 + $0x8] sm:$0x1] %vm5884, 0
      %5886 = vst.msk [vmem:[#allocation3 + $0xc] sm:$0xf] %vm5881, 0
      %5887 = vst.msk [vmem:[#allocation3 + $0x10] sm:$0xf] %vm5881, 0
      %5888 = vst.msk [vmem:[#allocation3 + $0x14] sm:$0x1] %vm5884, 0
      %5889 = vst.msk [vmem:[#allocation3 + $0x18] sm:$0xf] %vm5881, 0
      %5890 = vst.msk [vmem:[#allocation3 + $0x1c] sm:$0xf] %vm5881, 0
      %5891 = vst.msk [vmem:[#allocation3 + $0x20] sm:$0x1] %vm5884, 0
      %5892 = vst.msk [vmem:[#allocation3 + $0x24] sm:$0xf] %vm5881, 0
      %5893 = vst.msk [vmem:[#allocation3 + $0x28] sm:$0xf] %vm5881, 0
      %5894 = vst.msk [vmem:[#allocation3 + $0x2c] sm:$0x1] %vm5884, 0
      %5895 = vst.msk [vmem:[#allocation3 + $0x30] sm:$0xf] %vm5881, 0
      %5896 = vst.msk [vmem:[#allocation3 + $0x34] sm:$0xf] %vm5881, 0
      %5897 = vst.msk [vmem:[#allocation3 + $0x38] sm:$0x1] %vm5884, 0
      %5898 = vst.msk [vmem:[#allocation3 + $0x3c] sm:$0xf] %vm5881, 0
      %5899 = vst.msk [vmem:[#allocation3 + $0x40] sm:$0xf] %vm5881, 0
      %5900 = vst.msk [vmem:[#allocation3 + $0x44] sm:$0x1] %vm5884, 0
      %5901 = vst.msk [vmem:[#allocation3 + $0x48] sm:$0xf] %vm5881, 0
      %5902 = vst.msk [vmem:[#allocation3 + $0x4c] sm:$0xf] %vm5881, 0
      %5903 = vst.msk [vmem:[#allocation3 + $0x50] sm:$0x1] %vm5884, 0
      %5904 = vst.msk [vmem:[#allocation3 + $0x54] sm:$0xf] %vm5881, 0
      %5905 = vst.msk [vmem:[#allocation3 + $0x58] sm:$0xf] %vm5881, 0
      %5906 = vst.msk [vmem:[#allocation3 + $0x5c] sm:$0x1] %vm5884, 0
      %5907 = vst.msk [vmem:[#allocation3 + $0x60] sm:$0xf] %vm5881, 0
      %5908 = vst.msk [vmem:[#allocation3 + $0x64] sm:$0xf] %vm5881, 0
      %5909 = vst.msk [vmem:[#allocation3 + $0x68] sm:$0x1] %vm5884, 0
      %5910 = vst.msk [vmem:[#allocation3 + $0x6c] sm:$0xf] %vm5881, 0
      %5911 = vst.msk [vmem:[#allocation3 + $0x70] sm:$0xf] %vm5881, 0
      %5912 = vst.msk [vmem:[#allocation3 + $0x74] sm:$0x1] %vm5884, 0
      %5913 = vst.msk [vmem:[#allocation3 + $0x78] sm:$0xf] %vm5881, 0
      %5914 = vst.msk [vmem:[#allocation3 + $0x7c] sm:$0xf] %vm5881, 0
      %5915 = vst.msk [vmem:[#allocation3 + $0x80] sm:$0x1] %vm5884, 0
      %5916 = vst.msk [vmem:[#allocation3 + $0x84] sm:$0xf] %vm5881, 0
      %5917 = vst.msk [vmem:[#allocation3 + $0x88] sm:$0xf] %vm5881, 0
      %5918 = vst.msk [vmem:[#allocation3 + $0x8c] sm:$0x1] %vm5884, 0
      %5919 = vst.msk [vmem:[#allocation3 + $0x90] sm:$0xf] %vm5881, 0
      %5920 = vst.msk [vmem:[#allocation3 + $0x94] sm:$0xf] %vm5881, 0
      %5921 = vst.msk [vmem:[#allocation3 + $0x98] sm:$0x1] %vm5884, 0
      %5922 = vst.msk [vmem:[#allocation3 + $0x9c] sm:$0xf] %vm5881, 0
      %5923 = vst.msk [vmem:[#allocation3 + $0xa0] sm:$0xf] %vm5881, 0
      %5924 = vst.msk [vmem:[#allocation3 + $0xa4] sm:$0x1] %vm5884, 0
      %5925 = vst.msk [vmem:[#allocation3 + $0xa8] sm:$0xf] %vm5881, 0
      %5926 = vst.msk [vmem:[#allocation3 + $0xac] sm:$0xf] %vm5881, 0
      %5927 = vst.msk [vmem:[#allocation3 + $0xb0] sm:$0x1] %vm5884, 0
      %5928 = vst.msk [vmem:[#allocation3 + $0xb4] sm:$0xf] %vm5881, 0
      %5929 = vst.msk [vmem:[#allocation3 + $0xb8] sm:$0xf] %vm5881, 0
      %5930 = vst.msk [vmem:[#allocation3 + $0xbc] sm:$0x1] %vm5884, 0
      %5931 = vst.msk [vmem:[#allocation3 + $0xc0] sm:$0xf] %vm5881, 0
      %5932 = vst.msk [vmem:[#allocation3 + $0xc4] sm:$0xf] %vm5881, 0
      %5933 = vst.msk [vmem:[#allocation3 + $0xc8] sm:$0x1] %vm5884, 0
      %5934 = vst.msk [vmem:[#allocation3 + $0xcc] sm:$0xf] %vm5881, 0
      %5935 = vst.msk [vmem:[#allocation3 + $0xd0] sm:$0xf] %vm5881, 0
      %5936 = vst.msk [vmem:[#allocation3 + $0xd4] sm:$0x1] %vm5884, 0
      %v5937 = vpack.c.bf16 %v5850, %v5849
      %v5938 = vpack.c.bf16 %v5852, %v5851
      %v5939 = vpack.c.bf16 %v5854, %v5853
      %v5940 = vpack.c.bf16 %v5856, %v5855
      %v5941 = vpack.c.bf16 %v5858, %v5857
      %v5942 = vpack.c.bf16 %v5860, %v5859
      %v5943 = vpack.c.bf16 %v5862, %v5861
      %v5944 = vpack.c.bf16 %v5864, %v5863
      %v5945 = vpack.c.bf16 %v5866, %v5865
      %v5946 = vpack.c.bf16 %v5868, %v5867
      %v5947 = vpack.c.bf16 %v5870, %v5869
      %v5948 = vpack.c.bf16 %v5872, %v5871
      %v5949 = vpack.c.bf16 %v5874, %v5873
      %v5950 = vpack.c.bf16 %v5876, %v5875
      %v5951 = vpack.c.bf16 %v5878, %v5877
      %v5952 = vpack.c.bf16 %v5880, %v5879
      %v5969 = vunpack.c.l.b16 %v5937
      %v5970 = vunpack.c.h.b16 %v5937
      %v5971 = vunpack.c.l.b16 %v5938
      %v5972 = vunpack.c.h.b16 %v5938
      %v5973 = vunpack.c.l.b16 %v5939
      %v5974 = vunpack.c.h.b16 %v5939
      %v5975 = vunpack.c.l.b16 %v5940
      %v5976 = vunpack.c.h.b16 %v5940
      %v5977 = vunpack.c.l.b16 %v5941
      %v5978 = vunpack.c.h.b16 %v5941
      %v5979 = vunpack.c.l.b16 %v5942
      %v5980 = vunpack.c.h.b16 %v5942
      %v5981 = vunpack.c.l.b16 %v5943
      %v5982 = vunpack.c.h.b16 %v5943
      %v5983 = vunpack.c.l.b16 %v5944
      %v5984 = vunpack.c.h.b16 %v5944
      %v5985 = vunpack.c.l.b16 %v5945
      %v5986 = vunpack.c.h.b16 %v5945
      %v5987 = vunpack.c.l.b16 %v5946
      %v5988 = vunpack.c.h.b16 %v5946
      %v5989 = vunpack.c.l.b16 %v5947
      %v5990 = vunpack.c.h.b16 %v5947
      %v5991 = vunpack.c.l.b16 %v5948
      %v5992 = vunpack.c.h.b16 %v5948
      %v5993 = vunpack.c.l.b16 %v5949
      %v5994 = vunpack.c.h.b16 %v5949
      %v5995 = vunpack.c.l.b16 %v5950
      %v5996 = vunpack.c.h.b16 %v5950
      %v5997 = vunpack.c.l.b16 %v5951
      %v5998 = vunpack.c.h.b16 %v5951
      %v5999 = vunpack.c.l.b16 %v5952
      %v6000 = vunpack.c.h.b16 %v5952
      %v6001 = vpack.c.b16 %v5969, %v5969
      %v6002 = vpack.c.b16 %v5970, %v5970
      %v6003 = vpack.c.b16 %v5971, %v5971
      %v6004 = vpack.c.b16 %v5972, %v5972
      %v6005 = vpack.c.b16 %v5973, %v5973
      %v6006 = vpack.c.b16 %v5974, %v5974
      %v6007 = vpack.c.b16 %v5975, %v5975
      %v6008 = vpack.c.b16 %v5976, %v5976
      %v6009 = vpack.c.b16 %v5977, %v5977
      %v6010 = vpack.c.b16 %v5978, %v5978
      %v6011 = vpack.c.b16 %v5979, %v5979
      %v6012 = vpack.c.b16 %v5980, %v5980
      %v6013 = vpack.c.b16 %v5981, %v5981
      %v6014 = vpack.c.b16 %v5982, %v5982
      %v6015 = vpack.c.b16 %v5983, %v5983
      %v6016 = vpack.c.b16 %v5984, %v5984
      %v6017 = vpack.c.b16 %v5985, %v5985
      %v6018 = vpack.c.b16 %v5986, %v5986
      %v6019 = vpack.c.b16 %v5987, %v5987
      %v6020 = vpack.c.b16 %v5988, %v5988
      %v6021 = vpack.c.b16 %v5989, %v5989
      %v6022 = vpack.c.b16 %v5990, %v5990
      %v6023 = vpack.c.b16 %v5991, %v5991
      %v6024 = vpack.c.b16 %v5992, %v5992
      %v6025 = vpack.c.b16 %v5993, %v5993
      %v6026 = vpack.c.b16 %v5994, %v5994
      %v6027 = vpack.c.b16 %v5995, %v5995
      %v6028 = vpack.c.b16 %v5996, %v5996
      %v6029 = vpack.c.b16 %v5997, %v5997
      %v6030 = vpack.c.b16 %v5998, %v5998
      %v6031 = vpack.c.b16 %v5999, %v5999
      %v6032 = vpack.c.b16 %v6000, %v6000
      %v6034 = vshrl.u32 %v6001, 16
      %v6036 = vrot.slane %v6034, 7
      %v6037 = vshll.u32 %v6001, 16
      %v6039 = vor.u32 %v6036, %v6037
      %v6040 = vrot.slane %v6036, 4
      %v6042 = vshrl.u32 %v6002, 16
      %v6044 = vrot.slane %v6042, 7
      %v6045 = vshll.u32 %v6002, 16
      %v6047 = vor.u32 %v6044, %v6045
      %v6048 = vsel %vm774, %v6040, %v6047
      %v6049 = vrot.slane %v6044, 4
      %v6051 = vshrl.u32 %v6003, 16
      %v6053 = vrot.slane %v6051, 7
      %v6054 = vshll.u32 %v6003, 16
      %v6056 = vor.u32 %v6053, %v6054
      %v6057 = vrot.slane %v6053, 4
      %v6059 = vshrl.u32 %v6004, 16
      %v6061 = vrot.slane %v6059, 7
      %v6062 = vshll.u32 %v6004, 16
      %v6064 = vor.u32 %v6061, %v6062
      %v6065 = vsel %vm774, %v6057, %v6064
      %v6066 = vrot.slane %v6061, 4
      %v6068 = vshrl.u32 %v6005, 16
      %v6070 = vrot.slane %v6068, 7
      %v6071 = vshll.u32 %v6005, 16
      %v6073 = vor.u32 %v6070, %v6071
      %v6074 = vrot.slane %v6070, 4
      %v6076 = vshrl.u32 %v6006, 16
      %v6078 = vrot.slane %v6076, 7
      %v6079 = vshll.u32 %v6006, 16
      %v6081 = vor.u32 %v6078, %v6079
      %v6082 = vsel %vm774, %v6074, %v6081
      %v6083 = vrot.slane %v6078, 4
      %v6085 = vshrl.u32 %v6007, 16
      %v6087 = vrot.slane %v6085, 7
      %v6088 = vshll.u32 %v6007, 16
      %v6090 = vor.u32 %v6087, %v6088
      %v6091 = vrot.slane %v6087, 4
      %v6093 = vshrl.u32 %v6008, 16
      %v6095 = vrot.slane %v6093, 7
      %v6096 = vshll.u32 %v6008, 16
      %v6098 = vor.u32 %v6095, %v6096
      %v6099 = vsel %vm774, %v6091, %v6098
      %v6100 = vrot.slane %v6095, 4
      %v6102 = vshrl.u32 %v6009, 16
      %v6104 = vrot.slane %v6102, 7
      %v6105 = vshll.u32 %v6009, 16
      %v6107 = vor.u32 %v6104, %v6105
      %v6108 = vrot.slane %v6104, 4
      %v6110 = vshrl.u32 %v6010, 16
      %v6112 = vrot.slane %v6110, 7
      %v6113 = vshll.u32 %v6010, 16
      %v6115 = vor.u32 %v6112, %v6113
      %v6116 = vsel %vm774, %v6108, %v6115
      %v6117 = vrot.slane %v6112, 4
      %v6119 = vshrl.u32 %v6011, 16
      %v6121 = vrot.slane %v6119, 7
      %v6122 = vshll.u32 %v6011, 16
      %v6124 = vor.u32 %v6121, %v6122
      %v6125 = vrot.slane %v6121, 4
      %v6127 = vshrl.u32 %v6012, 16
      %v6129 = vrot.slane %v6127, 7
      %v6130 = vshll.u32 %v6012, 16
      %v6132 = vor.u32 %v6129, %v6130
      %v6133 = vsel %vm774, %v6125, %v6132
      %v6134 = vrot.slane %v6129, 4
      %v6136 = vshrl.u32 %v6013, 16
      %v6138 = vrot.slane %v6136, 7
      %v6139 = vshll.u32 %v6013, 16
      %v6141 = vor.u32 %v6138, %v6139
      %v6142 = vrot.slane %v6138, 4
      %v6144 = vshrl.u32 %v6014, 16
      %v6146 = vrot.slane %v6144, 7
      %v6147 = vshll.u32 %v6014, 16
      %v6149 = vor.u32 %v6146, %v6147
      %v6150 = vsel %vm774, %v6142, %v6149
      %v6151 = vrot.slane %v6146, 4
      %v6153 = vshrl.u32 %v6015, 16
      %v6155 = vrot.slane %v6153, 7
      %v6156 = vshll.u32 %v6015, 16
      %v6158 = vor.u32 %v6155, %v6156
      %v6159 = vrot.slane %v6155, 4
      %v6161 = vshrl.u32 %v6016, 16
      %v6163 = vrot.slane %v6161, 7
      %v6164 = vshll.u32 %v6016, 16
      %v6166 = vor.u32 %v6163, %v6164
      %v6167 = vsel %vm774, %v6159, %v6166
      %v6168 = vrot.slane %v6163, 4
      %v6170 = vshrl.u32 %v6017, 16
      %v6172 = vrot.slane %v6170, 7
      %v6173 = vshll.u32 %v6017, 16
      %v6175 = vor.u32 %v6172, %v6173
      %v6176 = vrot.slane %v6172, 4
      %v6178 = vshrl.u32 %v6018, 16
      %v6180 = vrot.slane %v6178, 7
      %v6181 = vshll.u32 %v6018, 16
      %v6183 = vor.u32 %v6180, %v6181
      %v6184 = vsel %vm774, %v6176, %v6183
      %v6185 = vrot.slane %v6180, 4
      %v6187 = vshrl.u32 %v6019, 16
      %v6189 = vrot.slane %v6187, 7
      %v6190 = vshll.u32 %v6019, 16
      %v6192 = vor.u32 %v6189, %v6190
      %v6193 = vrot.slane %v6189, 4
      %v6195 = vshrl.u32 %v6020, 16
      %v6197 = vrot.slane %v6195, 7
      %v6198 = vshll.u32 %v6020, 16
      %v6200 = vor.u32 %v6197, %v6198
      %v6201 = vsel %vm774, %v6193, %v6200
      %v6202 = vrot.slane %v6197, 4
      %v6204 = vshrl.u32 %v6021, 16
      %v6206 = vrot.slane %v6204, 7
      %v6207 = vshll.u32 %v6021, 16
      %v6209 = vor.u32 %v6206, %v6207
      %v6210 = vrot.slane %v6206, 4
      %v6212 = vshrl.u32 %v6022, 16
      %v6214 = vrot.slane %v6212, 7
      %v6215 = vshll.u32 %v6022, 16
      %v6217 = vor.u32 %v6214, %v6215
      %v6218 = vsel %vm774, %v6210, %v6217
      %v6219 = vrot.slane %v6214, 4
      %v6221 = vshrl.u32 %v6023, 16
      %v6223 = vrot.slane %v6221, 7
      %v6224 = vshll.u32 %v6023, 16
      %v6226 = vor.u32 %v6223, %v6224
      %v6227 = vrot.slane %v6223, 4
      %v6229 = vshrl.u32 %v6024, 16
      %v6231 = vrot.slane %v6229, 7
      %v6232 = vshll.u32 %v6024, 16
      %v6234 = vor.u32 %v6231, %v6232
      %v6235 = vsel %vm774, %v6227, %v6234
      %v6236 = vrot.slane %v6231, 4
      %v6238 = vshrl.u32 %v6025, 16
      %v6240 = vrot.slane %v6238, 7
      %v6241 = vshll.u32 %v6025, 16
      %v6243 = vor.u32 %v6240, %v6241
      %v6244 = vrot.slane %v6240, 4
      %v6246 = vshrl.u32 %v6026, 16
      %v6248 = vrot.slane %v6246, 7
      %v6249 = vshll.u32 %v6026, 16
      %v6251 = vor.u32 %v6248, %v6249
      %v6252 = vsel %vm774, %v6244, %v6251
      %v6253 = vrot.slane %v6248, 4
      %v6255 = vshrl.u32 %v6027, 16
      %v6257 = vrot.slane %v6255, 7
      %v6258 = vshll.u32 %v6027, 16
      %v6260 = vor.u32 %v6257, %v6258
      %v6261 = vrot.slane %v6257, 4
      %v6263 = vshrl.u32 %v6028, 16
      %v6265 = vrot.slane %v6263, 7
      %v6266 = vshll.u32 %v6028, 16
      %v6268 = vor.u32 %v6265, %v6266
      %v6269 = vsel %vm774, %v6261, %v6268
      %v6270 = vrot.slane %v6265, 4
      %v6272 = vshrl.u32 %v6029, 16
      %v6274 = vrot.slane %v6272, 7
      %v6275 = vshll.u32 %v6029, 16
      %v6277 = vor.u32 %v6274, %v6275
      %v6278 = vrot.slane %v6274, 4
      %v6280 = vshrl.u32 %v6030, 16
      %v6282 = vrot.slane %v6280, 7
      %v6283 = vshll.u32 %v6030, 16
      %v6285 = vor.u32 %v6282, %v6283
      %v6286 = vsel %vm774, %v6278, %v6285
      %v6287 = vrot.slane %v6282, 4
      %v6289 = vshrl.u32 %v6031, 16
      %v6291 = vrot.slane %v6289, 7
      %v6292 = vshll.u32 %v6031, 16
      %v6294 = vor.u32 %v6291, %v6292
      %v6295 = vrot.slane %v6291, 4
      %v6297 = vshrl.u32 %v6032, 16
      %v6299 = vrot.slane %v6297, 7
      %v6300 = vshll.u32 %v6032, 16
      %v6302 = vor.u32 %v6299, %v6300
      %v6303 = vsel %vm774, %v6295, %v6302
      %v6304 = vrot.slane %v6299, 4
      %s6353 = scalar_lea.vmem [#allocation3], 12
      %vm6354 = vcmask 125952
      %vm6355 = vmand %vm6354, %vm1097
      %v6356 = vld [vmem:[%s6353] sm:$0xf]
      %v6357 = vsel %vm6355, %v6039, %v6356
      %6358 = vst [vmem:[%s6353] sm:$0xf] %v6357
      %6359 = vst.msk [vmem:[%s6353 + $0x4] sm:$0xf] %vm5881, %v6048
      %vm6360 = vcmask 122880
      %vm6361 = vmand %vm6360, %vm772
      %v6362 = vld [vmem:[%s6353 + $0x8] sm:$0x1]
      %v6363 = vsel %vm6361, %v6049, %v6362
      %6364 = vst [vmem:[%s6353 + $0x8] sm:$0x1] %v6363
      %v6365 = vld [vmem:[%s6353 + $0xc] sm:$0xf]
      %v6366 = vsel %vm6355, %v6056, %v6365
      %6367 = vst [vmem:[%s6353 + $0xc] sm:$0xf] %v6366
      %6368 = vst.msk [vmem:[%s6353 + $0x10] sm:$0xf] %vm5881, %v6065
      %v6369 = vld [vmem:[%s6353 + $0x14] sm:$0x1]
      %v6370 = vsel %vm6361, %v6066, %v6369
      %6371 = vst [vmem:[%s6353 + $0x14] sm:$0x1] %v6370
      %v6372 = vld [vmem:[%s6353 + $0x18] sm:$0xf]
      %v6373 = vsel %vm6355, %v6073, %v6372
      %6374 = vst [vmem:[%s6353 + $0x18] sm:$0xf] %v6373
      %6375 = vst.msk [vmem:[%s6353 + $0x1c] sm:$0xf] %vm5881, %v6082
      %v6376 = vld [vmem:[%s6353 + $0x20] sm:$0x1]
      %v6377 = vsel %vm6361, %v6083, %v6376
      %6378 = vst [vmem:[%s6353 + $0x20] sm:$0x1] %v6377
      %v6379 = vld [vmem:[%s6353 + $0x24] sm:$0xf]
      %v6380 = vsel %vm6355, %v6090, %v6379
      %6381 = vst [vmem:[%s6353 + $0x24] sm:$0xf] %v6380
      %6382 = vst.msk [vmem:[%s6353 + $0x28] sm:$0xf] %vm5881, %v6099
      %v6383 = vld [vmem:[%s6353 + $0x2c] sm:$0x1]
      %v6384 = vsel %vm6361, %v6100, %v6383
      %6385 = vst [vmem:[%s6353 + $0x2c] sm:$0x1] %v6384
      %v6386 = vld [vmem:[%s6353 + $0x30] sm:$0xf]
      %v6387 = vsel %vm6355, %v6107, %v6386
      %6388 = vst [vmem:[%s6353 + $0x30] sm:$0xf] %v6387
      %6389 = vst.msk [vmem:[%s6353 + $0x34] sm:$0xf] %vm5881, %v6116
      %v6390 = vld [vmem:[%s6353 + $0x38] sm:$0x1]
      %v6391 = vsel %vm6361, %v6117, %v6390
      %6392 = vst [vmem:[%s6353 + $0x38] sm:$0x1] %v6391
      %v6393 = vld [vmem:[%s6353 + $0x3c] sm:$0xf]
      %v6394 = vsel %vm6355, %v6124, %v6393
      %6395 = vst [vmem:[%s6353 + $0x3c] sm:$0xf] %v6394
      %6396 = vst.msk [vmem:[%s6353 + $0x40] sm:$0xf] %vm5881, %v6133
      %v6397 = vld [vmem:[%s6353 + $0x44] sm:$0x1]
      %v6398 = vsel %vm6361, %v6134, %v6397
      %6399 = vst [vmem:[%s6353 + $0x44] sm:$0x1] %v6398
      %v6400 = vld [vmem:[%s6353 + $0x48] sm:$0xf]
      %v6401 = vsel %vm6355, %v6141, %v6400
      %6402 = vst [vmem:[%s6353 + $0x48] sm:$0xf] %v6401
      %6403 = vst.msk [vmem:[%s6353 + $0x4c] sm:$0xf] %vm5881, %v6150
      %v6404 = vld [vmem:[%s6353 + $0x50] sm:$0x1]
      %v6405 = vsel %vm6361, %v6151, %v6404
      %6406 = vst [vmem:[%s6353 + $0x50] sm:$0x1] %v6405
      %v6407 = vld [vmem:[%s6353 + $0x54] sm:$0xf]
      %v6408 = vsel %vm6355, %v6158, %v6407
      %6409 = vst [vmem:[%s6353 + $0x54] sm:$0xf] %v6408
      %6410 = vst.msk [vmem:[%s6353 + $0x58] sm:$0xf] %vm5881, %v6167
      %v6411 = vld [vmem:[%s6353 + $0x5c] sm:$0x1]
      %v6412 = vsel %vm6361, %v6168, %v6411
      %6413 = vst [vmem:[%s6353 + $0x5c] sm:$0x1] %v6412
      %v6414 = vld [vmem:[%s6353 + $0x60] sm:$0xf]
      %v6415 = vsel %vm6355, %v6175, %v6414
      %6416 = vst [vmem:[%s6353 + $0x60] sm:$0xf] %v6415
      %6417 = vst.msk [vmem:[%s6353 + $0x64] sm:$0xf] %vm5881, %v6184
      %v6418 = vld [vmem:[%s6353 + $0x68] sm:$0x1]
      %v6419 = vsel %vm6361, %v6185, %v6418
      %6420 = vst [vmem:[%s6353 + $0x68] sm:$0x1] %v6419
      %v6421 = vld [vmem:[%s6353 + $0x6c] sm:$0xf]
      %v6422 = vsel %vm6355, %v6192, %v6421
      %6423 = vst [vmem:[%s6353 + $0x6c] sm:$0xf] %v6422
      %6424 = vst.msk [vmem:[%s6353 + $0x70] sm:$0xf] %vm5881, %v6201
      %v6425 = vld [vmem:[%s6353 + $0x74] sm:$0x1]
      %v6426 = vsel %vm6361, %v6202, %v6425
      %6427 = vst [vmem:[%s6353 + $0x74] sm:$0x1] %v6426
      %v6428 = vld [vmem:[%s6353 + $0x78] sm:$0xf]
      %v6429 = vsel %vm6355, %v6209, %v6428
      %6430 = vst [vmem:[%s6353 + $0x78] sm:$0xf] %v6429
      %6431 = vst.msk [vmem:[%s6353 + $0x7c] sm:$0xf] %vm5881, %v6218
      %v6432 = vld [vmem:[%s6353 + $0x80] sm:$0x1]
      %v6433 = vsel %vm6361, %v6219, %v6432
      %6434 = vst [vmem:[%s6353 + $0x80] sm:$0x1] %v6433
      %v6435 = vld [vmem:[%s6353 + $0x84] sm:$0xf]
      %v6436 = vsel %vm6355, %v6226, %v6435
      %6437 = vst [vmem:[%s6353 + $0x84] sm:$0xf] %v6436
      %6438 = vst.msk [vmem:[%s6353 + $0x88] sm:$0xf] %vm5881, %v6235
      %v6439 = vld [vmem:[%s6353 + $0x8c] sm:$0x1]
      %v6440 = vsel %vm6361, %v6236, %v6439
      %6441 = vst [vmem:[%s6353 + $0x8c] sm:$0x1] %v6440
      %v6442 = vld [vmem:[%s6353 + $0x90] sm:$0xf]
      %v6443 = vsel %vm6355, %v6243, %v6442
      %6444 = vst [vmem:[%s6353 + $0x90] sm:$0xf] %v6443
      %6445 = vst.msk [vmem:[%s6353 + $0x94] sm:$0xf] %vm5881, %v6252
      %v6446 = vld [vmem:[%s6353 + $0x98] sm:$0x1]
      %v6447 = vsel %vm6361, %v6253, %v6446
      %6448 = vst [vmem:[%s6353 + $0x98] sm:$0x1] %v6447
      %v6449 = vld [vmem:[%s6353 + $0x9c] sm:$0xf]
      %v6450 = vsel %vm6355, %v6260, %v6449
      %6451 = vst [vmem:[%s6353 + $0x9c] sm:$0xf] %v6450
      %6452 = vst.msk [vmem:[%s6353 + $0xa0] sm:$0xf] %vm5881, %v6269
      %v6453 = vld [vmem:[%s6353 + $0xa4] sm:$0x1]
      %v6454 = vsel %vm6361, %v6270, %v6453
      %6455 = vst [vmem:[%s6353 + $0xa4] sm:$0x1] %v6454
      %v6456 = vld [vmem:[%s6353 + $0xa8] sm:$0xf]
      %v6457 = vsel %vm6355, %v6277, %v6456
      %6458 = vst [vmem:[%s6353 + $0xa8] sm:$0xf] %v6457
      %6459 = vst.msk [vmem:[%s6353 + $0xac] sm:$0xf] %vm5881, %v6286
      %v6460 = vld [vmem:[%s6353 + $0xb0] sm:$0x1]
      %v6461 = vsel %vm6361, %v6287, %v6460
      %6462 = vst [vmem:[%s6353 + $0xb0] sm:$0x1] %v6461
      %v6463 = vld [vmem:[%s6353 + $0xb4] sm:$0xf]
      %v6464 = vsel %vm6355, %v6294, %v6463
      %6465 = vst [vmem:[%s6353 + $0xb4] sm:$0xf] %v6464
      %6466 = vst.msk [vmem:[%s6353 + $0xb8] sm:$0xf] %vm5881, %v6303
      %v6467 = vld [vmem:[%s6353 + $0xbc] sm:$0x1]
      %v6468 = vsel %vm6361, %v6304, %v6467
      %6469 = vst [vmem:[%s6353 + $0xbc] sm:$0x1] %v6468
      %v6470 = vpack.c.bf16 %v463, %v462
      %v6471 = vpack.c.bf16 %v465, %v464
      %v6472 = vpack.c.bf16 %v467, %v466
      %v6473 = vpack.c.bf16 %v469, %v468
      %v6474 = vpack.c.bf16 %v471, %v470
      %v6475 = vpack.c.bf16 %v473, %v472
      %v6476 = vpack.c.bf16 %v475, %v474
      %v6477 = vpack.c.bf16 %v477, %v476
      %v6478 = vpack.c.bf16 %v495, %v494
      %v6479 = vpack.c.bf16 %v497, %v496
      %v6480 = vpack.c.bf16 %v499, %v498
      %v6481 = vpack.c.bf16 %v501, %v500
      %v6482 = vpack.c.bf16 %v503, %v502
      %v6483 = vpack.c.bf16 %v505, %v504
      %v6484 = vpack.c.bf16 %v507, %v506
      %v6485 = vpack.c.bf16 %v509, %v508
      %v6486 = vld [vmem:[%s4] sm:$0xf]
      %v6488 = vsel %vm1699, %v6470, 0
      %v6491 = vsel %vm1699, %v6471, 0
      %v6494 = vsel %vm1699, %v6472, 0
      %v6497 = vsel %vm1699, %v6473, 0
      %v6500 = vsel %vm1699, %v6474, 0
      %v6503 = vsel %vm1699, %v6475, 0
      %v6506 = vsel %vm1699, %v6476, 0
      %v6509 = vsel %vm1699, %v6477, 0
      %v6512 = vsel %vm1699, %v6478, 0
      %v6515 = vsel %vm1699, %v6479, 0
      %v6518 = vsel %vm1699, %v6480, 0
      %v6521 = vsel %vm1699, %v6481, 0
      %v6524 = vsel %vm1699, %v6482, 0
      %v6527 = vsel %vm1699, %v6483, 0
      %v6530 = vsel %vm1699, %v6484, 0
      %v6533 = vsel %vm1699, %v6485, 0
      %v6536 = vsel %vm1748, %v6486, 0
      %6538 = vmatprep.subr.bf16.mxu0 0
      %6539 = vmatpush1.bf16.msra.mxu0 %v6536
      %6540 = vmatprep.subr.bf16.mxu0 0
      %6541 = vmatpush1.bf16.msra.mxu0 0
      %6542 = vmatprep.subr.bf16.mxu0 0
      %6543 = vmatpush1.bf16.msra.mxu0 0
      %6544 = vmatprep.subr.bf16.mxu0 0
      %6545 = vmatpush1.bf16.msra.mxu0 0
      %6546 = vmatprep.subr.bf16.mxu0 0
      %6547 = vmatpush1.bf16.msra.mxu0 0
      %6548 = vmatprep.subr.bf16.mxu0 0
      %6549 = vmatpush1.bf16.msra.mxu0 0
      %6550 = vmatprep.subr.bf16.mxu0 0
      %6551 = vmatpush1.bf16.msra.mxu0 0
      %6552 = vmatprep.subr.bf16.mxu0 0
      %6553 = vmatpush1.bf16.msra.mxu0 0
      %6554 = vmatprep.subr.bf16.mxu0 0
      %6555 = vmatpush1.bf16.msra.mxu0 0
      %6556 = vmatprep.subr.bf16.mxu0 0
      %6557 = vmatpush1.bf16.msra.mxu0 0
      %6558 = vmatprep.subr.bf16.mxu0 0
      %6559 = vmatpush1.bf16.msra.mxu0 0
      %6560 = vmatprep.subr.bf16.mxu0 0
      %6561 = vmatpush1.bf16.msra.mxu0 0
      %6562 = vmatprep.subr.bf16.mxu0 0
      %6563 = vmatpush1.bf16.msra.mxu0 0
      %6564 = vmatprep.subr.bf16.mxu0 0
      %6565 = vmatpush1.bf16.msra.mxu0 0
      %6566 = vmatprep.subr.bf16.mxu0 0
      %6567 = vmatpush1.bf16.msra.mxu0 0
      %6568 = vmatprep.subr.bf16.mxu0 0
      %6569 = vmatpush1.bf16.msra.mxu0 0
      %6570 = vmatprep.mubr.bf16.mxu0 0
      %6571 = vmatmul.mubr.bf16.gmra.mrb[0].mxu0 %v6488
      %v6572 = vpop.f32.mrb[0].mxu0
      %v6573 = vadd.f32 0.0, %v6572
      %v6574 = vpop.f32.mrb[0].mxu0
      %v6575 = vpop.f32.mrb[0].mxu0
      %v6576 = vadd.f32 0.0, %v6575
      %v6577 = vpop.f32.mrb[0].mxu0
      %6578 = vmatprep.mubr.bf16.mxu0 0
      %6579 = vmatmul.mubr.bf16.gmra.mrb[0].mxu0 %v6491
      %v6580 = vpop.f32.mrb[0].mxu0
      %v6581 = vadd.f32 0.0, %v6580
      %v6582 = vpop.f32.mrb[0].mxu0
      %v6583 = vpop.f32.mrb[0].mxu0
      %v6584 = vadd.f32 0.0, %v6583
      %v6585 = vpop.f32.mrb[0].mxu0
      %6586 = vmatprep.mubr.bf16.mxu0 0
      %6587 = vmatmul.mubr.bf16.gmra.mrb[0].mxu0 %v6494
      %v6588 = vpop.f32.mrb[0].mxu0
      %v6589 = vadd.f32 0.0, %v6588
      %v6590 = vpop.f32.mrb[0].mxu0
      %v6591 = vpop.f32.mrb[0].mxu0
      %v6592 = vadd.f32 0.0, %v6591
      %v6593 = vpop.f32.mrb[0].mxu0
      %6594 = vmatprep.mubr.bf16.mxu0 0
      %6595 = vmatmul.mubr.bf16.gmra.mrb[0].mxu0 %v6497
      %v6596 = vpop.f32.mrb[0].mxu0
      %v6597 = vadd.f32 0.0, %v6596
      %v6598 = vpop.f32.mrb[0].mxu0
      %v6599 = vpop.f32.mrb[0].mxu0
      %v6600 = vadd.f32 0.0, %v6599
      %v6601 = vpop.f32.mrb[0].mxu0
      %6602 = vmatprep.mubr.bf16.mxu0 0
      %6603 = vmatmul.mubr.bf16.gmra.mrb[0].mxu0 %v6500
      %v6604 = vpop.f32.mrb[0].mxu0
      %v6605 = vadd.f32 0.0, %v6604
      %v6606 = vpop.f32.mrb[0].mxu0
      %v6607 = vpop.f32.mrb[0].mxu0
      %v6608 = vadd.f32 0.0, %v6607
      %v6609 = vpop.f32.mrb[0].mxu0
      %6610 = vmatprep.mubr.bf16.mxu0 0
      %6611 = vmatmul.mubr.bf16.gmra.mrb[0].mxu0 %v6503
      %v6612 = vpop.f32.mrb[0].mxu0
      %v6613 = vadd.f32 0.0, %v6612
      %v6614 = vpop.f32.mrb[0].mxu0
      %v6615 = vpop.f32.mrb[0].mxu0
      %v6616 = vadd.f32 0.0, %v6615
      %v6617 = vpop.f32.mrb[0].mxu0
      %6618 = vmatprep.mubr.bf16.mxu0 0
      %6619 = vmatmul.mubr.bf16.gmra.mrb[0].mxu0 %v6506
      %v6620 = vpop.f32.mrb[0].mxu0
      %v6621 = vadd.f32 0.0, %v6620
      %v6622 = vpop.f32.mrb[0].mxu0
      %v6623 = vpop.f32.mrb[0].mxu0
      %v6624 = vadd.f32 0.0, %v6623
      %v6625 = vpop.f32.mrb[0].mxu0
      %6626 = vmatprep.mubr.bf16.mxu0 0
      %6627 = vmatmul.mubr.bf16.gmra.mrb[0].mxu0 %v6509
      %v6628 = vpop.f32.mrb[0].mxu0
      %v6629 = vadd.f32 0.0, %v6628
      %v6630 = vpop.f32.mrb[0].mxu0
      %v6631 = vpop.f32.mrb[0].mxu0
      %v6632 = vadd.f32 0.0, %v6631
      %v6633 = vpop.f32.mrb[0].mxu0
      %6634 = vmatprep.mubr.bf16.mxu0 0
      %6635 = vmatmul.mubr.bf16.gmra.mrb[0].mxu0 %v6512
      %v6636 = vpop.f32.mrb[0].mxu0
      %v6637 = vadd.f32 0.0, %v6636
      %v6638 = vpop.f32.mrb[0].mxu0
      %v6639 = vpop.f32.mrb[0].mxu0
      %v6640 = vadd.f32 0.0, %v6639
      %v6641 = vpop.f32.mrb[0].mxu0
      %6642 = vmatprep.mubr.bf16.mxu0 0
      %6643 = vmatmul.mubr.bf16.gmra.mrb[0].mxu0 %v6515
      %v6644 = vpop.f32.mrb[0].mxu0
      %v6645 = vadd.f32 0.0, %v6644
      %v6646 = vpop.f32.mrb[0].mxu0
      %v6647 = vpop.f32.mrb[0].mxu0
      %v6648 = vadd.f32 0.0, %v6647
      %v6649 = vpop.f32.mrb[0].mxu0
      %6650 = vmatprep.mubr.bf16.mxu0 0
      %6651 = vmatmul.mubr.bf16.gmra.mrb[0].mxu0 %v6518
      %v6652 = vpop.f32.mrb[0].mxu0
      %v6653 = vadd.f32 0.0, %v6652
      %v6654 = vpop.f32.mrb[0].mxu0
      %v6655 = vpop.f32.mrb[0].mxu0
      %v6656 = vadd.f32 0.0, %v6655
      %v6657 = vpop.f32.mrb[0].mxu0
      %6658 = vmatprep.mubr.bf16.mxu0 0
      %6659 = vmatmul.mubr.bf16.gmra.mrb[0].mxu0 %v6521
      %v6660 = vpop.f32.mrb[0].mxu0
      %v6661 = vadd.f32 0.0, %v6660
      %v6662 = vpop.f32.mrb[0].mxu0
      %v6663 = vpop.f32.mrb[0].mxu0
      %v6664 = vadd.f32 0.0, %v6663
      %v6665 = vpop.f32.mrb[0].mxu0
      %6666 = vmatprep.mubr.bf16.mxu0 0
      %6667 = vmatmul.mubr.bf16.gmra.mrb[0].mxu0 %v6524
      %v6668 = vpop.f32.mrb[0].mxu0
      %v6669 = vadd.f32 0.0, %v6668
      %v6670 = vpop.f32.mrb[0].mxu0
      %v6671 = vpop.f32.mrb[0].mxu0
      %v6672 = vadd.f32 0.0, %v6671
      %v6673 = vpop.f32.mrb[0].mxu0
      %6674 = vmatprep.mubr.bf16.mxu0 0
      %6675 = vmatmul.mubr.bf16.gmra.mrb[0].mxu0 %v6527
      %v6676 = vpop.f32.mrb[0].mxu0
      %v6677 = vadd.f32 0.0, %v6676
      %v6678 = vpop.f32.mrb[0].mxu0
      %v6679 = vpop.f32.mrb[0].mxu0
      %v6680 = vadd.f32 0.0, %v6679
      %v6681 = vpop.f32.mrb[0].mxu0
      %6682 = vmatprep.mubr.bf16.mxu0 0
      %6683 = vmatmul.mubr.bf16.gmra.mrb[0].mxu0 %v6530
      %v6684 = vpop.f32.mrb[0].mxu0
      %v6685 = vadd.f32 0.0, %v6684
      %v6686 = vpop.f32.mrb[0].mxu0
      %v6687 = vpop.f32.mrb[0].mxu0
      %v6688 = vadd.f32 0.0, %v6687
      %v6689 = vpop.f32.mrb[0].mxu0
      %6690 = vmatprep.mubr.bf16.mxu0 0
      %6691 = vmatmul.mubr.bf16.gmra.mrb[0].mxu0 %v6533
      %v6692 = vpop.f32.mrb[0].mxu0
      %v6693 = vadd.f32 0.0, %v6692
      %v6694 = vpop.f32.mrb[0].mxu0
      %v6695 = vpop.f32.mrb[0].mxu0
      %v6696 = vadd.f32 0.0, %v6695
      %v6697 = vpop.f32.mrb[0].mxu0
      %6698 = vdwg.mxu0
      %v6699 = vld [vmem:[%s9] sm:$0x1]
      %v6701 = vlaneseq
      %v6702 = vshrl.u32 %v6701, 7
      %v6703 = vsub.s32 0, %v6702
      %v6704 = vrot.slane %v6699, %v6703
      %v6706 = vmul.f32 %v6573, %v6704
      %v6707 = vmul.f32 %v6576, %v6704
      %v6708 = vmul.f32 %v6581, %v6704
      %v6709 = vmul.f32 %v6584, %v6704
      %v6710 = vmul.f32 %v6589, %v6704
      %v6711 = vmul.f32 %v6592, %v6704
      %v6712 = vmul.f32 %v6597, %v6704
      %v6713 = vmul.f32 %v6600, %v6704
      %v6714 = vmul.f32 %v6605, %v6704
      %v6715 = vmul.f32 %v6608, %v6704
      %v6716 = vmul.f32 %v6613, %v6704
      %v6717 = vmul.f32 %v6616, %v6704
      %v6718 = vmul.f32 %v6621, %v6704
      %v6719 = vmul.f32 %v6624, %v6704
      %v6720 = vmul.f32 %v6629, %v6704
      %v6721 = vmul.f32 %v6632, %v6704
      %v6722 = vmul.f32 %v6637, %v6704
      %v6723 = vmul.f32 %v6640, %v6704
      %v6724 = vmul.f32 %v6645, %v6704
      %v6725 = vmul.f32 %v6648, %v6704
      %v6726 = vmul.f32 %v6653, %v6704
      %v6727 = vmul.f32 %v6656, %v6704
      %v6728 = vmul.f32 %v6661, %v6704
      %v6729 = vmul.f32 %v6664, %v6704
      %v6730 = vmul.f32 %v6669, %v6704
      %v6731 = vmul.f32 %v6672, %v6704
      %v6732 = vmul.f32 %v6677, %v6704
      %v6733 = vmul.f32 %v6680, %v6704
      %v6734 = vmul.f32 %v6685, %v6704
      %v6735 = vmul.f32 %v6688, %v6704
      %v6736 = vmul.f32 %v6693, %v6704
      %v6737 = vmul.f32 %v6696, %v6704
      %v6738 = vld [vmem:[%s10] sm:$0x1]
      %v6740 = vlaneseq
      %v6741 = vshrl.u32 %v6740, 7
      %v6742 = vsub.s32 0, %v6741
      %v6743 = vrot.slane %v6738, %v6742
      %v6745 = vadd.f32 %v6706, %v6743
      %v6746 = vadd.f32 %v6707, %v6743
      %v6747 = vadd.f32 %v6708, %v6743
      %v6748 = vadd.f32 %v6709, %v6743
      %v6749 = vadd.f32 %v6710, %v6743
      %v6750 = vadd.f32 %v6711, %v6743
      %v6751 = vadd.f32 %v6712, %v6743
      %v6752 = vadd.f32 %v6713, %v6743
      %v6753 = vadd.f32 %v6714, %v6743
      %v6754 = vadd.f32 %v6715, %v6743
      %v6755 = vadd.f32 %v6716, %v6743
      %v6756 = vadd.f32 %v6717, %v6743
      %v6757 = vadd.f32 %v6718, %v6743
      %v6758 = vadd.f32 %v6719, %v6743
      %v6759 = vadd.f32 %v6720, %v6743
      %v6760 = vadd.f32 %v6721, %v6743
      %v6761 = vadd.f32 %v6722, %v6743
      %v6762 = vadd.f32 %v6723, %v6743
      %v6763 = vadd.f32 %v6724, %v6743
      %v6764 = vadd.f32 %v6725, %v6743
      %v6765 = vadd.f32 %v6726, %v6743
      %v6766 = vadd.f32 %v6727, %v6743
      %v6767 = vadd.f32 %v6728, %v6743
      %v6768 = vadd.f32 %v6729, %v6743
      %v6769 = vadd.f32 %v6730, %v6743
      %v6770 = vadd.f32 %v6731, %v6743
      %v6771 = vadd.f32 %v6732, %v6743
      %v6772 = vadd.f32 %v6733, %v6743
      %v6773 = vadd.f32 %v6734, %v6743
      %v6774 = vadd.f32 %v6735, %v6743
      %v6775 = vadd.f32 %v6736, %v6743
      %v6776 = vadd.f32 %v6737, %v6743
      %v6777 = vld [vmem:[#allocation3] sm:$0xf]
      %v6778 = vld [vmem:[#allocation3 + $0x4] sm:$0xf]
      %v6779 = vld [vmem:[#allocation3 + $0xc] sm:$0xf]
      %v6780 = vld [vmem:[#allocation3 + $0x10] sm:$0xf]
      %v6781 = vld [vmem:[#allocation3 + $0x18] sm:$0xf]
      %v6782 = vld [vmem:[#allocation3 + $0x1c] sm:$0xf]
      %v6783 = vld [vmem:[#allocation3 + $0x24] sm:$0xf]
      %v6784 = vld [vmem:[#allocation3 + $0x28] sm:$0xf]
      %v6785 = vld [vmem:[#allocation3 + $0x30] sm:$0xf]
      %v6786 = vld [vmem:[#allocation3 + $0x34] sm:$0xf]
      %v6787 = vld [vmem:[#allocation3 + $0x3c] sm:$0xf]
      %v6788 = vld [vmem:[#allocation3 + $0x40] sm:$0xf]
      %v6789 = vld [vmem:[#allocation3 + $0x48] sm:$0xf]
      %v6790 = vld [vmem:[#allocation3 + $0x4c] sm:$0xf]
      %v6791 = vld [vmem:[#allocation3 + $0x54] sm:$0xf]
      %v6792 = vld [vmem:[#allocation3 + $0x58] sm:$0xf]
      %v6793 = vld [vmem:[#allocation3 + $0x60] sm:$0xf]
      %v6794 = vld [vmem:[#allocation3 + $0x64] sm:$0xf]
      %v6795 = vld [vmem:[#allocation3 + $0x6c] sm:$0xf]
      %v6796 = vld [vmem:[#allocation3 + $0x70] sm:$0xf]
      %v6797 = vld [vmem:[#allocation3 + $0x78] sm:$0xf]
      %v6798 = vld [vmem:[#allocation3 + $0x7c] sm:$0xf]
      %v6799 = vld [vmem:[#allocation3 + $0x84] sm:$0xf]
      %v6800 = vld [vmem:[#allocation3 + $0x88] sm:$0xf]
      %v6801 = vld [vmem:[#allocation3 + $0x90] sm:$0xf]
      %v6802 = vld [vmem:[#allocation3 + $0x94] sm:$0xf]
      %v6803 = vld [vmem:[#allocation3 + $0x9c] sm:$0xf]
      %v6804 = vld [vmem:[#allocation3 + $0xa0] sm:$0xf]
      %v6805 = vld [vmem:[#allocation3 + $0xa8] sm:$0xf]
      %v6806 = vld [vmem:[#allocation3 + $0xac] sm:$0xf]
      %v6807 = vld [vmem:[#allocation3 + $0xb4] sm:$0xf]
      %v6808 = vld [vmem:[#allocation3 + $0xb8] sm:$0xf]
      %v6809 = vld [vmem:[%s3] sm:$0xf]
      %v6810 = vld [vmem:[%s3 + $0x4] sm:$0xf]
      %v6843 = vunpack.c.l.b16 %v6777
      %v6844 = vunpack.c.l.b16 %v6778
      %v6845 = vunpack.c.l.b16 %v6779
      %v6846 = vunpack.c.l.b16 %v6780
      %v6847 = vunpack.c.l.b16 %v6781
      %v6848 = vunpack.c.l.b16 %v6782
      %v6849 = vunpack.c.l.b16 %v6783
      %v6850 = vunpack.c.l.b16 %v6784
      %v6851 = vunpack.c.l.b16 %v6785
      %v6852 = vunpack.c.l.b16 %v6786
      %v6853 = vunpack.c.l.b16 %v6787
      %v6854 = vunpack.c.l.b16 %v6788
      %v6855 = vunpack.c.l.b16 %v6789
      %v6856 = vunpack.c.l.b16 %v6790
      %v6857 = vunpack.c.l.b16 %v6791
      %v6858 = vunpack.c.l.b16 %v6792
      %v6859 = vunpack.c.l.b16 %v6793
      %v6860 = vunpack.c.l.b16 %v6794
      %v6861 = vunpack.c.l.b16 %v6795
      %v6862 = vunpack.c.l.b16 %v6796
      %v6863 = vunpack.c.l.b16 %v6797
      %v6864 = vunpack.c.l.b16 %v6798
      %v6865 = vunpack.c.l.b16 %v6799
      %v6866 = vunpack.c.l.b16 %v6800
      %v6867 = vunpack.c.l.b16 %v6801
      %v6868 = vunpack.c.l.b16 %v6802
      %v6869 = vunpack.c.l.b16 %v6803
      %v6870 = vunpack.c.l.b16 %v6804
      %v6871 = vunpack.c.l.b16 %v6805
      %v6872 = vunpack.c.l.b16 %v6806
      %v6873 = vunpack.c.l.b16 %v6807
      %v6874 = vunpack.c.l.b16 %v6808
      %v6875 = vpack.c.b16 %v6844, %v6843
      %v6876 = vpack.c.b16 %v6846, %v6845
      %v6877 = vpack.c.b16 %v6848, %v6847
      %v6878 = vpack.c.b16 %v6850, %v6849
      %v6879 = vpack.c.b16 %v6852, %v6851
      %v6880 = vpack.c.b16 %v6854, %v6853
      %v6881 = vpack.c.b16 %v6856, %v6855
      %v6882 = vpack.c.b16 %v6858, %v6857
      %v6883 = vpack.c.b16 %v6860, %v6859
      %v6884 = vpack.c.b16 %v6862, %v6861
      %v6885 = vpack.c.b16 %v6864, %v6863
      %v6886 = vpack.c.b16 %v6866, %v6865
      %v6887 = vpack.c.b16 %v6868, %v6867
      %v6888 = vpack.c.b16 %v6870, %v6869
      %v6889 = vpack.c.b16 %v6872, %v6871
      %v6890 = vpack.c.b16 %v6874, %v6873
      %v6893 = vunpack.c.l.b16 %v6809
      %v6894 = vunpack.c.l.b16 %v6810
      %v6895 = vpack.c.b16 %v6894, %v6893
      %vm6897 = vcmask 130048
      %v6899 = vsel %vm6897, %v6875, 0
      %v6902 = vsel %vm6897, %v6876, 0
      %v6905 = vsel %vm6897, %v6877, 0
      %v6908 = vsel %vm6897, %v6878, 0
      %v6911 = vsel %vm6897, %v6879, 0
      %v6914 = vsel %vm6897, %v6880, 0
      %v6917 = vsel %vm6897, %v6881, 0
      %v6920 = vsel %vm6897, %v6882, 0
      %v6923 = vsel %vm6897, %v6883, 0
      %v6926 = vsel %vm6897, %v6884, 0
      %v6929 = vsel %vm6897, %v6885, 0
      %v6932 = vsel %vm6897, %v6886, 0
      %v6935 = vsel %vm6897, %v6887, 0
      %v6938 = vsel %vm6897, %v6888, 0
      %v6941 = vsel %vm6897, %v6889, 0
      %v6944 = vsel %vm6897, %v6890, 0
      %6946 = vmatprep.subr.bf16.mxu0 0
      %6947 = vmatpush1.bf16.msra.mxu0 %v6895
      %6948 = vmatprep.subr.bf16.mxu0 0
      %6949 = vmatpush1.bf16.msra.mxu0 0
      %6950 = vmatprep.subr.bf16.mxu0 0
      %6951 = vmatpush1.bf16.msra.mxu0 0
      %6952 = vmatprep.subr.bf16.mxu0 0
      %6953 = vmatpush1.bf16.msra.mxu0 0
      %6954 = vmatprep.subr.bf16.mxu0 0
      %6955 = vmatpush1.bf16.msra.mxu0 0
      %6956 = vmatprep.subr.bf16.mxu0 0
      %6957 = vmatpush1.bf16.msra.mxu0 0
      %6958 = vmatprep.subr.bf16.mxu0 0
      %6959 = vmatpush1.bf16.msra.mxu0 0
      %6960 = vmatprep.subr.bf16.mxu0 0
      %6961 = vmatpush1.bf16.msra.mxu0 0
      %6962 = vmatprep.subr.bf16.mxu0 0
      %6963 = vmatpush1.bf16.msra.mxu0 0
      %6964 = vmatprep.subr.bf16.mxu0 0
      %6965 = vmatpush1.bf16.msra.mxu0 0
      %6966 = vmatprep.subr.bf16.mxu0 0
      %6967 = vmatpush1.bf16.msra.mxu0 0
      %6968 = vmatprep.subr.bf16.mxu0 0
      %6969 = vmatpush1.bf16.msra.mxu0 0
      %6970 = vmatprep.subr.bf16.mxu0 0
      %6971 = vmatpush1.bf16.msra.mxu0 0
      %6972 = vmatprep.subr.bf16.mxu0 0
      %6973 = vmatpush1.bf16.msra.mxu0 0
      %6974 = vmatprep.subr.bf16.mxu0 0
      %6975 = vmatpush1.bf16.msra.mxu0 0
      %6976 = vmatprep.subr.bf16.mxu0 0
      %6977 = vmatpush1.bf16.msra.mxu0 0
      %6978 = vmatprep.mubr.bf16.mxu0 0
      %6979 = vmatmul.mubr.bf16.gmra.mrb[0].mxu0 %v6899
      %v6980 = vpop.f32.mrb[0].mxu0
      %v6981 = vadd.f32 0.0, %v6980
      %v6982 = vpop.f32.mrb[0].mxu0
      %v6983 = vpop.f32.mrb[0].mxu0
      %v6984 = vadd.f32 0.0, %v6983
      %v6985 = vpop.f32.mrb[0].mxu0
      %6986 = vmatprep.mubr.bf16.mxu0 0
      %6987 = vmatmul.mubr.bf16.gmra.mrb[0].mxu0 %v6902
      %v6988 = vpop.f32.mrb[0].mxu0
      %v6989 = vadd.f32 0.0, %v6988
      %v6990 = vpop.f32.mrb[0].mxu0
      %v6991 = vpop.f32.mrb[0].mxu0
      %v6992 = vadd.f32 0.0, %v6991
      %v6993 = vpop.f32.mrb[0].mxu0
      %6994 = vmatprep.mubr.bf16.mxu0 0
      %6995 = vmatmul.mubr.bf16.gmra.mrb[0].mxu0 %v6905
      %v6996 = vpop.f32.mrb[0].mxu0
      %v6997 = vadd.f32 0.0, %v6996
      %v6998 = vpop.f32.mrb[0].mxu0
      %v6999 = vpop.f32.mrb[0].mxu0
      %v7000 = vadd.f32 0.0, %v6999
      %v7001 = vpop.f32.mrb[0].mxu0
      %7002 = vmatprep.mubr.bf16.mxu0 0
      %7003 = vmatmul.mubr.bf16.gmra.mrb[0].mxu0 %v6908
      %v7004 = vpop.f32.mrb[0].mxu0
      %v7005 = vadd.f32 0.0, %v7004
      %v7006 = vpop.f32.mrb[0].mxu0
      %v7007 = vpop.f32.mrb[0].mxu0
      %v7008 = vadd.f32 0.0, %v7007
      %v7009 = vpop.f32.mrb[0].mxu0
      %7010 = vmatprep.mubr.bf16.mxu0 0
      %7011 = vmatmul.mubr.bf16.gmra.mrb[0].mxu0 %v6911
      %v7012 = vpop.f32.mrb[0].mxu0
      %v7013 = vadd.f32 0.0, %v7012
      %v7014 = vpop.f32.mrb[0].mxu0
      %v7015 = vpop.f32.mrb[0].mxu0
      %v7016 = vadd.f32 0.0, %v7015
      %v7017 = vpop.f32.mrb[0].mxu0
      %7018 = vmatprep.mubr.bf16.mxu0 0
      %7019 = vmatmul.mubr.bf16.gmra.mrb[0].mxu0 %v6914
      %v7020 = vpop.f32.mrb[0].mxu0
      %v7021 = vadd.f32 0.0, %v7020
      %v7022 = vpop.f32.mrb[0].mxu0
      %v7023 = vpop.f32.mrb[0].mxu0
      %v7024 = vadd.f32 0.0, %v7023
      %v7025 = vpop.f32.mrb[0].mxu0
      %7026 = vmatprep.mubr.bf16.mxu0 0
      %7027 = vmatmul.mubr.bf16.gmra.mrb[0].mxu0 %v6917
      %v7028 = vpop.f32.mrb[0].mxu0
      %v7029 = vadd.f32 0.0, %v7028
      %v7030 = vpop.f32.mrb[0].mxu0
      %v7031 = vpop.f32.mrb[0].mxu0
      %v7032 = vadd.f32 0.0, %v7031
      %v7033 = vpop.f32.mrb[0].mxu0
      %7034 = vmatprep.mubr.bf16.mxu0 0
      %7035 = vmatmul.mubr.bf16.gmra.mrb[0].mxu0 %v6920
      %v7036 = vpop.f32.mrb[0].mxu0
      %v7037 = vadd.f32 0.0, %v7036
      %v7038 = vpop.f32.mrb[0].mxu0
      %v7039 = vpop.f32.mrb[0].mxu0
      %v7040 = vadd.f32 0.0, %v7039
      %v7041 = vpop.f32.mrb[0].mxu0
      %7042 = vmatprep.mubr.bf16.mxu0 0
      %7043 = vmatmul.mubr.bf16.gmra.mrb[0].mxu0 %v6923
      %v7044 = vpop.f32.mrb[0].mxu0
      %v7045 = vadd.f32 0.0, %v7044
      %v7046 = vpop.f32.mrb[0].mxu0
      %v7047 = vpop.f32.mrb[0].mxu0
      %v7048 = vadd.f32 0.0, %v7047
      %v7049 = vpop.f32.mrb[0].mxu0
      %7050 = vmatprep.mubr.bf16.mxu0 0
      %7051 = vmatmul.mubr.bf16.gmra.mrb[0].mxu0 %v6926
      %v7052 = vpop.f32.mrb[0].mxu0
      %v7053 = vadd.f32 0.0, %v7052
      %v7054 = vpop.f32.mrb[0].mxu0
      %v7055 = vpop.f32.mrb[0].mxu0
      %v7056 = vadd.f32 0.0, %v7055
      %v7057 = vpop.f32.mrb[0].mxu0
      %7058 = vmatprep.mubr.bf16.mxu0 0
      %7059 = vmatmul.mubr.bf16.gmra.mrb[0].mxu0 %v6929
      %v7060 = vpop.f32.mrb[0].mxu0
      %v7061 = vadd.f32 0.0, %v7060
      %v7062 = vpop.f32.mrb[0].mxu0
      %v7063 = vpop.f32.mrb[0].mxu0
      %v7064 = vadd.f32 0.0, %v7063
      %v7065 = vpop.f32.mrb[0].mxu0
      %7066 = vmatprep.mubr.bf16.mxu0 0
      %7067 = vmatmul.mubr.bf16.gmra.mrb[0].mxu0 %v6932
      %v7068 = vpop.f32.mrb[0].mxu0
      %v7069 = vadd.f32 0.0, %v7068
      %v7070 = vpop.f32.mrb[0].mxu0
      %v7071 = vpop.f32.mrb[0].mxu0
      %v7072 = vadd.f32 0.0, %v7071
      %v7073 = vpop.f32.mrb[0].mxu0
      %7074 = vmatprep.mubr.bf16.mxu0 0
      %7075 = vmatmul.mubr.bf16.gmra.mrb[0].mxu0 %v6935
      %v7076 = vpop.f32.mrb[0].mxu0
      %v7077 = vadd.f32 0.0, %v7076
      %v7078 = vpop.f32.mrb[0].mxu0
      %v7079 = vpop.f32.mrb[0].mxu0
      %v7080 = vadd.f32 0.0, %v7079
      %v7081 = vpop.f32.mrb[0].mxu0
      %7082 = vmatprep.mubr.bf16.mxu0 0
      %7083 = vmatmul.mubr.bf16.gmra.mrb[0].mxu0 %v6938
      %v7084 = vpop.f32.mrb[0].mxu0
      %v7085 = vadd.f32 0.0, %v7084
      %v7086 = vpop.f32.mrb[0].mxu0
      %v7087 = vpop.f32.mrb[0].mxu0
      %v7088 = vadd.f32 0.0, %v7087
      %v7089 = vpop.f32.mrb[0].mxu0
      %7090 = vmatprep.mubr.bf16.mxu0 0
      %7091 = vmatmul.mubr.bf16.gmra.mrb[0].mxu0 %v6941
      %v7092 = vpop.f32.mrb[0].mxu0
      %v7093 = vadd.f32 0.0, %v7092
      %v7094 = vpop.f32.mrb[0].mxu0
      %v7095 = vpop.f32.mrb[0].mxu0
      %v7096 = vadd.f32 0.0, %v7095
      %v7097 = vpop.f32.mrb[0].mxu0
      %7098 = vmatprep.mubr.bf16.mxu0 0
      %7099 = vmatmul.mubr.bf16.gmra.mrb[0].mxu0 %v6944
      %v7100 = vpop.f32.mrb[0].mxu0
      %v7101 = vadd.f32 0.0, %v7100
      %v7102 = vpop.f32.mrb[0].mxu0
      %v7103 = vpop.f32.mrb[0].mxu0
      %v7104 = vadd.f32 0.0, %v7103
      %v7105 = vpop.f32.mrb[0].mxu0
      %7106 = vdwg.mxu0
      %v7107 = vadd.f32 %v6745, %v6981
      %v7108 = vadd.f32 %v6746, %v6984
      %v7109 = vadd.f32 %v6747, %v6989
      %v7110 = vadd.f32 %v6748, %v6992
      %v7111 = vadd.f32 %v6749, %v6997
      %v7112 = vadd.f32 %v6750, %v7000
      %v7113 = vadd.f32 %v6751, %v7005
      %v7114 = vadd.f32 %v6752, %v7008
      %v7115 = vadd.f32 %v6753, %v7013
      %v7116 = vadd.f32 %v6754, %v7016
      %v7117 = vadd.f32 %v6755, %v7021
      %v7118 = vadd.f32 %v6756, %v7024
      %v7119 = vadd.f32 %v6757, %v7029
      %v7120 = vadd.f32 %v6758, %v7032
      %v7121 = vadd.f32 %v6759, %v7037
      %v7122 = vadd.f32 %v6760, %v7040
      %v7123 = vadd.f32 %v6761, %v7045
      %v7124 = vadd.f32 %v6762, %v7048
      %v7125 = vadd.f32 %v6763, %v7053
      %v7126 = vadd.f32 %v6764, %v7056
      %v7127 = vadd.f32 %v6765, %v7061
      %v7128 = vadd.f32 %v6766, %v7064
      %v7129 = vadd.f32 %v6767, %v7069
      %v7130 = vadd.f32 %v6768, %v7072
      %v7131 = vadd.f32 %v6769, %v7077
      %v7132 = vadd.f32 %v6770, %v7080
      %v7133 = vadd.f32 %v6771, %v7085
      %v7134 = vadd.f32 %v6772, %v7088
      %v7135 = vadd.f32 %v6773, %v7093
      %v7136 = vadd.f32 %v6774, %v7096
      %v7137 = vadd.f32 %v6775, %v7101
      %v7138 = vadd.f32 %v6776, %v7104
      %v7139 = vld [vmem:[#allocation3] sm:$0xf]
      %v7140 = vld [vmem:[#allocation3 + $0x4] sm:$0xf]
      %v7141 = vld [vmem:[#allocation3 + $0x8] sm:$0x1]
      %v7142 = vld [vmem:[#allocation3 + $0xc] sm:$0xf]
      %v7143 = vld [vmem:[#allocation3 + $0x10] sm:$0xf]
      %v7144 = vld [vmem:[#allocation3 + $0x14] sm:$0x1]
      %v7145 = vld [vmem:[#allocation3 + $0x18] sm:$0xf]
      %v7146 = vld [vmem:[#allocation3 + $0x1c] sm:$0xf]
      %v7147 = vld [vmem:[#allocation3 + $0x20] sm:$0x1]
      %v7148 = vld [vmem:[#allocation3 + $0x24] sm:$0xf]
      %v7149 = vld [vmem:[#allocation3 + $0x28] sm:$0xf]
      %v7150 = vld [vmem:[#allocation3 + $0x2c] sm:$0x1]
      %v7151 = vld [vmem:[#allocation3 + $0x30] sm:$0xf]
      %v7152 = vld [vmem:[#allocation3 + $0x34] sm:$0xf]
      %v7153 = vld [vmem:[#allocation3 + $0x38] sm:$0x1]
      %v7154 = vld [vmem:[#allocation3 + $0x3c] sm:$0xf]
      %v7155 = vld [vmem:[#allocation3 + $0x40] sm:$0xf]
      %v7156 = vld [vmem:[#allocation3 + $0x44] sm:$0x1]
      %v7157 = vld [vmem:[#allocation3 + $0x48] sm:$0xf]
      %v7158 = vld [vmem:[#allocation3 + $0x4c] sm:$0xf]
      %v7159 = vld [vmem:[#allocation3 + $0x50] sm:$0x1]
      %v7160 = vld [vmem:[#allocation3 + $0x54] sm:$0xf]
      %v7161 = vld [vmem:[#allocation3 + $0x58] sm:$0xf]
      %v7162 = vld [vmem:[#allocation3 + $0x5c] sm:$0x1]
      %v7163 = vld [vmem:[#allocation3 + $0x60] sm:$0xf]
      %v7164 = vld [vmem:[#allocation3 + $0x64] sm:$0xf]
      %v7165 = vld [vmem:[#allocation3 + $0x68] sm:$0x1]
      %v7166 = vld [vmem:[#allocation3 + $0x6c] sm:$0xf]
      %v7167 = vld [vmem:[#allocation3 + $0x70] sm:$0xf]
      %v7168 = vld [vmem:[#allocation3 + $0x74] sm:$0x1]
      %v7169 = vld [vmem:[#allocation3 + $0x78] sm:$0xf]
      %v7170 = vld [vmem:[#allocation3 + $0x7c] sm:$0xf]
      %v7171 = vld [vmem:[#allocation3 + $0x80] sm:$0x1]
      %v7172 = vld [vmem:[#allocation3 + $0x84] sm:$0xf]
      %v7173 = vld [vmem:[#allocation3 + $0x88] sm:$0xf]
      %v7174 = vld [vmem:[#allocation3 + $0x8c] sm:$0x1]
      %v7175 = vld [vmem:[#allocation3 + $0x90] sm:$0xf]
      %v7176 = vld [vmem:[#allocation3 + $0x94] sm:$0xf]
      %v7177 = vld [vmem:[#allocation3 + $0x98] sm:$0x1]
      %v7178 = vld [vmem:[#allocation3 + $0x9c] sm:$0xf]
      %v7179 = vld [vmem:[#allocation3 + $0xa0] sm:$0xf]
      %v7180 = vld [vmem:[#allocation3 + $0xa4] sm:$0x1]
      %v7181 = vld [vmem:[#allocation3 + $0xa8] sm:$0xf]
      %v7182 = vld [vmem:[#allocation3 + $0xac] sm:$0xf]
      %v7183 = vld [vmem:[#allocation3 + $0xb0] sm:$0x1]
      %v7184 = vld [vmem:[#allocation3 + $0xb4] sm:$0xf]
      %v7185 = vld [vmem:[#allocation3 + $0xb8] sm:$0xf]
      %v7186 = vld [vmem:[#allocation3 + $0xbc] sm:$0x1]
      %v7188 = vshrl.u32 %v7139, 16
      %v7190 = vrot.slane %v7188, 4
      %v7191 = vshll.u32 %v7139, 16
      %v7193 = vrot.slane %v7191, 5
      %v7194 = vor.u32 %v7190, %v7193
      %v7195 = vrot.slane %v7194, 4
      %v7197 = vshll.u32 %v7140, 16
      %v7199 = vrot.slane %v7197, 5
      %v7200 = vsel %vm1264, %v7195, %v7199
      %v7201 = vshrl.u32 %v7140, 16
      %v7203 = vrot.slane %v7201, 4
      %v7204 = vor.u32 %v7203, %v7199
      %v7205 = vrot.slane %v7204, 4
      %v7207 = vshll.u32 %v7141, 16
      %v7209 = vrot.slane %v7207, 5
      %v7210 = vsel %vm1264, %v7205, %v7209
      %v7212 = vshrl.u32 %v7142, 16
      %v7214 = vrot.slane %v7212, 4
      %v7215 = vshll.u32 %v7142, 16
      %v7217 = vrot.slane %v7215, 5
      %v7218 = vor.u32 %v7214, %v7217
      %v7219 = vrot.slane %v7218, 4
      %v7221 = vshll.u32 %v7143, 16
      %v7223 = vrot.slane %v7221, 5
      %v7224 = vsel %vm1264, %v7219, %v7223
      %v7225 = vshrl.u32 %v7143, 16
      %v7227 = vrot.slane %v7225, 4
      %v7228 = vor.u32 %v7227, %v7223
      %v7229 = vrot.slane %v7228, 4
      %v7231 = vshll.u32 %v7144, 16
      %v7233 = vrot.slane %v7231, 5
      %v7234 = vsel %vm1264, %v7229, %v7233
      %v7236 = vshrl.u32 %v7145, 16
      %v7238 = vrot.slane %v7236, 4
      %v7239 = vshll.u32 %v7145, 16
      %v7241 = vrot.slane %v7239, 5
      %v7242 = vor.u32 %v7238, %v7241
      %v7243 = vrot.slane %v7242, 4
      %v7245 = vshll.u32 %v7146, 16
      %v7247 = vrot.slane %v7245, 5
      %v7248 = vsel %vm1264, %v7243, %v7247
      %v7249 = vshrl.u32 %v7146, 16
      %v7251 = vrot.slane %v7249, 4
      %v7252 = vor.u32 %v7251, %v7247
      %v7253 = vrot.slane %v7252, 4
      %v7255 = vshll.u32 %v7147, 16
      %v7257 = vrot.slane %v7255, 5
      %v7258 = vsel %vm1264, %v7253, %v7257
      %v7260 = vshrl.u32 %v7148, 16
      %v7262 = vrot.slane %v7260, 4
      %v7263 = vshll.u32 %v7148, 16
      %v7265 = vrot.slane %v7263, 5
      %v7266 = vor.u32 %v7262, %v7265
      %v7267 = vrot.slane %v7266, 4
      %v7269 = vshll.u32 %v7149, 16
      %v7271 = vrot.slane %v7269, 5
      %v7272 = vsel %vm1264, %v7267, %v7271
      %v7273 = vshrl.u32 %v7149, 16
      %v7275 = vrot.slane %v7273, 4
      %v7276 = vor.u32 %v7275, %v7271
      %v7277 = vrot.slane %v7276, 4
      %v7279 = vshll.u32 %v7150, 16
      %v7281 = vrot.slane %v7279, 5
      %v7282 = vsel %vm1264, %v7277, %v7281
      %v7284 = vshrl.u32 %v7151, 16
      %v7286 = vrot.slane %v7284, 4
      %v7287 = vshll.u32 %v7151, 16
      %v7289 = vrot.slane %v7287, 5
      %v7290 = vor.u32 %v7286, %v7289
      %v7291 = vrot.slane %v7290, 4
      %v7293 = vshll.u32 %v7152, 16
      %v7295 = vrot.slane %v7293, 5
      %v7296 = vsel %vm1264, %v7291, %v7295
      %v7297 = vshrl.u32 %v7152, 16
      %v7299 = vrot.slane %v7297, 4
      %v7300 = vor.u32 %v7299, %v7295
      %v7301 = vrot.slane %v7300, 4
      %v7303 = vshll.u32 %v7153, 16
      %v7305 = vrot.slane %v7303, 5
      %v7306 = vsel %vm1264, %v7301, %v7305
      %v7308 = vshrl.u32 %v7154, 16
      %v7310 = vrot.slane %v7308, 4
      %v7311 = vshll.u32 %v7154, 16
      %v7313 = vrot.slane %v7311, 5
      %v7314 = vor.u32 %v7310, %v7313
      %v7315 = vrot.slane %v7314, 4
      %v7317 = vshll.u32 %v7155, 16
      %v7319 = vrot.slane %v7317, 5
      %v7320 = vsel %vm1264, %v7315, %v7319
      %v7321 = vshrl.u32 %v7155, 16
      %v7323 = vrot.slane %v7321, 4
      %v7324 = vor.u32 %v7323, %v7319
      %v7325 = vrot.slane %v7324, 4
      %v7327 = vshll.u32 %v7156, 16
      %v7329 = vrot.slane %v7327, 5
      %v7330 = vsel %vm1264, %v7325, %v7329
      %v7332 = vshrl.u32 %v7157, 16
      %v7334 = vrot.slane %v7332, 4
      %v7335 = vshll.u32 %v7157, 16
      %v7337 = vrot.slane %v7335, 5
      %v7338 = vor.u32 %v7334, %v7337
      %v7339 = vrot.slane %v7338, 4
      %v7341 = vshll.u32 %v7158, 16
      %v7343 = vrot.slane %v7341, 5
      %v7344 = vsel %vm1264, %v7339, %v7343
      %v7345 = vshrl.u32 %v7158, 16
      %v7347 = vrot.slane %v7345, 4
      %v7348 = vor.u32 %v7347, %v7343
      %v7349 = vrot.slane %v7348, 4
      %v7351 = vshll.u32 %v7159, 16
      %v7353 = vrot.slane %v7351, 5
      %v7354 = vsel %vm1264, %v7349, %v7353
      %v7356 = vshrl.u32 %v7160, 16
      %v7358 = vrot.slane %v7356, 4
      %v7359 = vshll.u32 %v7160, 16
      %v7361 = vrot.slane %v7359, 5
      %v7362 = vor.u32 %v7358, %v7361
      %v7363 = vrot.slane %v7362, 4
      %v7365 = vshll.u32 %v7161, 16
      %v7367 = vrot.slane %v7365, 5
      %v7368 = vsel %vm1264, %v7363, %v7367
      %v7369 = vshrl.u32 %v7161, 16
      %v7371 = vrot.slane %v7369, 4
      %v7372 = vor.u32 %v7371, %v7367
      %v7373 = vrot.slane %v7372, 4
      %v7375 = vshll.u32 %v7162, 16
      %v7377 = vrot.slane %v7375, 5
      %v7378 = vsel %vm1264, %v7373, %v7377
      %v7380 = vshrl.u32 %v7163, 16
      %v7382 = vrot.slane %v7380, 4
      %v7383 = vshll.u32 %v7163, 16
      %v7385 = vrot.slane %v7383, 5
      %v7386 = vor.u32 %v7382, %v7385
      %v7387 = vrot.slane %v7386, 4
      %v7389 = vshll.u32 %v7164, 16
      %v7391 = vrot.slane %v7389, 5
      %v7392 = vsel %vm1264, %v7387, %v7391
      %v7393 = vshrl.u32 %v7164, 16
      %v7395 = vrot.slane %v7393, 4
      %v7396 = vor.u32 %v7395, %v7391
      %v7397 = vrot.slane %v7396, 4
      %v7399 = vshll.u32 %v7165, 16
      %v7401 = vrot.slane %v7399, 5
      %v7402 = vsel %vm1264, %v7397, %v7401
      %v7404 = vshrl.u32 %v7166, 16
      %v7406 = vrot.slane %v7404, 4
      %v7407 = vshll.u32 %v7166, 16
      %v7409 = vrot.slane %v7407, 5
      %v7410 = vor.u32 %v7406, %v7409
      %v7411 = vrot.slane %v7410, 4
      %v7413 = vshll.u32 %v7167, 16
      %v7415 = vrot.slane %v7413, 5
      %v7416 = vsel %vm1264, %v7411, %v7415
      %v7417 = vshrl.u32 %v7167, 16
      %v7419 = vrot.slane %v7417, 4
      %v7420 = vor.u32 %v7419, %v7415
      %v7421 = vrot.slane %v7420, 4
      %v7423 = vshll.u32 %v7168, 16
      %v7425 = vrot.slane %v7423, 5
      %v7426 = vsel %vm1264, %v7421, %v7425
      %v7428 = vshrl.u32 %v7169, 16
      %v7430 = vrot.slane %v7428, 4
      %v7431 = vshll.u32 %v7169, 16
      %v7433 = vrot.slane %v7431, 5
      %v7434 = vor.u32 %v7430, %v7433
      %v7435 = vrot.slane %v7434, 4
      %v7437 = vshll.u32 %v7170, 16
      %v7439 = vrot.slane %v7437, 5
      %v7440 = vsel %vm1264, %v7435, %v7439
      %v7441 = vshrl.u32 %v7170, 16
      %v7443 = vrot.slane %v7441, 4
      %v7444 = vor.u32 %v7443, %v7439
      %v7445 = vrot.slane %v7444, 4
      %v7447 = vshll.u32 %v7171, 16
      %v7449 = vrot.slane %v7447, 5
      %v7450 = vsel %vm1264, %v7445, %v7449
      %v7452 = vshrl.u32 %v7172, 16
      %v7454 = vrot.slane %v7452, 4
      %v7455 = vshll.u32 %v7172, 16
      %v7457 = vrot.slane %v7455, 5
      %v7458 = vor.u32 %v7454, %v7457
      %v7459 = vrot.slane %v7458, 4
      %v7461 = vshll.u32 %v7173, 16
      %v7463 = vrot.slane %v7461, 5
      %v7464 = vsel %vm1264, %v7459, %v7463
      %v7465 = vshrl.u32 %v7173, 16
      %v7467 = vrot.slane %v7465, 4
      %v7468 = vor.u32 %v7467, %v7463
      %v7469 = vrot.slane %v7468, 4
      %v7471 = vshll.u32 %v7174, 16
      %v7473 = vrot.slane %v7471, 5
      %v7474 = vsel %vm1264, %v7469, %v7473
      %v7476 = vshrl.u32 %v7175, 16
      %v7478 = vrot.slane %v7476, 4
      %v7479 = vshll.u32 %v7175, 16
      %v7481 = vrot.slane %v7479, 5
      %v7482 = vor.u32 %v7478, %v7481
      %v7483 = vrot.slane %v7482, 4
      %v7485 = vshll.u32 %v7176, 16
      %v7487 = vrot.slane %v7485, 5
      %v7488 = vsel %vm1264, %v7483, %v7487
      %v7489 = vshrl.u32 %v7176, 16
      %v7491 = vrot.slane %v7489, 4
      %v7492 = vor.u32 %v7491, %v7487
      %v7493 = vrot.slane %v7492, 4
      %v7495 = vshll.u32 %v7177, 16
      %v7497 = vrot.slane %v7495, 5
      %v7498 = vsel %vm1264, %v7493, %v7497
      %v7500 = vshrl.u32 %v7178, 16
      %v7502 = vrot.slane %v7500, 4
      %v7503 = vshll.u32 %v7178, 16
      %v7505 = vrot.slane %v7503, 5
      %v7506 = vor.u32 %v7502, %v7505
      %v7507 = vrot.slane %v7506, 4
      %v7509 = vshll.u32 %v7179, 16
      %v7511 = vrot.slane %v7509, 5
      %v7512 = vsel %vm1264, %v7507, %v7511
      %v7513 = vshrl.u32 %v7179, 16
      %v7515 = vrot.slane %v7513, 4
      %v7516 = vor.u32 %v7515, %v7511
      %v7517 = vrot.slane %v7516, 4
      %v7519 = vshll.u32 %v7180, 16
      %v7521 = vrot.slane %v7519, 5
      %v7522 = vsel %vm1264, %v7517, %v7521
      %v7524 = vshrl.u32 %v7181, 16
      %v7526 = vrot.slane %v7524, 4
      %v7527 = vshll.u32 %v7181, 16
      %v7529 = vrot.slane %v7527, 5
      %v7530 = vor.u32 %v7526, %v7529
      %v7531 = vrot.slane %v7530, 4
      %v7533 = vshll.u32 %v7182, 16
      %v7535 = vrot.slane %v7533, 5
      %v7536 = vsel %vm1264, %v7531, %v7535
      %v7537 = vshrl.u32 %v7182, 16
      %v7539 = vrot.slane %v7537, 4
      %v7540 = vor.u32 %v7539, %v7535
      %v7541 = vrot.slane %v7540, 4
      %v7543 = vshll.u32 %v7183, 16
      %v7545 = vrot.slane %v7543, 5
      %v7546 = vsel %vm1264, %v7541, %v7545
      %v7548 = vshrl.u32 %v7184, 16
      %v7550 = vrot.slane %v7548, 4
      %v7551 = vshll.u32 %v7184, 16
      %v7553 = vrot.slane %v7551, 5
      %v7554 = vor.u32 %v7550, %v7553
      %v7555 = vrot.slane %v7554, 4
      %v7557 = vshll.u32 %v7185, 16
      %v7559 = vrot.slane %v7557, 5
      %v7560 = vsel %vm1264, %v7555, %v7559
      %v7561 = vshrl.u32 %v7185, 16
      %v7563 = vrot.slane %v7561, 4
      %v7564 = vor.u32 %v7563, %v7559
      %v7565 = vrot.slane %v7564, 4
      %v7567 = vshll.u32 %v7186, 16
      %v7569 = vrot.slane %v7567, 5
      %v7570 = vsel %vm1264, %v7565, %v7569
      %s7571 = scalar_lea.vmem %s3, 8
      %v7572 = vld [vmem:[%s7571] sm:$0xf]
      %v7573 = vld [vmem:[%s7571 + $0x4] sm:$0xf]
      %v7574 = vunpack.c.l.b16 %v7200
      %v7575 = vunpack.c.l.b16 %v7210
      %v7576 = vunpack.c.l.b16 %v7224
      %v7577 = vunpack.c.l.b16 %v7234
      %v7578 = vunpack.c.l.b16 %v7248
      %v7579 = vunpack.c.l.b16 %v7258
      %v7580 = vunpack.c.l.b16 %v7272
      %v7581 = vunpack.c.l.b16 %v7282
      %v7582 = vunpack.c.l.b16 %v7296
      %v7583 = vunpack.c.l.b16 %v7306
      %v7584 = vunpack.c.l.b16 %v7320
      %v7585 = vunpack.c.l.b16 %v7330
      %v7586 = vunpack.c.l.b16 %v7344
      %v7587 = vunpack.c.l.b16 %v7354
      %v7588 = vunpack.c.l.b16 %v7368
      %v7589 = vunpack.c.l.b16 %v7378
      %v7590 = vunpack.c.l.b16 %v7392
      %v7591 = vunpack.c.l.b16 %v7402
      %v7592 = vunpack.c.l.b16 %v7416
      %v7593 = vunpack.c.l.b16 %v7426
      %v7594 = vunpack.c.l.b16 %v7440
      %v7595 = vunpack.c.l.b16 %v7450
      %v7596 = vunpack.c.l.b16 %v7464
      %v7597 = vunpack.c.l.b16 %v7474
      %v7598 = vunpack.c.l.b16 %v7488
      %v7599 = vunpack.c.l.b16 %v7498
      %v7600 = vunpack.c.l.b16 %v7512
      %v7601 = vunpack.c.l.b16 %v7522
      %v7602 = vunpack.c.l.b16 %v7536
      %v7603 = vunpack.c.l.b16 %v7546
      %v7604 = vunpack.c.l.b16 %v7560
      %v7605 = vunpack.c.l.b16 %v7570
      %v7606 = vpack.c.b16 %v7575, %v7574
      %v7607 = vpack.c.b16 %v7577, %v7576
      %v7608 = vpack.c.b16 %v7579, %v7578
      %v7609 = vpack.c.b16 %v7581, %v7580
      %v7610 = vpack.c.b16 %v7583, %v7582
      %v7611 = vpack.c.b16 %v7585, %v7584
      %v7612 = vpack.c.b16 %v7587, %v7586
      %v7613 = vpack.c.b16 %v7589, %v7588
      %v7614 = vpack.c.b16 %v7591, %v7590
      %v7615 = vpack.c.b16 %v7593, %v7592
      %v7616 = vpack.c.b16 %v7595, %v7594
      %v7617 = vpack.c.b16 %v7597, %v7596
      %v7618 = vpack.c.b16 %v7599, %v7598
      %v7619 = vpack.c.b16 %v7601, %v7600
      %v7620 = vpack.c.b16 %v7603, %v7602
      %v7621 = vpack.c.b16 %v7605, %v7604
      %v7624 = vunpack.c.l.b16 %v7572
      %v7625 = vunpack.c.l.b16 %v7573
      %v7626 = vpack.c.b16 %v7625, %v7624
      %v7629 = vsel %vm6897, %v7606, 0
      %v7632 = vsel %vm6897, %v7607, 0
      %v7635 = vsel %vm6897, %v7608, 0
      %v7638 = vsel %vm6897, %v7609, 0
      %v7641 = vsel %vm6897, %v7610, 0
      %v7644 = vsel %vm6897, %v7611, 0
      %v7647 = vsel %vm6897, %v7612, 0
      %v7650 = vsel %vm6897, %v7613, 0
      %v7653 = vsel %vm6897, %v7614, 0
      %v7656 = vsel %vm6897, %v7615, 0
      %v7659 = vsel %vm6897, %v7616, 0
      %v7662 = vsel %vm6897, %v7617, 0
      %v7665 = vsel %vm6897, %v7618, 0
      %v7668 = vsel %vm6897, %v7619, 0
      %v7671 = vsel %vm6897, %v7620, 0
      %v7674 = vsel %vm6897, %v7621, 0
      %7676 = vmatprep.subr.bf16.mxu0 0
      %7677 = vmatpush1.bf16.msra.mxu0 %v7626
      %7678 = vmatprep.subr.bf16.mxu0 0
      %7679 = vmatpush1.bf16.msra.mxu0 0
      %7680 = vmatprep.subr.bf16.mxu0 0
      %7681 = vmatpush1.bf16.msra.mxu0 0
      %7682 = vmatprep.subr.bf16.mxu0 0
      %7683 = vmatpush1.bf16.msra.mxu0 0
      %7684 = vmatprep.subr.bf16.mxu0 0
      %7685 = vmatpush1.bf16.msra.mxu0 0
      %7686 = vmatprep.subr.bf16.mxu0 0
      %7687 = vmatpush1.bf16.msra.mxu0 0
      %7688 = vmatprep.subr.bf16.mxu0 0
      %7689 = vmatpush1.bf16.msra.mxu0 0
      %7690 = vmatprep.subr.bf16.mxu0 0
      %7691 = vmatpush1.bf16.msra.mxu0 0
      %7692 = vmatprep.subr.bf16.mxu0 0
      %7693 = vmatpush1.bf16.msra.mxu0 0
      %7694 = vmatprep.subr.bf16.mxu0 0
      %7695 = vmatpush1.bf16.msra.mxu0 0
      %7696 = vmatprep.subr.bf16.mxu0 0
      %7697 = vmatpush1.bf16.msra.mxu0 0
      %7698 = vmatprep.subr.bf16.mxu0 0
      %7699 = vmatpush1.bf16.msra.mxu0 0
      %7700 = vmatprep.subr.bf16.mxu0 0
      %7701 = vmatpush1.bf16.msra.mxu0 0
      %7702 = vmatprep.subr.bf16.mxu0 0
      %7703 = vmatpush1.bf16.msra.mxu0 0
      %7704 = vmatprep.subr.bf16.mxu0 0
      %7705 = vmatpush1.bf16.msra.mxu0 0
      %7706 = vmatprep.subr.bf16.mxu0 0
      %7707 = vmatpush1.bf16.msra.mxu0 0
      %7708 = vmatprep.mubr.bf16.mxu0 0
      %7709 = vmatmul.mubr.bf16.gmra.mrb[0].mxu0 %v7629
      %v7710 = vpop.f32.mrb[0].mxu0
      %v7711 = vadd.f32 0.0, %v7710
      %v7712 = vpop.f32.mrb[0].mxu0
      %v7713 = vpop.f32.mrb[0].mxu0
      %v7714 = vadd.f32 0.0, %v7713
      %v7715 = vpop.f32.mrb[0].mxu0
      %7716 = vmatprep.mubr.bf16.mxu0 0
      %7717 = vmatmul.mubr.bf16.gmra.mrb[0].mxu0 %v7632
      %v7718 = vpop.f32.mrb[0].mxu0
      %v7719 = vadd.f32 0.0, %v7718
      %v7720 = vpop.f32.mrb[0].mxu0
      %v7721 = vpop.f32.mrb[0].mxu0
      %v7722 = vadd.f32 0.0, %v7721
      %v7723 = vpop.f32.mrb[0].mxu0
      %7724 = vmatprep.mubr.bf16.mxu0 0
      %7725 = vmatmul.mubr.bf16.gmra.mrb[0].mxu0 %v7635
      %v7726 = vpop.f32.mrb[0].mxu0
      %v7727 = vadd.f32 0.0, %v7726
      %v7728 = vpop.f32.mrb[0].mxu0
      %v7729 = vpop.f32.mrb[0].mxu0
      %v7730 = vadd.f32 0.0, %v7729
      %v7731 = vpop.f32.mrb[0].mxu0
      %7732 = vmatprep.mubr.bf16.mxu0 0
      %7733 = vmatmul.mubr.bf16.gmra.mrb[0].mxu0 %v7638
      %v7734 = vpop.f32.mrb[0].mxu0
      %v7735 = vadd.f32 0.0, %v7734
      %v7736 = vpop.f32.mrb[0].mxu0
      %v7737 = vpop.f32.mrb[0].mxu0
      %v7738 = vadd.f32 0.0, %v7737
      %v7739 = vpop.f32.mrb[0].mxu0
      %7740 = vmatprep.mubr.bf16.mxu0 0
      %7741 = vmatmul.mubr.bf16.gmra.mrb[0].mxu0 %v7641
      %v7742 = vpop.f32.mrb[0].mxu0
      %v7743 = vadd.f32 0.0, %v7742
      %v7744 = vpop.f32.mrb[0].mxu0
      %v7745 = vpop.f32.mrb[0].mxu0
      %v7746 = vadd.f32 0.0, %v7745
      %v7747 = vpop.f32.mrb[0].mxu0
      %7748 = vmatprep.mubr.bf16.mxu0 0
      %7749 = vmatmul.mubr.bf16.gmra.mrb[0].mxu0 %v7644
      %v7750 = vpop.f32.mrb[0].mxu0
      %v7751 = vadd.f32 0.0, %v7750
      %v7752 = vpop.f32.mrb[0].mxu0
      %v7753 = vpop.f32.mrb[0].mxu0
      %v7754 = vadd.f32 0.0, %v7753
      %v7755 = vpop.f32.mrb[0].mxu0
      %7756 = vmatprep.mubr.bf16.mxu0 0
      %7757 = vmatmul.mubr.bf16.gmra.mrb[0].mxu0 %v7647
      %v7758 = vpop.f32.mrb[0].mxu0
      %v7759 = vadd.f32 0.0, %v7758
      %v7760 = vpop.f32.mrb[0].mxu0
      %v7761 = vpop.f32.mrb[0].mxu0
      %v7762 = vadd.f32 0.0, %v7761
      %v7763 = vpop.f32.mrb[0].mxu0
      %7764 = vmatprep.mubr.bf16.mxu0 0
      %7765 = vmatmul.mubr.bf16.gmra.mrb[0].mxu0 %v7650
      %v7766 = vpop.f32.mrb[0].mxu0
      %v7767 = vadd.f32 0.0, %v7766
      %v7768 = vpop.f32.mrb[0].mxu0
      %v7769 = vpop.f32.mrb[0].mxu0
      %v7770 = vadd.f32 0.0, %v7769
      %v7771 = vpop.f32.mrb[0].mxu0
      %7772 = vmatprep.mubr.bf16.mxu0 0
      %7773 = vmatmul.mubr.bf16.gmra.mrb[0].mxu0 %v7653
      %v7774 = vpop.f32.mrb[0].mxu0
      %v7775 = vadd.f32 0.0, %v7774
      %v7776 = vpop.f32.mrb[0].mxu0
      %v7777 = vpop.f32.mrb[0].mxu0
      %v7778 = vadd.f32 0.0, %v7777
      %v7779 = vpop.f32.mrb[0].mxu0
      %7780 = vmatprep.mubr.bf16.mxu0 0
      %7781 = vmatmul.mubr.bf16.gmra.mrb[0].mxu0 %v7656
      %v7782 = vpop.f32.mrb[0].mxu0
      %v7783 = vadd.f32 0.0, %v7782
      %v7784 = vpop.f32.mrb[0].mxu0
      %v7785 = vpop.f32.mrb[0].mxu0
      %v7786 = vadd.f32 0.0, %v7785
      %v7787 = vpop.f32.mrb[0].mxu0
      %7788 = vmatprep.mubr.bf16.mxu0 0
      %7789 = vmatmul.mubr.bf16.gmra.mrb[0].mxu0 %v7659
      %v7790 = vpop.f32.mrb[0].mxu0
      %v7791 = vadd.f32 0.0, %v7790
      %v7792 = vpop.f32.mrb[0].mxu0
      %v7793 = vpop.f32.mrb[0].mxu0
      %v7794 = vadd.f32 0.0, %v7793
      %v7795 = vpop.f32.mrb[0].mxu0
      %7796 = vmatprep.mubr.bf16.mxu0 0
      %7797 = vmatmul.mubr.bf16.gmra.mrb[0].mxu0 %v7662
      %v7798 = vpop.f32.mrb[0].mxu0
      %v7799 = vadd.f32 0.0, %v7798
      %v7800 = vpop.f32.mrb[0].mxu0
      %v7801 = vpop.f32.mrb[0].mxu0
      %v7802 = vadd.f32 0.0, %v7801
      %v7803 = vpop.f32.mrb[0].mxu0
      %7804 = vmatprep.mubr.bf16.mxu0 0
      %7805 = vmatmul.mubr.bf16.gmra.mrb[0].mxu0 %v7665
      %v7806 = vpop.f32.mrb[0].mxu0
      %v7807 = vadd.f32 0.0, %v7806
      %v7808 = vpop.f32.mrb[0].mxu0
      %v7809 = vpop.f32.mrb[0].mxu0
      %v7810 = vadd.f32 0.0, %v7809
      %v7811 = vpop.f32.mrb[0].mxu0
      %7812 = vmatprep.mubr.bf16.mxu0 0
      %7813 = vmatmul.mubr.bf16.gmra.mrb[0].mxu0 %v7668
      %v7814 = vpop.f32.mrb[0].mxu0
      %v7815 = vadd.f32 0.0, %v7814
      %v7816 = vpop.f32.mrb[0].mxu0
      %v7817 = vpop.f32.mrb[0].mxu0
      %v7818 = vadd.f32 0.0, %v7817
      %v7819 = vpop.f32.mrb[0].mxu0
      %7820 = vmatprep.mubr.bf16.mxu0 0
      %7821 = vmatmul.mubr.bf16.gmra.mrb[0].mxu0 %v7671
      %v7822 = vpop.f32.mrb[0].mxu0
      %v7823 = vadd.f32 0.0, %v7822
      %v7824 = vpop.f32.mrb[0].mxu0
      %v7825 = vpop.f32.mrb[0].mxu0
      %v7826 = vadd.f32 0.0, %v7825
      %v7827 = vpop.f32.mrb[0].mxu0
      %7828 = vmatprep.mubr.bf16.mxu0 0
      %7829 = vmatmul.mubr.bf16.gmra.mrb[0].mxu0 %v7674
      %v7830 = vpop.f32.mrb[0].mxu0
      %v7831 = vadd.f32 0.0, %v7830
      %v7832 = vpop.f32.mrb[0].mxu0
      %v7833 = vpop.f32.mrb[0].mxu0
      %v7834 = vadd.f32 0.0, %v7833
      %v7835 = vpop.f32.mrb[0].mxu0
      %7836 = vdwg.mxu0
      %v7837 = vadd.f32 %v7107, %v7711
      %v7838 = vadd.f32 %v7108, %v7714
      %v7839 = vadd.f32 %v7109, %v7719
      %v7840 = vadd.f32 %v7110, %v7722
      %v7841 = vadd.f32 %v7111, %v7727
      %v7842 = vadd.f32 %v7112, %v7730
      %v7843 = vadd.f32 %v7113, %v7735
      %v7844 = vadd.f32 %v7114, %v7738
      %v7845 = vadd.f32 %v7115, %v7743
      %v7846 = vadd.f32 %v7116, %v7746
      %v7847 = vadd.f32 %v7117, %v7751
      %v7848 = vadd.f32 %v7118, %v7754
      %v7849 = vadd.f32 %v7119, %v7759
      %v7850 = vadd.f32 %v7120, %v7762
      %v7851 = vadd.f32 %v7121, %v7767
      %v7852 = vadd.f32 %v7122, %v7770
      %v7853 = vadd.f32 %v7123, %v7775
      %v7854 = vadd.f32 %v7124, %v7778
      %v7855 = vadd.f32 %v7125, %v7783
      %v7856 = vadd.f32 %v7126, %v7786
      %v7857 = vadd.f32 %v7127, %v7791
      %v7858 = vadd.f32 %v7128, %v7794
      %v7859 = vadd.f32 %v7129, %v7799
      %v7860 = vadd.f32 %v7130, %v7802
      %v7861 = vadd.f32 %v7131, %v7807
      %v7862 = vadd.f32 %v7132, %v7810
      %v7863 = vadd.f32 %v7133, %v7815
      %v7864 = vadd.f32 %v7134, %v7818
      %v7865 = vadd.f32 %v7135, %v7823
      %v7866 = vadd.f32 %v7136, %v7826
      %v7867 = vadd.f32 %v7137, %v7831
      %v7868 = vadd.f32 %v7138, %v7834
      %v7869 = vld [vmem:[#allocation3] sm:$0xe]
      %v7870 = vld [vmem:[#allocation3 + $0xc] sm:$0xe]
      %v7871 = vld [vmem:[#allocation3 + $0x18] sm:$0xe]
      %v7872 = vld [vmem:[#allocation3 + $0x24] sm:$0xe]
      %v7873 = vld [vmem:[#allocation3 + $0x30] sm:$0xe]
      %v7874 = vld [vmem:[#allocation3 + $0x3c] sm:$0xe]
      %v7875 = vld [vmem:[#allocation3 + $0x48] sm:$0xe]
      %v7876 = vld [vmem:[#allocation3 + $0x54] sm:$0xe]
      %v7877 = vld [vmem:[#allocation3 + $0x60] sm:$0xe]
      %v7878 = vld [vmem:[#allocation3 + $0x6c] sm:$0xe]
      %v7879 = vld [vmem:[#allocation3 + $0x78] sm:$0xe]
      %v7880 = vld [vmem:[#allocation3 + $0x84] sm:$0xe]
      %v7881 = vld [vmem:[#allocation3 + $0x90] sm:$0xe]
      %v7882 = vld [vmem:[#allocation3 + $0x9c] sm:$0xe]
      %v7883 = vld [vmem:[#allocation3 + $0xa8] sm:$0xe]
      %v7884 = vld [vmem:[#allocation3 + $0xb4] sm:$0xe]
      %v7933 = vrot.slane %v7869, 5
      %v7934 = vrot.slane %v7933, 4
      %v7935 = vrot.slane %v7140, 5
      %v7936 = vsel %vm2255, %v7934, %v7935
      %v7937 = vrot.slane %v7935, 4
      %v7938 = vrot.slane %v7141, 5
      %v7939 = vsel %vm2255, %v7937, %v7938
      %v7940 = vrot.slane %v7870, 5
      %v7941 = vrot.slane %v7940, 4
      %v7942 = vrot.slane %v7143, 5
      %v7943 = vsel %vm2255, %v7941, %v7942
      %v7944 = vrot.slane %v7942, 4
      %v7945 = vrot.slane %v7144, 5
      %v7946 = vsel %vm2255, %v7944, %v7945
      %v7947 = vrot.slane %v7871, 5
      %v7948 = vrot.slane %v7947, 4
      %v7949 = vrot.slane %v7146, 5
      %v7950 = vsel %vm2255, %v7948, %v7949
      %v7951 = vrot.slane %v7949, 4
      %v7952 = vrot.slane %v7147, 5
      %v7953 = vsel %vm2255, %v7951, %v7952
      %v7954 = vrot.slane %v7872, 5
      %v7955 = vrot.slane %v7954, 4
      %v7956 = vrot.slane %v7149, 5
      %v7957 = vsel %vm2255, %v7955, %v7956
      %v7958 = vrot.slane %v7956, 4
      %v7959 = vrot.slane %v7150, 5
      %v7960 = vsel %vm2255, %v7958, %v7959
      %v7961 = vrot.slane %v7873, 5
      %v7962 = vrot.slane %v7961, 4
      %v7963 = vrot.slane %v7152, 5
      %v7964 = vsel %vm2255, %v7962, %v7963
      %v7965 = vrot.slane %v7963, 4
      %v7966 = vrot.slane %v7153, 5
      %v7967 = vsel %vm2255, %v7965, %v7966
      %v7968 = vrot.slane %v7874, 5
      %v7969 = vrot.slane %v7968, 4
      %v7970 = vrot.slane %v7155, 5
      %v7971 = vsel %vm2255, %v7969, %v7970
      %v7972 = vrot.slane %v7970, 4
      %v7973 = vrot.slane %v7156, 5
      %v7974 = vsel %vm2255, %v7972, %v7973
      %v7975 = vrot.slane %v7875, 5
      %v7976 = vrot.slane %v7975, 4
      %v7977 = vrot.slane %v7158, 5
      %v7978 = vsel %vm2255, %v7976, %v7977
      %v7979 = vrot.slane %v7977, 4
      %v7980 = vrot.slane %v7159, 5
      %v7981 = vsel %vm2255, %v7979, %v7980
      %v7982 = vrot.slane %v7876, 5
      %v7983 = vrot.slane %v7982, 4
      %v7984 = vrot.slane %v7161, 5
      %v7985 = vsel %vm2255, %v7983, %v7984
      %v7986 = vrot.slane %v7984, 4
      %v7987 = vrot.slane %v7162, 5
      %v7988 = vsel %vm2255, %v7986, %v7987
      %v7989 = vrot.slane %v7877, 5
      %v7990 = vrot.slane %v7989, 4
      %v7991 = vrot.slane %v7164, 5
      %v7992 = vsel %vm2255, %v7990, %v7991
      %v7993 = vrot.slane %v7991, 4
      %v7994 = vrot.slane %v7165, 5
      %v7995 = vsel %vm2255, %v7993, %v7994
      %v7996 = vrot.slane %v7878, 5
      %v7997 = vrot.slane %v7996, 4
      %v7998 = vrot.slane %v7167, 5
      %v7999 = vsel %vm2255, %v7997, %v7998
      %v8000 = vrot.slane %v7998, 4
      %v8001 = vrot.slane %v7168, 5
      %v8002 = vsel %vm2255, %v8000, %v8001
      %v8003 = vrot.slane %v7879, 5
      %v8004 = vrot.slane %v8003, 4
      %v8005 = vrot.slane %v7170, 5
      %v8006 = vsel %vm2255, %v8004, %v8005
      %v8007 = vrot.slane %v8005, 4
      %v8008 = vrot.slane %v7171, 5
      %v8009 = vsel %vm2255, %v8007, %v8008
      %v8010 = vrot.slane %v7880, 5
      %v8011 = vrot.slane %v8010, 4
      %v8012 = vrot.slane %v7173, 5
      %v8013 = vsel %vm2255, %v8011, %v8012
      %v8014 = vrot.slane %v8012, 4
      %v8015 = vrot.slane %v7174, 5
      %v8016 = vsel %vm2255, %v8014, %v8015
      %v8017 = vrot.slane %v7881, 5
      %v8018 = vrot.slane %v8017, 4
      %v8019 = vrot.slane %v7176, 5
      %v8020 = vsel %vm2255, %v8018, %v8019
      %v8021 = vrot.slane %v8019, 4
      %v8022 = vrot.slane %v7177, 5
      %v8023 = vsel %vm2255, %v8021, %v8022
      %v8024 = vrot.slane %v7882, 5
      %v8025 = vrot.slane %v8024, 4
      %v8026 = vrot.slane %v7179, 5
      %v8027 = vsel %vm2255, %v8025, %v8026
      %v8028 = vrot.slane %v8026, 4
      %v8029 = vrot.slane %v7180, 5
      %v8030 = vsel %vm2255, %v8028, %v8029
      %v8031 = vrot.slane %v7883, 5
      %v8032 = vrot.slane %v8031, 4
      %v8033 = vrot.slane %v7182, 5
      %v8034 = vsel %vm2255, %v8032, %v8033
      %v8035 = vrot.slane %v8033, 4
      %v8036 = vrot.slane %v7183, 5
      %v8037 = vsel %vm2255, %v8035, %v8036
      %v8038 = vrot.slane %v7884, 5
      %v8039 = vrot.slane %v8038, 4
      %v8040 = vrot.slane %v7185, 5
      %v8041 = vsel %vm2255, %v8039, %v8040
      %v8042 = vrot.slane %v8040, 4
      %v8043 = vrot.slane %v7186, 5
      %v8044 = vsel %vm2255, %v8042, %v8043
      %s8045 = scalar_lea.vmem %s3, 16
      %v8046 = vld [vmem:[%s8045] sm:$0xf]
      %v8047 = vld [vmem:[%s8045 + $0x4] sm:$0xf]
      %v8048 = vunpack.c.l.b16 %v7936
      %v8049 = vunpack.c.l.b16 %v7939
      %v8050 = vunpack.c.l.b16 %v7943
      %v8051 = vunpack.c.l.b16 %v7946
      %v8052 = vunpack.c.l.b16 %v7950
      %v8053 = vunpack.c.l.b16 %v7953
      %v8054 = vunpack.c.l.b16 %v7957
      %v8055 = vunpack.c.l.b16 %v7960
      %v8056 = vunpack.c.l.b16 %v7964
      %v8057 = vunpack.c.l.b16 %v7967
      %v8058 = vunpack.c.l.b16 %v7971
      %v8059 = vunpack.c.l.b16 %v7974
      %v8060 = vunpack.c.l.b16 %v7978
      %v8061 = vunpack.c.l.b16 %v7981
      %v8062 = vunpack.c.l.b16 %v7985
      %v8063 = vunpack.c.l.b16 %v7988
      %v8064 = vunpack.c.l.b16 %v7992
      %v8065 = vunpack.c.l.b16 %v7995
      %v8066 = vunpack.c.l.b16 %v7999
      %v8067 = vunpack.c.l.b16 %v8002
      %v8068 = vunpack.c.l.b16 %v8006
      %v8069 = vunpack.c.l.b16 %v8009
      %v8070 = vunpack.c.l.b16 %v8013
      %v8071 = vunpack.c.l.b16 %v8016
      %v8072 = vunpack.c.l.b16 %v8020
      %v8073 = vunpack.c.l.b16 %v8023
      %v8074 = vunpack.c.l.b16 %v8027
      %v8075 = vunpack.c.l.b16 %v8030
      %v8076 = vunpack.c.l.b16 %v8034
      %v8077 = vunpack.c.l.b16 %v8037
      %v8078 = vunpack.c.l.b16 %v8041
      %v8079 = vunpack.c.l.b16 %v8044
      %v8080 = vpack.c.b16 %v8049, %v8048
      %v8081 = vpack.c.b16 %v8051, %v8050
      %v8082 = vpack.c.b16 %v8053, %v8052
      %v8083 = vpack.c.b16 %v8055, %v8054
      %v8084 = vpack.c.b16 %v8057, %v8056
      %v8085 = vpack.c.b16 %v8059, %v8058
      %v8086 = vpack.c.b16 %v8061, %v8060
      %v8087 = vpack.c.b16 %v8063, %v8062
      %v8088 = vpack.c.b16 %v8065, %v8064
      %v8089 = vpack.c.b16 %v8067, %v8066
      %v8090 = vpack.c.b16 %v8069, %v8068
      %v8091 = vpack.c.b16 %v8071, %v8070
      %v8092 = vpack.c.b16 %v8073, %v8072
      %v8093 = vpack.c.b16 %v8075, %v8074
      %v8094 = vpack.c.b16 %v8077, %v8076
      %v8095 = vpack.c.b16 %v8079, %v8078
      %v8098 = vunpack.c.l.b16 %v8046
      %v8099 = vunpack.c.l.b16 %v8047
      %v8100 = vpack.c.b16 %v8099, %v8098
      %v8103 = vsel %vm6897, %v8080, 0
      %v8106 = vsel %vm6897, %v8081, 0
      %v8109 = vsel %vm6897, %v8082, 0
      %v8112 = vsel %vm6897, %v8083, 0
      %v8115 = vsel %vm6897, %v8084, 0
      %v8118 = vsel %vm6897, %v8085, 0
      %v8121 = vsel %vm6897, %v8086, 0
      %v8124 = vsel %vm6897, %v8087, 0
      %v8127 = vsel %vm6897, %v8088, 0
      %v8130 = vsel %vm6897, %v8089, 0
      %v8133 = vsel %vm6897, %v8090, 0
      %v8136 = vsel %vm6897, %v8091, 0
      %v8139 = vsel %vm6897, %v8092, 0
      %v8142 = vsel %vm6897, %v8093, 0
      %v8145 = vsel %vm6897, %v8094, 0
      %v8148 = vsel %vm6897, %v8095, 0
      %8150 = vmatprep.subr.bf16.mxu0 0
      %8151 = vmatpush1.bf16.msra.mxu0 %v8100
      %8152 = vmatprep.subr.bf16.mxu0 0
      %8153 = vmatpush1.bf16.msra.mxu0 0
      %8154 = vmatprep.subr.bf16.mxu0 0
      %8155 = vmatpush1.bf16.msra.mxu0 0
      %8156 = vmatprep.subr.bf16.mxu0 0
      %8157 = vmatpush1.bf16.msra.mxu0 0
      %8158 = vmatprep.subr.bf16.mxu0 0
      %8159 = vmatpush1.bf16.msra.mxu0 0
      %8160 = vmatprep.subr.bf16.mxu0 0
      %8161 = vmatpush1.bf16.msra.mxu0 0
      %8162 = vmatprep.subr.bf16.mxu0 0
      %8163 = vmatpush1.bf16.msra.mxu0 0
      %8164 = vmatprep.subr.bf16.mxu0 0
      %8165 = vmatpush1.bf16.msra.mxu0 0
      %8166 = vmatprep.subr.bf16.mxu0 0
      %8167 = vmatpush1.bf16.msra.mxu0 0
      %8168 = vmatprep.subr.bf16.mxu0 0
      %8169 = vmatpush1.bf16.msra.mxu0 0
      %8170 = vmatprep.subr.bf16.mxu0 0
      %8171 = vmatpush1.bf16.msra.mxu0 0
      %8172 = vmatprep.subr.bf16.mxu0 0
      %8173 = vmatpush1.bf16.msra.mxu0 0
      %8174 = vmatprep.subr.bf16.mxu0 0
      %8175 = vmatpush1.bf16.msra.mxu0 0
      %8176 = vmatprep.subr.bf16.mxu0 0
      %8177 = vmatpush1.bf16.msra.mxu0 0
      %8178 = vmatprep.subr.bf16.mxu0 0
      %8179 = vmatpush1.bf16.msra.mxu0 0
      %8180 = vmatprep.subr.bf16.mxu0 0
      %8181 = vmatpush1.bf16.msra.mxu0 0
      %8182 = vmatprep.mubr.bf16.mxu0 0
      %8183 = vmatmul.mubr.bf16.gmra.mrb[0].mxu0 %v8103
      %v8184 = vpop.f32.mrb[0].mxu0
      %v8185 = vadd.f32 0.0, %v8184
      %v8186 = vpop.f32.mrb[0].mxu0
      %v8187 = vpop.f32.mrb[0].mxu0
      %v8188 = vadd.f32 0.0, %v8187
      %v8189 = vpop.f32.mrb[0].mxu0
      %8190 = vmatprep.mubr.bf16.mxu0 0
      %8191 = vmatmul.mubr.bf16.gmra.mrb[0].mxu0 %v8106
      %v8192 = vpop.f32.mrb[0].mxu0
      %v8193 = vadd.f32 0.0, %v8192
      %v8194 = vpop.f32.mrb[0].mxu0
      %v8195 = vpop.f32.mrb[0].mxu0
      %v8196 = vadd.f32 0.0, %v8195
      %v8197 = vpop.f32.mrb[0].mxu0
      %8198 = vmatprep.mubr.bf16.mxu0 0
      %8199 = vmatmul.mubr.bf16.gmra.mrb[0].mxu0 %v8109
      %v8200 = vpop.f32.mrb[0].mxu0
      %v8201 = vadd.f32 0.0, %v8200
      %v8202 = vpop.f32.mrb[0].mxu0
      %v8203 = vpop.f32.mrb[0].mxu0
      %v8204 = vadd.f32 0.0, %v8203
      %v8205 = vpop.f32.mrb[0].mxu0
      %8206 = vmatprep.mubr.bf16.mxu0 0
      %8207 = vmatmul.mubr.bf16.gmra.mrb[0].mxu0 %v8112
      %v8208 = vpop.f32.mrb[0].mxu0
      %v8209 = vadd.f32 0.0, %v8208
      %v8210 = vpop.f32.mrb[0].mxu0
      %v8211 = vpop.f32.mrb[0].mxu0
      %v8212 = vadd.f32 0.0, %v8211
      %v8213 = vpop.f32.mrb[0].mxu0
      %8214 = vmatprep.mubr.bf16.mxu0 0
      %8215 = vmatmul.mubr.bf16.gmra.mrb[0].mxu0 %v8115
      %v8216 = vpop.f32.mrb[0].mxu0
      %v8217 = vadd.f32 0.0, %v8216
      %v8218 = vpop.f32.mrb[0].mxu0
      %v8219 = vpop.f32.mrb[0].mxu0
      %v8220 = vadd.f32 0.0, %v8219
      %v8221 = vpop.f32.mrb[0].mxu0
      %8222 = vmatprep.mubr.bf16.mxu0 0
      %8223 = vmatmul.mubr.bf16.gmra.mrb[0].mxu0 %v8118
      %v8224 = vpop.f32.mrb[0].mxu0
      %v8225 = vadd.f32 0.0, %v8224
      %v8226 = vpop.f32.mrb[0].mxu0
      %v8227 = vpop.f32.mrb[0].mxu0
      %v8228 = vadd.f32 0.0, %v8227
      %v8229 = vpop.f32.mrb[0].mxu0
      %8230 = vmatprep.mubr.bf16.mxu0 0
      %8231 = vmatmul.mubr.bf16.gmra.mrb[0].mxu0 %v8121
      %v8232 = vpop.f32.mrb[0].mxu0
      %v8233 = vadd.f32 0.0, %v8232
      %v8234 = vpop.f32.mrb[0].mxu0
      %v8235 = vpop.f32.mrb[0].mxu0
      %v8236 = vadd.f32 0.0, %v8235
      %v8237 = vpop.f32.mrb[0].mxu0
      %8238 = vmatprep.mubr.bf16.mxu0 0
      %8239 = vmatmul.mubr.bf16.gmra.mrb[0].mxu0 %v8124
      %v8240 = vpop.f32.mrb[0].mxu0
      %v8241 = vadd.f32 0.0, %v8240
      %v8242 = vpop.f32.mrb[0].mxu0
      %v8243 = vpop.f32.mrb[0].mxu0
      %v8244 = vadd.f32 0.0, %v8243
      %v8245 = vpop.f32.mrb[0].mxu0
      %8246 = vmatprep.mubr.bf16.mxu0 0
      %8247 = vmatmul.mubr.bf16.gmra.mrb[0].mxu0 %v8127
      %v8248 = vpop.f32.mrb[0].mxu0
      %v8249 = vadd.f32 0.0, %v8248
      %v8250 = vpop.f32.mrb[0].mxu0
      %v8251 = vpop.f32.mrb[0].mxu0
      %v8252 = vadd.f32 0.0, %v8251
      %v8253 = vpop.f32.mrb[0].mxu0
      %8254 = vmatprep.mubr.bf16.mxu0 0
      %8255 = vmatmul.mubr.bf16.gmra.mrb[0].mxu0 %v8130
      %v8256 = vpop.f32.mrb[0].mxu0
      %v8257 = vadd.f32 0.0, %v8256
      %v8258 = vpop.f32.mrb[0].mxu0
      %v8259 = vpop.f32.mrb[0].mxu0
      %v8260 = vadd.f32 0.0, %v8259
      %v8261 = vpop.f32.mrb[0].mxu0
      %8262 = vmatprep.mubr.bf16.mxu0 0
      %8263 = vmatmul.mubr.bf16.gmra.mrb[0].mxu0 %v8133
      %v8264 = vpop.f32.mrb[0].mxu0
      %v8265 = vadd.f32 0.0, %v8264
      %v8266 = vpop.f32.mrb[0].mxu0
      %v8267 = vpop.f32.mrb[0].mxu0
      %v8268 = vadd.f32 0.0, %v8267
      %v8269 = vpop.f32.mrb[0].mxu0
      %8270 = vmatprep.mubr.bf16.mxu0 0
      %8271 = vmatmul.mubr.bf16.gmra.mrb[0].mxu0 %v8136
      %v8272 = vpop.f32.mrb[0].mxu0
      %v8273 = vadd.f32 0.0, %v8272
      %v8274 = vpop.f32.mrb[0].mxu0
      %v8275 = vpop.f32.mrb[0].mxu0
      %v8276 = vadd.f32 0.0, %v8275
      %v8277 = vpop.f32.mrb[0].mxu0
      %8278 = vmatprep.mubr.bf16.mxu0 0
      %8279 = vmatmul.mubr.bf16.gmra.mrb[0].mxu0 %v8139
      %v8280 = vpop.f32.mrb[0].mxu0
      %v8281 = vadd.f32 0.0, %v8280
      %v8282 = vpop.f32.mrb[0].mxu0
      %v8283 = vpop.f32.mrb[0].mxu0
      %v8284 = vadd.f32 0.0, %v8283
      %v8285 = vpop.f32.mrb[0].mxu0
      %8286 = vmatprep.mubr.bf16.mxu0 0
      %8287 = vmatmul.mubr.bf16.gmra.mrb[0].mxu0 %v8142
      %v8288 = vpop.f32.mrb[0].mxu0
      %v8289 = vadd.f32 0.0, %v8288
      %v8290 = vpop.f32.mrb[0].mxu0
      %v8291 = vpop.f32.mrb[0].mxu0
      %v8292 = vadd.f32 0.0, %v8291
      %v8293 = vpop.f32.mrb[0].mxu0
      %8294 = vmatprep.mubr.bf16.mxu0 0
      %8295 = vmatmul.mubr.bf16.gmra.mrb[0].mxu0 %v8145
      %v8296 = vpop.f32.mrb[0].mxu0
      %v8297 = vadd.f32 0.0, %v8296
      %v8298 = vpop.f32.mrb[0].mxu0
      %v8299 = vpop.f32.mrb[0].mxu0
      %v8300 = vadd.f32 0.0, %v8299
      %v8301 = vpop.f32.mrb[0].mxu0
      %8302 = vmatprep.mubr.bf16.mxu0 0
      %8303 = vmatmul.mubr.bf16.gmra.mrb[0].mxu0 %v8148
      %v8304 = vpop.f32.mrb[0].mxu0
      %v8305 = vadd.f32 0.0, %v8304
      %v8306 = vpop.f32.mrb[0].mxu0
      %v8307 = vpop.f32.mrb[0].mxu0
      %v8308 = vadd.f32 0.0, %v8307
      %v8309 = vpop.f32.mrb[0].mxu0
      %8310 = vdwg.mxu0
      %v8311 = vadd.f32 %v7837, %v8185
      %v8312 = vadd.f32 %v7838, %v8188
      %v8313 = vadd.f32 %v7839, %v8193
      %v8314 = vadd.f32 %v7840, %v8196
      %v8315 = vadd.f32 %v7841, %v8201
      %v8316 = vadd.f32 %v7842, %v8204
      %v8317 = vadd.f32 %v7843, %v8209
      %v8318 = vadd.f32 %v7844, %v8212
      %v8319 = vadd.f32 %v7845, %v8217
      %v8320 = vadd.f32 %v7846, %v8220
      %v8321 = vadd.f32 %v7847, %v8225
      %v8322 = vadd.f32 %v7848, %v8228
      %v8323 = vadd.f32 %v7849, %v8233
      %v8324 = vadd.f32 %v7850, %v8236
      %v8325 = vadd.f32 %v7851, %v8241
      %v8326 = vadd.f32 %v7852, %v8244
      %v8327 = vadd.f32 %v7853, %v8249
      %v8328 = vadd.f32 %v7854, %v8252
      %v8329 = vadd.f32 %v7855, %v8257
      %v8330 = vadd.f32 %v7856, %v8260
      %v8331 = vadd.f32 %v7857, %v8265
      %v8332 = vadd.f32 %v7858, %v8268
      %v8333 = vadd.f32 %v7859, %v8273
      %v8334 = vadd.f32 %v7860, %v8276
      %v8335 = vadd.f32 %v7861, %v8281
      %v8336 = vadd.f32 %v7862, %v8284
      %v8337 = vadd.f32 %v7863, %v8289
      %v8338 = vadd.f32 %v7864, %v8292
      %v8339 = vadd.f32 %v7865, %v8297
      %v8340 = vadd.f32 %v7866, %v8300
      %v8341 = vadd.f32 %v7867, %v8305
      %v8342 = vadd.f32 %v7868, %v8308
      %v8343 = vld [vmem:[%s6353] sm:$0xf]
      %v8344 = vld [vmem:[%s6353 + $0x4] sm:$0xf]
      %v8345 = vld [vmem:[%s6353 + $0xc] sm:$0xf]
      %v8346 = vld [vmem:[%s6353 + $0x10] sm:$0xf]
      %v8347 = vld [vmem:[%s6353 + $0x18] sm:$0xf]
      %v8348 = vld [vmem:[%s6353 + $0x1c] sm:$0xf]
      %v8349 = vld [vmem:[%s6353 + $0x24] sm:$0xf]
      %v8350 = vld [vmem:[%s6353 + $0x28] sm:$0xf]
      %v8351 = vld [vmem:[%s6353 + $0x30] sm:$0xf]
      %v8352 = vld [vmem:[%s6353 + $0x34] sm:$0xf]
      %v8353 = vld [vmem:[%s6353 + $0x3c] sm:$0xf]
      %v8354 = vld [vmem:[%s6353 + $0x40] sm:$0xf]
      %v8355 = vld [vmem:[%s6353 + $0x48] sm:$0xf]
      %v8356 = vld [vmem:[%s6353 + $0x4c] sm:$0xf]
      %v8357 = vld [vmem:[%s6353 + $0x54] sm:$0xf]
      %v8358 = vld [vmem:[%s6353 + $0x58] sm:$0xf]
      %v8359 = vld [vmem:[%s6353 + $0x60] sm:$0xf]
      %v8360 = vld [vmem:[%s6353 + $0x64] sm:$0xf]
      %v8361 = vld [vmem:[%s6353 + $0x6c] sm:$0xf]
      %v8362 = vld [vmem:[%s6353 + $0x70] sm:$0xf]
      %v8363 = vld [vmem:[%s6353 + $0x78] sm:$0xf]
      %v8364 = vld [vmem:[%s6353 + $0x7c] sm:$0xf]
      %v8365 = vld [vmem:[%s6353 + $0x84] sm:$0xf]
      %v8366 = vld [vmem:[%s6353 + $0x88] sm:$0xf]
      %v8367 = vld [vmem:[%s6353 + $0x90] sm:$0xf]
      %v8368 = vld [vmem:[%s6353 + $0x94] sm:$0xf]
      %v8369 = vld [vmem:[%s6353 + $0x9c] sm:$0xf]
      %v8370 = vld [vmem:[%s6353 + $0xa0] sm:$0xf]
      %v8371 = vld [vmem:[%s6353 + $0xa8] sm:$0xf]
      %v8372 = vld [vmem:[%s6353 + $0xac] sm:$0xf]
      %v8373 = vld [vmem:[%s6353 + $0xb4] sm:$0xf]
      %v8374 = vld [vmem:[%s6353 + $0xb8] sm:$0xf]
      %s8375 = scalar_lea.vmem %s3, 24
      %v8376 = vld [vmem:[%s8375] sm:$0xf]
      %v8377 = vld [vmem:[%s8375 + $0x4] sm:$0xf]
      %v8410 = vunpack.c.l.b16 %v8343
      %v8411 = vunpack.c.l.b16 %v8344
      %v8412 = vunpack.c.l.b16 %v8345
      %v8413 = vunpack.c.l.b16 %v8346
      %v8414 = vunpack.c.l.b16 %v8347
      %v8415 = vunpack.c.l.b16 %v8348
      %v8416 = vunpack.c.l.b16 %v8349
      %v8417 = vunpack.c.l.b16 %v8350
      %v8418 = vunpack.c.l.b16 %v8351
      %v8419 = vunpack.c.l.b16 %v8352
      %v8420 = vunpack.c.l.b16 %v8353
      %v8421 = vunpack.c.l.b16 %v8354
      %v8422 = vunpack.c.l.b16 %v8355
      %v8423 = vunpack.c.l.b16 %v8356
      %v8424 = vunpack.c.l.b16 %v8357
      %v8425 = vunpack.c.l.b16 %v8358
      %v8426 = vunpack.c.l.b16 %v8359
      %v8427 = vunpack.c.l.b16 %v8360
      %v8428 = vunpack.c.l.b16 %v8361
      %v8429 = vunpack.c.l.b16 %v8362
      %v8430 = vunpack.c.l.b16 %v8363
      %v8431 = vunpack.c.l.b16 %v8364
      %v8432 = vunpack.c.l.b16 %v8365
      %v8433 = vunpack.c.l.b16 %v8366
      %v8434 = vunpack.c.l.b16 %v8367
      %v8435 = vunpack.c.l.b16 %v8368
      %v8436 = vunpack.c.l.b16 %v8369
      %v8437 = vunpack.c.l.b16 %v8370
      %v8438 = vunpack.c.l.b16 %v8371
      %v8439 = vunpack.c.l.b16 %v8372
      %v8440 = vunpack.c.l.b16 %v8373
      %v8441 = vunpack.c.l.b16 %v8374
      %v8442 = vpack.c.b16 %v8411, %v8410
      %v8443 = vpack.c.b16 %v8413, %v8412
      %v8444 = vpack.c.b16 %v8415, %v8414
      %v8445 = vpack.c.b16 %v8417, %v8416
      %v8446 = vpack.c.b16 %v8419, %v8418
      %v8447 = vpack.c.b16 %v8421, %v8420
      %v8448 = vpack.c.b16 %v8423, %v8422
      %v8449 = vpack.c.b16 %v8425, %v8424
      %v8450 = vpack.c.b16 %v8427, %v8426
      %v8451 = vpack.c.b16 %v8429, %v8428
      %v8452 = vpack.c.b16 %v8431, %v8430
      %v8453 = vpack.c.b16 %v8433, %v8432
      %v8454 = vpack.c.b16 %v8435, %v8434
      %v8455 = vpack.c.b16 %v8437, %v8436
      %v8456 = vpack.c.b16 %v8439, %v8438
      %v8457 = vpack.c.b16 %v8441, %v8440
      %v8460 = vunpack.c.l.b16 %v8376
      %v8461 = vunpack.c.l.b16 %v8377
      %v8462 = vpack.c.b16 %v8461, %v8460
      %v8465 = vsel %vm6897, %v8442, 0
      %v8468 = vsel %vm6897, %v8443, 0
      %v8471 = vsel %vm6897, %v8444, 0
      %v8474 = vsel %vm6897, %v8445, 0
      %v8477 = vsel %vm6897, %v8446, 0
      %v8480 = vsel %vm6897, %v8447, 0
      %v8483 = vsel %vm6897, %v8448, 0
      %v8486 = vsel %vm6897, %v8449, 0
      %v8489 = vsel %vm6897, %v8450, 0
      %v8492 = vsel %vm6897, %v8451, 0
      %v8495 = vsel %vm6897, %v8452, 0
      %v8498 = vsel %vm6897, %v8453, 0
      %v8501 = vsel %vm6897, %v8454, 0
      %v8504 = vsel %vm6897, %v8455, 0
      %v8507 = vsel %vm6897, %v8456, 0
      %v8510 = vsel %vm6897, %v8457, 0
      %8512 = vmatprep.subr.bf16.mxu0 0
      %8513 = vmatpush1.bf16.msra.mxu0 %v8462
      %8514 = vmatprep.subr.bf16.mxu0 0
      %8515 = vmatpush1.bf16.msra.mxu0 0
      %8516 = vmatprep.subr.bf16.mxu0 0
      %8517 = vmatpush1.bf16.msra.mxu0 0
      %8518 = vmatprep.subr.bf16.mxu0 0
      %8519 = vmatpush1.bf16.msra.mxu0 0
      %8520 = vmatprep.subr.bf16.mxu0 0
      %8521 = vmatpush1.bf16.msra.mxu0 0
      %8522 = vmatprep.subr.bf16.mxu0 0
      %8523 = vmatpush1.bf16.msra.mxu0 0
      %8524 = vmatprep.subr.bf16.mxu0 0
      %8525 = vmatpush1.bf16.msra.mxu0 0
      %8526 = vmatprep.subr.bf16.mxu0 0
      %8527 = vmatpush1.bf16.msra.mxu0 0
      %8528 = vmatprep.subr.bf16.mxu0 0
      %8529 = vmatpush1.bf16.msra.mxu0 0
      %8530 = vmatprep.subr.bf16.mxu0 0
      %8531 = vmatpush1.bf16.msra.mxu0 0
      %8532 = vmatprep.subr.bf16.mxu0 0
      %8533 = vmatpush1.bf16.msra.mxu0 0
      %8534 = vmatprep.subr.bf16.mxu0 0
      %8535 = vmatpush1.bf16.msra.mxu0 0
      %8536 = vmatprep.subr.bf16.mxu0 0
      %8537 = vmatpush1.bf16.msra.mxu0 0
      %8538 = vmatprep.subr.bf16.mxu0 0
      %8539 = vmatpush1.bf16.msra.mxu0 0
      %8540 = vmatprep.subr.bf16.mxu0 0
      %8541 = vmatpush1.bf16.msra.mxu0 0
      %8542 = vmatprep.subr.bf16.mxu0 0
      %8543 = vmatpush1.bf16.msra.mxu0 0
      %8544 = vmatprep.mubr.bf16.mxu0 0
      %8545 = vmatmul.mubr.bf16.gmra.mrb[0].mxu0 %v8465
      %v8546 = vpop.f32.mrb[0].mxu0
      %v8547 = vadd.f32 0.0, %v8546
      %v8548 = vpop.f32.mrb[0].mxu0
      %v8549 = vpop.f32.mrb[0].mxu0
      %v8550 = vadd.f32 0.0, %v8549
      %v8551 = vpop.f32.mrb[0].mxu0
      %8552 = vmatprep.mubr.bf16.mxu0 0
      %8553 = vmatmul.mubr.bf16.gmra.mrb[0].mxu0 %v8468
      %v8554 = vpop.f32.mrb[0].mxu0
      %v8555 = vadd.f32 0.0, %v8554
      %v8556 = vpop.f32.mrb[0].mxu0
      %v8557 = vpop.f32.mrb[0].mxu0
      %v8558 = vadd.f32 0.0, %v8557
      %v8559 = vpop.f32.mrb[0].mxu0
      %8560 = vmatprep.mubr.bf16.mxu0 0
      %8561 = vmatmul.mubr.bf16.gmra.mrb[0].mxu0 %v8471
      %v8562 = vpop.f32.mrb[0].mxu0
      %v8563 = vadd.f32 0.0, %v8562
      %v8564 = vpop.f32.mrb[0].mxu0
      %v8565 = vpop.f32.mrb[0].mxu0
      %v8566 = vadd.f32 0.0, %v8565
      %v8567 = vpop.f32.mrb[0].mxu0
      %8568 = vmatprep.mubr.bf16.mxu0 0
      %8569 = vmatmul.mubr.bf16.gmra.mrb[0].mxu0 %v8474
      %v8570 = vpop.f32.mrb[0].mxu0
      %v8571 = vadd.f32 0.0, %v8570
      %v8572 = vpop.f32.mrb[0].mxu0
      %v8573 = vpop.f32.mrb[0].mxu0
      %v8574 = vadd.f32 0.0, %v8573
      %v8575 = vpop.f32.mrb[0].mxu0
      %8576 = vmatprep.mubr.bf16.mxu0 0
      %8577 = vmatmul.mubr.bf16.gmra.mrb[0].mxu0 %v8477
      %v8578 = vpop.f32.mrb[0].mxu0
      %v8579 = vadd.f32 0.0, %v8578
      %v8580 = vpop.f32.mrb[0].mxu0
      %v8581 = vpop.f32.mrb[0].mxu0
      %v8582 = vadd.f32 0.0, %v8581
      %v8583 = vpop.f32.mrb[0].mxu0
      %8584 = vmatprep.mubr.bf16.mxu0 0
      %8585 = vmatmul.mubr.bf16.gmra.mrb[0].mxu0 %v8480
      %v8586 = vpop.f32.mrb[0].mxu0
      %v8587 = vadd.f32 0.0, %v8586
      %v8588 = vpop.f32.mrb[0].mxu0
      %v8589 = vpop.f32.mrb[0].mxu0
      %v8590 = vadd.f32 0.0, %v8589
      %v8591 = vpop.f32.mrb[0].mxu0
      %8592 = vmatprep.mubr.bf16.mxu0 0
      %8593 = vmatmul.mubr.bf16.gmra.mrb[0].mxu0 %v8483
      %v8594 = vpop.f32.mrb[0].mxu0
      %v8595 = vadd.f32 0.0, %v8594
      %v8596 = vpop.f32.mrb[0].mxu0
      %v8597 = vpop.f32.mrb[0].mxu0
      %v8598 = vadd.f32 0.0, %v8597
      %v8599 = vpop.f32.mrb[0].mxu0
      %8600 = vmatprep.mubr.bf16.mxu0 0
      %8601 = vmatmul.mubr.bf16.gmra.mrb[0].mxu0 %v8486
      %v8602 = vpop.f32.mrb[0].mxu0
      %v8603 = vadd.f32 0.0, %v8602
      %v8604 = vpop.f32.mrb[0].mxu0
      %v8605 = vpop.f32.mrb[0].mxu0
      %v8606 = vadd.f32 0.0, %v8605
      %v8607 = vpop.f32.mrb[0].mxu0
      %8608 = vmatprep.mubr.bf16.mxu0 0
      %8609 = vmatmul.mubr.bf16.gmra.mrb[0].mxu0 %v8489
      %v8610 = vpop.f32.mrb[0].mxu0
      %v8611 = vadd.f32 0.0, %v8610
      %v8612 = vpop.f32.mrb[0].mxu0
      %v8613 = vpop.f32.mrb[0].mxu0
      %v8614 = vadd.f32 0.0, %v8613
      %v8615 = vpop.f32.mrb[0].mxu0
      %8616 = vmatprep.mubr.bf16.mxu0 0
      %8617 = vmatmul.mubr.bf16.gmra.mrb[0].mxu0 %v8492
      %v8618 = vpop.f32.mrb[0].mxu0
      %v8619 = vadd.f32 0.0, %v8618
      %v8620 = vpop.f32.mrb[0].mxu0
      %v8621 = vpop.f32.mrb[0].mxu0
      %v8622 = vadd.f32 0.0, %v8621
      %v8623 = vpop.f32.mrb[0].mxu0
      %8624 = vmatprep.mubr.bf16.mxu0 0
      %8625 = vmatmul.mubr.bf16.gmra.mrb[0].mxu0 %v8495
      %v8626 = vpop.f32.mrb[0].mxu0
      %v8627 = vadd.f32 0.0, %v8626
      %v8628 = vpop.f32.mrb[0].mxu0
      %v8629 = vpop.f32.mrb[0].mxu0
      %v8630 = vadd.f32 0.0, %v8629
      %v8631 = vpop.f32.mrb[0].mxu0
      %8632 = vmatprep.mubr.bf16.mxu0 0
      %8633 = vmatmul.mubr.bf16.gmra.mrb[0].mxu0 %v8498
      %v8634 = vpop.f32.mrb[0].mxu0
      %v8635 = vadd.f32 0.0, %v8634
      %v8636 = vpop.f32.mrb[0].mxu0
      %v8637 = vpop.f32.mrb[0].mxu0
      %v8638 = vadd.f32 0.0, %v8637
      %v8639 = vpop.f32.mrb[0].mxu0
      %8640 = vmatprep.mubr.bf16.mxu0 0
      %8641 = vmatmul.mubr.bf16.gmra.mrb[0].mxu0 %v8501
      %v8642 = vpop.f32.mrb[0].mxu0
      %v8643 = vadd.f32 0.0, %v8642
      %v8644 = vpop.f32.mrb[0].mxu0
      %v8645 = vpop.f32.mrb[0].mxu0
      %v8646 = vadd.f32 0.0, %v8645
      %v8647 = vpop.f32.mrb[0].mxu0
      %8648 = vmatprep.mubr.bf16.mxu0 0
      %8649 = vmatmul.mubr.bf16.gmra.mrb[0].mxu0 %v8504
      %v8650 = vpop.f32.mrb[0].mxu0
      %v8651 = vadd.f32 0.0, %v8650
      %v8652 = vpop.f32.mrb[0].mxu0
      %v8653 = vpop.f32.mrb[0].mxu0
      %v8654 = vadd.f32 0.0, %v8653
      %v8655 = vpop.f32.mrb[0].mxu0
      %8656 = vmatprep.mubr.bf16.mxu0 0
      %8657 = vmatmul.mubr.bf16.gmra.mrb[0].mxu0 %v8507
      %v8658 = vpop.f32.mrb[0].mxu0
      %v8659 = vadd.f32 0.0, %v8658
      %v8660 = vpop.f32.mrb[0].mxu0
      %v8661 = vpop.f32.mrb[0].mxu0
      %v8662 = vadd.f32 0.0, %v8661
      %v8663 = vpop.f32.mrb[0].mxu0
      %8664 = vmatprep.mubr.bf16.mxu0 0
      %8665 = vmatmul.mubr.bf16.gmra.mrb[0].mxu0 %v8510
      %v8666 = vpop.f32.mrb[0].mxu0
      %v8667 = vadd.f32 0.0, %v8666
      %v8668 = vpop.f32.mrb[0].mxu0
      %v8669 = vpop.f32.mrb[0].mxu0
      %v8670 = vadd.f32 0.0, %v8669
      %v8671 = vpop.f32.mrb[0].mxu0
      %8672 = vdwg.mxu0
      %v8673 = vadd.f32 %v8311, %v8547
      %v8674 = vadd.f32 %v8312, %v8550
      %v8675 = vadd.f32 %v8313, %v8555
      %v8676 = vadd.f32 %v8314, %v8558
      %v8677 = vadd.f32 %v8315, %v8563
      %v8678 = vadd.f32 %v8316, %v8566
      %v8679 = vadd.f32 %v8317, %v8571
      %v8680 = vadd.f32 %v8318, %v8574
      %v8681 = vadd.f32 %v8319, %v8579
      %v8682 = vadd.f32 %v8320, %v8582
      %v8683 = vadd.f32 %v8321, %v8587
      %v8684 = vadd.f32 %v8322, %v8590
      %v8685 = vadd.f32 %v8323, %v8595
      %v8686 = vadd.f32 %v8324, %v8598
      %v8687 = vadd.f32 %v8325, %v8603
      %v8688 = vadd.f32 %v8326, %v8606
      %v8689 = vadd.f32 %v8327, %v8611
      %v8690 = vadd.f32 %v8328, %v8614
      %v8691 = vadd.f32 %v8329, %v8619
      %v8692 = vadd.f32 %v8330, %v8622
      %v8693 = vadd.f32 %v8331, %v8627
      %v8694 = vadd.f32 %v8332, %v8630
      %v8695 = vadd.f32 %v8333, %v8635
      %v8696 = vadd.f32 %v8334, %v8638
      %v8697 = vadd.f32 %v8335, %v8643
      %v8698 = vadd.f32 %v8336, %v8646
      %v8699 = vadd.f32 %v8337, %v8651
      %v8700 = vadd.f32 %v8338, %v8654
      %v8701 = vadd.f32 %v8339, %v8659
      %v8702 = vadd.f32 %v8340, %v8662
      %v8703 = vadd.f32 %v8341, %v8667
      %v8704 = vadd.f32 %v8342, %v8670
      %v8705 = vld [vmem:[%s6353] sm:$0xf]
      %v8706 = vld [vmem:[%s6353 + $0x4] sm:$0xf]
      %v8707 = vld [vmem:[%s6353 + $0x8] sm:$0x1]
      %v8708 = vld [vmem:[%s6353 + $0xc] sm:$0xf]
      %v8709 = vld [vmem:[%s6353 + $0x10] sm:$0xf]
      %v8710 = vld [vmem:[%s6353 + $0x14] sm:$0x1]
      %v8711 = vld [vmem:[%s6353 + $0x18] sm:$0xf]
      %v8712 = vld [vmem:[%s6353 + $0x1c] sm:$0xf]
      %v8713 = vld [vmem:[%s6353 + $0x20] sm:$0x1]
      %v8714 = vld [vmem:[%s6353 + $0x24] sm:$0xf]
      %v8715 = vld [vmem:[%s6353 + $0x28] sm:$0xf]
      %v8716 = vld [vmem:[%s6353 + $0x2c] sm:$0x1]
      %v8717 = vld [vmem:[%s6353 + $0x30] sm:$0xf]
      %v8718 = vld [vmem:[%s6353 + $0x34] sm:$0xf]
      %v8719 = vld [vmem:[%s6353 + $0x38] sm:$0x1]
      %v8720 = vld [vmem:[%s6353 + $0x3c] sm:$0xf]
      %v8721 = vld [vmem:[%s6353 + $0x40] sm:$0xf]
      %v8722 = vld [vmem:[%s6353 + $0x44] sm:$0x1]
      %v8723 = vld [vmem:[%s6353 + $0x48] sm:$0xf]
      %v8724 = vld [vmem:[%s6353 + $0x4c] sm:$0xf]
      %v8725 = vld [vmem:[%s6353 + $0x50] sm:$0x1]
      %v8726 = vld [vmem:[%s6353 + $0x54] sm:$0xf]
      %v8727 = vld [vmem:[%s6353 + $0x58] sm:$0xf]
      %v8728 = vld [vmem:[%s6353 + $0x5c] sm:$0x1]
      %v8729 = vld [vmem:[%s6353 + $0x60] sm:$0xf]
      %v8730 = vld [vmem:[%s6353 + $0x64] sm:$0xf]
      %v8731 = vld [vmem:[%s6353 + $0x68] sm:$0x1]
      %v8732 = vld [vmem:[%s6353 + $0x6c] sm:$0xf]
      %v8733 = vld [vmem:[%s6353 + $0x70] sm:$0xf]
      %v8734 = vld [vmem:[%s6353 + $0x74] sm:$0x1]
      %v8735 = vld [vmem:[%s6353 + $0x78] sm:$0xf]
      %v8736 = vld [vmem:[%s6353 + $0x7c] sm:$0xf]
      %v8737 = vld [vmem:[%s6353 + $0x80] sm:$0x1]
      %v8738 = vld [vmem:[%s6353 + $0x84] sm:$0xf]
      %v8739 = vld [vmem:[%s6353 + $0x88] sm:$0xf]
      %v8740 = vld [vmem:[%s6353 + $0x8c] sm:$0x1]
      %v8741 = vld [vmem:[%s6353 + $0x90] sm:$0xf]
      %v8742 = vld [vmem:[%s6353 + $0x94] sm:$0xf]
      %v8743 = vld [vmem:[%s6353 + $0x98] sm:$0x1]
      %v8744 = vld [vmem:[%s6353 + $0x9c] sm:$0xf]
      %v8745 = vld [vmem:[%s6353 + $0xa0] sm:$0xf]
      %v8746 = vld [vmem:[%s6353 + $0xa4] sm:$0x1]
      %v8747 = vld [vmem:[%s6353 + $0xa8] sm:$0xf]
      %v8748 = vld [vmem:[%s6353 + $0xac] sm:$0xf]
      %v8749 = vld [vmem:[%s6353 + $0xb0] sm:$0x1]
      %v8750 = vld [vmem:[%s6353 + $0xb4] sm:$0xf]
      %v8751 = vld [vmem:[%s6353 + $0xb8] sm:$0xf]
      %v8752 = vld [vmem:[%s6353 + $0xbc] sm:$0x1]
      %v8754 = vshrl.u32 %v8705, 16
      %v8756 = vrot.slane %v8754, 4
      %v8757 = vshll.u32 %v8705, 16
      %v8759 = vrot.slane %v8757, 5
      %v8760 = vor.u32 %v8756, %v8759
      %v8761 = vrot.slane %v8760, 4
      %v8763 = vshll.u32 %v8706, 16
      %v8765 = vrot.slane %v8763, 5
      %v8766 = vsel %vm1264, %v8761, %v8765
      %v8767 = vshrl.u32 %v8706, 16
      %v8769 = vrot.slane %v8767, 4
      %v8770 = vor.u32 %v8769, %v8765
      %v8771 = vrot.slane %v8770, 4
      %v8773 = vshll.u32 %v8707, 16
      %v8775 = vrot.slane %v8773, 5
      %v8776 = vsel %vm1264, %v8771, %v8775
      %v8778 = vshrl.u32 %v8708, 16
      %v8780 = vrot.slane %v8778, 4
      %v8781 = vshll.u32 %v8708, 16
      %v8783 = vrot.slane %v8781, 5
      %v8784 = vor.u32 %v8780, %v8783
      %v8785 = vrot.slane %v8784, 4
      %v8787 = vshll.u32 %v8709, 16
      %v8789 = vrot.slane %v8787, 5
      %v8790 = vsel %vm1264, %v8785, %v8789
      %v8791 = vshrl.u32 %v8709, 16
      %v8793 = vrot.slane %v8791, 4
      %v8794 = vor.u32 %v8793, %v8789
      %v8795 = vrot.slane %v8794, 4
      %v8797 = vshll.u32 %v8710, 16
      %v8799 = vrot.slane %v8797, 5
      %v8800 = vsel %vm1264, %v8795, %v8799
      %v8802 = vshrl.u32 %v8711, 16
      %v8804 = vrot.slane %v8802, 4
      %v8805 = vshll.u32 %v8711, 16
      %v8807 = vrot.slane %v8805, 5
      %v8808 = vor.u32 %v8804, %v8807
      %v8809 = vrot.slane %v8808, 4
      %v8811 = vshll.u32 %v8712, 16
      %v8813 = vrot.slane %v8811, 5
      %v8814 = vsel %vm1264, %v8809, %v8813
      %v8815 = vshrl.u32 %v8712, 16
      %v8817 = vrot.slane %v8815, 4
      %v8818 = vor.u32 %v8817, %v8813
      %v8819 = vrot.slane %v8818, 4
      %v8821 = vshll.u32 %v8713, 16
      %v8823 = vrot.slane %v8821, 5
      %v8824 = vsel %vm1264, %v8819, %v8823
      %v8826 = vshrl.u32 %v8714, 16
      %v8828 = vrot.slane %v8826, 4
      %v8829 = vshll.u32 %v8714, 16
      %v8831 = vrot.slane %v8829, 5
      %v8832 = vor.u32 %v8828, %v8831
      %v8833 = vrot.slane %v8832, 4
      %v8835 = vshll.u32 %v8715, 16
      %v8837 = vrot.slane %v8835, 5
      %v8838 = vsel %vm1264, %v8833, %v8837
      %v8839 = vshrl.u32 %v8715, 16
      %v8841 = vrot.slane %v8839, 4
      %v8842 = vor.u32 %v8841, %v8837
      %v8843 = vrot.slane %v8842, 4
      %v8845 = vshll.u32 %v8716, 16
      %v8847 = vrot.slane %v8845, 5
      %v8848 = vsel %vm1264, %v8843, %v8847
      %v8850 = vshrl.u32 %v8717, 16
      %v8852 = vrot.slane %v8850, 4
      %v8853 = vshll.u32 %v8717, 16
      %v8855 = vrot.slane %v8853, 5
      %v8856 = vor.u32 %v8852, %v8855
      %v8857 = vrot.slane %v8856, 4
      %v8859 = vshll.u32 %v8718, 16
      %v8861 = vrot.slane %v8859, 5
      %v8862 = vsel %vm1264, %v8857, %v8861
      %v8863 = vshrl.u32 %v8718, 16
      %v8865 = vrot.slane %v8863, 4
      %v8866 = vor.u32 %v8865, %v8861
      %v8867 = vrot.slane %v8866, 4
      %v8869 = vshll.u32 %v8719, 16
      %v8871 = vrot.slane %v8869, 5
      %v8872 = vsel %vm1264, %v8867, %v8871
      %v8874 = vshrl.u32 %v8720, 16
      %v8876 = vrot.slane %v8874, 4
      %v8877 = vshll.u32 %v8720, 16
      %v8879 = vrot.slane %v8877, 5
      %v8880 = vor.u32 %v8876, %v8879
      %v8881 = vrot.slane %v8880, 4
      %v8883 = vshll.u32 %v8721, 16
      %v8885 = vrot.slane %v8883, 5
      %v8886 = vsel %vm1264, %v8881, %v8885
      %v8887 = vshrl.u32 %v8721, 16
      %v8889 = vrot.slane %v8887, 4
      %v8890 = vor.u32 %v8889, %v8885
      %v8891 = vrot.slane %v8890, 4
      %v8893 = vshll.u32 %v8722, 16
      %v8895 = vrot.slane %v8893, 5
      %v8896 = vsel %vm1264, %v8891, %v8895
      %v8898 = vshrl.u32 %v8723, 16
      %v8900 = vrot.slane %v8898, 4
      %v8901 = vshll.u32 %v8723, 16
      %v8903 = vrot.slane %v8901, 5
      %v8904 = vor.u32 %v8900, %v8903
      %v8905 = vrot.slane %v8904, 4
      %v8907 = vshll.u32 %v8724, 16
      %v8909 = vrot.slane %v8907, 5
      %v8910 = vsel %vm1264, %v8905, %v8909
      %v8911 = vshrl.u32 %v8724, 16
      %v8913 = vrot.slane %v8911, 4
      %v8914 = vor.u32 %v8913, %v8909
      %v8915 = vrot.slane %v8914, 4
      %v8917 = vshll.u32 %v8725, 16
      %v8919 = vrot.slane %v8917, 5
      %v8920 = vsel %vm1264, %v8915, %v8919
      %v8922 = vshrl.u32 %v8726, 16
      %v8924 = vrot.slane %v8922, 4
      %v8925 = vshll.u32 %v8726, 16
      %v8927 = vrot.slane %v8925, 5
      %v8928 = vor.u32 %v8924, %v8927
      %v8929 = vrot.slane %v8928, 4
      %v8931 = vshll.u32 %v8727, 16
      %v8933 = vrot.slane %v8931, 5
      %v8934 = vsel %vm1264, %v8929, %v8933
      %v8935 = vshrl.u32 %v8727, 16
      %v8937 = vrot.slane %v8935, 4
      %v8938 = vor.u32 %v8937, %v8933
      %v8939 = vrot.slane %v8938, 4
      %v8941 = vshll.u32 %v8728, 16
      %v8943 = vrot.slane %v8941, 5
      %v8944 = vsel %vm1264, %v8939, %v8943
      %v8946 = vshrl.u32 %v8729, 16
      %v8948 = vrot.slane %v8946, 4
      %v8949 = vshll.u32 %v8729, 16
      %v8951 = vrot.slane %v8949, 5
      %v8952 = vor.u32 %v8948, %v8951
      %v8953 = vrot.slane %v8952, 4
      %v8955 = vshll.u32 %v8730, 16
      %v8957 = vrot.slane %v8955, 5
      %v8958 = vsel %vm1264, %v8953, %v8957
      %v8959 = vshrl.u32 %v8730, 16
      %v8961 = vrot.slane %v8959, 4
      %v8962 = vor.u32 %v8961, %v8957
      %v8963 = vrot.slane %v8962, 4
      %v8965 = vshll.u32 %v8731, 16
      %v8967 = vrot.slane %v8965, 5
      %v8968 = vsel %vm1264, %v8963, %v8967
      %v8970 = vshrl.u32 %v8732, 16
      %v8972 = vrot.slane %v8970, 4
      %v8973 = vshll.u32 %v8732, 16
      %v8975 = vrot.slane %v8973, 5
      %v8976 = vor.u32 %v8972, %v8975
      %v8977 = vrot.slane %v8976, 4
      %v8979 = vshll.u32 %v8733, 16
      %v8981 = vrot.slane %v8979, 5
      %v8982 = vsel %vm1264, %v8977, %v8981
      %v8983 = vshrl.u32 %v8733, 16
      %v8985 = vrot.slane %v8983, 4
      %v8986 = vor.u32 %v8985, %v8981
      %v8987 = vrot.slane %v8986, 4
      %v8989 = vshll.u32 %v8734, 16
      %v8991 = vrot.slane %v8989, 5
      %v8992 = vsel %vm1264, %v8987, %v8991
      %v8994 = vshrl.u32 %v8735, 16
      %v8996 = vrot.slane %v8994, 4
      %v8997 = vshll.u32 %v8735, 16
      %v8999 = vrot.slane %v8997, 5
      %v9000 = vor.u32 %v8996, %v8999
      %v9001 = vrot.slane %v9000, 4
      %v9003 = vshll.u32 %v8736, 16
      %v9005 = vrot.slane %v9003, 5
      %v9006 = vsel %vm1264, %v9001, %v9005
      %v9007 = vshrl.u32 %v8736, 16
      %v9009 = vrot.slane %v9007, 4
      %v9010 = vor.u32 %v9009, %v9005
      %v9011 = vrot.slane %v9010, 4
      %v9013 = vshll.u32 %v8737, 16
      %v9015 = vrot.slane %v9013, 5
      %v9016 = vsel %vm1264, %v9011, %v9015
      %v9018 = vshrl.u32 %v8738, 16
      %v9020 = vrot.slane %v9018, 4
      %v9021 = vshll.u32 %v8738, 16
      %v9023 = vrot.slane %v9021, 5
      %v9024 = vor.u32 %v9020, %v9023
      %v9025 = vrot.slane %v9024, 4
      %v9027 = vshll.u32 %v8739, 16
      %v9029 = vrot.slane %v9027, 5
      %v9030 = vsel %vm1264, %v9025, %v9029
      %v9031 = vshrl.u32 %v8739, 16
      %v9033 = vrot.slane %v9031, 4
      %v9034 = vor.u32 %v9033, %v9029
      %v9035 = vrot.slane %v9034, 4
      %v9037 = vshll.u32 %v8740, 16
      %v9039 = vrot.slane %v9037, 5
      %v9040 = vsel %vm1264, %v9035, %v9039
      %v9042 = vshrl.u32 %v8741, 16
      %v9044 = vrot.slane %v9042, 4
      %v9045 = vshll.u32 %v8741, 16
      %v9047 = vrot.slane %v9045, 5
      %v9048 = vor.u32 %v9044, %v9047
      %v9049 = vrot.slane %v9048, 4
      %v9051 = vshll.u32 %v8742, 16
      %v9053 = vrot.slane %v9051, 5
      %v9054 = vsel %vm1264, %v9049, %v9053
      %v9055 = vshrl.u32 %v8742, 16
      %v9057 = vrot.slane %v9055, 4
      %v9058 = vor.u32 %v9057, %v9053
      %v9059 = vrot.slane %v9058, 4
      %v9061 = vshll.u32 %v8743, 16
      %v9063 = vrot.slane %v9061, 5
      %v9064 = vsel %vm1264, %v9059, %v9063
      %v9066 = vshrl.u32 %v8744, 16
      %v9068 = vrot.slane %v9066, 4
      %v9069 = vshll.u32 %v8744, 16
      %v9071 = vrot.slane %v9069, 5
      %v9072 = vor.u32 %v9068, %v9071
      %v9073 = vrot.slane %v9072, 4
      %v9075 = vshll.u32 %v8745, 16
      %v9077 = vrot.slane %v9075, 5
      %v9078 = vsel %vm1264, %v9073, %v9077
      %v9079 = vshrl.u32 %v8745, 16
      %v9081 = vrot.slane %v9079, 4
      %v9082 = vor.u32 %v9081, %v9077
      %v9083 = vrot.slane %v9082, 4
      %v9085 = vshll.u32 %v8746, 16
      %v9087 = vrot.slane %v9085, 5
      %v9088 = vsel %vm1264, %v9083, %v9087
      %v9090 = vshrl.u32 %v8747, 16
      %v9092 = vrot.slane %v9090, 4
      %v9093 = vshll.u32 %v8747, 16
      %v9095 = vrot.slane %v9093, 5
      %v9096 = vor.u32 %v9092, %v9095
      %v9097 = vrot.slane %v9096, 4
      %v9099 = vshll.u32 %v8748, 16
      %v9101 = vrot.slane %v9099, 5
      %v9102 = vsel %vm1264, %v9097, %v9101
      %v9103 = vshrl.u32 %v8748, 16
      %v9105 = vrot.slane %v9103, 4
      %v9106 = vor.u32 %v9105, %v9101
      %v9107 = vrot.slane %v9106, 4
      %v9109 = vshll.u32 %v8749, 16
      %v9111 = vrot.slane %v9109, 5
      %v9112 = vsel %vm1264, %v9107, %v9111
      %v9114 = vshrl.u32 %v8750, 16
      %v9116 = vrot.slane %v9114, 4
      %v9117 = vshll.u32 %v8750, 16
      %v9119 = vrot.slane %v9117, 5
      %v9120 = vor.u32 %v9116, %v9119
      %v9121 = vrot.slane %v9120, 4
      %v9123 = vshll.u32 %v8751, 16
      %v9125 = vrot.slane %v9123, 5
      %v9126 = vsel %vm1264, %v9121, %v9125
      %v9127 = vshrl.u32 %v8751, 16
      %v9129 = vrot.slane %v9127, 4
      %v9130 = vor.u32 %v9129, %v9125
      %v9131 = vrot.slane %v9130, 4
      %v9133 = vshll.u32 %v8752, 16
      %v9135 = vrot.slane %v9133, 5
      %v9136 = vsel %vm1264, %v9131, %v9135
      %s9137 = scalar_lea.vmem %s3, 32
      %v9138 = vld [vmem:[%s9137] sm:$0xf]
      %v9139 = vld [vmem:[%s9137 + $0x4] sm:$0xf]
      %v9140 = vunpack.c.l.b16 %v8766
      %v9141 = vunpack.c.l.b16 %v8776
      %v9142 = vunpack.c.l.b16 %v8790
      %v9143 = vunpack.c.l.b16 %v8800
      %v9144 = vunpack.c.l.b16 %v8814
      %v9145 = vunpack.c.l.b16 %v8824
      %v9146 = vunpack.c.l.b16 %v8838
      %v9147 = vunpack.c.l.b16 %v8848
      %v9148 = vunpack.c.l.b16 %v8862
      %v9149 = vunpack.c.l.b16 %v8872
      %v9150 = vunpack.c.l.b16 %v8886
      %v9151 = vunpack.c.l.b16 %v8896
      %v9152 = vunpack.c.l.b16 %v8910
      %v9153 = vunpack.c.l.b16 %v8920
      %v9154 = vunpack.c.l.b16 %v8934
      %v9155 = vunpack.c.l.b16 %v8944
      %v9156 = vunpack.c.l.b16 %v8958
      %v9157 = vunpack.c.l.b16 %v8968
      %v9158 = vunpack.c.l.b16 %v8982
      %v9159 = vunpack.c.l.b16 %v8992
      %v9160 = vunpack.c.l.b16 %v9006
      %v9161 = vunpack.c.l.b16 %v9016
      %v9162 = vunpack.c.l.b16 %v9030
      %v9163 = vunpack.c.l.b16 %v9040
      %v9164 = vunpack.c.l.b16 %v9054
      %v9165 = vunpack.c.l.b16 %v9064
      %v9166 = vunpack.c.l.b16 %v9078
      %v9167 = vunpack.c.l.b16 %v9088
      %v9168 = vunpack.c.l.b16 %v9102
      %v9169 = vunpack.c.l.b16 %v9112
      %v9170 = vunpack.c.l.b16 %v9126
      %v9171 = vunpack.c.l.b16 %v9136
      %v9172 = vpack.c.b16 %v9141, %v9140
      %v9173 = vpack.c.b16 %v9143, %v9142
      %v9174 = vpack.c.b16 %v9145, %v9144
      %v9175 = vpack.c.b16 %v9147, %v9146
      %v9176 = vpack.c.b16 %v9149, %v9148
      %v9177 = vpack.c.b16 %v9151, %v9150
      %v9178 = vpack.c.b16 %v9153, %v9152
      %v9179 = vpack.c.b16 %v9155, %v9154
      %v9180 = vpack.c.b16 %v9157, %v9156
      %v9181 = vpack.c.b16 %v9159, %v9158
      %v9182 = vpack.c.b16 %v9161, %v9160
      %v9183 = vpack.c.b16 %v9163, %v9162
      %v9184 = vpack.c.b16 %v9165, %v9164
      %v9185 = vpack.c.b16 %v9167, %v9166
      %v9186 = vpack.c.b16 %v9169, %v9168
      %v9187 = vpack.c.b16 %v9171, %v9170
      %v9190 = vunpack.c.l.b16 %v9138
      %v9191 = vunpack.c.l.b16 %v9139
      %v9192 = vpack.c.b16 %v9191, %v9190
      %v9195 = vsel %vm6897, %v9172, 0
      %v9198 = vsel %vm6897, %v9173, 0
      %v9201 = vsel %vm6897, %v9174, 0
      %v9204 = vsel %vm6897, %v9175, 0
      %v9207 = vsel %vm6897, %v9176, 0
      %v9210 = vsel %vm6897, %v9177, 0
      %v9213 = vsel %vm6897, %v9178, 0
      %v9216 = vsel %vm6897, %v9179, 0
      %v9219 = vsel %vm6897, %v9180, 0
      %v9222 = vsel %vm6897, %v9181, 0
      %v9225 = vsel %vm6897, %v9182, 0
      %v9228 = vsel %vm6897, %v9183, 0
      %v9231 = vsel %vm6897, %v9184, 0
      %v9234 = vsel %vm6897, %v9185, 0
      %v9237 = vsel %vm6897, %v9186, 0
      %v9240 = vsel %vm6897, %v9187, 0
      %9242 = vmatprep.subr.bf16.mxu0 0
      %9243 = vmatpush1.bf16.msra.mxu0 %v9192
      %9244 = vmatprep.subr.bf16.mxu0 0
      %9245 = vmatpush1.bf16.msra.mxu0 0
      %9246 = vmatprep.subr.bf16.mxu0 0
      %9247 = vmatpush1.bf16.msra.mxu0 0
      %9248 = vmatprep.subr.bf16.mxu0 0
      %9249 = vmatpush1.bf16.msra.mxu0 0
      %9250 = vmatprep.subr.bf16.mxu0 0
      %9251 = vmatpush1.bf16.msra.mxu0 0
      %9252 = vmatprep.subr.bf16.mxu0 0
      %9253 = vmatpush1.bf16.msra.mxu0 0
      %9254 = vmatprep.subr.bf16.mxu0 0
      %9255 = vmatpush1.bf16.msra.mxu0 0
      %9256 = vmatprep.subr.bf16.mxu0 0
      %9257 = vmatpush1.bf16.msra.mxu0 0
      %9258 = vmatprep.subr.bf16.mxu0 0
      %9259 = vmatpush1.bf16.msra.mxu0 0
      %9260 = vmatprep.subr.bf16.mxu0 0
      %9261 = vmatpush1.bf16.msra.mxu0 0
      %9262 = vmatprep.subr.bf16.mxu0 0
      %9263 = vmatpush1.bf16.msra.mxu0 0
      %9264 = vmatprep.subr.bf16.mxu0 0
      %9265 = vmatpush1.bf16.msra.mxu0 0
      %9266 = vmatprep.subr.bf16.mxu0 0
      %9267 = vmatpush1.bf16.msra.mxu0 0
      %9268 = vmatprep.subr.bf16.mxu0 0
      %9269 = vmatpush1.bf16.msra.mxu0 0
      %9270 = vmatprep.subr.bf16.mxu0 0
      %9271 = vmatpush1.bf16.msra.mxu0 0
      %9272 = vmatprep.subr.bf16.mxu0 0
      %9273 = vmatpush1.bf16.msra.mxu0 0
      %9274 = vmatprep.mubr.bf16.mxu0 0
      %9275 = vmatmul.mubr.bf16.gmra.mrb[0].mxu0 %v9195
      %v9276 = vpop.f32.mrb[0].mxu0
      %v9277 = vadd.f32 0.0, %v9276
      %v9278 = vpop.f32.mrb[0].mxu0
      %v9279 = vpop.f32.mrb[0].mxu0
      %v9280 = vadd.f32 0.0, %v9279
      %v9281 = vpop.f32.mrb[0].mxu0
      %9282 = vmatprep.mubr.bf16.mxu0 0
      %9283 = vmatmul.mubr.bf16.gmra.mrb[0].mxu0 %v9198
      %v9284 = vpop.f32.mrb[0].mxu0
      %v9285 = vadd.f32 0.0, %v9284
      %v9286 = vpop.f32.mrb[0].mxu0
      %v9287 = vpop.f32.mrb[0].mxu0
      %v9288 = vadd.f32 0.0, %v9287
      %v9289 = vpop.f32.mrb[0].mxu0
      %9290 = vmatprep.mubr.bf16.mxu0 0
      %9291 = vmatmul.mubr.bf16.gmra.mrb[0].mxu0 %v9201
      %v9292 = vpop.f32.mrb[0].mxu0
      %v9293 = vadd.f32 0.0, %v9292
      %v9294 = vpop.f32.mrb[0].mxu0
      %v9295 = vpop.f32.mrb[0].mxu0
      %v9296 = vadd.f32 0.0, %v9295
      %v9297 = vpop.f32.mrb[0].mxu0
      %9298 = vmatprep.mubr.bf16.mxu0 0
      %9299 = vmatmul.mubr.bf16.gmra.mrb[0].mxu0 %v9204
      %v9300 = vpop.f32.mrb[0].mxu0
      %v9301 = vadd.f32 0.0, %v9300
      %v9302 = vpop.f32.mrb[0].mxu0
      %v9303 = vpop.f32.mrb[0].mxu0
      %v9304 = vadd.f32 0.0, %v9303
      %v9305 = vpop.f32.mrb[0].mxu0
      %9306 = vmatprep.mubr.bf16.mxu0 0
      %9307 = vmatmul.mubr.bf16.gmra.mrb[0].mxu0 %v9207
      %v9308 = vpop.f32.mrb[0].mxu0
      %v9309 = vadd.f32 0.0, %v9308
      %v9310 = vpop.f32.mrb[0].mxu0
      %v9311 = vpop.f32.mrb[0].mxu0
      %v9312 = vadd.f32 0.0, %v9311
      %v9313 = vpop.f32.mrb[0].mxu0
      %9314 = vmatprep.mubr.bf16.mxu0 0
      %9315 = vmatmul.mubr.bf16.gmra.mrb[0].mxu0 %v9210
      %v9316 = vpop.f32.mrb[0].mxu0
      %v9317 = vadd.f32 0.0, %v9316
      %v9318 = vpop.f32.mrb[0].mxu0
      %v9319 = vpop.f32.mrb[0].mxu0
      %v9320 = vadd.f32 0.0, %v9319
      %v9321 = vpop.f32.mrb[0].mxu0
      %9322 = vmatprep.mubr.bf16.mxu0 0
      %9323 = vmatmul.mubr.bf16.gmra.mrb[0].mxu0 %v9213
      %v9324 = vpop.f32.mrb[0].mxu0
      %v9325 = vadd.f32 0.0, %v9324
      %v9326 = vpop.f32.mrb[0].mxu0
      %v9327 = vpop.f32.mrb[0].mxu0
      %v9328 = vadd.f32 0.0, %v9327
      %v9329 = vpop.f32.mrb[0].mxu0
      %9330 = vmatprep.mubr.bf16.mxu0 0
      %9331 = vmatmul.mubr.bf16.gmra.mrb[0].mxu0 %v9216
      %v9332 = vpop.f32.mrb[0].mxu0
      %v9333 = vadd.f32 0.0, %v9332
      %v9334 = vpop.f32.mrb[0].mxu0
      %v9335 = vpop.f32.mrb[0].mxu0
      %v9336 = vadd.f32 0.0, %v9335
      %v9337 = vpop.f32.mrb[0].mxu0
      %9338 = vmatprep.mubr.bf16.mxu0 0
      %9339 = vmatmul.mubr.bf16.gmra.mrb[0].mxu0 %v9219
      %v9340 = vpop.f32.mrb[0].mxu0
      %v9341 = vadd.f32 0.0, %v9340
      %v9342 = vpop.f32.mrb[0].mxu0
      %v9343 = vpop.f32.mrb[0].mxu0
      %v9344 = vadd.f32 0.0, %v9343
      %v9345 = vpop.f32.mrb[0].mxu0
      %9346 = vmatprep.mubr.bf16.mxu0 0
      %9347 = vmatmul.mubr.bf16.gmra.mrb[0].mxu0 %v9222
      %v9348 = vpop.f32.mrb[0].mxu0
      %v9349 = vadd.f32 0.0, %v9348
      %v9350 = vpop.f32.mrb[0].mxu0
      %v9351 = vpop.f32.mrb[0].mxu0
      %v9352 = vadd.f32 0.0, %v9351
      %v9353 = vpop.f32.mrb[0].mxu0
      %9354 = vmatprep.mubr.bf16.mxu0 0
      %9355 = vmatmul.mubr.bf16.gmra.mrb[0].mxu0 %v9225
      %v9356 = vpop.f32.mrb[0].mxu0
      %v9357 = vadd.f32 0.0, %v9356
      %v9358 = vpop.f32.mrb[0].mxu0
      %v9359 = vpop.f32.mrb[0].mxu0
      %v9360 = vadd.f32 0.0, %v9359
      %v9361 = vpop.f32.mrb[0].mxu0
      %9362 = vmatprep.mubr.bf16.mxu0 0
      %9363 = vmatmul.mubr.bf16.gmra.mrb[0].mxu0 %v9228
      %v9364 = vpop.f32.mrb[0].mxu0
      %v9365 = vadd.f32 0.0, %v9364
      %v9366 = vpop.f32.mrb[0].mxu0
      %v9367 = vpop.f32.mrb[0].mxu0
      %v9368 = vadd.f32 0.0, %v9367
      %v9369 = vpop.f32.mrb[0].mxu0
      %9370 = vmatprep.mubr.bf16.mxu0 0
      %9371 = vmatmul.mubr.bf16.gmra.mrb[0].mxu0 %v9231
      %v9372 = vpop.f32.mrb[0].mxu0
      %v9373 = vadd.f32 0.0, %v9372
      %v9374 = vpop.f32.mrb[0].mxu0
      %v9375 = vpop.f32.mrb[0].mxu0
      %v9376 = vadd.f32 0.0, %v9375
      %v9377 = vpop.f32.mrb[0].mxu0
      %9378 = vmatprep.mubr.bf16.mxu0 0
      %9379 = vmatmul.mubr.bf16.gmra.mrb[0].mxu0 %v9234
      %v9380 = vpop.f32.mrb[0].mxu0
      %v9381 = vadd.f32 0.0, %v9380
      %v9382 = vpop.f32.mrb[0].mxu0
      %v9383 = vpop.f32.mrb[0].mxu0
      %v9384 = vadd.f32 0.0, %v9383
      %v9385 = vpop.f32.mrb[0].mxu0
      %9386 = vmatprep.mubr.bf16.mxu0 0
      %9387 = vmatmul.mubr.bf16.gmra.mrb[0].mxu0 %v9237
      %v9388 = vpop.f32.mrb[0].mxu0
      %v9389 = vadd.f32 0.0, %v9388
      %v9390 = vpop.f32.mrb[0].mxu0
      %v9391 = vpop.f32.mrb[0].mxu0
      %v9392 = vadd.f32 0.0, %v9391
      %v9393 = vpop.f32.mrb[0].mxu0
      %9394 = vmatprep.mubr.bf16.mxu0 0
      %9395 = vmatmul.mubr.bf16.gmra.mrb[0].mxu0 %v9240
      %v9396 = vpop.f32.mrb[0].mxu0
      %v9397 = vadd.f32 0.0, %v9396
      %v9398 = vpop.f32.mrb[0].mxu0
      %v9399 = vpop.f32.mrb[0].mxu0
      %v9400 = vadd.f32 0.0, %v9399
      %v9401 = vpop.f32.mrb[0].mxu0
      %9402 = vdwg.mxu0
      %v9403 = vadd.f32 %v8673, %v9277
      %v9404 = vadd.f32 %v8674, %v9280
      %v9405 = vadd.f32 %v8675, %v9285
      %v9406 = vadd.f32 %v8676, %v9288
      %v9407 = vadd.f32 %v8677, %v9293
      %v9408 = vadd.f32 %v8678, %v9296
      %v9409 = vadd.f32 %v8679, %v9301
      %v9410 = vadd.f32 %v8680, %v9304
      %v9411 = vadd.f32 %v8681, %v9309
      %v9412 = vadd.f32 %v8682, %v9312
      %v9413 = vadd.f32 %v8683, %v9317
      %v9414 = vadd.f32 %v8684, %v9320
      %v9415 = vadd.f32 %v8685, %v9325
      %v9416 = vadd.f32 %v8686, %v9328
      %v9417 = vadd.f32 %v8687, %v9333
      %v9418 = vadd.f32 %v8688, %v9336
      %v9419 = vadd.f32 %v8689, %v9341
      %v9420 = vadd.f32 %v8690, %v9344
      %v9421 = vadd.f32 %v8691, %v9349
      %v9422 = vadd.f32 %v8692, %v9352
      %v9423 = vadd.f32 %v8693, %v9357
      %v9424 = vadd.f32 %v8694, %v9360
      %v9425 = vadd.f32 %v8695, %v9365
      %v9426 = vadd.f32 %v8696, %v9368
      %v9427 = vadd.f32 %v8697, %v9373
      %v9428 = vadd.f32 %v8698, %v9376
      %v9429 = vadd.f32 %v8699, %v9381
      %v9430 = vadd.f32 %v8700, %v9384
      %v9431 = vadd.f32 %v8701, %v9389
      %v9432 = vadd.f32 %v8702, %v9392
      %v9433 = vadd.f32 %v8703, %v9397
      %v9434 = vadd.f32 %v8704, %v9400
      %v9435 = vld [vmem:[%s6353] sm:$0xe]
      %v9436 = vld [vmem:[%s6353 + $0xc] sm:$0xe]
      %v9437 = vld [vmem:[%s6353 + $0x18] sm:$0xe]
      %v9438 = vld [vmem:[%s6353 + $0x24] sm:$0xe]
      %v9439 = vld [vmem:[%s6353 + $0x30] sm:$0xe]
      %v9440 = vld [vmem:[%s6353 + $0x3c] sm:$0xe]
      %v9441 = vld [vmem:[%s6353 + $0x48] sm:$0xe]
      %v9442 = vld [vmem:[%s6353 + $0x54] sm:$0xe]
      %v9443 = vld [vmem:[%s6353 + $0x60] sm:$0xe]
      %v9444 = vld [vmem:[%s6353 + $0x6c] sm:$0xe]
      %v9445 = vld [vmem:[%s6353 + $0x78] sm:$0xe]
      %v9446 = vld [vmem:[%s6353 + $0x84] sm:$0xe]
      %v9447 = vld [vmem:[%s6353 + $0x90] sm:$0xe]
      %v9448 = vld [vmem:[%s6353 + $0x9c] sm:$0xe]
      %v9449 = vld [vmem:[%s6353 + $0xa8] sm:$0xe]
      %v9450 = vld [vmem:[%s6353 + $0xb4] sm:$0xe]
      %v9499 = vrot.slane %v9435, 5
      %v9500 = vrot.slane %v9499, 4
      %v9501 = vrot.slane %v8706, 5
      %v9502 = vsel %vm2255, %v9500, %v9501
      %v9503 = vrot.slane %v9501, 4
      %v9504 = vrot.slane %v8707, 5
      %v9505 = vsel %vm2255, %v9503, %v9504
      %v9506 = vrot.slane %v9436, 5
      %v9507 = vrot.slane %v9506, 4
      %v9508 = vrot.slane %v8709, 5
      %v9509 = vsel %vm2255, %v9507, %v9508
      %v9510 = vrot.slane %v9508, 4
      %v9511 = vrot.slane %v8710, 5
      %v9512 = vsel %vm2255, %v9510, %v9511
      %v9513 = vrot.slane %v9437, 5
      %v9514 = vrot.slane %v9513, 4
      %v9515 = vrot.slane %v8712, 5
      %v9516 = vsel %vm2255, %v9514, %v9515
      %v9517 = vrot.slane %v9515, 4
      %v9518 = vrot.slane %v8713, 5
      %v9519 = vsel %vm2255, %v9517, %v9518
      %v9520 = vrot.slane %v9438, 5
      %v9521 = vrot.slane %v9520, 4
      %v9522 = vrot.slane %v8715, 5
      %v9523 = vsel %vm2255, %v9521, %v9522
      %v9524 = vrot.slane %v9522, 4
      %v9525 = vrot.slane %v8716, 5
      %v9526 = vsel %vm2255, %v9524, %v9525
      %v9527 = vrot.slane %v9439, 5
      %v9528 = vrot.slane %v9527, 4
      %v9529 = vrot.slane %v8718, 5
      %v9530 = vsel %vm2255, %v9528, %v9529
      %v9531 = vrot.slane %v9529, 4
      %v9532 = vrot.slane %v8719, 5
      %v9533 = vsel %vm2255, %v9531, %v9532
      %v9534 = vrot.slane %v9440, 5
      %v9535 = vrot.slane %v9534, 4
      %v9536 = vrot.slane %v8721, 5
      %v9537 = vsel %vm2255, %v9535, %v9536
      %v9538 = vrot.slane %v9536, 4
      %v9539 = vrot.slane %v8722, 5
      %v9540 = vsel %vm2255, %v9538, %v9539
      %v9541 = vrot.slane %v9441, 5
      %v9542 = vrot.slane %v9541, 4
      %v9543 = vrot.slane %v8724, 5
      %v9544 = vsel %vm2255, %v9542, %v9543
      %v9545 = vrot.slane %v9543, 4
      %v9546 = vrot.slane %v8725, 5
      %v9547 = vsel %vm2255, %v9545, %v9546
      %v9548 = vrot.slane %v9442, 5
      %v9549 = vrot.slane %v9548, 4
      %v9550 = vrot.slane %v8727, 5
      %v9551 = vsel %vm2255, %v9549, %v9550
      %v9552 = vrot.slane %v9550, 4
      %v9553 = vrot.slane %v8728, 5
      %v9554 = vsel %vm2255, %v9552, %v9553
      %v9555 = vrot.slane %v9443, 5
      %v9556 = vrot.slane %v9555, 4
      %v9557 = vrot.slane %v8730, 5
      %v9558 = vsel %vm2255, %v9556, %v9557
      %v9559 = vrot.slane %v9557, 4
      %v9560 = vrot.slane %v8731, 5
      %v9561 = vsel %vm2255, %v9559, %v9560
      %v9562 = vrot.slane %v9444, 5
      %v9563 = vrot.slane %v9562, 4
      %v9564 = vrot.slane %v8733, 5
      %v9565 = vsel %vm2255, %v9563, %v9564
      %v9566 = vrot.slane %v9564, 4
      %v9567 = vrot.slane %v8734, 5
      %v9568 = vsel %vm2255, %v9566, %v9567
      %v9569 = vrot.slane %v9445, 5
      %v9570 = vrot.slane %v9569, 4
      %v9571 = vrot.slane %v8736, 5
      %v9572 = vsel %vm2255, %v9570, %v9571
      %v9573 = vrot.slane %v9571, 4
      %v9574 = vrot.slane %v8737, 5
      %v9575 = vsel %vm2255, %v9573, %v9574
      %v9576 = vrot.slane %v9446, 5
      %v9577 = vrot.slane %v9576, 4
      %v9578 = vrot.slane %v8739, 5
      %v9579 = vsel %vm2255, %v9577, %v9578
      %v9580 = vrot.slane %v9578, 4
      %v9581 = vrot.slane %v8740, 5
      %v9582 = vsel %vm2255, %v9580, %v9581
      %v9583 = vrot.slane %v9447, 5
      %v9584 = vrot.slane %v9583, 4
      %v9585 = vrot.slane %v8742, 5
      %v9586 = vsel %vm2255, %v9584, %v9585
      %v9587 = vrot.slane %v9585, 4
      %v9588 = vrot.slane %v8743, 5
      %v9589 = vsel %vm2255, %v9587, %v9588
      %v9590 = vrot.slane %v9448, 5
      %v9591 = vrot.slane %v9590, 4
      %v9592 = vrot.slane %v8745, 5
      %v9593 = vsel %vm2255, %v9591, %v9592
      %v9594 = vrot.slane %v9592, 4
      %v9595 = vrot.slane %v8746, 5
      %v9596 = vsel %vm2255, %v9594, %v9595
      %v9597 = vrot.slane %v9449, 5
      %v9598 = vrot.slane %v9597, 4
      %v9599 = vrot.slane %v8748, 5
      %v9600 = vsel %vm2255, %v9598, %v9599
      %v9601 = vrot.slane %v9599, 4
      %v9602 = vrot.slane %v8749, 5
      %v9603 = vsel %vm2255, %v9601, %v9602
      %v9604 = vrot.slane %v9450, 5
      %v9605 = vrot.slane %v9604, 4
      %v9606 = vrot.slane %v8751, 5
      %v9607 = vsel %vm2255, %v9605, %v9606
      %v9608 = vrot.slane %v9606, 4
      %v9609 = vrot.slane %v8752, 5
      %v9610 = vsel %vm2255, %v9608, %v9609
      %s9611 = scalar_lea.vmem %s3, 40
      %v9612 = vld [vmem:[%s9611] sm:$0xf]
      %v9613 = vld [vmem:[%s9611 + $0x4] sm:$0xf]
      %v9614 = vunpack.c.l.b16 %v9502
      %v9615 = vunpack.c.l.b16 %v9505
      %v9616 = vunpack.c.l.b16 %v9509
      %v9617 = vunpack.c.l.b16 %v9512
      %v9618 = vunpack.c.l.b16 %v9516
      %v9619 = vunpack.c.l.b16 %v9519
      %v9620 = vunpack.c.l.b16 %v9523
      %v9621 = vunpack.c.l.b16 %v9526
      %v9622 = vunpack.c.l.b16 %v9530
      %v9623 = vunpack.c.l.b16 %v9533
      %v9624 = vunpack.c.l.b16 %v9537
      %v9625 = vunpack.c.l.b16 %v9540
      %v9626 = vunpack.c.l.b16 %v9544
      %v9627 = vunpack.c.l.b16 %v9547
      %v9628 = vunpack.c.l.b16 %v9551
      %v9629 = vunpack.c.l.b16 %v9554
      %v9630 = vunpack.c.l.b16 %v9558
      %v9631 = vunpack.c.l.b16 %v9561
      %v9632 = vunpack.c.l.b16 %v9565
      %v9633 = vunpack.c.l.b16 %v9568
      %v9634 = vunpack.c.l.b16 %v9572
      %v9635 = vunpack.c.l.b16 %v9575
      %v9636 = vunpack.c.l.b16 %v9579
      %v9637 = vunpack.c.l.b16 %v9582
      %v9638 = vunpack.c.l.b16 %v9586
      %v9639 = vunpack.c.l.b16 %v9589
      %v9640 = vunpack.c.l.b16 %v9593
      %v9641 = vunpack.c.l.b16 %v9596
      %v9642 = vunpack.c.l.b16 %v9600
      %v9643 = vunpack.c.l.b16 %v9603
      %v9644 = vunpack.c.l.b16 %v9607
      %v9645 = vunpack.c.l.b16 %v9610
      %v9646 = vpack.c.b16 %v9615, %v9614
      %v9647 = vpack.c.b16 %v9617, %v9616
      %v9648 = vpack.c.b16 %v9619, %v9618
      %v9649 = vpack.c.b16 %v9621, %v9620
      %v9650 = vpack.c.b16 %v9623, %v9622
      %v9651 = vpack.c.b16 %v9625, %v9624
      %v9652 = vpack.c.b16 %v9627, %v9626
      %v9653 = vpack.c.b16 %v9629, %v9628
      %v9654 = vpack.c.b16 %v9631, %v9630
      %v9655 = vpack.c.b16 %v9633, %v9632
      %v9656 = vpack.c.b16 %v9635, %v9634
      %v9657 = vpack.c.b16 %v9637, %v9636
      %v9658 = vpack.c.b16 %v9639, %v9638
      %v9659 = vpack.c.b16 %v9641, %v9640
      %v9660 = vpack.c.b16 %v9643, %v9642
      %v9661 = vpack.c.b16 %v9645, %v9644
      %v9664 = vunpack.c.l.b16 %v9612
      %v9665 = vunpack.c.l.b16 %v9613
      %v9666 = vpack.c.b16 %v9665, %v9664
      %v9669 = vsel %vm6897, %v9646, 0
      %v9672 = vsel %vm6897, %v9647, 0
      %v9675 = vsel %vm6897, %v9648, 0
      %v9678 = vsel %vm6897, %v9649, 0
      %v9681 = vsel %vm6897, %v9650, 0
      %v9684 = vsel %vm6897, %v9651, 0
      %v9687 = vsel %vm6897, %v9652, 0
      %v9690 = vsel %vm6897, %v9653, 0
      %v9693 = vsel %vm6897, %v9654, 0
      %v9696 = vsel %vm6897, %v9655, 0
      %v9699 = vsel %vm6897, %v9656, 0
      %v9702 = vsel %vm6897, %v9657, 0
      %v9705 = vsel %vm6897, %v9658, 0
      %v9708 = vsel %vm6897, %v9659, 0
      %v9711 = vsel %vm6897, %v9660, 0
      %v9714 = vsel %vm6897, %v9661, 0
      %9716 = vmatprep.subr.bf16.mxu0 0
      %9717 = vmatpush1.bf16.msra.mxu0 %v9666
      %9718 = vmatprep.subr.bf16.mxu0 0
      %9719 = vmatpush1.bf16.msra.mxu0 0
      %9720 = vmatprep.subr.bf16.mxu0 0
      %9721 = vmatpush1.bf16.msra.mxu0 0
      %9722 = vmatprep.subr.bf16.mxu0 0
      %9723 = vmatpush1.bf16.msra.mxu0 0
      %9724 = vmatprep.subr.bf16.mxu0 0
      %9725 = vmatpush1.bf16.msra.mxu0 0
      %9726 = vmatprep.subr.bf16.mxu0 0
      %9727 = vmatpush1.bf16.msra.mxu0 0
      %9728 = vmatprep.subr.bf16.mxu0 0
      %9729 = vmatpush1.bf16.msra.mxu0 0
      %9730 = vmatprep.subr.bf16.mxu0 0
      %9731 = vmatpush1.bf16.msra.mxu0 0
      %9732 = vmatprep.subr.bf16.mxu0 0
      %9733 = vmatpush1.bf16.msra.mxu0 0
      %9734 = vmatprep.subr.bf16.mxu0 0
      %9735 = vmatpush1.bf16.msra.mxu0 0
      %9736 = vmatprep.subr.bf16.mxu0 0
      %9737 = vmatpush1.bf16.msra.mxu0 0
      %9738 = vmatprep.subr.bf16.mxu0 0
      %9739 = vmatpush1.bf16.msra.mxu0 0
      %9740 = vmatprep.subr.bf16.mxu0 0
      %9741 = vmatpush1.bf16.msra.mxu0 0
      %9742 = vmatprep.subr.bf16.mxu0 0
      %9743 = vmatpush1.bf16.msra.mxu0 0
      %9744 = vmatprep.subr.bf16.mxu0 0
      %9745 = vmatpush1.bf16.msra.mxu0 0
      %9746 = vmatprep.subr.bf16.mxu0 0
      %9747 = vmatpush1.bf16.msra.mxu0 0
      %9748 = vmatprep.mubr.bf16.mxu0 0
      %9749 = vmatmul.mubr.bf16.gmra.mrb[0].mxu0 %v9669
      %v9750 = vpop.f32.mrb[0].mxu0
      %v9751 = vadd.f32 0.0, %v9750
      %v9752 = vpop.f32.mrb[0].mxu0
      %v9753 = vpop.f32.mrb[0].mxu0
      %v9754 = vadd.f32 0.0, %v9753
      %v9755 = vpop.f32.mrb[0].mxu0
      %9756 = vmatprep.mubr.bf16.mxu0 0
      %9757 = vmatmul.mubr.bf16.gmra.mrb[0].mxu0 %v9672
      %v9758 = vpop.f32.mrb[0].mxu0
      %v9759 = vadd.f32 0.0, %v9758
      %v9760 = vpop.f32.mrb[0].mxu0
      %v9761 = vpop.f32.mrb[0].mxu0
      %v9762 = vadd.f32 0.0, %v9761
      %v9763 = vpop.f32.mrb[0].mxu0
      %9764 = vmatprep.mubr.bf16.mxu0 0
      %9765 = vmatmul.mubr.bf16.gmra.mrb[0].mxu0 %v9675
      %v9766 = vpop.f32.mrb[0].mxu0
      %v9767 = vadd.f32 0.0, %v9766
      %v9768 = vpop.f32.mrb[0].mxu0
      %v9769 = vpop.f32.mrb[0].mxu0
      %v9770 = vadd.f32 0.0, %v9769
      %v9771 = vpop.f32.mrb[0].mxu0
      %9772 = vmatprep.mubr.bf16.mxu0 0
      %9773 = vmatmul.mubr.bf16.gmra.mrb[0].mxu0 %v9678
      %v9774 = vpop.f32.mrb[0].mxu0
      %v9775 = vadd.f32 0.0, %v9774
      %v9776 = vpop.f32.mrb[0].mxu0
      %v9777 = vpop.f32.mrb[0].mxu0
      %v9778 = vadd.f32 0.0, %v9777
      %v9779 = vpop.f32.mrb[0].mxu0
      %9780 = vmatprep.mubr.bf16.mxu0 0
      %9781 = vmatmul.mubr.bf16.gmra.mrb[0].mxu0 %v9681
      %v9782 = vpop.f32.mrb[0].mxu0
      %v9783 = vadd.f32 0.0, %v9782
      %v9784 = vpop.f32.mrb[0].mxu0
      %v9785 = vpop.f32.mrb[0].mxu0
      %v9786 = vadd.f32 0.0, %v9785
      %v9787 = vpop.f32.mrb[0].mxu0
      %9788 = vmatprep.mubr.bf16.mxu0 0
      %9789 = vmatmul.mubr.bf16.gmra.mrb[0].mxu0 %v9684
      %v9790 = vpop.f32.mrb[0].mxu0
      %v9791 = vadd.f32 0.0, %v9790
      %v9792 = vpop.f32.mrb[0].mxu0
      %v9793 = vpop.f32.mrb[0].mxu0
      %v9794 = vadd.f32 0.0, %v9793
      %v9795 = vpop.f32.mrb[0].mxu0
      %9796 = vmatprep.mubr.bf16.mxu0 0
      %9797 = vmatmul.mubr.bf16.gmra.mrb[0].mxu0 %v9687
      %v9798 = vpop.f32.mrb[0].mxu0
      %v9799 = vadd.f32 0.0, %v9798
      %v9800 = vpop.f32.mrb[0].mxu0
      %v9801 = vpop.f32.mrb[0].mxu0
      %v9802 = vadd.f32 0.0, %v9801
      %v9803 = vpop.f32.mrb[0].mxu0
      %9804 = vmatprep.mubr.bf16.mxu0 0
      %9805 = vmatmul.mubr.bf16.gmra.mrb[0].mxu0 %v9690
      %v9806 = vpop.f32.mrb[0].mxu0
      %v9807 = vadd.f32 0.0, %v9806
      %v9808 = vpop.f32.mrb[0].mxu0
      %v9809 = vpop.f32.mrb[0].mxu0
      %v9810 = vadd.f32 0.0, %v9809
      %v9811 = vpop.f32.mrb[0].mxu0
      %9812 = vmatprep.mubr.bf16.mxu0 0
      %9813 = vmatmul.mubr.bf16.gmra.mrb[0].mxu0 %v9693
      %v9814 = vpop.f32.mrb[0].mxu0
      %v9815 = vadd.f32 0.0, %v9814
      %v9816 = vpop.f32.mrb[0].mxu0
      %v9817 = vpop.f32.mrb[0].mxu0
      %v9818 = vadd.f32 0.0, %v9817
      %v9819 = vpop.f32.mrb[0].mxu0
      %9820 = vmatprep.mubr.bf16.mxu0 0
      %9821 = vmatmul.mubr.bf16.gmra.mrb[0].mxu0 %v9696
      %v9822 = vpop.f32.mrb[0].mxu0
      %v9823 = vadd.f32 0.0, %v9822
      %v9824 = vpop.f32.mrb[0].mxu0
      %v9825 = vpop.f32.mrb[0].mxu0
      %v9826 = vadd.f32 0.0, %v9825
      %v9827 = vpop.f32.mrb[0].mxu0
      %9828 = vmatprep.mubr.bf16.mxu0 0
      %9829 = vmatmul.mubr.bf16.gmra.mrb[0].mxu0 %v9699
      %v9830 = vpop.f32.mrb[0].mxu0
      %v9831 = vadd.f32 0.0, %v9830
      %v9832 = vpop.f32.mrb[0].mxu0
      %v9833 = vpop.f32.mrb[0].mxu0
      %v9834 = vadd.f32 0.0, %v9833
      %v9835 = vpop.f32.mrb[0].mxu0
      %9836 = vmatprep.mubr.bf16.mxu0 0
      %9837 = vmatmul.mubr.bf16.gmra.mrb[0].mxu0 %v9702
      %v9838 = vpop.f32.mrb[0].mxu0
      %v9839 = vadd.f32 0.0, %v9838
      %v9840 = vpop.f32.mrb[0].mxu0
      %v9841 = vpop.f32.mrb[0].mxu0
      %v9842 = vadd.f32 0.0, %v9841
      %v9843 = vpop.f32.mrb[0].mxu0
      %9844 = vmatprep.mubr.bf16.mxu0 0
      %9845 = vmatmul.mubr.bf16.gmra.mrb[0].mxu0 %v9705
      %v9846 = vpop.f32.mrb[0].mxu0
      %v9847 = vadd.f32 0.0, %v9846
      %v9848 = vpop.f32.mrb[0].mxu0
      %v9849 = vpop.f32.mrb[0].mxu0
      %v9850 = vadd.f32 0.0, %v9849
      %v9851 = vpop.f32.mrb[0].mxu0
      %9852 = vmatprep.mubr.bf16.mxu0 0
      %9853 = vmatmul.mubr.bf16.gmra.mrb[0].mxu0 %v9708
      %v9854 = vpop.f32.mrb[0].mxu0
      %v9855 = vadd.f32 0.0, %v9854
      %v9856 = vpop.f32.mrb[0].mxu0
      %v9857 = vpop.f32.mrb[0].mxu0
      %v9858 = vadd.f32 0.0, %v9857
      %v9859 = vpop.f32.mrb[0].mxu0
      %9860 = vmatprep.mubr.bf16.mxu0 0
      %9861 = vmatmul.mubr.bf16.gmra.mrb[0].mxu0 %v9711
      %v9862 = vpop.f32.mrb[0].mxu0
      %v9863 = vadd.f32 0.0, %v9862
      %v9864 = vpop.f32.mrb[0].mxu0
      %v9865 = vpop.f32.mrb[0].mxu0
      %v9866 = vadd.f32 0.0, %v9865
      %v9867 = vpop.f32.mrb[0].mxu0
      %9868 = vmatprep.mubr.bf16.mxu0 0
      %9869 = vmatmul.mubr.bf16.gmra.mrb[0].mxu0 %v9714
      %v9870 = vpop.f32.mrb[0].mxu0
      %v9871 = vadd.f32 0.0, %v9870
      %v9872 = vpop.f32.mrb[0].mxu0
      %v9873 = vpop.f32.mrb[0].mxu0
      %v9874 = vadd.f32 0.0, %v9873
      %v9875 = vpop.f32.mrb[0].mxu0
      %9876 = vdwg.mxu0
      %v9877 = vadd.f32 %v9403, %v9751
      %v9878 = vadd.f32 %v9404, %v9754
      %v9879 = vadd.f32 %v9405, %v9759
      %v9880 = vadd.f32 %v9406, %v9762
      %v9881 = vadd.f32 %v9407, %v9767
      %v9882 = vadd.f32 %v9408, %v9770
      %v9883 = vadd.f32 %v9409, %v9775
      %v9884 = vadd.f32 %v9410, %v9778
      %v9885 = vadd.f32 %v9411, %v9783
      %v9886 = vadd.f32 %v9412, %v9786
      %v9887 = vadd.f32 %v9413, %v9791
      %v9888 = vadd.f32 %v9414, %v9794
      %v9889 = vadd.f32 %v9415, %v9799
      %v9890 = vadd.f32 %v9416, %v9802
      %v9891 = vadd.f32 %v9417, %v9807
      %v9892 = vadd.f32 %v9418, %v9810
      %v9893 = vadd.f32 %v9419, %v9815
      %v9894 = vadd.f32 %v9420, %v9818
      %v9895 = vadd.f32 %v9421, %v9823
      %v9896 = vadd.f32 %v9422, %v9826
      %v9897 = vadd.f32 %v9423, %v9831
      %v9898 = vadd.f32 %v9424, %v9834
      %v9899 = vadd.f32 %v9425, %v9839
      %v9900 = vadd.f32 %v9426, %v9842
      %v9901 = vadd.f32 %v9427, %v9847
      %v9902 = vadd.f32 %v9428, %v9850
      %v9903 = vadd.f32 %v9429, %v9855
      %v9904 = vadd.f32 %v9430, %v9858
      %v9905 = vadd.f32 %v9431, %v9863
      %v9906 = vadd.f32 %v9432, %v9866
      %v9907 = vadd.f32 %v9433, %v9871
      %v9908 = vadd.f32 %v9434, %v9874
      %s9909 = scalar_lea.vmem [#allocation3], 24
      %v9910 = vld [vmem:[%s9909] sm:$0xf]
      %v9911 = vld [vmem:[%s9909 + $0x4] sm:$0xf]
      %v9912 = vld [vmem:[%s9909 + $0xc] sm:$0xf]
      %v9913 = vld [vmem:[%s9909 + $0x10] sm:$0xf]
      %v9914 = vld [vmem:[%s9909 + $0x18] sm:$0xf]
      %v9915 = vld [vmem:[%s9909 + $0x1c] sm:$0xf]
      %v9916 = vld [vmem:[%s9909 + $0x24] sm:$0xf]
      %v9917 = vld [vmem:[%s9909 + $0x28] sm:$0xf]
      %v9918 = vld [vmem:[%s9909 + $0x30] sm:$0xf]
      %v9919 = vld [vmem:[%s9909 + $0x34] sm:$0xf]
      %v9920 = vld [vmem:[%s9909 + $0x3c] sm:$0xf]
      %v9921 = vld [vmem:[%s9909 + $0x40] sm:$0xf]
      %v9922 = vld [vmem:[%s9909 + $0x48] sm:$0xf]
      %v9923 = vld [vmem:[%s9909 + $0x4c] sm:$0xf]
      %v9924 = vld [vmem:[%s9909 + $0x54] sm:$0xf]
      %v9925 = vld [vmem:[%s9909 + $0x58] sm:$0xf]
      %v9926 = vld [vmem:[%s9909 + $0x60] sm:$0xf]
      %v9927 = vld [vmem:[%s9909 + $0x64] sm:$0xf]
      %v9928 = vld [vmem:[%s9909 + $0x6c] sm:$0xf]
      %v9929 = vld [vmem:[%s9909 + $0x70] sm:$0xf]
      %v9930 = vld [vmem:[%s9909 + $0x78] sm:$0xf]
      %v9931 = vld [vmem:[%s9909 + $0x7c] sm:$0xf]
      %v9932 = vld [vmem:[%s9909 + $0x84] sm:$0xf]
      %v9933 = vld [vmem:[%s9909 + $0x88] sm:$0xf]
      %v9934 = vld [vmem:[%s9909 + $0x90] sm:$0xf]
      %v9935 = vld [vmem:[%s9909 + $0x94] sm:$0xf]
      %v9936 = vld [vmem:[%s9909 + $0x9c] sm:$0xf]
      %v9937 = vld [vmem:[%s9909 + $0xa0] sm:$0xf]
      %v9938 = vld [vmem:[%s9909 + $0xa8] sm:$0xf]
      %v9939 = vld [vmem:[%s9909 + $0xac] sm:$0xf]
      %v9940 = vld [vmem:[%s9909 + $0xb4] sm:$0xf]
      %v9941 = vld [vmem:[%s9909 + $0xb8] sm:$0xf]
      %s9942 = scalar_lea.vmem %s3, 48
      %v9943 = vld [vmem:[%s9942] sm:$0xf]
      %v9944 = vld [vmem:[%s9942 + $0x4] sm:$0xf]
      %v9977 = vunpack.c.l.b16 %v9910
      %v9978 = vunpack.c.l.b16 %v9911
      %v9979 = vunpack.c.l.b16 %v9912
      %v9980 = vunpack.c.l.b16 %v9913
      %v9981 = vunpack.c.l.b16 %v9914
      %v9982 = vunpack.c.l.b16 %v9915
      %v9983 = vunpack.c.l.b16 %v9916
      %v9984 = vunpack.c.l.b16 %v9917
      %v9985 = vunpack.c.l.b16 %v9918
      %v9986 = vunpack.c.l.b16 %v9919
      %v9987 = vunpack.c.l.b16 %v9920
      %v9988 = vunpack.c.l.b16 %v9921
      %v9989 = vunpack.c.l.b16 %v9922
      %v9990 = vunpack.c.l.b16 %v9923
      %v9991 = vunpack.c.l.b16 %v9924
      %v9992 = vunpack.c.l.b16 %v9925
      %v9993 = vunpack.c.l.b16 %v9926
      %v9994 = vunpack.c.l.b16 %v9927
      %v9995 = vunpack.c.l.b16 %v9928
      %v9996 = vunpack.c.l.b16 %v9929
      %v9997 = vunpack.c.l.b16 %v9930
      %v9998 = vunpack.c.l.b16 %v9931
      %v9999 = vunpack.c.l.b16 %v9932
      %v10000 = vunpack.c.l.b16 %v9933
      %v10001 = vunpack.c.l.b16 %v9934
      %v10002 = vunpack.c.l.b16 %v9935
      %v10003 = vunpack.c.l.b16 %v9936
      %v10004 = vunpack.c.l.b16 %v9937
      %v10005 = vunpack.c.l.b16 %v9938
      %v10006 = vunpack.c.l.b16 %v9939
      %v10007 = vunpack.c.l.b16 %v9940
      %v10008 = vunpack.c.l.b16 %v9941
      %v10009 = vpack.c.b16 %v9978, %v9977
      %v10010 = vpack.c.b16 %v9980, %v9979
      %v10011 = vpack.c.b16 %v9982, %v9981
      %v10012 = vpack.c.b16 %v9984, %v9983
      %v10013 = vpack.c.b16 %v9986, %v9985
      %v10014 = vpack.c.b16 %v9988, %v9987
      %v10015 = vpack.c.b16 %v9990, %v9989
      %v10016 = vpack.c.b16 %v9992, %v9991
      %v10017 = vpack.c.b16 %v9994, %v9993
      %v10018 = vpack.c.b16 %v9996, %v9995
      %v10019 = vpack.c.b16 %v9998, %v9997
      %v10020 = vpack.c.b16 %v10000, %v9999
      %v10021 = vpack.c.b16 %v10002, %v10001
      %v10022 = vpack.c.b16 %v10004, %v10003
      %v10023 = vpack.c.b16 %v10006, %v10005
      %v10024 = vpack.c.b16 %v10008, %v10007
      %v10027 = vunpack.c.l.b16 %v9943
      %v10028 = vunpack.c.l.b16 %v9944
      %v10029 = vpack.c.b16 %v10028, %v10027
      %v10032 = vsel %vm6897, %v10009, 0
      %v10035 = vsel %vm6897, %v10010, 0
      %v10038 = vsel %vm6897, %v10011, 0
      %v10041 = vsel %vm6897, %v10012, 0
      %v10044 = vsel %vm6897, %v10013, 0
      %v10047 = vsel %vm6897, %v10014, 0
      %v10050 = vsel %vm6897, %v10015, 0
      %v10053 = vsel %vm6897, %v10016, 0
      %v10056 = vsel %vm6897, %v10017, 0
      %v10059 = vsel %vm6897, %v10018, 0
      %v10062 = vsel %vm6897, %v10019, 0
      %v10065 = vsel %vm6897, %v10020, 0
      %v10068 = vsel %vm6897, %v10021, 0
      %v10071 = vsel %vm6897, %v10022, 0
      %v10074 = vsel %vm6897, %v10023, 0
      %v10077 = vsel %vm6897, %v10024, 0
      %10079 = vmatprep.subr.bf16.mxu0 0
      %10080 = vmatpush1.bf16.msra.mxu0 %v10029
      %10081 = vmatprep.subr.bf16.mxu0 0
      %10082 = vmatpush1.bf16.msra.mxu0 0
      %10083 = vmatprep.subr.bf16.mxu0 0
      %10084 = vmatpush1.bf16.msra.mxu0 0
      %10085 = vmatprep.subr.bf16.mxu0 0
      %10086 = vmatpush1.bf16.msra.mxu0 0
      %10087 = vmatprep.subr.bf16.mxu0 0
      %10088 = vmatpush1.bf16.msra.mxu0 0
      %10089 = vmatprep.subr.bf16.mxu0 0
      %10090 = vmatpush1.bf16.msra.mxu0 0
      %10091 = vmatprep.subr.bf16.mxu0 0
      %10092 = vmatpush1.bf16.msra.mxu0 0
      %10093 = vmatprep.subr.bf16.mxu0 0
      %10094 = vmatpush1.bf16.msra.mxu0 0
      %10095 = vmatprep.subr.bf16.mxu0 0
      %10096 = vmatpush1.bf16.msra.mxu0 0
      %10097 = vmatprep.subr.bf16.mxu0 0
      %10098 = vmatpush1.bf16.msra.mxu0 0
      %10099 = vmatprep.subr.bf16.mxu0 0
      %10100 = vmatpush1.bf16.msra.mxu0 0
      %10101 = vmatprep.subr.bf16.mxu0 0
      %10102 = vmatpush1.bf16.msra.mxu0 0
      %10103 = vmatprep.subr.bf16.mxu0 0
      %10104 = vmatpush1.bf16.msra.mxu0 0
      %10105 = vmatprep.subr.bf16.mxu0 0
      %10106 = vmatpush1.bf16.msra.mxu0 0
      %10107 = vmatprep.subr.bf16.mxu0 0
      %10108 = vmatpush1.bf16.msra.mxu0 0
      %10109 = vmatprep.subr.bf16.mxu0 0
      %10110 = vmatpush1.bf16.msra.mxu0 0
      %10111 = vmatprep.mubr.bf16.mxu0 0
      %10112 = vmatmul.mubr.bf16.gmra.mrb[0].mxu0 %v10032
      %v10113 = vpop.f32.mrb[0].mxu0
      %v10114 = vadd.f32 0.0, %v10113
      %v10115 = vpop.f32.mrb[0].mxu0
      %v10116 = vpop.f32.mrb[0].mxu0
      %v10117 = vadd.f32 0.0, %v10116
      %v10118 = vpop.f32.mrb[0].mxu0
      %10119 = vmatprep.mubr.bf16.mxu0 0
      %10120 = vmatmul.mubr.bf16.gmra.mrb[0].mxu0 %v10035
      %v10121 = vpop.f32.mrb[0].mxu0
      %v10122 = vadd.f32 0.0, %v10121
      %v10123 = vpop.f32.mrb[0].mxu0
      %v10124 = vpop.f32.mrb[0].mxu0
      %v10125 = vadd.f32 0.0, %v10124
      %v10126 = vpop.f32.mrb[0].mxu0
      %10127 = vmatprep.mubr.bf16.mxu0 0
      %10128 = vmatmul.mubr.bf16.gmra.mrb[0].mxu0 %v10038
      %v10129 = vpop.f32.mrb[0].mxu0
      %v10130 = vadd.f32 0.0, %v10129
      %v10131 = vpop.f32.mrb[0].mxu0
      %v10132 = vpop.f32.mrb[0].mxu0
      %v10133 = vadd.f32 0.0, %v10132
      %v10134 = vpop.f32.mrb[0].mxu0
      %10135 = vmatprep.mubr.bf16.mxu0 0
      %10136 = vmatmul.mubr.bf16.gmra.mrb[0].mxu0 %v10041
      %v10137 = vpop.f32.mrb[0].mxu0
      %v10138 = vadd.f32 0.0, %v10137
      %v10139 = vpop.f32.mrb[0].mxu0
      %v10140 = vpop.f32.mrb[0].mxu0
      %v10141 = vadd.f32 0.0, %v10140
      %v10142 = vpop.f32.mrb[0].mxu0
      %10143 = vmatprep.mubr.bf16.mxu0 0
      %10144 = vmatmul.mubr.bf16.gmra.mrb[0].mxu0 %v10044
      %v10145 = vpop.f32.mrb[0].mxu0
      %v10146 = vadd.f32 0.0, %v10145
      %v10147 = vpop.f32.mrb[0].mxu0
      %v10148 = vpop.f32.mrb[0].mxu0
      %v10149 = vadd.f32 0.0, %v10148
      %v10150 = vpop.f32.mrb[0].mxu0
      %10151 = vmatprep.mubr.bf16.mxu0 0
      %10152 = vmatmul.mubr.bf16.gmra.mrb[0].mxu0 %v10047
      %v10153 = vpop.f32.mrb[0].mxu0
      %v10154 = vadd.f32 0.0, %v10153
      %v10155 = vpop.f32.mrb[0].mxu0
      %v10156 = vpop.f32.mrb[0].mxu0
      %v10157 = vadd.f32 0.0, %v10156
      %v10158 = vpop.f32.mrb[0].mxu0
      %10159 = vmatprep.mubr.bf16.mxu0 0
      %10160 = vmatmul.mubr.bf16.gmra.mrb[0].mxu0 %v10050
      %v10161 = vpop.f32.mrb[0].mxu0
      %v10162 = vadd.f32 0.0, %v10161
      %v10163 = vpop.f32.mrb[0].mxu0
      %v10164 = vpop.f32.mrb[0].mxu0
      %v10165 = vadd.f32 0.0, %v10164
      %v10166 = vpop.f32.mrb[0].mxu0
      %10167 = vmatprep.mubr.bf16.mxu0 0
      %10168 = vmatmul.mubr.bf16.gmra.mrb[0].mxu0 %v10053
      %v10169 = vpop.f32.mrb[0].mxu0
      %v10170 = vadd.f32 0.0, %v10169
      %v10171 = vpop.f32.mrb[0].mxu0
      %v10172 = vpop.f32.mrb[0].mxu0
      %v10173 = vadd.f32 0.0, %v10172
      %v10174 = vpop.f32.mrb[0].mxu0
      %10175 = vmatprep.mubr.bf16.mxu0 0
      %10176 = vmatmul.mubr.bf16.gmra.mrb[0].mxu0 %v10056
      %v10177 = vpop.f32.mrb[0].mxu0
      %v10178 = vadd.f32 0.0, %v10177
      %v10179 = vpop.f32.mrb[0].mxu0
      %v10180 = vpop.f32.mrb[0].mxu0
      %v10181 = vadd.f32 0.0, %v10180
      %v10182 = vpop.f32.mrb[0].mxu0
      %10183 = vmatprep.mubr.bf16.mxu0 0
      %10184 = vmatmul.mubr.bf16.gmra.mrb[0].mxu0 %v10059
      %v10185 = vpop.f32.mrb[0].mxu0
      %v10186 = vadd.f32 0.0, %v10185
      %v10187 = vpop.f32.mrb[0].mxu0
      %v10188 = vpop.f32.mrb[0].mxu0
      %v10189 = vadd.f32 0.0, %v10188
      %v10190 = vpop.f32.mrb[0].mxu0
      %10191 = vmatprep.mubr.bf16.mxu0 0
      %10192 = vmatmul.mubr.bf16.gmra.mrb[0].mxu0 %v10062
      %v10193 = vpop.f32.mrb[0].mxu0
      %v10194 = vadd.f32 0.0, %v10193
      %v10195 = vpop.f32.mrb[0].mxu0
      %v10196 = vpop.f32.mrb[0].mxu0
      %v10197 = vadd.f32 0.0, %v10196
      %v10198 = vpop.f32.mrb[0].mxu0
      %10199 = vmatprep.mubr.bf16.mxu0 0
      %10200 = vmatmul.mubr.bf16.gmra.mrb[0].mxu0 %v10065
      %v10201 = vpop.f32.mrb[0].mxu0
      %v10202 = vadd.f32 0.0, %v10201
      %v10203 = vpop.f32.mrb[0].mxu0
      %v10204 = vpop.f32.mrb[0].mxu0
      %v10205 = vadd.f32 0.0, %v10204
      %v10206 = vpop.f32.mrb[0].mxu0
      %10207 = vmatprep.mubr.bf16.mxu0 0
      %10208 = vmatmul.mubr.bf16.gmra.mrb[0].mxu0 %v10068
      %v10209 = vpop.f32.mrb[0].mxu0
      %v10210 = vadd.f32 0.0, %v10209
      %v10211 = vpop.f32.mrb[0].mxu0
      %v10212 = vpop.f32.mrb[0].mxu0
      %v10213 = vadd.f32 0.0, %v10212
      %v10214 = vpop.f32.mrb[0].mxu0
      %10215 = vmatprep.mubr.bf16.mxu0 0
      %10216 = vmatmul.mubr.bf16.gmra.mrb[0].mxu0 %v10071
      %v10217 = vpop.f32.mrb[0].mxu0
      %v10218 = vadd.f32 0.0, %v10217
      %v10219 = vpop.f32.mrb[0].mxu0
      %v10220 = vpop.f32.mrb[0].mxu0
      %v10221 = vadd.f32 0.0, %v10220
      %v10222 = vpop.f32.mrb[0].mxu0
      %10223 = vmatprep.mubr.bf16.mxu0 0
      %10224 = vmatmul.mubr.bf16.gmra.mrb[0].mxu0 %v10074
      %v10225 = vpop.f32.mrb[0].mxu0
      %v10226 = vadd.f32 0.0, %v10225
      %v10227 = vpop.f32.mrb[0].mxu0
      %v10228 = vpop.f32.mrb[0].mxu0
      %v10229 = vadd.f32 0.0, %v10228
      %v10230 = vpop.f32.mrb[0].mxu0
      %10231 = vmatprep.mubr.bf16.mxu0 0
      %10232 = vmatmul.mubr.bf16.gmra.mrb[0].mxu0 %v10077
      %v10233 = vpop.f32.mrb[0].mxu0
      %v10234 = vadd.f32 0.0, %v10233
      %v10235 = vpop.f32.mrb[0].mxu0
      %v10236 = vpop.f32.mrb[0].mxu0
      %v10237 = vadd.f32 0.0, %v10236
      %v10238 = vpop.f32.mrb[0].mxu0
      %10239 = vdwg.mxu0
      %v10240 = vadd.f32 %v9877, %v10114
      %v10241 = vadd.f32 %v9878, %v10117
      %v10242 = vadd.f32 %v9879, %v10122
      %v10243 = vadd.f32 %v9880, %v10125
      %v10244 = vadd.f32 %v9881, %v10130
      %v10245 = vadd.f32 %v9882, %v10133
      %v10246 = vadd.f32 %v9883, %v10138
      %v10247 = vadd.f32 %v9884, %v10141
      %v10248 = vadd.f32 %v9885, %v10146
      %v10249 = vadd.f32 %v9886, %v10149
      %v10250 = vadd.f32 %v9887, %v10154
      %v10251 = vadd.f32 %v9888, %v10157
      %v10252 = vadd.f32 %v9889, %v10162
      %v10253 = vadd.f32 %v9890, %v10165
      %v10254 = vadd.f32 %v9891, %v10170
      %v10255 = vadd.f32 %v9892, %v10173
      %v10256 = vadd.f32 %v9893, %v10178
      %v10257 = vadd.f32 %v9894, %v10181
      %v10258 = vadd.f32 %v9895, %v10186
      %v10259 = vadd.f32 %v9896, %v10189
      %v10260 = vadd.f32 %v9897, %v10194
      %v10261 = vadd.f32 %v9898, %v10197
      %v10262 = vadd.f32 %v9899, %v10202
      %v10263 = vadd.f32 %v9900, %v10205
      %v10264 = vadd.f32 %v9901, %v10210
      %v10265 = vadd.f32 %v9902, %v10213
      %v10266 = vadd.f32 %v9903, %v10218
      %v10267 = vadd.f32 %v9904, %v10221
      %v10268 = vadd.f32 %v9905, %v10226
      %v10269 = vadd.f32 %v9906, %v10229
      %v10270 = vadd.f32 %v9907, %v10234
      %v10271 = vadd.f32 %v9908, %v10237
      %v10272 = vld [vmem:[%s9909] sm:$0xf]
      %v10273 = vld [vmem:[%s9909 + $0x4] sm:$0xf]
      %v10274 = vld [vmem:[%s9909 + $0x8] sm:$0x1]
      %v10275 = vld [vmem:[%s9909 + $0xc] sm:$0xf]
      %v10276 = vld [vmem:[%s9909 + $0x10] sm:$0xf]
      %v10277 = vld [vmem:[%s9909 + $0x14] sm:$0x1]
      %v10278 = vld [vmem:[%s9909 + $0x18] sm:$0xf]
      %v10279 = vld [vmem:[%s9909 + $0x1c] sm:$0xf]
      %v10280 = vld [vmem:[%s9909 + $0x20] sm:$0x1]
      %v10281 = vld [vmem:[%s9909 + $0x24] sm:$0xf]
      %v10282 = vld [vmem:[%s9909 + $0x28] sm:$0xf]
      %v10283 = vld [vmem:[%s9909 + $0x2c] sm:$0x1]
      %v10284 = vld [vmem:[%s9909 + $0x30] sm:$0xf]
      %v10285 = vld [vmem:[%s9909 + $0x34] sm:$0xf]
      %v10286 = vld [vmem:[%s9909 + $0x38] sm:$0x1]
      %v10287 = vld [vmem:[%s9909 + $0x3c] sm:$0xf]
      %v10288 = vld [vmem:[%s9909 + $0x40] sm:$0xf]
      %v10289 = vld [vmem:[%s9909 + $0x44] sm:$0x1]
      %v10290 = vld [vmem:[%s9909 + $0x48] sm:$0xf]
      %v10291 = vld [vmem:[%s9909 + $0x4c] sm:$0xf]
      %v10292 = vld [vmem:[%s9909 + $0x50] sm:$0x1]
      %v10293 = vld [vmem:[%s9909 + $0x54] sm:$0xf]
      %v10294 = vld [vmem:[%s9909 + $0x58] sm:$0xf]
      %v10295 = vld [vmem:[%s9909 + $0x5c] sm:$0x1]
      %v10296 = vld [vmem:[%s9909 + $0x60] sm:$0xf]
      %v10297 = vld [vmem:[%s9909 + $0x64] sm:$0xf]
      %v10298 = vld [vmem:[%s9909 + $0x68] sm:$0x1]
      %v10299 = vld [vmem:[%s9909 + $0x6c] sm:$0xf]
      %v10300 = vld [vmem:[%s9909 + $0x70] sm:$0xf]
      %v10301 = vld [vmem:[%s9909 + $0x74] sm:$0x1]
      %v10302 = vld [vmem:[%s9909 + $0x78] sm:$0xf]
      %v10303 = vld [vmem:[%s9909 + $0x7c] sm:$0xf]
      %v10304 = vld [vmem:[%s9909 + $0x80] sm:$0x1]
      %v10305 = vld [vmem:[%s9909 + $0x84] sm:$0xf]
      %v10306 = vld [vmem:[%s9909 + $0x88] sm:$0xf]
      %v10307 = vld [vmem:[%s9909 + $0x8c] sm:$0x1]
      %v10308 = vld [vmem:[%s9909 + $0x90] sm:$0xf]
      %v10309 = vld [vmem:[%s9909 + $0x94] sm:$0xf]
      %v10310 = vld [vmem:[%s9909 + $0x98] sm:$0x1]
      %v10311 = vld [vmem:[%s9909 + $0x9c] sm:$0xf]
      %v10312 = vld [vmem:[%s9909 + $0xa0] sm:$0xf]
      %v10313 = vld [vmem:[%s9909 + $0xa4] sm:$0x1]
      %v10314 = vld [vmem:[%s9909 + $0xa8] sm:$0xf]
      %v10315 = vld [vmem:[%s9909 + $0xac] sm:$0xf]
      %v10316 = vld [vmem:[%s9909 + $0xb0] sm:$0x1]
      %v10317 = vld [vmem:[%s9909 + $0xb4] sm:$0xf]
      %v10318 = vld [vmem:[%s9909 + $0xb8] sm:$0xf]
      %v10319 = vld [vmem:[%s9909 + $0xbc] sm:$0x1]
      %v10321 = vshrl.u32 %v10272, 16
      %v10323 = vrot.slane %v10321, 4
      %v10324 = vshll.u32 %v10272, 16
      %v10326 = vrot.slane %v10324, 5
      %v10327 = vor.u32 %v10323, %v10326
      %v10328 = vrot.slane %v10327, 4
      %v10330 = vshll.u32 %v10273, 16
      %v10332 = vrot.slane %v10330, 5
      %v10333 = vsel %vm1264, %v10328, %v10332
      %v10334 = vshrl.u32 %v10273, 16
      %v10336 = vrot.slane %v10334, 4
      %v10337 = vor.u32 %v10336, %v10332
      %v10338 = vrot.slane %v10337, 4
      %v10340 = vshll.u32 %v10274, 16
      %v10342 = vrot.slane %v10340, 5
      %v10343 = vsel %vm1264, %v10338, %v10342
      %v10345 = vshrl.u32 %v10275, 16
      %v10347 = vrot.slane %v10345, 4
      %v10348 = vshll.u32 %v10275, 16
      %v10350 = vrot.slane %v10348, 5
      %v10351 = vor.u32 %v10347, %v10350
      %v10352 = vrot.slane %v10351, 4
      %v10354 = vshll.u32 %v10276, 16
      %v10356 = vrot.slane %v10354, 5
      %v10357 = vsel %vm1264, %v10352, %v10356
      %v10358 = vshrl.u32 %v10276, 16
      %v10360 = vrot.slane %v10358, 4
      %v10361 = vor.u32 %v10360, %v10356
      %v10362 = vrot.slane %v10361, 4
      %v10364 = vshll.u32 %v10277, 16
      %v10366 = vrot.slane %v10364, 5
      %v10367 = vsel %vm1264, %v10362, %v10366
      %v10369 = vshrl.u32 %v10278, 16
      %v10371 = vrot.slane %v10369, 4
      %v10372 = vshll.u32 %v10278, 16
      %v10374 = vrot.slane %v10372, 5
      %v10375 = vor.u32 %v10371, %v10374
      %v10376 = vrot.slane %v10375, 4
      %v10378 = vshll.u32 %v10279, 16
      %v10380 = vrot.slane %v10378, 5
      %v10381 = vsel %vm1264, %v10376, %v10380
      %v10382 = vshrl.u32 %v10279, 16
      %v10384 = vrot.slane %v10382, 4
      %v10385 = vor.u32 %v10384, %v10380
      %v10386 = vrot.slane %v10385, 4
      %v10388 = vshll.u32 %v10280, 16
      %v10390 = vrot.slane %v10388, 5
      %v10391 = vsel %vm1264, %v10386, %v10390
      %v10393 = vshrl.u32 %v10281, 16
      %v10395 = vrot.slane %v10393, 4
      %v10396 = vshll.u32 %v10281, 16
      %v10398 = vrot.slane %v10396, 5
      %v10399 = vor.u32 %v10395, %v10398
      %v10400 = vrot.slane %v10399, 4
      %v10402 = vshll.u32 %v10282, 16
      %v10404 = vrot.slane %v10402, 5
      %v10405 = vsel %vm1264, %v10400, %v10404
      %v10406 = vshrl.u32 %v10282, 16
      %v10408 = vrot.slane %v10406, 4
      %v10409 = vor.u32 %v10408, %v10404
      %v10410 = vrot.slane %v10409, 4
      %v10412 = vshll.u32 %v10283, 16
      %v10414 = vrot.slane %v10412, 5
      %v10415 = vsel %vm1264, %v10410, %v10414
      %v10417 = vshrl.u32 %v10284, 16
      %v10419 = vrot.slane %v10417, 4
      %v10420 = vshll.u32 %v10284, 16
      %v10422 = vrot.slane %v10420, 5
      %v10423 = vor.u32 %v10419, %v10422
      %v10424 = vrot.slane %v10423, 4
      %v10426 = vshll.u32 %v10285, 16
      %v10428 = vrot.slane %v10426, 5
      %v10429 = vsel %vm1264, %v10424, %v10428
      %v10430 = vshrl.u32 %v10285, 16
      %v10432 = vrot.slane %v10430, 4
      %v10433 = vor.u32 %v10432, %v10428
      %v10434 = vrot.slane %v10433, 4
      %v10436 = vshll.u32 %v10286, 16
      %v10438 = vrot.slane %v10436, 5
      %v10439 = vsel %vm1264, %v10434, %v10438
      %v10441 = vshrl.u32 %v10287, 16
      %v10443 = vrot.slane %v10441, 4
      %v10444 = vshll.u32 %v10287, 16
      %v10446 = vrot.slane %v10444, 5
      %v10447 = vor.u32 %v10443, %v10446
      %v10448 = vrot.slane %v10447, 4
      %v10450 = vshll.u32 %v10288, 16
      %v10452 = vrot.slane %v10450, 5
      %v10453 = vsel %vm1264, %v10448, %v10452
      %v10454 = vshrl.u32 %v10288, 16
      %v10456 = vrot.slane %v10454, 4
      %v10457 = vor.u32 %v10456, %v10452
      %v10458 = vrot.slane %v10457, 4
      %v10460 = vshll.u32 %v10289, 16
      %v10462 = vrot.slane %v10460, 5
      %v10463 = vsel %vm1264, %v10458, %v10462
      %v10465 = vshrl.u32 %v10290, 16
      %v10467 = vrot.slane %v10465, 4
      %v10468 = vshll.u32 %v10290, 16
      %v10470 = vrot.slane %v10468, 5
      %v10471 = vor.u32 %v10467, %v10470
      %v10472 = vrot.slane %v10471, 4
      %v10474 = vshll.u32 %v10291, 16
      %v10476 = vrot.slane %v10474, 5
      %v10477 = vsel %vm1264, %v10472, %v10476
      %v10478 = vshrl.u32 %v10291, 16
      %v10480 = vrot.slane %v10478, 4
      %v10481 = vor.u32 %v10480, %v10476
      %v10482 = vrot.slane %v10481, 4
      %v10484 = vshll.u32 %v10292, 16
      %v10486 = vrot.slane %v10484, 5
      %v10487 = vsel %vm1264, %v10482, %v10486
      %v10489 = vshrl.u32 %v10293, 16
      %v10491 = vrot.slane %v10489, 4
      %v10492 = vshll.u32 %v10293, 16
      %v10494 = vrot.slane %v10492, 5
      %v10495 = vor.u32 %v10491, %v10494
      %v10496 = vrot.slane %v10495, 4
      %v10498 = vshll.u32 %v10294, 16
      %v10500 = vrot.slane %v10498, 5
      %v10501 = vsel %vm1264, %v10496, %v10500
      %v10502 = vshrl.u32 %v10294, 16
      %v10504 = vrot.slane %v10502, 4
      %v10505 = vor.u32 %v10504, %v10500
      %v10506 = vrot.slane %v10505, 4
      %v10508 = vshll.u32 %v10295, 16
      %v10510 = vrot.slane %v10508, 5
      %v10511 = vsel %vm1264, %v10506, %v10510
      %v10513 = vshrl.u32 %v10296, 16
      %v10515 = vrot.slane %v10513, 4
      %v10516 = vshll.u32 %v10296, 16
      %v10518 = vrot.slane %v10516, 5
      %v10519 = vor.u32 %v10515, %v10518
      %v10520 = vrot.slane %v10519, 4
      %v10522 = vshll.u32 %v10297, 16
      %v10524 = vrot.slane %v10522, 5
      %v10525 = vsel %vm1264, %v10520, %v10524
      %v10526 = vshrl.u32 %v10297, 16
      %v10528 = vrot.slane %v10526, 4
      %v10529 = vor.u32 %v10528, %v10524
      %v10530 = vrot.slane %v10529, 4
      %v10532 = vshll.u32 %v10298, 16
      %v10534 = vrot.slane %v10532, 5
      %v10535 = vsel %vm1264, %v10530, %v10534
      %v10537 = vshrl.u32 %v10299, 16
      %v10539 = vrot.slane %v10537, 4
      %v10540 = vshll.u32 %v10299, 16
      %v10542 = vrot.slane %v10540, 5
      %v10543 = vor.u32 %v10539, %v10542
      %v10544 = vrot.slane %v10543, 4
      %v10546 = vshll.u32 %v10300, 16
      %v10548 = vrot.slane %v10546, 5
      %v10549 = vsel %vm1264, %v10544, %v10548
      %v10550 = vshrl.u32 %v10300, 16
      %v10552 = vrot.slane %v10550, 4
      %v10553 = vor.u32 %v10552, %v10548
      %v10554 = vrot.slane %v10553, 4
      %v10556 = vshll.u32 %v10301, 16
      %v10558 = vrot.slane %v10556, 5
      %v10559 = vsel %vm1264, %v10554, %v10558
      %v10561 = vshrl.u32 %v10302, 16
      %v10563 = vrot.slane %v10561, 4
      %v10564 = vshll.u32 %v10302, 16
      %v10566 = vrot.slane %v10564, 5
      %v10567 = vor.u32 %v10563, %v10566
      %v10568 = vrot.slane %v10567, 4
      %v10570 = vshll.u32 %v10303, 16
      %v10572 = vrot.slane %v10570, 5
      %v10573 = vsel %vm1264, %v10568, %v10572
      %v10574 = vshrl.u32 %v10303, 16
      %v10576 = vrot.slane %v10574, 4
      %v10577 = vor.u32 %v10576, %v10572
      %v10578 = vrot.slane %v10577, 4
      %v10580 = vshll.u32 %v10304, 16
      %v10582 = vrot.slane %v10580, 5
      %v10583 = vsel %vm1264, %v10578, %v10582
      %v10585 = vshrl.u32 %v10305, 16
      %v10587 = vrot.slane %v10585, 4
      %v10588 = vshll.u32 %v10305, 16
      %v10590 = vrot.slane %v10588, 5
      %v10591 = vor.u32 %v10587, %v10590
      %v10592 = vrot.slane %v10591, 4
      %v10594 = vshll.u32 %v10306, 16
      %v10596 = vrot.slane %v10594, 5
      %v10597 = vsel %vm1264, %v10592, %v10596
      %v10598 = vshrl.u32 %v10306, 16
      %v10600 = vrot.slane %v10598, 4
      %v10601 = vor.u32 %v10600, %v10596
      %v10602 = vrot.slane %v10601, 4
      %v10604 = vshll.u32 %v10307, 16
      %v10606 = vrot.slane %v10604, 5
      %v10607 = vsel %vm1264, %v10602, %v10606
      %v10609 = vshrl.u32 %v10308, 16
      %v10611 = vrot.slane %v10609, 4
      %v10612 = vshll.u32 %v10308, 16
      %v10614 = vrot.slane %v10612, 5
      %v10615 = vor.u32 %v10611, %v10614
      %v10616 = vrot.slane %v10615, 4
      %v10618 = vshll.u32 %v10309, 16
      %v10620 = vrot.slane %v10618, 5
      %v10621 = vsel %vm1264, %v10616, %v10620
      %v10622 = vshrl.u32 %v10309, 16
      %v10624 = vrot.slane %v10622, 4
      %v10625 = vor.u32 %v10624, %v10620
      %v10626 = vrot.slane %v10625, 4
      %v10628 = vshll.u32 %v10310, 16
      %v10630 = vrot.slane %v10628, 5
      %v10631 = vsel %vm1264, %v10626, %v10630
      %v10633 = vshrl.u32 %v10311, 16
      %v10635 = vrot.slane %v10633, 4
      %v10636 = vshll.u32 %v10311, 16
      %v10638 = vrot.slane %v10636, 5
      %v10639 = vor.u32 %v10635, %v10638
      %v10640 = vrot.slane %v10639, 4
      %v10642 = vshll.u32 %v10312, 16
      %v10644 = vrot.slane %v10642, 5
      %v10645 = vsel %vm1264, %v10640, %v10644
      %v10646 = vshrl.u32 %v10312, 16
      %v10648 = vrot.slane %v10646, 4
      %v10649 = vor.u32 %v10648, %v10644
      %v10650 = vrot.slane %v10649, 4
      %v10652 = vshll.u32 %v10313, 16
      %v10654 = vrot.slane %v10652, 5
      %v10655 = vsel %vm1264, %v10650, %v10654
      %v10657 = vshrl.u32 %v10314, 16
      %v10659 = vrot.slane %v10657, 4
      %v10660 = vshll.u32 %v10314, 16
      %v10662 = vrot.slane %v10660, 5
      %v10663 = vor.u32 %v10659, %v10662
      %v10664 = vrot.slane %v10663, 4
      %v10666 = vshll.u32 %v10315, 16
      %v10668 = vrot.slane %v10666, 5
      %v10669 = vsel %vm1264, %v10664, %v10668
      %v10670 = vshrl.u32 %v10315, 16
      %v10672 = vrot.slane %v10670, 4
      %v10673 = vor.u32 %v10672, %v10668
      %v10674 = vrot.slane %v10673, 4
      %v10676 = vshll.u32 %v10316, 16
      %v10678 = vrot.slane %v10676, 5
      %v10679 = vsel %vm1264, %v10674, %v10678
      %v10681 = vshrl.u32 %v10317, 16
      %v10683 = vrot.slane %v10681, 4
      %v10684 = vshll.u32 %v10317, 16
      %v10686 = vrot.slane %v10684, 5
      %v10687 = vor.u32 %v10683, %v10686
      %v10688 = vrot.slane %v10687, 4
      %v10690 = vshll.u32 %v10318, 16
      %v10692 = vrot.slane %v10690, 5
      %v10693 = vsel %vm1264, %v10688, %v10692
      %v10694 = vshrl.u32 %v10318, 16
      %v10696 = vrot.slane %v10694, 4
      %v10697 = vor.u32 %v10696, %v10692
      %v10698 = vrot.slane %v10697, 4
      %v10700 = vshll.u32 %v10319, 16
      %v10702 = vrot.slane %v10700, 5
      %v10703 = vsel %vm1264, %v10698, %v10702
      %s10704 = scalar_lea.vmem %s3, 56
      %v10705 = vld [vmem:[%s10704] sm:$0xf]
      %v10706 = vld [vmem:[%s10704 + $0x4] sm:$0xf]
      %v10707 = vunpack.c.l.b16 %v10333
      %v10708 = vunpack.c.l.b16 %v10343
      %v10709 = vunpack.c.l.b16 %v10357
      %v10710 = vunpack.c.l.b16 %v10367
      %v10711 = vunpack.c.l.b16 %v10381
      %v10712 = vunpack.c.l.b16 %v10391
      %v10713 = vunpack.c.l.b16 %v10405
      %v10714 = vunpack.c.l.b16 %v10415
      %v10715 = vunpack.c.l.b16 %v10429
      %v10716 = vunpack.c.l.b16 %v10439
      %v10717 = vunpack.c.l.b16 %v10453
      %v10718 = vunpack.c.l.b16 %v10463
      %v10719 = vunpack.c.l.b16 %v10477
      %v10720 = vunpack.c.l.b16 %v10487
      %v10721 = vunpack.c.l.b16 %v10501
      %v10722 = vunpack.c.l.b16 %v10511
      %v10723 = vunpack.c.l.b16 %v10525
      %v10724 = vunpack.c.l.b16 %v10535
      %v10725 = vunpack.c.l.b16 %v10549
      %v10726 = vunpack.c.l.b16 %v10559
      %v10727 = vunpack.c.l.b16 %v10573
      %v10728 = vunpack.c.l.b16 %v10583
      %v10729 = vunpack.c.l.b16 %v10597
      %v10730 = vunpack.c.l.b16 %v10607
      %v10731 = vunpack.c.l.b16 %v10621
      %v10732 = vunpack.c.l.b16 %v10631
      %v10733 = vunpack.c.l.b16 %v10645
      %v10734 = vunpack.c.l.b16 %v10655
      %v10735 = vunpack.c.l.b16 %v10669
      %v10736 = vunpack.c.l.b16 %v10679
      %v10737 = vunpack.c.l.b16 %v10693
      %v10738 = vunpack.c.l.b16 %v10703
      %v10739 = vpack.c.b16 %v10708, %v10707
      %v10740 = vpack.c.b16 %v10710, %v10709
      %v10741 = vpack.c.b16 %v10712, %v10711
      %v10742 = vpack.c.b16 %v10714, %v10713
      %v10743 = vpack.c.b16 %v10716, %v10715
      %v10744 = vpack.c.b16 %v10718, %v10717
      %v10745 = vpack.c.b16 %v10720, %v10719
      %v10746 = vpack.c.b16 %v10722, %v10721
      %v10747 = vpack.c.b16 %v10724, %v10723
      %v10748 = vpack.c.b16 %v10726, %v10725
      %v10749 = vpack.c.b16 %v10728, %v10727
      %v10750 = vpack.c.b16 %v10730, %v10729
      %v10751 = vpack.c.b16 %v10732, %v10731
      %v10752 = vpack.c.b16 %v10734, %v10733
      %v10753 = vpack.c.b16 %v10736, %v10735
      %v10754 = vpack.c.b16 %v10738, %v10737
      %v10757 = vunpack.c.l.b16 %v10705
      %v10758 = vunpack.c.l.b16 %v10706
      %v10759 = vpack.c.b16 %v10758, %v10757
      %v10762 = vsel %vm6897, %v10739, 0
      %v10765 = vsel %vm6897, %v10740, 0
      %v10768 = vsel %vm6897, %v10741, 0
      %v10771 = vsel %vm6897, %v10742, 0
      %v10774 = vsel %vm6897, %v10743, 0
      %v10777 = vsel %vm6897, %v10744, 0
      %v10780 = vsel %vm6897, %v10745, 0
      %v10783 = vsel %vm6897, %v10746, 0
      %v10786 = vsel %vm6897, %v10747, 0
      %v10789 = vsel %vm6897, %v10748, 0
      %v10792 = vsel %vm6897, %v10749, 0
      %v10795 = vsel %vm6897, %v10750, 0
      %v10798 = vsel %vm6897, %v10751, 0
      %v10801 = vsel %vm6897, %v10752, 0
      %v10804 = vsel %vm6897, %v10753, 0
      %v10807 = vsel %vm6897, %v10754, 0
      %10809 = vmatprep.subr.bf16.mxu0 0
      %10810 = vmatpush1.bf16.msra.mxu0 %v10759
      %10811 = vmatprep.subr.bf16.mxu0 0
      %10812 = vmatpush1.bf16.msra.mxu0 0
      %10813 = vmatprep.subr.bf16.mxu0 0
      %10814 = vmatpush1.bf16.msra.mxu0 0
      %10815 = vmatprep.subr.bf16.mxu0 0
      %10816 = vmatpush1.bf16.msra.mxu0 0
      %10817 = vmatprep.subr.bf16.mxu0 0
      %10818 = vmatpush1.bf16.msra.mxu0 0
      %10819 = vmatprep.subr.bf16.mxu0 0
      %10820 = vmatpush1.bf16.msra.mxu0 0
      %10821 = vmatprep.subr.bf16.mxu0 0
      %10822 = vmatpush1.bf16.msra.mxu0 0
      %10823 = vmatprep.subr.bf16.mxu0 0
      %10824 = vmatpush1.bf16.msra.mxu0 0
      %10825 = vmatprep.subr.bf16.mxu0 0
      %10826 = vmatpush1.bf16.msra.mxu0 0
      %10827 = vmatprep.subr.bf16.mxu0 0
      %10828 = vmatpush1.bf16.msra.mxu0 0
      %10829 = vmatprep.subr.bf16.mxu0 0
      %10830 = vmatpush1.bf16.msra.mxu0 0
      %10831 = vmatprep.subr.bf16.mxu0 0
      %10832 = vmatpush1.bf16.msra.mxu0 0
      %10833 = vmatprep.subr.bf16.mxu0 0
      %10834 = vmatpush1.bf16.msra.mxu0 0
      %10835 = vmatprep.subr.bf16.mxu0 0
      %10836 = vmatpush1.bf16.msra.mxu0 0
      %10837 = vmatprep.subr.bf16.mxu0 0
      %10838 = vmatpush1.bf16.msra.mxu0 0
      %10839 = vmatprep.subr.bf16.mxu0 0
      %10840 = vmatpush1.bf16.msra.mxu0 0
      %10841 = vmatprep.mubr.bf16.mxu0 0
      %10842 = vmatmul.mubr.bf16.gmra.mrb[0].mxu0 %v10762
      %v10843 = vpop.f32.mrb[0].mxu0
      %v10844 = vadd.f32 0.0, %v10843
      %v10845 = vpop.f32.mrb[0].mxu0
      %v10846 = vpop.f32.mrb[0].mxu0
      %v10847 = vadd.f32 0.0, %v10846
      %v10848 = vpop.f32.mrb[0].mxu0
      %10849 = vmatprep.mubr.bf16.mxu0 0
      %10850 = vmatmul.mubr.bf16.gmra.mrb[0].mxu0 %v10765
      %v10851 = vpop.f32.mrb[0].mxu0
      %v10852 = vadd.f32 0.0, %v10851
      %v10853 = vpop.f32.mrb[0].mxu0
      %v10854 = vpop.f32.mrb[0].mxu0
      %v10855 = vadd.f32 0.0, %v10854
      %v10856 = vpop.f32.mrb[0].mxu0
      %10857 = vmatprep.mubr.bf16.mxu0 0
      %10858 = vmatmul.mubr.bf16.gmra.mrb[0].mxu0 %v10768
      %v10859 = vpop.f32.mrb[0].mxu0
      %v10860 = vadd.f32 0.0, %v10859
      %v10861 = vpop.f32.mrb[0].mxu0
      %v10862 = vpop.f32.mrb[0].mxu0
      %v10863 = vadd.f32 0.0, %v10862
      %v10864 = vpop.f32.mrb[0].mxu0
      %10865 = vmatprep.mubr.bf16.mxu0 0
      %10866 = vmatmul.mubr.bf16.gmra.mrb[0].mxu0 %v10771
      %v10867 = vpop.f32.mrb[0].mxu0
      %v10868 = vadd.f32 0.0, %v10867
      %v10869 = vpop.f32.mrb[0].mxu0
      %v10870 = vpop.f32.mrb[0].mxu0
      %v10871 = vadd.f32 0.0, %v10870
      %v10872 = vpop.f32.mrb[0].mxu0
      %10873 = vmatprep.mubr.bf16.mxu0 0
      %10874 = vmatmul.mubr.bf16.gmra.mrb[0].mxu0 %v10774
      %v10875 = vpop.f32.mrb[0].mxu0
      %v10876 = vadd.f32 0.0, %v10875
      %v10877 = vpop.f32.mrb[0].mxu0
      %v10878 = vpop.f32.mrb[0].mxu0
      %v10879 = vadd.f32 0.0, %v10878
      %v10880 = vpop.f32.mrb[0].mxu0
      %10881 = vmatprep.mubr.bf16.mxu0 0
      %10882 = vmatmul.mubr.bf16.gmra.mrb[0].mxu0 %v10777
      %v10883 = vpop.f32.mrb[0].mxu0
      %v10884 = vadd.f32 0.0, %v10883
      %v10885 = vpop.f32.mrb[0].mxu0
      %v10886 = vpop.f32.mrb[0].mxu0
      %v10887 = vadd.f32 0.0, %v10886
      %v10888 = vpop.f32.mrb[0].mxu0
      %10889 = vmatprep.mubr.bf16.mxu0 0
      %10890 = vmatmul.mubr.bf16.gmra.mrb[0].mxu0 %v10780
      %v10891 = vpop.f32.mrb[0].mxu0
      %v10892 = vadd.f32 0.0, %v10891
      %v10893 = vpop.f32.mrb[0].mxu0
      %v10894 = vpop.f32.mrb[0].mxu0
      %v10895 = vadd.f32 0.0, %v10894
      %v10896 = vpop.f32.mrb[0].mxu0
      %10897 = vmatprep.mubr.bf16.mxu0 0
      %10898 = vmatmul.mubr.bf16.gmra.mrb[0].mxu0 %v10783
      %v10899 = vpop.f32.mrb[0].mxu0
      %v10900 = vadd.f32 0.0, %v10899
      %v10901 = vpop.f32.mrb[0].mxu0
      %v10902 = vpop.f32.mrb[0].mxu0
      %v10903 = vadd.f32 0.0, %v10902
      %v10904 = vpop.f32.mrb[0].mxu0
      %10905 = vmatprep.mubr.bf16.mxu0 0
      %10906 = vmatmul.mubr.bf16.gmra.mrb[0].mxu0 %v10786
      %v10907 = vpop.f32.mrb[0].mxu0
      %v10908 = vadd.f32 0.0, %v10907
      %v10909 = vpop.f32.mrb[0].mxu0
      %v10910 = vpop.f32.mrb[0].mxu0
      %v10911 = vadd.f32 0.0, %v10910
      %v10912 = vpop.f32.mrb[0].mxu0
      %10913 = vmatprep.mubr.bf16.mxu0 0
      %10914 = vmatmul.mubr.bf16.gmra.mrb[0].mxu0 %v10789
      %v10915 = vpop.f32.mrb[0].mxu0
      %v10916 = vadd.f32 0.0, %v10915
      %v10917 = vpop.f32.mrb[0].mxu0
      %v10918 = vpop.f32.mrb[0].mxu0
      %v10919 = vadd.f32 0.0, %v10918
      %v10920 = vpop.f32.mrb[0].mxu0
      %10921 = vmatprep.mubr.bf16.mxu0 0
      %10922 = vmatmul.mubr.bf16.gmra.mrb[0].mxu0 %v10792
      %v10923 = vpop.f32.mrb[0].mxu0
      %v10924 = vadd.f32 0.0, %v10923
      %v10925 = vpop.f32.mrb[0].mxu0
      %v10926 = vpop.f32.mrb[0].mxu0
      %v10927 = vadd.f32 0.0, %v10926
      %v10928 = vpop.f32.mrb[0].mxu0
      %10929 = vmatprep.mubr.bf16.mxu0 0
      %10930 = vmatmul.mubr.bf16.gmra.mrb[0].mxu0 %v10795
      %v10931 = vpop.f32.mrb[0].mxu0
      %v10932 = vadd.f32 0.0, %v10931
      %v10933 = vpop.f32.mrb[0].mxu0
      %v10934 = vpop.f32.mrb[0].mxu0
      %v10935 = vadd.f32 0.0, %v10934
      %v10936 = vpop.f32.mrb[0].mxu0
      %10937 = vmatprep.mubr.bf16.mxu0 0
      %10938 = vmatmul.mubr.bf16.gmra.mrb[0].mxu0 %v10798
      %v10939 = vpop.f32.mrb[0].mxu0
      %v10940 = vadd.f32 0.0, %v10939
      %v10941 = vpop.f32.mrb[0].mxu0
      %v10942 = vpop.f32.mrb[0].mxu0
      %v10943 = vadd.f32 0.0, %v10942
      %v10944 = vpop.f32.mrb[0].mxu0
      %10945 = vmatprep.mubr.bf16.mxu0 0
      %10946 = vmatmul.mubr.bf16.gmra.mrb[0].mxu0 %v10801
      %v10947 = vpop.f32.mrb[0].mxu0
      %v10948 = vadd.f32 0.0, %v10947
      %v10949 = vpop.f32.mrb[0].mxu0
      %v10950 = vpop.f32.mrb[0].mxu0
      %v10951 = vadd.f32 0.0, %v10950
      %v10952 = vpop.f32.mrb[0].mxu0
      %10953 = vmatprep.mubr.bf16.mxu0 0
      %10954 = vmatmul.mubr.bf16.gmra.mrb[0].mxu0 %v10804
      %v10955 = vpop.f32.mrb[0].mxu0
      %v10956 = vadd.f32 0.0, %v10955
      %v10957 = vpop.f32.mrb[0].mxu0
      %v10958 = vpop.f32.mrb[0].mxu0
      %v10959 = vadd.f32 0.0, %v10958
      %v10960 = vpop.f32.mrb[0].mxu0
      %10961 = vmatprep.mubr.bf16.mxu0 0
      %10962 = vmatmul.mubr.bf16.gmra.mrb[0].mxu0 %v10807
      %v10963 = vpop.f32.mrb[0].mxu0
      %v10964 = vadd.f32 0.0, %v10963
      %v10965 = vpop.f32.mrb[0].mxu0
      %v10966 = vpop.f32.mrb[0].mxu0
      %v10967 = vadd.f32 0.0, %v10966
      %v10968 = vpop.f32.mrb[0].mxu0
      %10969 = vdwg.mxu0
      %v10970 = vadd.f32 %v10240, %v10844
      %v10971 = vadd.f32 %v10241, %v10847
      %v10972 = vadd.f32 %v10242, %v10852
      %v10973 = vadd.f32 %v10243, %v10855
      %v10974 = vadd.f32 %v10244, %v10860
      %v10975 = vadd.f32 %v10245, %v10863
      %v10976 = vadd.f32 %v10246, %v10868
      %v10977 = vadd.f32 %v10247, %v10871
      %v10978 = vadd.f32 %v10248, %v10876
      %v10979 = vadd.f32 %v10249, %v10879
      %v10980 = vadd.f32 %v10250, %v10884
      %v10981 = vadd.f32 %v10251, %v10887
      %v10982 = vadd.f32 %v10252, %v10892
      %v10983 = vadd.f32 %v10253, %v10895
      %v10984 = vadd.f32 %v10254, %v10900
      %v10985 = vadd.f32 %v10255, %v10903
      %v10986 = vadd.f32 %v10256, %v10908
      %v10987 = vadd.f32 %v10257, %v10911
      %v10988 = vadd.f32 %v10258, %v10916
      %v10989 = vadd.f32 %v10259, %v10919
      %v10990 = vadd.f32 %v10260, %v10924
      %v10991 = vadd.f32 %v10261, %v10927
      %v10992 = vadd.f32 %v10262, %v10932
      %v10993 = vadd.f32 %v10263, %v10935
      %v10994 = vadd.f32 %v10264, %v10940
      %v10995 = vadd.f32 %v10265, %v10943
      %v10996 = vadd.f32 %v10266, %v10948
      %v10997 = vadd.f32 %v10267, %v10951
      %v10998 = vadd.f32 %v10268, %v10956
      %v10999 = vadd.f32 %v10269, %v10959
      %v11000 = vadd.f32 %v10270, %v10964
      %v11001 = vadd.f32 %v10271, %v10967
      %v11002 = vld [vmem:[%s9909] sm:$0xe]
      %v11003 = vld [vmem:[%s9909 + $0xc] sm:$0xe]
      %v11004 = vld [vmem:[%s9909 + $0x18] sm:$0xe]
      %v11005 = vld [vmem:[%s9909 + $0x24] sm:$0xe]
      %v11006 = vld [vmem:[%s9909 + $0x30] sm:$0xe]
      %v11007 = vld [vmem:[%s9909 + $0x3c] sm:$0xe]
      %v11008 = vld [vmem:[%s9909 + $0x48] sm:$0xe]
      %v11009 = vld [vmem:[%s9909 + $0x54] sm:$0xe]
      %v11010 = vld [vmem:[%s9909 + $0x60] sm:$0xe]
      %v11011 = vld [vmem:[%s9909 + $0x6c] sm:$0xe]
      %v11012 = vld [vmem:[%s9909 + $0x78] sm:$0xe]
      %v11013 = vld [vmem:[%s9909 + $0x84] sm:$0xe]
      %v11014 = vld [vmem:[%s9909 + $0x90] sm:$0xe]
      %v11015 = vld [vmem:[%s9909 + $0x9c] sm:$0xe]
      %v11016 = vld [vmem:[%s9909 + $0xa8] sm:$0xe]
      %v11017 = vld [vmem:[%s9909 + $0xb4] sm:$0xe]
      %v11066 = vrot.slane %v11002, 5
      %v11067 = vrot.slane %v11066, 4
      %v11068 = vrot.slane %v10273, 5
      %v11069 = vsel %vm2255, %v11067, %v11068
      %v11070 = vrot.slane %v11068, 4
      %v11071 = vrot.slane %v10274, 5
      %v11072 = vsel %vm2255, %v11070, %v11071
      %v11073 = vrot.slane %v11003, 5
      %v11074 = vrot.slane %v11073, 4
      %v11075 = vrot.slane %v10276, 5
      %v11076 = vsel %vm2255, %v11074, %v11075
      %v11077 = vrot.slane %v11075, 4
      %v11078 = vrot.slane %v10277, 5
      %v11079 = vsel %vm2255, %v11077, %v11078
      %v11080 = vrot.slane %v11004, 5
      %v11081 = vrot.slane %v11080, 4
      %v11082 = vrot.slane %v10279, 5
      %v11083 = vsel %vm2255, %v11081, %v11082
      %v11084 = vrot.slane %v11082, 4
      %v11085 = vrot.slane %v10280, 5
      %v11086 = vsel %vm2255, %v11084, %v11085
      %v11087 = vrot.slane %v11005, 5
      %v11088 = vrot.slane %v11087, 4
      %v11089 = vrot.slane %v10282, 5
      %v11090 = vsel %vm2255, %v11088, %v11089
      %v11091 = vrot.slane %v11089, 4
      %v11092 = vrot.slane %v10283, 5
      %v11093 = vsel %vm2255, %v11091, %v11092
      %v11094 = vrot.slane %v11006, 5
      %v11095 = vrot.slane %v11094, 4
      %v11096 = vrot.slane %v10285, 5
      %v11097 = vsel %vm2255, %v11095, %v11096
      %v11098 = vrot.slane %v11096, 4
      %v11099 = vrot.slane %v10286, 5
      %v11100 = vsel %vm2255, %v11098, %v11099
      %v11101 = vrot.slane %v11007, 5
      %v11102 = vrot.slane %v11101, 4
      %v11103 = vrot.slane %v10288, 5
      %v11104 = vsel %vm2255, %v11102, %v11103
      %v11105 = vrot.slane %v11103, 4
      %v11106 = vrot.slane %v10289, 5
      %v11107 = vsel %vm2255, %v11105, %v11106
      %v11108 = vrot.slane %v11008, 5
      %v11109 = vrot.slane %v11108, 4
      %v11110 = vrot.slane %v10291, 5
      %v11111 = vsel %vm2255, %v11109, %v11110
      %v11112 = vrot.slane %v11110, 4
      %v11113 = vrot.slane %v10292, 5
      %v11114 = vsel %vm2255, %v11112, %v11113
      %v11115 = vrot.slane %v11009, 5
      %v11116 = vrot.slane %v11115, 4
      %v11117 = vrot.slane %v10294, 5
      %v11118 = vsel %vm2255, %v11116, %v11117
      %v11119 = vrot.slane %v11117, 4
      %v11120 = vrot.slane %v10295, 5
      %v11121 = vsel %vm2255, %v11119, %v11120
      %v11122 = vrot.slane %v11010, 5
      %v11123 = vrot.slane %v11122, 4
      %v11124 = vrot.slane %v10297, 5
      %v11125 = vsel %vm2255, %v11123, %v11124
      %v11126 = vrot.slane %v11124, 4
      %v11127 = vrot.slane %v10298, 5
      %v11128 = vsel %vm2255, %v11126, %v11127
      %v11129 = vrot.slane %v11011, 5
      %v11130 = vrot.slane %v11129, 4
      %v11131 = vrot.slane %v10300, 5
      %v11132 = vsel %vm2255, %v11130, %v11131
      %v11133 = vrot.slane %v11131, 4
      %v11134 = vrot.slane %v10301, 5
      %v11135 = vsel %vm2255, %v11133, %v11134
      %v11136 = vrot.slane %v11012, 5
      %v11137 = vrot.slane %v11136, 4
      %v11138 = vrot.slane %v10303, 5
      %v11139 = vsel %vm2255, %v11137, %v11138
      %v11140 = vrot.slane %v11138, 4
      %v11141 = vrot.slane %v10304, 5
      %v11142 = vsel %vm2255, %v11140, %v11141
      %v11143 = vrot.slane %v11013, 5
      %v11144 = vrot.slane %v11143, 4
      %v11145 = vrot.slane %v10306, 5
      %v11146 = vsel %vm2255, %v11144, %v11145
      %v11147 = vrot.slane %v11145, 4
      %v11148 = vrot.slane %v10307, 5
      %v11149 = vsel %vm2255, %v11147, %v11148
      %v11150 = vrot.slane %v11014, 5
      %v11151 = vrot.slane %v11150, 4
      %v11152 = vrot.slane %v10309, 5
      %v11153 = vsel %vm2255, %v11151, %v11152
      %v11154 = vrot.slane %v11152, 4
      %v11155 = vrot.slane %v10310, 5
      %v11156 = vsel %vm2255, %v11154, %v11155
      %v11157 = vrot.slane %v11015, 5
      %v11158 = vrot.slane %v11157, 4
      %v11159 = vrot.slane %v10312, 5
      %v11160 = vsel %vm2255, %v11158, %v11159
      %v11161 = vrot.slane %v11159, 4
      %v11162 = vrot.slane %v10313, 5
      %v11163 = vsel %vm2255, %v11161, %v11162
      %v11164 = vrot.slane %v11016, 5
      %v11165 = vrot.slane %v11164, 4
      %v11166 = vrot.slane %v10315, 5
      %v11167 = vsel %vm2255, %v11165, %v11166
      %v11168 = vrot.slane %v11166, 4
      %v11169 = vrot.slane %v10316, 5
      %v11170 = vsel %vm2255, %v11168, %v11169
      %v11171 = vrot.slane %v11017, 5
      %v11172 = vrot.slane %v11171, 4
      %v11173 = vrot.slane %v10318, 5
      %v11174 = vsel %vm2255, %v11172, %v11173
      %v11175 = vrot.slane %v11173, 4
      %v11176 = vrot.slane %v10319, 5
      %v11177 = vsel %vm2255, %v11175, %v11176
      %s11178 = scalar_lea.vmem %s3, 64
      %v11179 = vld [vmem:[%s11178] sm:$0xf]
      %v11180 = vld [vmem:[%s11178 + $0x4] sm:$0xf]
      %v11181 = vunpack.c.l.b16 %v11069
      %v11182 = vunpack.c.l.b16 %v11072
      %v11183 = vunpack.c.l.b16 %v11076
      %v11184 = vunpack.c.l.b16 %v11079
      %v11185 = vunpack.c.l.b16 %v11083
      %v11186 = vunpack.c.l.b16 %v11086
      %v11187 = vunpack.c.l.b16 %v11090
      %v11188 = vunpack.c.l.b16 %v11093
      %v11189 = vunpack.c.l.b16 %v11097
      %v11190 = vunpack.c.l.b16 %v11100
      %v11191 = vunpack.c.l.b16 %v11104
      %v11192 = vunpack.c.l.b16 %v11107
      %v11193 = vunpack.c.l.b16 %v11111
      %v11194 = vunpack.c.l.b16 %v11114
      %v11195 = vunpack.c.l.b16 %v11118
      %v11196 = vunpack.c.l.b16 %v11121
      %v11197 = vunpack.c.l.b16 %v11125
      %v11198 = vunpack.c.l.b16 %v11128
      %v11199 = vunpack.c.l.b16 %v11132
      %v11200 = vunpack.c.l.b16 %v11135
      %v11201 = vunpack.c.l.b16 %v11139
      %v11202 = vunpack.c.l.b16 %v11142
      %v11203 = vunpack.c.l.b16 %v11146
      %v11204 = vunpack.c.l.b16 %v11149
      %v11205 = vunpack.c.l.b16 %v11153
      %v11206 = vunpack.c.l.b16 %v11156
      %v11207 = vunpack.c.l.b16 %v11160
      %v11208 = vunpack.c.l.b16 %v11163
      %v11209 = vunpack.c.l.b16 %v11167
      %v11210 = vunpack.c.l.b16 %v11170
      %v11211 = vunpack.c.l.b16 %v11174
      %v11212 = vunpack.c.l.b16 %v11177
      %v11213 = vpack.c.b16 %v11182, %v11181
      %v11214 = vpack.c.b16 %v11184, %v11183
      %v11215 = vpack.c.b16 %v11186, %v11185
      %v11216 = vpack.c.b16 %v11188, %v11187
      %v11217 = vpack.c.b16 %v11190, %v11189
      %v11218 = vpack.c.b16 %v11192, %v11191
      %v11219 = vpack.c.b16 %v11194, %v11193
      %v11220 = vpack.c.b16 %v11196, %v11195
      %v11221 = vpack.c.b16 %v11198, %v11197
      %v11222 = vpack.c.b16 %v11200, %v11199
      %v11223 = vpack.c.b16 %v11202, %v11201
      %v11224 = vpack.c.b16 %v11204, %v11203
      %v11225 = vpack.c.b16 %v11206, %v11205
      %v11226 = vpack.c.b16 %v11208, %v11207
      %v11227 = vpack.c.b16 %v11210, %v11209
      %v11228 = vpack.c.b16 %v11212, %v11211
      %v11231 = vunpack.c.l.b16 %v11179
      %v11232 = vunpack.c.l.b16 %v11180
      %v11233 = vpack.c.b16 %v11232, %v11231
      %v11236 = vsel %vm6897, %v11213, 0
      %v11239 = vsel %vm6897, %v11214, 0
      %v11242 = vsel %vm6897, %v11215, 0
      %v11245 = vsel %vm6897, %v11216, 0
      %v11248 = vsel %vm6897, %v11217, 0
      %v11251 = vsel %vm6897, %v11218, 0
      %v11254 = vsel %vm6897, %v11219, 0
      %v11257 = vsel %vm6897, %v11220, 0
      %v11260 = vsel %vm6897, %v11221, 0
      %v11263 = vsel %vm6897, %v11222, 0
      %v11266 = vsel %vm6897, %v11223, 0
      %v11269 = vsel %vm6897, %v11224, 0
      %v11272 = vsel %vm6897, %v11225, 0
      %v11275 = vsel %vm6897, %v11226, 0
      %v11278 = vsel %vm6897, %v11227, 0
      %v11281 = vsel %vm6897, %v11228, 0
      %11283 = vmatprep.subr.bf16.mxu0 0
      %11284 = vmatpush1.bf16.msra.mxu0 %v11233
      %11285 = vmatprep.subr.bf16.mxu0 0
      %11286 = vmatpush1.bf16.msra.mxu0 0
      %11287 = vmatprep.subr.bf16.mxu0 0
      %11288 = vmatpush1.bf16.msra.mxu0 0
      %11289 = vmatprep.subr.bf16.mxu0 0
      %11290 = vmatpush1.bf16.msra.mxu0 0
      %11291 = vmatprep.subr.bf16.mxu0 0
      %11292 = vmatpush1.bf16.msra.mxu0 0
      %11293 = vmatprep.subr.bf16.mxu0 0
      %11294 = vmatpush1.bf16.msra.mxu0 0
      %11295 = vmatprep.subr.bf16.mxu0 0
      %11296 = vmatpush1.bf16.msra.mxu0 0
      %11297 = vmatprep.subr.bf16.mxu0 0
      %11298 = vmatpush1.bf16.msra.mxu0 0
      %11299 = vmatprep.subr.bf16.mxu0 0
      %11300 = vmatpush1.bf16.msra.mxu0 0
      %11301 = vmatprep.subr.bf16.mxu0 0
      %11302 = vmatpush1.bf16.msra.mxu0 0
      %11303 = vmatprep.subr.bf16.mxu0 0
      %11304 = vmatpush1.bf16.msra.mxu0 0
      %11305 = vmatprep.subr.bf16.mxu0 0
      %11306 = vmatpush1.bf16.msra.mxu0 0
      %11307 = vmatprep.subr.bf16.mxu0 0
      %11308 = vmatpush1.bf16.msra.mxu0 0
      %11309 = vmatprep.subr.bf16.mxu0 0
      %11310 = vmatpush1.bf16.msra.mxu0 0
      %11311 = vmatprep.subr.bf16.mxu0 0
      %11312 = vmatpush1.bf16.msra.mxu0 0
      %11313 = vmatprep.subr.bf16.mxu0 0
      %11314 = vmatpush1.bf16.msra.mxu0 0
      %11315 = vmatprep.mubr.bf16.mxu0 0
      %11316 = vmatmul.mubr.bf16.gmra.mrb[0].mxu0 %v11236
      %v11317 = vpop.f32.mrb[0].mxu0
      %v11318 = vadd.f32 0.0, %v11317
      %v11319 = vpop.f32.mrb[0].mxu0
      %v11320 = vpop.f32.mrb[0].mxu0
      %v11321 = vadd.f32 0.0, %v11320
      %v11322 = vpop.f32.mrb[0].mxu0
      %11323 = vmatprep.mubr.bf16.mxu0 0
      %11324 = vmatmul.mubr.bf16.gmra.mrb[0].mxu0 %v11239
      %v11325 = vpop.f32.mrb[0].mxu0
      %v11326 = vadd.f32 0.0, %v11325
      %v11327 = vpop.f32.mrb[0].mxu0
      %v11328 = vpop.f32.mrb[0].mxu0
      %v11329 = vadd.f32 0.0, %v11328
      %v11330 = vpop.f32.mrb[0].mxu0
      %11331 = vmatprep.mubr.bf16.mxu0 0
      %11332 = vmatmul.mubr.bf16.gmra.mrb[0].mxu0 %v11242
      %v11333 = vpop.f32.mrb[0].mxu0
      %v11334 = vadd.f32 0.0, %v11333
      %v11335 = vpop.f32.mrb[0].mxu0
      %v11336 = vpop.f32.mrb[0].mxu0
      %v11337 = vadd.f32 0.0, %v11336
      %v11338 = vpop.f32.mrb[0].mxu0
      %11339 = vmatprep.mubr.bf16.mxu0 0
      %11340 = vmatmul.mubr.bf16.gmra.mrb[0].mxu0 %v11245
      %v11341 = vpop.f32.mrb[0].mxu0
      %v11342 = vadd.f32 0.0, %v11341
      %v11343 = vpop.f32.mrb[0].mxu0
      %v11344 = vpop.f32.mrb[0].mxu0
      %v11345 = vadd.f32 0.0, %v11344
      %v11346 = vpop.f32.mrb[0].mxu0
      %11347 = vmatprep.mubr.bf16.mxu0 0
      %11348 = vmatmul.mubr.bf16.gmra.mrb[0].mxu0 %v11248
      %v11349 = vpop.f32.mrb[0].mxu0
      %v11350 = vadd.f32 0.0, %v11349
      %v11351 = vpop.f32.mrb[0].mxu0
      %v11352 = vpop.f32.mrb[0].mxu0
      %v11353 = vadd.f32 0.0, %v11352
      %v11354 = vpop.f32.mrb[0].mxu0
      %11355 = vmatprep.mubr.bf16.mxu0 0
      %11356 = vmatmul.mubr.bf16.gmra.mrb[0].mxu0 %v11251
      %v11357 = vpop.f32.mrb[0].mxu0
      %v11358 = vadd.f32 0.0, %v11357
      %v11359 = vpop.f32.mrb[0].mxu0
      %v11360 = vpop.f32.mrb[0].mxu0
      %v11361 = vadd.f32 0.0, %v11360
      %v11362 = vpop.f32.mrb[0].mxu0
      %11363 = vmatprep.mubr.bf16.mxu0 0
      %11364 = vmatmul.mubr.bf16.gmra.mrb[0].mxu0 %v11254
      %v11365 = vpop.f32.mrb[0].mxu0
      %v11366 = vadd.f32 0.0, %v11365
      %v11367 = vpop.f32.mrb[0].mxu0
      %v11368 = vpop.f32.mrb[0].mxu0
      %v11369 = vadd.f32 0.0, %v11368
      %v11370 = vpop.f32.mrb[0].mxu0
      %11371 = vmatprep.mubr.bf16.mxu0 0
      %11372 = vmatmul.mubr.bf16.gmra.mrb[0].mxu0 %v11257
      %v11373 = vpop.f32.mrb[0].mxu0
      %v11374 = vadd.f32 0.0, %v11373
      %v11375 = vpop.f32.mrb[0].mxu0
      %v11376 = vpop.f32.mrb[0].mxu0
      %v11377 = vadd.f32 0.0, %v11376
      %v11378 = vpop.f32.mrb[0].mxu0
      %11379 = vmatprep.mubr.bf16.mxu0 0
      %11380 = vmatmul.mubr.bf16.gmra.mrb[0].mxu0 %v11260
      %v11381 = vpop.f32.mrb[0].mxu0
      %v11382 = vadd.f32 0.0, %v11381
      %v11383 = vpop.f32.mrb[0].mxu0
      %v11384 = vpop.f32.mrb[0].mxu0
      %v11385 = vadd.f32 0.0, %v11384
      %v11386 = vpop.f32.mrb[0].mxu0
      %11387 = vmatprep.mubr.bf16.mxu0 0
      %11388 = vmatmul.mubr.bf16.gmra.mrb[0].mxu0 %v11263
      %v11389 = vpop.f32.mrb[0].mxu0
      %v11390 = vadd.f32 0.0, %v11389
      %v11391 = vpop.f32.mrb[0].mxu0
      %v11392 = vpop.f32.mrb[0].mxu0
      %v11393 = vadd.f32 0.0, %v11392
      %v11394 = vpop.f32.mrb[0].mxu0
      %11395 = vmatprep.mubr.bf16.mxu0 0
      %11396 = vmatmul.mubr.bf16.gmra.mrb[0].mxu0 %v11266
      %v11397 = vpop.f32.mrb[0].mxu0
      %v11398 = vadd.f32 0.0, %v11397
      %v11399 = vpop.f32.mrb[0].mxu0
      %v11400 = vpop.f32.mrb[0].mxu0
      %v11401 = vadd.f32 0.0, %v11400
      %v11402 = vpop.f32.mrb[0].mxu0
      %11403 = vmatprep.mubr.bf16.mxu0 0
      %11404 = vmatmul.mubr.bf16.gmra.mrb[0].mxu0 %v11269
      %v11405 = vpop.f32.mrb[0].mxu0
      %v11406 = vadd.f32 0.0, %v11405
      %v11407 = vpop.f32.mrb[0].mxu0
      %v11408 = vpop.f32.mrb[0].mxu0
      %v11409 = vadd.f32 0.0, %v11408
      %v11410 = vpop.f32.mrb[0].mxu0
      %11411 = vmatprep.mubr.bf16.mxu0 0
      %11412 = vmatmul.mubr.bf16.gmra.mrb[0].mxu0 %v11272
      %v11413 = vpop.f32.mrb[0].mxu0
      %v11414 = vadd.f32 0.0, %v11413
      %v11415 = vpop.f32.mrb[0].mxu0
      %v11416 = vpop.f32.mrb[0].mxu0
      %v11417 = vadd.f32 0.0, %v11416
      %v11418 = vpop.f32.mrb[0].mxu0
      %11419 = vmatprep.mubr.bf16.mxu0 0
      %11420 = vmatmul.mubr.bf16.gmra.mrb[0].mxu0 %v11275
      %v11421 = vpop.f32.mrb[0].mxu0
      %v11422 = vadd.f32 0.0, %v11421
      %v11423 = vpop.f32.mrb[0].mxu0
      %v11424 = vpop.f32.mrb[0].mxu0
      %v11425 = vadd.f32 0.0, %v11424
      %v11426 = vpop.f32.mrb[0].mxu0
      %11427 = vmatprep.mubr.bf16.mxu0 0
      %11428 = vmatmul.mubr.bf16.gmra.mrb[0].mxu0 %v11278
      %v11429 = vpop.f32.mrb[0].mxu0
      %v11430 = vadd.f32 0.0, %v11429
      %v11431 = vpop.f32.mrb[0].mxu0
      %v11432 = vpop.f32.mrb[0].mxu0
      %v11433 = vadd.f32 0.0, %v11432
      %v11434 = vpop.f32.mrb[0].mxu0
      %11435 = vmatprep.mubr.bf16.mxu0 0
      %11436 = vmatmul.mubr.bf16.gmra.mrb[0].mxu0 %v11281
      %v11437 = vpop.f32.mrb[0].mxu0
      %v11438 = vadd.f32 0.0, %v11437
      %v11439 = vpop.f32.mrb[0].mxu0
      %v11440 = vpop.f32.mrb[0].mxu0
      %v11441 = vadd.f32 0.0, %v11440
      %v11442 = vpop.f32.mrb[0].mxu0
      %11443 = vdwg.mxu0
      %v11444 = vadd.f32 %v10970, %v11318
      %v11445 = vadd.f32 %v10971, %v11321
      %v11446 = vadd.f32 %v10972, %v11326
      %v11447 = vadd.f32 %v10973, %v11329
      %v11448 = vadd.f32 %v10974, %v11334
      %v11449 = vadd.f32 %v10975, %v11337
      %v11450 = vadd.f32 %v10976, %v11342
      %v11451 = vadd.f32 %v10977, %v11345
      %v11452 = vadd.f32 %v10978, %v11350
      %v11453 = vadd.f32 %v10979, %v11353
      %v11454 = vadd.f32 %v10980, %v11358
      %v11455 = vadd.f32 %v10981, %v11361
      %v11456 = vadd.f32 %v10982, %v11366
      %v11457 = vadd.f32 %v10983, %v11369
      %v11458 = vadd.f32 %v10984, %v11374
      %v11459 = vadd.f32 %v10985, %v11377
      %v11460 = vadd.f32 %v10986, %v11382
      %v11461 = vadd.f32 %v10987, %v11385
      %v11462 = vadd.f32 %v10988, %v11390
      %v11463 = vadd.f32 %v10989, %v11393
      %v11464 = vadd.f32 %v10990, %v11398
      %v11465 = vadd.f32 %v10991, %v11401
      %v11466 = vadd.f32 %v10992, %v11406
      %v11467 = vadd.f32 %v10993, %v11409
      %v11468 = vadd.f32 %v10994, %v11414
      %v11469 = vadd.f32 %v10995, %v11417
      %v11470 = vadd.f32 %v10996, %v11422
      %v11471 = vadd.f32 %v10997, %v11425
      %v11472 = vadd.f32 %v10998, %v11430
      %v11473 = vadd.f32 %v10999, %v11433
      %v11474 = vadd.f32 %v11000, %v11438
      %v11475 = vadd.f32 %v11001, %v11441
      %v11476 = vsel %vm6897, %v11444, 0.0
      %v11477 = vsel %vm6897, %v11445, 0.0
      %v11478 = vadd.f32 %v11476, %v11477
      %v11479 = vsel %vm6897, %v11446, 0.0
      %v11480 = vadd.f32 %v11478, %v11479
      %v11481 = vsel %vm6897, %v11447, 0.0
      %v11482 = vadd.f32 %v11480, %v11481
      %v11483 = vsel %vm6897, %v11448, 0.0
      %v11484 = vadd.f32 %v11482, %v11483
      %v11485 = vsel %vm6897, %v11449, 0.0
      %v11486 = vadd.f32 %v11484, %v11485
      %v11487 = vsel %vm6897, %v11450, 0.0
      %v11488 = vadd.f32 %v11486, %v11487
      %v11489 = vsel %vm6897, %v11451, 0.0
      %v11490 = vadd.f32 %v11488, %v11489
      %v11491 = vsel %vm6897, %v11452, 0.0
      %v11492 = vadd.f32 %v11490, %v11491
      %v11493 = vsel %vm6897, %v11453, 0.0
      %v11494 = vadd.f32 %v11492, %v11493
      %v11495 = vsel %vm6897, %v11454, 0.0
      %v11496 = vadd.f32 %v11494, %v11495
      %v11497 = vsel %vm6897, %v11455, 0.0
      %v11498 = vadd.f32 %v11496, %v11497
      %v11499 = vsel %vm6897, %v11456, 0.0
      %v11500 = vadd.f32 %v11498, %v11499
      %v11501 = vsel %vm6897, %v11457, 0.0
      %v11502 = vadd.f32 %v11500, %v11501
      %v11503 = vsel %vm6897, %v11458, 0.0
      %v11504 = vadd.f32 %v11502, %v11503
      %v11505 = vsel %vm6897, %v11459, 0.0
      %v11506 = vadd.f32 %v11504, %v11505
      %v11507 = vsel %vm6897, %v11460, 0.0
      %v11508 = vadd.f32 %v11506, %v11507
      %v11509 = vsel %vm6897, %v11461, 0.0
      %v11510 = vadd.f32 %v11508, %v11509
      %v11511 = vsel %vm6897, %v11462, 0.0
      %v11512 = vadd.f32 %v11510, %v11511
      %v11513 = vsel %vm6897, %v11463, 0.0
      %v11514 = vadd.f32 %v11512, %v11513
      %v11515 = vsel %vm6897, %v11464, 0.0
      %v11516 = vadd.f32 %v11514, %v11515
      %v11517 = vsel %vm6897, %v11465, 0.0
      %v11518 = vadd.f32 %v11516, %v11517
      %v11519 = vsel %vm6897, %v11466, 0.0
      %v11520 = vadd.f32 %v11518, %v11519
      %v11521 = vsel %vm6897, %v11467, 0.0
      %v11522 = vadd.f32 %v11520, %v11521
      %v11523 = vsel %vm6897, %v11468, 0.0
      %v11524 = vadd.f32 %v11522, %v11523
      %v11525 = vsel %vm6897, %v11469, 0.0
      %v11526 = vadd.f32 %v11524, %v11525
      %v11527 = vsel %vm6897, %v11470, 0.0
      %v11528 = vadd.f32 %v11526, %v11527
      %v11529 = vsel %vm6897, %v11471, 0.0
      %v11530 = vadd.f32 %v11528, %v11529
      %v11531 = vsel %vm6897, %v11472, 0.0
      %v11532 = vadd.f32 %v11530, %v11531
      %v11533 = vsel %vm6897, %v11473, 0.0
      %v11534 = vadd.f32 %v11532, %v11533
      %v11535 = vsel %vm6897, %v11474, 0.0
      %v11536 = vadd.f32 %v11534, %v11535
      %v11537 = vsel %vm6897, %v11475, 0.0
      %v11538 = vadd.f32 %v11536, %v11537
      %v11539 = vrot.slane %v11538, 4
      %v11540 = vadd.f32 %v11538, %v11539
      %v11541 = vrot.slane %v11540, 2
      %v11542 = vadd.f32 %v11540, %v11541
      %v11543 = vrot.slane %v11542, 1
      %v11544 = vadd.f32 %v11542, %v11543
      %v11545 = vmul.f32 %v11544, 0.00390625
      %v11546 = vld [vmem:[%s11] sm:$0xff]
      %v11547 = vld [vmem:[%s11 + $0x8] sm:$0xff]
      %v11549 = vsel %vm6897, %v11545, 0
      %11551 = vmatprep.subr.mxu0 0.0
      %11552 = vmatpush1.msra.mxu0 %v11546
      %11553 = vmatprep.subr.mxu0 0.0
      %11554 = vmatpush1.msra.mxu0 %v11547
      %11555 = vmatprep.subr.mxu0 0.0
      %11556 = vmatpush1.msra.mxu0 0.0
      %11557 = vmatprep.subr.mxu0 0.0
      %11558 = vmatpush1.msra.mxu0 0.0
      %11559 = vmatprep.subr.mxu0 0.0
      %11560 = vmatpush1.msra.mxu0 0.0
      %11561 = vmatprep.subr.mxu0 0.0
      %11562 = vmatpush1.msra.mxu0 0.0
      %11563 = vmatprep.subr.mxu0 0.0
      %11564 = vmatpush1.msra.mxu0 0.0
      %11565 = vmatprep.subr.mxu0 0.0
      %11566 = vmatpush1.msra.mxu0 0.0
      %11567 = vmatprep.subr.mxu0 0.0
      %11568 = vmatpush1.msra.mxu0 0.0
      %11569 = vmatprep.subr.mxu0 0.0
      %11570 = vmatpush1.msra.mxu0 0.0
      %11571 = vmatprep.subr.mxu0 0.0
      %11572 = vmatpush1.msra.mxu0 0.0
      %11573 = vmatprep.subr.mxu0 0.0
      %11574 = vmatpush1.msra.mxu0 0.0
      %11575 = vmatprep.subr.mxu0 0.0
      %11576 = vmatpush1.msra.mxu0 0.0
      %11577 = vmatprep.subr.mxu0 0.0
      %11578 = vmatpush1.msra.mxu0 0.0
      %11579 = vmatprep.subr.mxu0 0.0
      %11580 = vmatpush1.msra.mxu0 0.0
      %11581 = vmatprep.subr.mxu0 0.0
      %11582 = vmatpush1.msra.mxu0 0.0
      %11583 = vmatprep.subr.mxu0 0.0
      %11584 = vmatpush1.msra.mxu0 0.0
      %11585 = vmatprep.subr.mxu0 0.0
      %11586 = vmatpush1.msra.mxu0 0.0
      %11587 = vmatprep.subr.mxu0 0.0
      %11588 = vmatpush1.msra.mxu0 0.0
      %11589 = vmatprep.subr.mxu0 0.0
      %11590 = vmatpush1.msra.mxu0 0.0
      %11591 = vmatprep.subr.mxu0 0.0
      %11592 = vmatpush1.msra.mxu0 0.0
      %11593 = vmatprep.subr.mxu0 0.0
      %11594 = vmatpush1.msra.mxu0 0.0
      %11595 = vmatprep.subr.mxu0 0.0
      %11596 = vmatpush1.msra.mxu0 0.0
      %11597 = vmatprep.subr.mxu0 0.0
      %11598 = vmatpush1.msra.mxu0 0.0
      %11599 = vmatprep.subr.mxu0 0.0
      %11600 = vmatpush1.msra.mxu0 0.0
      %11601 = vmatprep.subr.mxu0 0.0
      %11602 = vmatpush1.msra.mxu0 0.0
      %11603 = vmatprep.subr.mxu0 0.0
      %11604 = vmatpush1.msra.mxu0 0.0
      %11605 = vmatprep.subr.mxu0 0.0
      %11606 = vmatpush1.msra.mxu0 0.0
      %11607 = vmatprep.subr.mxu0 0.0
      %11608 = vmatpush1.msra.mxu0 0.0
      %11609 = vmatprep.subr.mxu0 0.0
      %11610 = vmatpush1.msra.mxu0 0.0
      %11611 = vmatprep.subr.mxu0 0.0
      %11612 = vmatpush1.msra.mxu0 0.0
      %11613 = vmatprep.subr.mxu0 0.0
      %11614 = vmatpush1.msra.mxu0 0.0
      %11615 = vmatprep.mubr.f32.mxu0 0.0
      %11616 = vmatmul.mubr.f32.gmra.mrb[0].mxu0 %v11549
      %v11617 = vpop.f32.mrb[0].mxu0
      %v11618 = vadd.f32 0.0, %v11617
      %v11619 = vpop.f32.mrb[0].mxu0
      %11620 = vdwg.mxu0
      %v11621 = vmax.f32 %v11618, 0.0
      %v11622 = vld [vmem:[%s12] sm:$0x3]
      %vm11623 = vcmask 15360
      %v11625 = vsel %vm11623, %v11621, 0
      %vm11627 = vcmask 1041408
      %v11629 = vsel %vm11627, %v11622, 0
      %11631 = vmatprep.subr.mxu0 0.0
      %11632 = vmatpush1.msra.mxu0 %v11629
      %11633 = vmatprep.subr.mxu0 0.0
      %11634 = vmatpush1.msra.mxu0 0.0
      %11635 = vmatprep.subr.mxu0 0.0
      %11636 = vmatpush1.msra.mxu0 0.0
      %11637 = vmatprep.subr.mxu0 0.0
      %11638 = vmatpush1.msra.mxu0 0.0
      %11639 = vmatprep.subr.mxu0 0.0
      %11640 = vmatpush1.msra.mxu0 0.0
      %11641 = vmatprep.subr.mxu0 0.0
      %11642 = vmatpush1.msra.mxu0 0.0
      %11643 = vmatprep.subr.mxu0 0.0
      %11644 = vmatpush1.msra.mxu0 0.0
      %11645 = vmatprep.subr.mxu0 0.0
      %11646 = vmatpush1.msra.mxu0 0.0
      %11647 = vmatprep.subr.mxu0 0.0
      %11648 = vmatpush1.msra.mxu0 0.0
      %11649 = vmatprep.subr.mxu0 0.0
      %11650 = vmatpush1.msra.mxu0 0.0
      %11651 = vmatprep.subr.mxu0 0.0
      %11652 = vmatpush1.msra.mxu0 0.0
      %11653 = vmatprep.subr.mxu0 0.0
      %11654 = vmatpush1.msra.mxu0 0.0
      %11655 = vmatprep.subr.mxu0 0.0
      %11656 = vmatpush1.msra.mxu0 0.0
      %11657 = vmatprep.subr.mxu0 0.0
      %11658 = vmatpush1.msra.mxu0 0.0
      %11659 = vmatprep.subr.mxu0 0.0
      %11660 = vmatpush1.msra.mxu0 0.0
      %11661 = vmatprep.subr.mxu0 0.0
      %11662 = vmatpush1.msra.mxu0 0.0
      %11663 = vmatprep.subr.mxu0 0.0
      %11664 = vmatpush1.msra.mxu0 0.0
      %11665 = vmatprep.subr.mxu0 0.0
      %11666 = vmatpush1.msra.mxu0 0.0
      %11667 = vmatprep.subr.mxu0 0.0
      %11668 = vmatpush1.msra.mxu0 0.0
      %11669 = vmatprep.subr.mxu0 0.0
      %11670 = vmatpush1.msra.mxu0 0.0
      %11671 = vmatprep.subr.mxu0 0.0
      %11672 = vmatpush1.msra.mxu0 0.0
      %11673 = vmatprep.subr.mxu0 0.0
      %11674 = vmatpush1.msra.mxu0 0.0
      %11675 = vmatprep.subr.mxu0 0.0
      %11676 = vmatpush1.msra.mxu0 0.0
      %11677 = vmatprep.subr.mxu0 0.0
      %11678 = vmatpush1.msra.mxu0 0.0
      %11679 = vmatprep.subr.mxu0 0.0
      %11680 = vmatpush1.msra.mxu0 0.0
      %11681 = vmatprep.subr.mxu0 0.0
      %11682 = vmatpush1.msra.mxu0 0.0
      %11683 = vmatprep.subr.mxu0 0.0
      %11684 = vmatpush1.msra.mxu0 0.0
      %11685 = vmatprep.subr.mxu0 0.0
      %11686 = vmatpush1.msra.mxu0 0.0
      %11687 = vmatprep.subr.mxu0 0.0
      %11688 = vmatpush1.msra.mxu0 0.0
      %11689 = vmatprep.subr.mxu0 0.0
      %11690 = vmatpush1.msra.mxu0 0.0
      %11691 = vmatprep.subr.mxu0 0.0
      %11692 = vmatpush1.msra.mxu0 0.0
      %11693 = vmatprep.subr.mxu0 0.0
      %11694 = vmatpush1.msra.mxu0 0.0
      %11695 = vmatprep.mubr.f32.mxu0 0.0
      %11696 = vmatmul.mubr.f32.gmra.mrb[0].mxu0 %v11625
      %v11697 = vpop.f32.mrb[0].mxu0
      %v11698 = vadd.f32 0.0, %v11697
      %v11699 = vpop.f32.mrb[0].mxu0
      %11700 = vdwg.mxu0
      %v11701 = vxor.u32 %v11698, 2147483648
      %v11702 = vmul.f32 %v11701, 1.442695
      %v11703 = vpow.pop %v11702
      %v11704 = vadd.f32 %v11703, 1.0
      %v11705 = vrcp.pop %v11704
      %v11706 = vmul.f32 1.0, %v11705
      %v11707 = vlaneseq
      %v11708 = vshrl.u32 %v11707, 7
      %v11709 = vsub.s32 0, %v11708
      %v11710 = vrot.slane %v11706, %v11709
      %v11711 = vmul.f32 %v11444, %v11710
      %v11712 = vmul.f32 %v11445, %v11710
      %v11713 = vmul.f32 %v11446, %v11710
      %v11714 = vmul.f32 %v11447, %v11710
      %v11715 = vmul.f32 %v11448, %v11710
      %v11716 = vmul.f32 %v11449, %v11710
      %v11717 = vmul.f32 %v11450, %v11710
      %v11718 = vmul.f32 %v11451, %v11710
      %v11719 = vmul.f32 %v11452, %v11710
      %v11720 = vmul.f32 %v11453, %v11710
      %v11721 = vmul.f32 %v11454, %v11710
      %v11722 = vmul.f32 %v11455, %v11710
      %v11723 = vmul.f32 %v11456, %v11710
      %v11724 = vmul.f32 %v11457, %v11710
      %v11725 = vmul.f32 %v11458, %v11710
      %v11726 = vmul.f32 %v11459, %v11710
      %v11727 = vmul.f32 %v11460, %v11710
      %v11728 = vmul.f32 %v11461, %v11710
      %v11729 = vmul.f32 %v11462, %v11710
      %v11730 = vmul.f32 %v11463, %v11710
      %v11731 = vmul.f32 %v11464, %v11710
      %v11732 = vmul.f32 %v11465, %v11710
      %v11733 = vmul.f32 %v11466, %v11710
      %v11734 = vmul.f32 %v11467, %v11710
      %v11735 = vmul.f32 %v11468, %v11710
      %v11736 = vmul.f32 %v11469, %v11710
      %v11737 = vmul.f32 %v11470, %v11710
      %v11738 = vmul.f32 %v11471, %v11710
      %v11739 = vmul.f32 %v11472, %v11710
      %v11740 = vmul.f32 %v11473, %v11710
      %v11741 = vmul.f32 %v11474, %v11710
      %v11742 = vmul.f32 %v11475, %v11710
      %11743 = vxpose.xlu0.b32.start [1/16] %v11711, 128
      %11744 = vxpose.xlu0.b32.cont [2/16] %v11712, 128
      %11745 = vxpose.xlu0.b32.cont [3/16] %v11713, 128
      %11746 = vxpose.xlu0.b32.cont [4/16] %v11714, 128
      %11747 = vxpose.xlu0.b32.cont [5/16] %v11715, 128
      %11748 = vxpose.xlu0.b32.cont [6/16] %v11716, 128
      %11749 = vxpose.xlu0.b32.cont [7/16] %v11717, 128
      %11750 = vxpose.xlu0.b32.cont [8/16] %v11718, 128
      %11751 = vxpose.xlu0.b32.cont [9/16] %v11719, 128
      %11752 = vxpose.xlu0.b32.cont [10/16] %v11720, 128
      %11753 = vxpose.xlu0.b32.cont [11/16] %v11721, 128
      %11754 = vxpose.xlu0.b32.cont [12/16] %v11722, 128
      %11755 = vxpose.xlu0.b32.cont [13/16] %v11723, 128
      %11756 = vxpose.xlu0.b32.cont [14/16] %v11724, 128
      %11757 = vxpose.xlu0.b32.cont [15/16] %v11725, 128
      %11758 = vxpose.xlu0.b32.end [16/16] %v11726, 128
      %v11759 = vpop.trf.xlu0
      %v11760 = vpop.trf.xlu0
      %v11761 = vpop.trf.xlu0
      %v11762 = vpop.trf.xlu0
      %v11763 = vpop.trf.xlu0
      %v11764 = vpop.trf.xlu0
      %v11765 = vpop.trf.xlu0
      %v11766 = vpop.trf.xlu0
      %v11767 = vpop.trf.xlu0
      %v11768 = vpop.trf.xlu0
      %v11769 = vpop.trf.xlu0
      %v11770 = vpop.trf.xlu0
      %v11771 = vpop.trf.xlu0
      %v11772 = vpop.trf.xlu0
      %v11773 = vpop.trf.xlu0
      %v11774 = vpop.trf.xlu0
      %11775 = vxpose.xlu0.b32.start [1/16] %v11727, 128
      %11776 = vxpose.xlu0.b32.cont [2/16] %v11728, 128
      %11777 = vxpose.xlu0.b32.cont [3/16] %v11729, 128
      %11778 = vxpose.xlu0.b32.cont [4/16] %v11730, 128
      %11779 = vxpose.xlu0.b32.cont [5/16] %v11731, 128
      %11780 = vxpose.xlu0.b32.cont [6/16] %v11732, 128
      %11781 = vxpose.xlu0.b32.cont [7/16] %v11733, 128
      %11782 = vxpose.xlu0.b32.cont [8/16] %v11734, 128
      %11783 = vxpose.xlu0.b32.cont [9/16] %v11735, 128
      %11784 = vxpose.xlu0.b32.cont [10/16] %v11736, 128
      %11785 = vxpose.xlu0.b32.cont [11/16] %v11737, 128
      %11786 = vxpose.xlu0.b32.cont [12/16] %v11738, 128
      %11787 = vxpose.xlu0.b32.cont [13/16] %v11739, 128
      %11788 = vxpose.xlu0.b32.cont [14/16] %v11740, 128
      %11789 = vxpose.xlu0.b32.cont [15/16] %v11741, 128
      %11790 = vxpose.xlu0.b32.end [16/16] %v11742, 128
      %v11791 = vpop.trf.xlu0
      %v11792 = vpop.trf.xlu0
      %v11793 = vpop.trf.xlu0
      %v11794 = vpop.trf.xlu0
      %v11795 = vpop.trf.xlu0
      %v11796 = vpop.trf.xlu0
      %v11797 = vpop.trf.xlu0
      %v11798 = vpop.trf.xlu0
      %v11799 = vpop.trf.xlu0
      %v11800 = vpop.trf.xlu0
      %v11801 = vpop.trf.xlu0
      %v11802 = vpop.trf.xlu0
      %v11803 = vpop.trf.xlu0
      %v11804 = vpop.trf.xlu0
      %v11805 = vpop.trf.xlu0
      %v11806 = vpop.trf.xlu0
      %11807 = vst [vmem:[%s442] sm:$0xff] %v11759
      %11808 = vst [vmem:[%s442 + $0x8] sm:$0xff] %v11791
      %11809 = vst [vmem:[%s442 + $0x10] sm:$0xff] %v11760
      %11810 = vst [vmem:[%s442 + $0x18] sm:$0xff] %v11792
      %p11811 = scmp.lt.s32.totalorder %s26, 1
      %s11812 = scalar_select %p11811, %s26, 1
      %s11813 = smul.addr %s11812, 4
      %s11814 = smul.addr %s11813, 8
      %s11815 = scalar_lea.vmem %s13, %s11814
      // Predicated region
      $region73: #{resnet_block_forward.1} parent=71 // pred_check
        %p11816 = pneg %p322
      $region74: #{resnet_block_forward.1} parent=71 // pred_check_branch
        %11818 = sbr.rel (%p11816) target = $region76
      $region75: #{resnet_block_forward.1} parent=71 // pred_region
        _
      $region76: #{resnet_block_forward.1} parent=71 // pred_fallthru
        _
    $region72: #{resnet_block_forward.1} parent=5 // pred_fallthru
      _
    %p11819 = scmp.le.s32.totalorder 2, %s21
    // Predicated region
    $region77: #{resnet_block_forward.1} parent=5 // pred_check
      %p11820 = pneg %p11819
    $region78: #{resnet_block_forward.1} parent=5 // pred_check_branch
      %11822 = sbr.rel (%p11820) target = $region80
    $region79: #{resnet_block_forward.1} parent=5 // pred_region
      %s11823 = ssub.s32 %s21, 2
      // Predicated region
      $region81: #{resnet_block_forward.1} parent=79 // pred_check
        %p11824 = pneg %p328
      $region82: #{resnet_block_forward.1} parent=79 // pred_check_branch
        %11826 = sbr.rel (%p11824) target = $region84
      $region83: #{resnet_block_forward.1} parent=79 // pred_region
        %p11827 = scmp.lt.s32.totalorder %s27, 1
        %s11828 = scalar_select %p11827, %s27, 1
        %s11829 = smul.addr %s11828, 4
        %s11830 = smul.addr %s11829, 8
        %s11831 = scalar_lea.vmem %s13, %s11830
      $region84: #{resnet_block_forward.1} parent=79 // pred_fallthru
        _
    $region80: #{resnet_block_forward.1} parent=5 // pred_fallthru
      _
  $region6: #{resnet_block_forward.1} parent=0 // loop_footer
    %s25 = sadd.s32 1, %s21
  $region7: #{resnet_block_forward.1} parent=0 // loop_footer_branch
    %20 = sbr.rel target = $region3
  $region8: #{resnet_block_forward.1} parent=0 // loop_exit
    _

</llo_original>
